<compile_context>
chip_gen: v7x
topology: tpu7x:2x2x1
jax: 0.10.0
libtpu: 0.0.40
codegen_flags: <defaults>
</compile_context>

<pallas_src>
import functools

import jax
import jax.numpy as jnp
import numpy as np
from jax.experimental import pallas as pl
from jax.experimental.pallas import tpu as pltpu

HIDDEN = 128           # config.hidden_size (forced: over_all_input_size = 256 = 2*H)
NUM_LAYERS = 2         # config.num_layers (fixed at 2 in this fused implementation)
NUM_CLASSES = 4        # config.num_classes
OBJ_FEAT = 8           # config.object_info_size
LANE_FEAT = 6          # config.lane_info_size
TRAFFIC_FEAT = 6       # config.traffic_info_size
SPEED_FEAT = 4         # config.self_speed_info_size
SPEED_MID = 8          # config.self_speed_middle_info_size
MID1, MID2 = 100, 50   # middle_fc_feature1 / middle_fc_feature2

DIN_PAD = 8            # layer-0 input features zero-padded to this (>= max feature size)
_NROW = 6              # 3 stacks x 2 directions batched through the recurrence

# ---- packed classifier-head buffer layout (f32, lane-aligned) ----
# head_a: (2H, 128)  cols [0:MID1] = over_all_fc weight (2H, 100), col MID1 = att weight
_ATT_COL = MID1
# head_b: (112, 128) rows[0:100] x cols[0:50] = middle_fc1 W, rows[0:50] x cols[50:54] =
#         middle_fc2 W, row 104 = over_all_fc b, row 105 = middle_fc1 b, row 106 = middle_fc2 b
_HEAD_B_ROWS = 112
_B1_ROW, _B2_ROW, _B3_ROW = 104, 105, 106


def _vmem_spec():
    return pl.BlockSpec(memory_space=pltpu.MemorySpace.VMEM)


def _any_spec():
    return pl.BlockSpec(memory_space=pl.ANY)


def _bf16_round(x):
    return x.astype(jnp.bfloat16).astype(jnp.float32)


# ----------------------- in-kernel 6-way batched bidirectional recurrence --------------
def _recurrence(gx, whh, blk_mask, *, hidden, t_max, t_lens):
    """Run one LSTM layer for 3 stacks x 2 directions simultaneously.

    gx:   list of 3 (t_max, 8H) f32 arrays, cols = [fwd i,f,g,o | bwd i,f,g,o]
          (input projection + combined bias, hoisted out of the recurrence).
    whh:  (6H, 4H) bf16 value; rows [r*H:(r+1)*H] = weight_hh^T of row r = 2*stack+dir.
    blk_mask: (6, 6H) bf16 constant, 1 where column-block == row (masked block-row LHS).
    Returns 3 per-stack (t_max, 2H) f32 outputs ([fwd | bwd]); padded timesteps are 0.
    """
    H = hidden
    h6 = jnp.zeros((_NROW, H), jnp.float32)
    c6 = jnp.zeros((_NROW, H), jnp.float32)

    hs = []
    for k in range(t_max):
        # Assemble this step's pre-projected gates (reverse direction folded into
        # static index arithmetic) and the static per-row validity pattern.
        rows, valid = [], []
        for s in range(3):
            tf = k                 # forward direction processes timestep k
            tb = t_max - 1 - k     # backward direction processes timestep t_max-1-k
            rows.append(gx[s][tf:tf + 1, 0:4 * H])
            rows.append(gx[s][tb:tb + 1, 4 * H:8 * H])
            valid.append(tf < t_lens[s])
            valid.append(tb < t_lens[s])
        gx_k = jnp.concatenate(rows, axis=0)                                  # (6, 4H)

        # Masked block-row LHS: row r holds h6[r] in columns [r*H:(r+1)*H], zeros elsewhere,
        # so one (6,6H)@(6H,4H) MXU matmul computes all six h @ whh products at once.
        h_b = h6.astype(jnp.bfloat16)
        lhs = jnp.concatenate([h_b] * _NROW, axis=1) * blk_mask               # (6, 6H) bf16
        g = gx_k + jnp.dot(lhs, whh, preferred_element_type=jnp.float32)      # (6, 4H) f32

        i = jax.nn.sigmoid(g[:, 0:H])
        f = jax.nn.sigmoid(g[:, H:2 * H])
        gg = jnp.tanh(g[:, 2 * H:3 * H])
        o = jax.nn.sigmoid(g[:, 3 * H:4 * H])
        c_new = f * c6 + i * gg
        h_new = o * jnp.tanh(c_new)

        # Padded timesteps carry (h, c) through unchanged (validity is static here,
        # so the carry is pure static row re-assembly, no runtime select needed).
        if all(valid):
            h6, c6 = h_new, c_new
        else:
            h6 = jnp.concatenate(
                [h_new[r:r + 1] if valid[r] else h6[r:r + 1] for r in range(_NROW)], axis=0)
            c6 = jnp.concatenate(
                [c_new[r:r + 1] if valid[r] else c6[r:r + 1] for r in range(_NROW)], axis=0)
        hs.append(h6)

    # Re-assemble per-stack (t_max, 2H) = [fwd(t) | bwd(t)] outputs.
    outs = []
    for s in range(3):
        rows = []
        for t in range(t_max):
            if t < t_lens[s]:
                fwd = hs[t][2 * s:2 * s + 1, :]
                bwd = hs[t_max - 1 - t][2 * s + 1:2 * s + 2, :]
                rows.append(jnp.concatenate([fwd, bwd], axis=1))
            else:
                rows.append(jnp.zeros((1, 2 * H), jnp.float32))
        outs.append(jnp.concatenate(rows, axis=0))
    return outs


# ------------------------------ whole-model fused kernel -------------------------------
def _model_kernel(x_ref, wih0_ref, whh0_ref, bias_ref, head_a_ref, head_b_ref,
                  wih1_hbm, whh1_hbm,
                  out_ref, alpha_ref,
                  wih1_vmem, whh1_vmem, dma_sem,
                  *, hidden, t_max, t_lens, counts):
    H = hidden

    # Kick off the layer-1 weight DMAs (HBM -> VMEM scratch) so they overlap the
    # layer-0 projections + recurrence.
    cp_wih1 = pltpu.make_async_copy(wih1_hbm, wih1_vmem, dma_sem.at[0])
    cp_whh1 = pltpu.make_async_copy(whh1_hbm, whh1_vmem, dma_sem.at[1])
    cp_wih1.start()
    cp_whh1.start()

    # Constant block-row selection mask for the batched recurrent matmul.
    col_idx = jax.lax.broadcasted_iota(jnp.int32, (_NROW, _NROW * H), 1)
    row_id = jax.lax.broadcasted_iota(jnp.int32, (_NROW, _NROW * H), 0)
    lo = row_id * H
    blk_mask = jnp.where((col_idx >= lo) & (col_idx < lo + H), 1.0, 0.0).astype(jnp.bfloat16)

    bias = bias_ref[...]                                                      # (2, 3, 8H) f32

    # --- layer 0: fused (fwd|bwd) input projection per stack, then batched recurrence ---
    gx0 = []
    for s in range(3):
        x_s = x_ref[s].astype(jnp.bfloat16)                                   # (t_max, DIN_PAD)
        gx0.append(jnp.dot(x_s, wih0_ref[s], preferred_element_type=jnp.float32)
                   + bias[0, s:s + 1, :])                                     # (t_max, 8H)
    whh0 = whh0_ref[...]                                                      # (6H, 4H) bf16
    y0 = _recurrence(gx0, whh0, blk_mask, hidden=H, t_max=t_max, t_lens=t_lens)

    # --- layer 1 (weights prefetched above; wait only now) ---
    # TODO(synk): nn.LSTM inter-layer dropout is training-only; identity in eval mode.
    cp_wih1.wait()
    cp_whh1.wait()
    gx1 = []
    for s in range(3):
        gx1.append(jnp.dot(y0[s].astype(jnp.bfloat16), wih1_vmem[s],
                           preferred_element_type=jnp.float32)
                   + bias[1, s:s + 1, :])                                     # (t_max, 8H)
    whh1 = whh1_vmem[...]
    y1 = _recurrence(gx1, whh1, blk_mask, hidden=H, t_max=t_max, t_lens=t_lens)

    # --- attention over the first counts[s] objects of each kind (static slices) ---
    n_mv, n_lane, n_tl = counts
    objs = jnp.concatenate([y1[0][:n_mv], y1[1][:n_lane], y1[2][:n_tl]], axis=0)   # (N, 2H)
    attw = head_a_ref[:, _ATT_COL:_ATT_COL + 1]                                    # (2H, 1)
    imp = jnp.dot(objs, attw, preferred_element_type=jnp.float32)                  # (N, 1)
    m = jnp.max(imp, axis=0, keepdims=True)
    e = jnp.exp(imp - m)
    alpha = e / jnp.sum(e, axis=0, keepdims=True)
    alpha_ref[...] = alpha
    ctx = jnp.sum(objs * alpha, axis=0, keepdims=True)                             # (1, 2H)

    # --- classifier head (tiny, kept f32) ---
    w1 = head_a_ref[:, 0:MID1]                                                     # (2H, 100)
    b1 = head_b_ref[_B1_ROW:_B1_ROW + 1, 0:MID1]
    w2 = head_b_ref[0:MID1, 0:MID2]
    b2 = head_b_ref[_B2_ROW:_B2_ROW + 1, 0:MID2]
    w3 = head_b_ref[0:MID2, MID2:MID2 + NUM_CLASSES]
    b3 = head_b_ref[_B3_ROW:_B3_ROW + 1, 0:NUM_CLASSES]

    h1 = jnp.maximum(jnp.dot(ctx, w1, preferred_element_type=jnp.float32) + b1, 0.0)
    # nn.Dropout(p=0.5) is identity in eval mode.
    h2 = jnp.dot(h1, w2, preferred_element_type=jnp.float32) + b2
    out_ref[...] = jnp.dot(h2, w3, preferred_element_type=jnp.float32) + b3


# ------------------------------------------ wrapper ------------------------------------
def model_forward(packed, self_speed_info, all_objects_info, counts):
    del self_speed_info
    # TODO(synk): the reference computes self_speed_fc(self_speed_info) but never uses
    # the result downstream; the dead computation (and its kernel launch) is dropped.
    mv, lane, tl = all_objects_info
    t_lens = (mv.shape[0], lane.shape[0], tl.shape[0])
    t_max = max(t_lens)
    n_mv, n_lane, n_tl = (int(c) for c in counts)
    assert n_mv <= t_lens[0] and n_lane <= t_lens[1] and n_tl <= t_lens[2]
    N = n_mv + n_lane + n_tl
    # TODO(synk): counts / sequence lengths are compile-time constants; new (T, counts)
    # combinations recompile.  For a serving loop, fix T_MAX and move the masks to
    # scalar-prefetch SMEM counts instead.

    # Pack the three ragged inputs into one zero-padded (3, t_max, DIN_PAD) buffer.
    x_all = jnp.zeros((3, t_max, DIN_PAD), jnp.float32)
    x_all = x_all.at[0, :t_lens[0], :mv.shape[1]].set(mv)
    x_all = x_all.at[1, :t_lens[1], :lane.shape[1]].set(lane)
    x_all = x_all.at[2, :t_lens[2], :tl.shape[1]].set(tl)

    kernel = functools.partial(_model_kernel, hidden=HIDDEN, t_max=t_max,
                               t_lens=t_lens, counts=(n_mv, n_lane, n_tl))

    out, alpha = pl.pallas_call(
        kernel,
        out_shape=(jax.ShapeDtypeStruct((1, NUM_CLASSES), jnp.float32),
                   jax.ShapeDtypeStruct((N, 1), jnp.float32)),
        in_specs=[_vmem_spec(), _vmem_spec(), _vmem_spec(), _vmem_spec(),
                  _vmem_spec(), _vmem_spec(), _any_spec(), _any_spec()],
        out_specs=(_vmem_spec(), _vmem_spec()),
        scratch_shapes=[
            pltpu.VMEM((3, 2 * HIDDEN, 8 * HIDDEN), jnp.bfloat16),   # wih1 prefetch buffer
            pltpu.VMEM((6 * HIDDEN, 4 * HIDDEN), jnp.bfloat16),      # whh (layer 1) buffer
            pltpu.SemaphoreType.DMA((2,)),
        ],
        compiler_params=pltpu.CompilerParams(vmem_limit_bytes=32 * 1024 * 1024),
    )(x_all, packed['wih0'], packed['whh0'], packed['bias'],
      packed['head_a'], packed['head_b'], packed['wih1'], packed['whh1'])
    return out, alpha


# --------------------------------------- parameters ------------------------------------
def init_params(key):
    ks = iter(jax.random.split(key, 64))

    def rnd(shape, scale=0.1):
        return scale * jax.random.normal(next(ks), shape, dtype=jnp.float32)

    def rnd_w(shape, scale=0.1):
        # LSTM weights are shipped to the kernel in bf16; keep the master copy bf16-rounded
        # so the pure-JAX reference sees exactly the same values.
        return _bf16_round(rnd(shape, scale))

    def lstm_stack_params(in_size):
        return dict(
            wih0=rnd_w((2, in_size, 4 * HIDDEN)),       # [dir]: layer-0 weight_ih^T (i,f,g,o)
            wih1=rnd_w((2, 2 * HIDDEN, 4 * HIDDEN)),    # [dir]: layer-1 weight_ih^T
            whh=rnd_w((2, 2, HIDDEN, 4 * HIDDEN)),      # [layer, dir]: weight_hh^T
            b=rnd((2, 2, 1, 4 * HIDDEN)),               # [layer, dir]: b_ih + b_hh combined
        )

    # NOTE: the reference inits attention weights to zeros; small deterministic randoms
    # are used instead so the softmax/attention path is exercised non-trivially.
    return dict(
        att_w=rnd((2 * HIDDEN, 1)),                     # self.moveable_object_weight (column)
        w1=rnd((2 * HIDDEN, MID1)), b1=rnd((1, MID1)),          # over_all_fc
        w2=rnd((MID1, MID2)), b2=rnd((1, MID2)),                # middle_fc1
        w3=rnd((MID2, NUM_CLASSES)), b3=rnd((1, NUM_CLASSES)),  # middle_fc2
        mv=lstm_stack_params(OBJ_FEAT),
        lane=lstm_stack_params(LANE_FEAT),
        tl=lstm_stack_params(TRAFFIC_FEAT),
    )


def pack_params(params):
    """Build the consolidated, (8,128)-aligned device buffers (done once at init).

    TODO(synk): a converter from a real PyTorch checkpoint must transpose weight_ih/_hh
    and pre-sum b_ih + b_hh into this layout.
    """
    H = HIDDEN
    names = ('mv', 'lane', 'tl')
    wih0 = jnp.zeros((3, DIN_PAD, 8 * H), jnp.bfloat16)
    wih1 = jnp.zeros((3, 2 * H, 8 * H), jnp.bfloat16)
    whh = jnp.zeros((2, 6 * H, 4 * H), jnp.bfloat16)
    bias = jnp.zeros((2, 3, 8 * H), jnp.float32)
    for s, name in enumerate(names):
        p = params[name]
        din = p['wih0'].shape[1]
        assert din <= DIN_PAD
        for d in range(2):
            cols = slice(d * 4 * H, (d + 1) * 4 * H)
            wih0 = wih0.at[s, :din, cols].set(p['wih0'][d].astype(jnp.bfloat16))
            wih1 = wih1.at[s, :, cols].set(p['wih1'][d].astype(jnp.bfloat16))
            r = 2 * s + d
            for layer in range(2):
                whh = whh.at[layer, r * H:(r + 1) * H, :].set(
                    p['whh'][layer, d].astype(jnp.bfloat16))
                bias = bias.at[layer, s, cols].set(p['b'][layer, d, 0])

    head_a = jnp.zeros((2 * H, 128), jnp.float32)
    head_a = head_a.at[:, :MID1].set(params['w1'])
    head_a = head_a.at[:, _ATT_COL:_ATT_COL + 1].set(params['att_w'])

    head_b = jnp.zeros((_HEAD_B_ROWS, 128), jnp.float32)
    head_b = head_b.at[:MID1, :MID2].set(params['w2'])
    head_b = head_b.at[:MID2, MID2:MID2 + NUM_CLASSES].set(params['w3'])
    head_b = head_b.at[_B1_ROW, :MID1].set(params['b1'][0])
    head_b = head_b.at[_B2_ROW, :MID2].set(params['b2'][0])
    head_b = head_b.at[_B3_ROW, :NUM_CLASSES].set(params['b3'][0])

    return dict(wih0=wih0, wih1=wih1, whh0=whh[0], whh1=whh[1],
                bias=bias, head_a=head_a, head_b=head_b)


# --------------------------- pure-JAX reference (PyTorch-equivalent) --------------------
def _ref_lstm_dir(x, wih, whh, b, reverse):
    T = x.shape[0]
    h = jnp.zeros((1, HIDDEN), jnp.float32)
    c = jnp.zeros((1, HIDDEN), jnp.float32)
    outs = [None] * T
    steps = range(T - 1, -1, -1) if reverse else range(T)
    for t in steps:
        g = (jnp.dot(_bf16_round(x[t:t + 1]), _bf16_round(wih)) +
             jnp.dot(_bf16_round(h), _bf16_round(whh)) + b)
        i = jax.nn.sigmoid(g[:, 0:HIDDEN])
        f = jax.nn.sigmoid(g[:, HIDDEN:2 * HIDDEN])
        gg = jnp.tanh(g[:, 2 * HIDDEN:3 * HIDDEN])
        o = jax.nn.sigmoid(g[:, 3 * HIDDEN:4 * HIDDEN])
        c = f * c + i * gg
        h = o * jnp.tanh(c)
        outs[t] = h
    return jnp.concatenate(outs, axis=0)


def _ref_bidir_layer(x, p, layer):
    wih = p['wih0'] if layer == 0 else p['wih1']
    yf = _ref_lstm_dir(x, wih[0], p['whh'][layer, 0], p['b'][layer, 0], False)
    yb = _ref_lstm_dir(x, wih[1], p['whh'][layer, 1], p['b'][layer, 1], True)
    return jnp.concatenate([yf, yb], axis=1)


def reference_forward(params, all_objects_info, *, counts):
    ys = []
    for name, x in zip(('mv', 'lane', 'tl'), all_objects_info):
        p = params[name]
        y0 = _ref_bidir_layer(x, p, 0)
        y1 = _ref_bidir_layer(y0, p, 1)
        ys.append(y1)
    n_mv, n_lane, n_tl = counts
    objs = jnp.concatenate([ys[0][:n_mv], ys[1][:n_lane], ys[2][:n_tl]], axis=0)
    imp = jnp.dot(objs, params['att_w'])
    alpha = jax.nn.softmax(imp, axis=0)
    ctx = jnp.sum(objs * alpha, axis=0, keepdims=True)
    h1 = jnp.maximum(jnp.dot(ctx, params['w1']) + params['b1'], 0.0)
    h2 = jnp.dot(h1, params['w2']) + params['b2']
    out = jnp.dot(h2, params['w3']) + params['b3']
    return out, alpha


if __name__ == "__main__":
    key = jax.random.PRNGKey(0)
    pk, dk = jax.random.split(key)
    params = init_params(pk)
    packed = pack_params(params)

    k1, k2, k3, k4 = jax.random.split(dk, 4)
    self_speed = jax.random.normal(k1, (SPEED_FEAT,), dtype=jnp.float32)
    mv_info = jax.random.normal(k2, (6, OBJ_FEAT), dtype=jnp.float32)
    lane_info = jax.random.normal(k3, (5, LANE_FEAT), dtype=jnp.float32)
    tl_info = jax.random.normal(k4, (4, TRAFFIC_FEAT), dtype=jnp.float32)
    counts = (5, 4, 3)  # (moveable, lane, traffic-light) object counts for this image

    out, alpha = model_forward(packed, self_speed, (mv_info, lane_info, tl_info), counts)
    jax.block_until_ready((out, alpha))
    assert out.shape == (1, NUM_CLASSES)
    assert alpha.shape == (sum(counts), 1)

    # Numerical check against a straightforward JAX transcription of the PyTorch forward.
    ref_fn = jax.jit(functools.partial(reference_forward, counts=counts))
    ref_out, ref_alpha = ref_fn(params, (mv_info, lane_info, tl_info))
    jax.block_until_ready((ref_out, ref_alpha))
    assert np.allclose(np.asarray(out), np.asarray(ref_out), atol=5e-2, rtol=0), \
        (np.asarray(out), np.asarray(ref_out))
    assert np.allclose(np.asarray(alpha), np.asarray(ref_alpha), atol=2e-2, rtol=0), \
        (np.asarray(alpha).ravel(), np.asarray(ref_alpha).ravel())
    print("KERNEL_OK")
</pallas_src>

<mosaic_0001>
module attributes {stable_mosaic.version = 11 : i64} {
  func.func @_model_kernel(%arg0: memref<3x6x8xf32, #tpu.memory_space<vmem>>, %arg1: memref<3x8x1024xbf16, #tpu.memory_space<vmem>>, %arg2: memref<768x512xbf16, #tpu.memory_space<vmem>>, %arg3: memref<2x3x1024xf32, #tpu.memory_space<vmem>>, %arg4: memref<256x128xf32, #tpu.memory_space<vmem>>, %arg5: memref<112x128xf32, #tpu.memory_space<vmem>>, %arg6: memref<3x256x1024xbf16, #tpu.memory_space<any>>, %arg7: memref<768x512xbf16, #tpu.memory_space<any>>, %arg8: memref<1x4xf32, #tpu.memory_space<vmem>>, %arg9: memref<12x1xf32, #tpu.memory_space<vmem>>, %arg10: memref<3x256x1024xbf16, #tpu.memory_space<vmem>>, %arg11: memref<768x512xbf16, #tpu.memory_space<vmem>>, %arg12: memref<2x!tpu.dma_semaphore, #tpu.memory_space<semaphore_mem>>) attributes {dimension_semantics = [], scalar_prefetch = 0 : i64, scratch_operands = 3 : i64, tpu.core_type = #tpu.core_type<tc>} {
    %c0_i32 = arith.constant 0 : i32
    %0 = tpu.memref_slice %arg12[%c0_i32] : memref<2x!tpu.dma_semaphore, #tpu.memory_space<semaphore_mem>> -> memref<1x!tpu.dma_semaphore, #tpu.memory_space<semaphore_mem>>
    %1 = tpu.memref_squeeze %0 : memref<1x!tpu.dma_semaphore, #tpu.memory_space<semaphore_mem>> -> memref<!tpu.dma_semaphore, #tpu.memory_space<semaphore_mem>>
    tpu.enqueue_dma source(%arg6 : memref<3x256x1024xbf16, #tpu.memory_space<any>>) target(%arg10 : memref<3x256x1024xbf16, #tpu.memory_space<vmem>>) target_semaphore(%1 : memref<!tpu.dma_semaphore, #tpu.memory_space<semaphore_mem>>)
    %c1_i32 = arith.constant 1 : i32
    %2 = tpu.memref_slice %arg12[%c1_i32] : memref<2x!tpu.dma_semaphore, #tpu.memory_space<semaphore_mem>> -> memref<1x!tpu.dma_semaphore, #tpu.memory_space<semaphore_mem>>
    %3 = tpu.memref_squeeze %2 : memref<1x!tpu.dma_semaphore, #tpu.memory_space<semaphore_mem>> -> memref<!tpu.dma_semaphore, #tpu.memory_space<semaphore_mem>>
    tpu.enqueue_dma source(%arg7 : memref<768x512xbf16, #tpu.memory_space<any>>) target(%arg11 : memref<768x512xbf16, #tpu.memory_space<vmem>>) target_semaphore(%3 : memref<!tpu.dma_semaphore, #tpu.memory_space<semaphore_mem>>)
    %4 = tpu.iota {dimensions = array<i32: 1>} : vector<6x768xi32>
    %5 = tpu.iota {dimensions = array<i32: 0>} : vector<6x768xi32>
    %c128_i32 = arith.constant 128 : i32
    %6 = vector.broadcast %c128_i32 : i32 to vector<6x768xi32>
    %7 = arith.muli %5, %6 : vector<6x768xi32>
    %8 = arith.cmpi sge, %4, %7 : vector<6x768xi32>
    %c128_i32_0 = arith.constant 128 : i32
    %9 = vector.broadcast %c128_i32_0 : i32 to vector<6x768xi32>
    %10 = arith.addi %7, %9 : vector<6x768xi32>
    %11 = arith.cmpi slt, %4, %10 : vector<6x768xi32>
    %12 = arith.andi %8, %11 : vector<6x768xi1>
    %cst = arith.constant 1.000000e+00 : f32
    %cst_1 = arith.constant 0.000000e+00 : f32
    %13 = vector.broadcast %cst : f32 to vector<6x768xf32>
    %14 = vector.broadcast %cst_1 : f32 to vector<6x768xf32>
    %15 = arith.select %12, %13, %14 : vector<6x768xi1>, vector<6x768xf32>
    %16 = arith.truncf %15 : vector<6x768xf32> to vector<6x768xbf16>
    %c0 = arith.constant 0 : index
    %c0_2 = arith.constant 0 : index
    %c0_3 = arith.constant 0 : index
    %17 = vector.load %arg3[%c0, %c0_2, %c0_3] : memref<2x3x1024xf32, #tpu.memory_space<vmem>>, vector<2x3x1024xf32>
    %c0_4 = arith.constant 0 : index
    %c0_5 = arith.constant 0 : index
    %c0_6 = arith.constant 0 : index
    %18 = vector.load %arg0[%c0_4, %c0_5, %c0_6] : memref<3x6x8xf32, #tpu.memory_space<vmem>>, vector<1x6x8xf32>
    %19 = vector.shape_cast %18 : vector<1x6x8xf32> to vector<6x8xf32>
    %20 = arith.truncf %19 : vector<6x8xf32> to vector<6x8xbf16>
    %c0_7 = arith.constant 0 : index
    %c0_8 = arith.constant 0 : index
    %c0_9 = arith.constant 0 : index
    %21 = vector.load %arg1[%c0_7, %c0_8, %c0_9] : memref<3x8x1024xbf16, #tpu.memory_space<vmem>>, vector<1x8x1024xbf16>
    %22 = vector.shape_cast %21 : vector<1x8x1024xbf16> to vector<8x1024xbf16>
    %cst_10 = arith.constant dense<0.000000e+00> : vector<6x1024xf32>
    %23 = tpu.matmul %20, %22, %cst_10 {dimension_numbers = #tpu.dot_dimension_numbers<[1], [0], [0], [1], [0, 0, 1, 1], [], []>} : vector<6x8xbf16>, vector<8x1024xbf16>, vector<6x1024xf32> -> vector<6x1024xf32>
    %24 = vector.extract_strided_slice %17 {offsets = [0, 0, 0], sizes = [1, 1, 1024], strides = [1, 1, 1]} : vector<2x3x1024xf32> to vector<1x1x1024xf32>
    %25 = vector.shape_cast %24 : vector<1x1x1024xf32> to vector<1x1024xf32>
    %26 = vector.broadcast %25 : vector<1x1024xf32> to vector<6x1024xf32>
    %27 = arith.addf %23, %26 : vector<6x1024xf32>
    %c1 = arith.constant 1 : index
    %c0_11 = arith.constant 0 : index
    %c0_12 = arith.constant 0 : index
    %28 = vector.load %arg0[%c1, %c0_11, %c0_12] : memref<3x6x8xf32, #tpu.memory_space<vmem>>, vector<1x6x8xf32>
    %29 = vector.shape_cast %28 : vector<1x6x8xf32> to vector<6x8xf32>
    %30 = arith.truncf %29 : vector<6x8xf32> to vector<6x8xbf16>
    %c1_13 = arith.constant 1 : index
    %c0_14 = arith.constant 0 : index
    %c0_15 = arith.constant 0 : index
    %31 = vector.load %arg1[%c1_13, %c0_14, %c0_15] : memref<3x8x1024xbf16, #tpu.memory_space<vmem>>, vector<1x8x1024xbf16>
    %32 = vector.shape_cast %31 : vector<1x8x1024xbf16> to vector<8x1024xbf16>
    %cst_16 = arith.constant dense<0.000000e+00> : vector<6x1024xf32>
    %33 = tpu.matmul %30, %32, %cst_16 {dimension_numbers = #tpu.dot_dimension_numbers<[1], [0], [0], [1], [0, 0, 1, 1], [], []>} : vector<6x8xbf16>, vector<8x1024xbf16>, vector<6x1024xf32> -> vector<6x1024xf32>
    %34 = vector.extract_strided_slice %17 {offsets = [0, 1, 0], sizes = [1, 1, 1024], strides = [1, 1, 1]} : vector<2x3x1024xf32> to vector<1x1x1024xf32>
    %35 = vector.shape_cast %34 : vector<1x1x1024xf32> to vector<1x1024xf32>
    %36 = vector.broadcast %35 : vector<1x1024xf32> to vector<6x1024xf32>
    %37 = arith.addf %33, %36 : vector<6x1024xf32>
    %c2 = arith.constant 2 : index
    %c0_17 = arith.constant 0 : index
    %c0_18 = arith.constant 0 : index
    %38 = vector.load %arg0[%c2, %c0_17, %c0_18] : memref<3x6x8xf32, #tpu.memory_space<vmem>>, vector<1x6x8xf32>
    %39 = vector.shape_cast %38 : vector<1x6x8xf32> to vector<6x8xf32>
    %40 = arith.truncf %39 : vector<6x8xf32> to vector<6x8xbf16>
    %c2_19 = arith.constant 2 : index
    %c0_20 = arith.constant 0 : index
    %c0_21 = arith.constant 0 : index
    %41 = vector.load %arg1[%c2_19, %c0_20, %c0_21] : memref<3x8x1024xbf16, #tpu.memory_space<vmem>>, vector<1x8x1024xbf16>
    %42 = vector.shape_cast %41 : vector<1x8x1024xbf16> to vector<8x1024xbf16>
    %cst_22 = arith.constant dense<0.000000e+00> : vector<6x1024xf32>
    %43 = tpu.matmul %40, %42, %cst_22 {dimension_numbers = #tpu.dot_dimension_numbers<[1], [0], [0], [1], [0, 0, 1, 1], [], []>} : vector<6x8xbf16>, vector<8x1024xbf16>, vector<6x1024xf32> -> vector<6x1024xf32>
    %44 = vector.extract_strided_slice %17 {offsets = [0, 2, 0], sizes = [1, 1, 1024], strides = [1, 1, 1]} : vector<2x3x1024xf32> to vector<1x1x1024xf32>
    %45 = vector.shape_cast %44 : vector<1x1x1024xf32> to vector<1x1024xf32>
    %46 = vector.broadcast %45 : vector<1x1024xf32> to vector<6x1024xf32>
    %47 = arith.addf %43, %46 : vector<6x1024xf32>
    %c0_23 = arith.constant 0 : index
    %c0_24 = arith.constant 0 : index
    %48 = vector.load %arg2[%c0_23, %c0_24] : memref<768x512xbf16, #tpu.memory_space<vmem>>, vector<768x512xbf16>
    %cst_25 = arith.constant 0.000000e+00 : f32
    %49 = vector.broadcast %cst_25 : f32 to vector<6x128xf32>
    %cst_26 = arith.constant 0.000000e+00 : f32
    %50 = vector.broadcast %cst_26 : f32 to vector<6x128xf32>
    %51 = vector.extract_strided_slice %27 {offsets = [0, 0], sizes = [1, 512], strides = [1, 1]} : vector<6x1024xf32> to vector<1x512xf32>
    %52 = vector.extract_strided_slice %27 {offsets = [5, 512], sizes = [1, 512], strides = [1, 1]} : vector<6x1024xf32> to vector<1x512xf32>
    %53 = vector.extract_strided_slice %37 {offsets = [0, 0], sizes = [1, 512], strides = [1, 1]} : vector<6x1024xf32> to vector<1x512xf32>
    %54 = vector.extract_strided_slice %37 {offsets = [5, 512], sizes = [1, 512], strides = [1, 1]} : vector<6x1024xf32> to vector<1x512xf32>
    %55 = vector.extract_strided_slice %47 {offsets = [0, 0], sizes = [1, 512], strides = [1, 1]} : vector<6x1024xf32> to vector<1x512xf32>
    %56 = vector.extract_strided_slice %47 {offsets = [5, 512], sizes = [1, 512], strides = [1, 1]} : vector<6x1024xf32> to vector<1x512xf32>
    %57 = tpu.concatenate %51, %52, %53, %54, %55, %56 in 0 : vector<1x512xf32>, vector<1x512xf32>, vector<1x512xf32>, vector<1x512xf32>, vector<1x512xf32>, vector<1x512xf32> -> vector<6x512xf32>
    %58 = arith.truncf %49 : vector<6x128xf32> to vector<6x128xbf16>
    %59 = tpu.concatenate %58, %58, %58, %58, %58, %58 in 1 : vector<6x128xbf16>, vector<6x128xbf16>, vector<6x128xbf16>, vector<6x128xbf16>, vector<6x128xbf16>, vector<6x128xbf16> -> vector<6x768xbf16>
    %60 = arith.mulf %59, %16 : vector<6x768xbf16>
    %cst_27 = arith.constant dense<0.000000e+00> : vector<6x512xf32>
    %61 = tpu.matmul %60, %48, %cst_27 {dimension_numbers = #tpu.dot_dimension_numbers<[1], [0], [0], [1], [0, 0, 1, 1], [], []>} : vector<6x768xbf16>, vector<768x512xbf16>, vector<6x512xf32> -> vector<6x512xf32>
    %62 = arith.addf %57, %61 : vector<6x512xf32>
    %63 = vector.extract_strided_slice %62 {offsets = [0, 0], sizes = [6, 128], strides = [1, 1]} : vector<6x512xf32> to vector<6x128xf32>
    %64 = arith.negf %63 : vector<6x128xf32>
    %65 = math.exp %64 : vector<6x128xf32>
    %cst_28 = arith.constant 1.000000e+00 : f32
    %66 = vector.broadcast %cst_28 : f32 to vector<6x128xf32>
    %67 = arith.addf %66, %65 : vector<6x128xf32>
    %68 = arith.divf %66, %67 : vector<6x128xf32>
    %69 = vector.extract_strided_slice %62 {offsets = [0, 128], sizes = [6, 128], strides = [1, 1]} : vector<6x512xf32> to vector<6x128xf32>
    %70 = arith.negf %69 : vector<6x128xf32>
    %71 = math.exp %70 : vector<6x128xf32>
    %cst_29 = arith.constant 1.000000e+00 : f32
    %72 = vector.broadcast %cst_29 : f32 to vector<6x128xf32>
    %73 = arith.addf %72, %71 : vector<6x128xf32>
    %74 = arith.divf %72, %73 : vector<6x128xf32>
    %75 = vector.extract_strided_slice %62 {offsets = [0, 256], sizes = [6, 128], strides = [1, 1]} : vector<6x512xf32> to vector<6x128xf32>
    %76 = math.tanh %75 : vector<6x128xf32>
    %77 = vector.extract_strided_slice %62 {offsets = [0, 384], sizes = [6, 128], strides = [1, 1]} : vector<6x512xf32> to vector<6x128xf32>
    %78 = arith.negf %77 : vector<6x128xf32>
    %79 = math.exp %78 : vector<6x128xf32>
    %cst_30 = arith.constant 1.000000e+00 : f32
    %80 = vector.broadcast %cst_30 : f32 to vector<6x128xf32>
    %81 = arith.addf %80, %79 : vector<6x128xf32>
    %82 = arith.divf %80, %81 : vector<6x128xf32>
    %83 = arith.mulf %74, %50 : vector<6x128xf32>
    %84 = arith.mulf %68, %76 : vector<6x128xf32>
    %85 = arith.addf %83, %84 : vector<6x128xf32>
    %86 = math.tanh %85 : vector<6x128xf32>
    %87 = arith.mulf %82, %86 : vector<6x128xf32>
    %88 = vector.extract_strided_slice %87 {offsets = [0, 0], sizes = [1, 128], strides = [1, 1]} : vector<6x128xf32> to vector<1x128xf32>
    %89 = vector.extract_strided_slice %87 {offsets = [1, 0], sizes = [1, 128], strides = [1, 1]} : vector<6x128xf32> to vector<1x128xf32>
    %90 = vector.extract_strided_slice %87 {offsets = [2, 0], sizes = [1, 128], strides = [1, 1]} : vector<6x128xf32> to vector<1x128xf32>
    %91 = vector.extract_strided_slice %49 {offsets = [3, 0], sizes = [1, 128], strides = [1, 1]} : vector<6x128xf32> to vector<1x128xf32>
    %92 = vector.extract_strided_slice %87 {offsets = [4, 0], sizes = [1, 128], strides = [1, 1]} : vector<6x128xf32> to vector<1x128xf32>
    %93 = vector.extract_strided_slice %49 {offsets = [5, 0], sizes = [1, 128], strides = [1, 1]} : vector<6x128xf32> to vector<1x128xf32>
    %94 = tpu.concatenate %88, %89, %90, %91, %92, %93 in 0 : vector<1x128xf32>, vector<1x128xf32>, vector<1x128xf32>, vector<1x128xf32>, vector<1x128xf32>, vector<1x128xf32> -> vector<6x128xf32>
    %95 = vector.extract_strided_slice %85 {offsets = [0, 0], sizes = [1, 128], strides = [1, 1]} : vector<6x128xf32> to vector<1x128xf32>
    %96 = vector.extract_strided_slice %85 {offsets = [1, 0], sizes = [1, 128], strides = [1, 1]} : vector<6x128xf32> to vector<1x128xf32>
    %97 = vector.extract_strided_slice %85 {offsets = [2, 0], sizes = [1, 128], strides = [1, 1]} : vector<6x128xf32> to vector<1x128xf32>
    %98 = vector.extract_strided_slice %50 {offsets = [3, 0], sizes = [1, 128], strides = [1, 1]} : vector<6x128xf32> to vector<1x128xf32>
    %99 = vector.extract_strided_slice %85 {offsets = [4, 0], sizes = [1, 128], strides = [1, 1]} : vector<6x128xf32> to vector<1x128xf32>
    %100 = vector.extract_strided_slice %50 {offsets = [5, 0], sizes = [1, 128], strides = [1, 1]} : vector<6x128xf32> to vector<1x128xf32>
    %101 = tpu.concatenate %95, %96, %97, %98, %99, %100 in 0 : vector<1x128xf32>, vector<1x128xf32>, vector<1x128xf32>, vector<1x128xf32>, vector<1x128xf32>, vector<1x128xf32> -> vector<6x128xf32>
    %102 = vector.extract_strided_slice %27 {offsets = [1, 0], sizes = [1, 512], strides = [1, 1]} : vector<6x1024xf32> to vector<1x512xf32>
    %103 = vector.extract_strided_slice %27 {offsets = [4, 512], sizes = [1, 512], strides = [1, 1]} : vector<6x1024xf32> to vector<1x512xf32>
    %104 = vector.extract_strided_slice %37 {offsets = [1, 0], sizes = [1, 512], strides = [1, 1]} : vector<6x1024xf32> to vector<1x512xf32>
    %105 = vector.extract_strided_slice %37 {offsets = [4, 512], sizes = [1, 512], strides = [1, 1]} : vector<6x1024xf32> to vector<1x512xf32>
    %106 = vector.extract_strided_slice %47 {offsets = [1, 0], sizes = [1, 512], strides = [1, 1]} : vector<6x1024xf32> to vector<1x512xf32>
    %107 = vector.extract_strided_slice %47 {offsets = [4, 512], sizes = [1, 512], strides = [1, 1]} : vector<6x1024xf32> to vector<1x512xf32>
    %108 = tpu.concatenate %102, %103, %104, %105, %106, %107 in 0 : vector<1x512xf32>, vector<1x512xf32>, vector<1x512xf32>, vector<1x512xf32>, vector<1x512xf32>, vector<1x512xf32> -> vector<6x512xf32>
    %109 = arith.truncf %94 : vector<6x128xf32> to vector<6x128xbf16>
    %110 = tpu.concatenate %109, %109, %109, %109, %109, %109 in 1 : vector<6x128xbf16>, vector<6x128xbf16>, vector<6x128xbf16>, vector<6x128xbf16>, vector<6x128xbf16>, vector<6x128xbf16> -> vector<6x768xbf16>
    %111 = arith.mulf %110, %16 : vector<6x768xbf16>
    %cst_31 = arith.constant dense<0.000000e+00> : vector<6x512xf32>
    %112 = tpu.matmul %111, %48, %cst_31 {dimension_numbers = #tpu.dot_dimension_numbers<[1], [0], [0], [1], [0, 0, 1, 1], [], []>} : vector<6x768xbf16>, vector<768x512xbf16>, vector<6x512xf32> -> vector<6x512xf32>
    %113 = arith.addf %108, %112 : vector<6x512xf32>
    %114 = vector.extract_strided_slice %113 {offsets = [0, 0], sizes = [6, 128], strides = [1, 1]} : vector<6x512xf32> to vector<6x128xf32>
    %115 = arith.negf %114 : vector<6x128xf32>
    %116 = math.exp %115 : vector<6x128xf32>
    %cst_32 = arith.constant 1.000000e+00 : f32
    %117 = vector.broadcast %cst_32 : f32 to vector<6x128xf32>
    %118 = arith.addf %117, %116 : vector<6x128xf32>
    %119 = arith.divf %117, %118 : vector<6x128xf32>
    %120 = vector.extract_strided_slice %113 {offsets = [0, 128], sizes = [6, 128], strides = [1, 1]} : vector<6x512xf32> to vector<6x128xf32>
    %121 = arith.negf %120 : vector<6x128xf32>
    %122 = math.exp %121 : vector<6x128xf32>
    %cst_33 = arith.constant 1.000000e+00 : f32
    %123 = vector.broadcast %cst_33 : f32 to vector<6x128xf32>
    %124 = arith.addf %123, %122 : vector<6x128xf32>
    %125 = arith.divf %123, %124 : vector<6x128xf32>
    %126 = vector.extract_strided_slice %113 {offsets = [0, 256], sizes = [6, 128], strides = [1, 1]} : vector<6x512xf32> to vector<6x128xf32>
    %127 = math.tanh %126 : vector<6x128xf32>
    %128 = vector.extract_strided_slice %113 {offsets = [0, 384], sizes = [6, 128], strides = [1, 1]} : vector<6x512xf32> to vector<6x128xf32>
    %129 = arith.negf %128 : vector<6x128xf32>
    %130 = math.exp %129 : vector<6x128xf32>
    %cst_34 = arith.constant 1.000000e+00 : f32
    %131 = vector.broadcast %cst_34 : f32 to vector<6x128xf32>
    %132 = arith.addf %131, %130 : vector<6x128xf32>
    %133 = arith.divf %131, %132 : vector<6x128xf32>
    %134 = arith.mulf %125, %101 : vector<6x128xf32>
    %135 = arith.mulf %119, %127 : vector<6x128xf32>
    %136 = arith.addf %134, %135 : vector<6x128xf32>
    %137 = math.tanh %136 : vector<6x128xf32>
    %138 = arith.mulf %133, %137 : vector<6x128xf32>
    %139 = vector.extract_strided_slice %138 {offsets = [0, 0], sizes = [1, 128], strides = [1, 1]} : vector<6x128xf32> to vector<1x128xf32>
    %140 = vector.extract_strided_slice %138 {offsets = [1, 0], sizes = [1, 128], strides = [1, 1]} : vector<6x128xf32> to vector<1x128xf32>
    %141 = vector.extract_strided_slice %138 {offsets = [2, 0], sizes = [1, 128], strides = [1, 1]} : vector<6x128xf32> to vector<1x128xf32>
    %142 = vector.extract_strided_slice %138 {offsets = [3, 0], sizes = [1, 128], strides = [1, 1]} : vector<6x128xf32> to vector<1x128xf32>
    %143 = vector.extract_strided_slice %138 {offsets = [4, 0], sizes = [1, 128], strides = [1, 1]} : vector<6x128xf32> to vector<1x128xf32>
    %144 = vector.extract_strided_slice %94 {offsets = [5, 0], sizes = [1, 128], strides = [1, 1]} : vector<6x128xf32> to vector<1x128xf32>
    %145 = tpu.concatenate %139, %140, %141, %142, %143, %144 in 0 : vector<1x128xf32>, vector<1x128xf32>, vector<1x128xf32>, vector<1x128xf32>, vector<1x128xf32>, vector<1x128xf32> -> vector<6x128xf32>
    %146 = vector.extract_strided_slice %136 {offsets = [0, 0], sizes = [1, 128], strides = [1, 1]} : vector<6x128xf32> to vector<1x128xf32>
    %147 = vector.extract_strided_slice %136 {offsets = [1, 0], sizes = [1, 128], strides = [1, 1]} : vector<6x128xf32> to vector<1x128xf32>
    %148 = vector.extract_strided_slice %136 {offsets = [2, 0], sizes = [1, 128], strides = [1, 1]} : vector<6x128xf32> to vector<1x128xf32>
    %149 = vector.extract_strided_slice %136 {offsets = [3, 0], sizes = [1, 128], strides = [1, 1]} : vector<6x128xf32> to vector<1x128xf32>
    %150 = vector.extract_strided_slice %136 {offsets = [4, 0], sizes = [1, 128], strides = [1, 1]} : vector<6x128xf32> to vector<1x128xf32>
    %151 = vector.extract_strided_slice %101 {offsets = [5, 0], sizes = [1, 128], strides = [1, 1]} : vector<6x128xf32> to vector<1x128xf32>
    %152 = tpu.concatenate %146, %147, %148, %149, %150, %151 in 0 : vector<1x128xf32>, vector<1x128xf32>, vector<1x128xf32>, vector<1x128xf32>, vector<1x128xf32>, vector<1x128xf32> -> vector<6x128xf32>
    %153 = vector.extract_strided_slice %27 {offsets = [2, 0], sizes = [1, 512], strides = [1, 1]} : vector<6x1024xf32> to vector<1x512xf32>
    %154 = vector.extract_strided_slice %27 {offsets = [3, 512], sizes = [1, 512], strides = [1, 1]} : vector<6x1024xf32> to vector<1x512xf32>
    %155 = vector.extract_strided_slice %37 {offsets = [2, 0], sizes = [1, 512], strides = [1, 1]} : vector<6x1024xf32> to vector<1x512xf32>
    %156 = vector.extract_strided_slice %37 {offsets = [3, 512], sizes = [1, 512], strides = [1, 1]} : vector<6x1024xf32> to vector<1x512xf32>
    %157 = vector.extract_strided_slice %47 {offsets = [2, 0], sizes = [1, 512], strides = [1, 1]} : vector<6x1024xf32> to vector<1x512xf32>
    %158 = vector.extract_strided_slice %47 {offsets = [3, 512], sizes = [1, 512], strides = [1, 1]} : vector<6x1024xf32> to vector<1x512xf32>
    %159 = tpu.concatenate %153, %154, %155, %156, %157, %158 in 0 : vector<1x512xf32>, vector<1x512xf32>, vector<1x512xf32>, vector<1x512xf32>, vector<1x512xf32>, vector<1x512xf32> -> vector<6x512xf32>
    %160 = arith.truncf %145 : vector<6x128xf32> to vector<6x128xbf16>
    %161 = tpu.concatenate %160, %160, %160, %160, %160, %160 in 1 : vector<6x128xbf16>, vector<6x128xbf16>, vector<6x128xbf16>, vector<6x128xbf16>, vector<6x128xbf16>, vector<6x128xbf16> -> vector<6x768xbf16>
    %162 = arith.mulf %161, %16 : vector<6x768xbf16>
    %cst_35 = arith.constant dense<0.000000e+00> : vector<6x512xf32>
    %163 = tpu.matmul %162, %48, %cst_35 {dimension_numbers = #tpu.dot_dimension_numbers<[1], [0], [0], [1], [0, 0, 1, 1], [], []>} : vector<6x768xbf16>, vector<768x512xbf16>, vector<6x512xf32> -> vector<6x512xf32>
    %164 = arith.addf %159, %163 : vector<6x512xf32>
    %165 = vector.extract_strided_slice %164 {offsets = [0, 0], sizes = [6, 128], strides = [1, 1]} : vector<6x512xf32> to vector<6x128xf32>
    %166 = arith.negf %165 : vector<6x128xf32>
    %167 = math.exp %166 : vector<6x128xf32>
    %cst_36 = arith.constant 1.000000e+00 : f32
    %168 = vector.broadcast %cst_36 : f32 to vector<6x128xf32>
    %169 = arith.addf %168, %167 : vector<6x128xf32>
    %170 = arith.divf %168, %169 : vector<6x128xf32>
    %171 = vector.extract_strided_slice %164 {offsets = [0, 128], sizes = [6, 128], strides = [1, 1]} : vector<6x512xf32> to vector<6x128xf32>
    %172 = arith.negf %171 : vector<6x128xf32>
    %173 = math.exp %172 : vector<6x128xf32>
    %cst_37 = arith.constant 1.000000e+00 : f32
    %174 = vector.broadcast %cst_37 : f32 to vector<6x128xf32>
    %175 = arith.addf %174, %173 : vector<6x128xf32>
    %176 = arith.divf %174, %175 : vector<6x128xf32>
    %177 = vector.extract_strided_slice %164 {offsets = [0, 256], sizes = [6, 128], strides = [1, 1]} : vector<6x512xf32> to vector<6x128xf32>
    %178 = math.tanh %177 : vector<6x128xf32>
    %179 = vector.extract_strided_slice %164 {offsets = [0, 384], sizes = [6, 128], strides = [1, 1]} : vector<6x512xf32> to vector<6x128xf32>
    %180 = arith.negf %179 : vector<6x128xf32>
    %181 = math.exp %180 : vector<6x128xf32>
    %cst_38 = arith.constant 1.000000e+00 : f32
    %182 = vector.broadcast %cst_38 : f32 to vector<6x128xf32>
    %183 = arith.addf %182, %181 : vector<6x128xf32>
    %184 = arith.divf %182, %183 : vector<6x128xf32>
    %185 = arith.mulf %176, %152 : vector<6x128xf32>
    %186 = arith.mulf %170, %178 : vector<6x128xf32>
    %187 = arith.addf %185, %186 : vector<6x128xf32>
    %188 = math.tanh %187 : vector<6x128xf32>
    %189 = arith.mulf %184, %188 : vector<6x128xf32>
    %190 = vector.extract_strided_slice %27 {offsets = [3, 0], sizes = [1, 512], strides = [1, 1]} : vector<6x1024xf32> to vector<1x512xf32>
    %191 = vector.extract_strided_slice %27 {offsets = [2, 512], sizes = [1, 512], strides = [1, 1]} : vector<6x1024xf32> to vector<1x512xf32>
    %192 = vector.extract_strided_slice %37 {offsets = [3, 0], sizes = [1, 512], strides = [1, 1]} : vector<6x1024xf32> to vector<1x512xf32>
    %193 = vector.extract_strided_slice %37 {offsets = [2, 512], sizes = [1, 512], strides = [1, 1]} : vector<6x1024xf32> to vector<1x512xf32>
    %194 = vector.extract_strided_slice %47 {offsets = [3, 0], sizes = [1, 512], strides = [1, 1]} : vector<6x1024xf32> to vector<1x512xf32>
    %195 = vector.extract_strided_slice %47 {offsets = [2, 512], sizes = [1, 512], strides = [1, 1]} : vector<6x1024xf32> to vector<1x512xf32>
    %196 = tpu.concatenate %190, %191, %192, %193, %194, %195 in 0 : vector<1x512xf32>, vector<1x512xf32>, vector<1x512xf32>, vector<1x512xf32>, vector<1x512xf32>, vector<1x512xf32> -> vector<6x512xf32>
    %197 = arith.truncf %189 : vector<6x128xf32> to vector<6x128xbf16>
    %198 = tpu.concatenate %197, %197, %197, %197, %197, %197 in 1 : vector<6x128xbf16>, vector<6x128xbf16>, vector<6x128xbf16>, vector<6x128xbf16>, vector<6x128xbf16>, vector<6x128xbf16> -> vector<6x768xbf16>
    %199 = arith.mulf %198, %16 : vector<6x768xbf16>
    %cst_39 = arith.constant dense<0.000000e+00> : vector<6x512xf32>
    %200 = tpu.matmul %199, %48, %cst_39 {dimension_numbers = #tpu.dot_dimension_numbers<[1], [0], [0], [1], [0, 0, 1, 1], [], []>} : vector<6x768xbf16>, vector<768x512xbf16>, vector<6x512xf32> -> vector<6x512xf32>
    %201 = arith.addf %196, %200 : vector<6x512xf32>
    %202 = vector.extract_strided_slice %201 {offsets = [0, 0], sizes = [6, 128], strides = [1, 1]} : vector<6x512xf32> to vector<6x128xf32>
    %203 = arith.negf %202 : vector<6x128xf32>
    %204 = math.exp %203 : vector<6x128xf32>
    %cst_40 = arith.constant 1.000000e+00 : f32
    %205 = vector.broadcast %cst_40 : f32 to vector<6x128xf32>
    %206 = arith.addf %205, %204 : vector<6x128xf32>
    %207 = arith.divf %205, %206 : vector<6x128xf32>
    %208 = vector.extract_strided_slice %201 {offsets = [0, 128], sizes = [6, 128], strides = [1, 1]} : vector<6x512xf32> to vector<6x128xf32>
    %209 = arith.negf %208 : vector<6x128xf32>
    %210 = math.exp %209 : vector<6x128xf32>
    %cst_41 = arith.constant 1.000000e+00 : f32
    %211 = vector.broadcast %cst_41 : f32 to vector<6x128xf32>
    %212 = arith.addf %211, %210 : vector<6x128xf32>
    %213 = arith.divf %211, %212 : vector<6x128xf32>
    %214 = vector.extract_strided_slice %201 {offsets = [0, 256], sizes = [6, 128], strides = [1, 1]} : vector<6x512xf32> to vector<6x128xf32>
    %215 = math.tanh %214 : vector<6x128xf32>
    %216 = vector.extract_strided_slice %201 {offsets = [0, 384], sizes = [6, 128], strides = [1, 1]} : vector<6x512xf32> to vector<6x128xf32>
    %217 = arith.negf %216 : vector<6x128xf32>
    %218 = math.exp %217 : vector<6x128xf32>
    %cst_42 = arith.constant 1.000000e+00 : f32
    %219 = vector.broadcast %cst_42 : f32 to vector<6x128xf32>
    %220 = arith.addf %219, %218 : vector<6x128xf32>
    %221 = arith.divf %219, %220 : vector<6x128xf32>
    %222 = arith.mulf %213, %187 : vector<6x128xf32>
    %223 = arith.mulf %207, %215 : vector<6x128xf32>
    %224 = arith.addf %222, %223 : vector<6x128xf32>
    %225 = math.tanh %224 : vector<6x128xf32>
    %226 = arith.mulf %221, %225 : vector<6x128xf32>
    %227 = vector.extract_strided_slice %27 {offsets = [4, 0], sizes = [1, 512], strides = [1, 1]} : vector<6x1024xf32> to vector<1x512xf32>
    %228 = vector.extract_strided_slice %27 {offsets = [1, 512], sizes = [1, 512], strides = [1, 1]} : vector<6x1024xf32> to vector<1x512xf32>
    %229 = vector.extract_strided_slice %37 {offsets = [4, 0], sizes = [1, 512], strides = [1, 1]} : vector<6x1024xf32> to vector<1x512xf32>
    %230 = vector.extract_strided_slice %37 {offsets = [1, 512], sizes = [1, 512], strides = [1, 1]} : vector<6x1024xf32> to vector<1x512xf32>
    %231 = vector.extract_strided_slice %47 {offsets = [4, 0], sizes = [1, 512], strides = [1, 1]} : vector<6x1024xf32> to vector<1x512xf32>
    %232 = vector.extract_strided_slice %47 {offsets = [1, 512], sizes = [1, 512], strides = [1, 1]} : vector<6x1024xf32> to vector<1x512xf32>
    %233 = tpu.concatenate %227, %228, %229, %230, %231, %232 in 0 : vector<1x512xf32>, vector<1x512xf32>, vector<1x512xf32>, vector<1x512xf32>, vector<1x512xf32>, vector<1x512xf32> -> vector<6x512xf32>
    %234 = arith.truncf %226 : vector<6x128xf32> to vector<6x128xbf16>
    %235 = tpu.concatenate %234, %234, %234, %234, %234, %234 in 1 : vector<6x128xbf16>, vector<6x128xbf16>, vector<6x128xbf16>, vector<6x128xbf16>, vector<6x128xbf16>, vector<6x128xbf16> -> vector<6x768xbf16>
    %236 = arith.mulf %235, %16 : vector<6x768xbf16>
    %cst_43 = arith.constant dense<0.000000e+00> : vector<6x512xf32>
    %237 = tpu.matmul %236, %48, %cst_43 {dimension_numbers = #tpu.dot_dimension_numbers<[1], [0], [0], [1], [0, 0, 1, 1], [], []>} : vector<6x768xbf16>, vector<768x512xbf16>, vector<6x512xf32> -> vector<6x512xf32>
    %238 = arith.addf %233, %237 : vector<6x512xf32>
    %239 = vector.extract_strided_slice %238 {offsets = [0, 0], sizes = [6, 128], strides = [1, 1]} : vector<6x512xf32> to vector<6x128xf32>
    %240 = arith.negf %239 : vector<6x128xf32>
    %241 = math.exp %240 : vector<6x128xf32>
    %cst_44 = arith.constant 1.000000e+00 : f32
    %242 = vector.broadcast %cst_44 : f32 to vector<6x128xf32>
    %243 = arith.addf %242, %241 : vector<6x128xf32>
    %244 = arith.divf %242, %243 : vector<6x128xf32>
    %245 = vector.extract_strided_slice %238 {offsets = [0, 128], sizes = [6, 128], strides = [1, 1]} : vector<6x512xf32> to vector<6x128xf32>
    %246 = arith.negf %245 : vector<6x128xf32>
    %247 = math.exp %246 : vector<6x128xf32>
    %cst_45 = arith.constant 1.000000e+00 : f32
    %248 = vector.broadcast %cst_45 : f32 to vector<6x128xf32>
    %249 = arith.addf %248, %247 : vector<6x128xf32>
    %250 = arith.divf %248, %249 : vector<6x128xf32>
    %251 = vector.extract_strided_slice %238 {offsets = [0, 256], sizes = [6, 128], strides = [1, 1]} : vector<6x512xf32> to vector<6x128xf32>
    %252 = math.tanh %251 : vector<6x128xf32>
    %253 = vector.extract_strided_slice %238 {offsets = [0, 384], sizes = [6, 128], strides = [1, 1]} : vector<6x512xf32> to vector<6x128xf32>
    %254 = arith.negf %253 : vector<6x128xf32>
    %255 = math.exp %254 : vector<6x128xf32>
    %cst_46 = arith.constant 1.000000e+00 : f32
    %256 = vector.broadcast %cst_46 : f32 to vector<6x128xf32>
    %257 = arith.addf %256, %255 : vector<6x128xf32>
    %258 = arith.divf %256, %257 : vector<6x128xf32>
    %259 = arith.mulf %250, %224 : vector<6x128xf32>
    %260 = arith.mulf %244, %252 : vector<6x128xf32>
    %261 = arith.addf %259, %260 : vector<6x128xf32>
    %262 = math.tanh %261 : vector<6x128xf32>
    %263 = arith.mulf %258, %262 : vector<6x128xf32>
    %264 = vector.extract_strided_slice %263 {offsets = [0, 0], sizes = [1, 128], strides = [1, 1]} : vector<6x128xf32> to vector<1x128xf32>
    %265 = vector.extract_strided_slice %263 {offsets = [1, 0], sizes = [1, 128], strides = [1, 1]} : vector<6x128xf32> to vector<1x128xf32>
    %266 = vector.extract_strided_slice %263 {offsets = [2, 0], sizes = [1, 128], strides = [1, 1]} : vector<6x128xf32> to vector<1x128xf32>
    %267 = vector.extract_strided_slice %263 {offsets = [3, 0], sizes = [1, 128], strides = [1, 1]} : vector<6x128xf32> to vector<1x128xf32>
    %268 = vector.extract_strided_slice %226 {offsets = [4, 0], sizes = [1, 128], strides = [1, 1]} : vector<6x128xf32> to vector<1x128xf32>
    %269 = vector.extract_strided_slice %263 {offsets = [5, 0], sizes = [1, 128], strides = [1, 1]} : vector<6x128xf32> to vector<1x128xf32>
    %270 = tpu.concatenate %264, %265, %266, %267, %268, %269 in 0 : vector<1x128xf32>, vector<1x128xf32>, vector<1x128xf32>, vector<1x128xf32>, vector<1x128xf32>, vector<1x128xf32> -> vector<6x128xf32>
    %271 = vector.extract_strided_slice %261 {offsets = [0, 0], sizes = [1, 128], strides = [1, 1]} : vector<6x128xf32> to vector<1x128xf32>
    %272 = vector.extract_strided_slice %261 {offsets = [1, 0], sizes = [1, 128], strides = [1, 1]} : vector<6x128xf32> to vector<1x128xf32>
    %273 = vector.extract_strided_slice %261 {offsets = [2, 0], sizes = [1, 128], strides = [1, 1]} : vector<6x128xf32> to vector<1x128xf32>
    %274 = vector.extract_strided_slice %261 {offsets = [3, 0], sizes = [1, 128], strides = [1, 1]} : vector<6x128xf32> to vector<1x128xf32>
    %275 = vector.extract_strided_slice %224 {offsets = [4, 0], sizes = [1, 128], strides = [1, 1]} : vector<6x128xf32> to vector<1x128xf32>
    %276 = vector.extract_strided_slice %261 {offsets = [5, 0], sizes = [1, 128], strides = [1, 1]} : vector<6x128xf32> to vector<1x128xf32>
    %277 = tpu.concatenate %271, %272, %273, %274, %275, %276 in 0 : vector<1x128xf32>, vector<1x128xf32>, vector<1x128xf32>, vector<1x128xf32>, vector<1x128xf32>, vector<1x128xf32> -> vector<6x128xf32>
    %278 = vector.extract_strided_slice %27 {offsets = [5, 0], sizes = [1, 512], strides = [1, 1]} : vector<6x1024xf32> to vector<1x512xf32>
    %279 = vector.extract_strided_slice %27 {offsets = [0, 512], sizes = [1, 512], strides = [1, 1]} : vector<6x1024xf32> to vector<1x512xf32>
    %280 = vector.extract_strided_slice %37 {offsets = [5, 0], sizes = [1, 512], strides = [1, 1]} : vector<6x1024xf32> to vector<1x512xf32>
    %281 = vector.extract_strided_slice %37 {offsets = [0, 512], sizes = [1, 512], strides = [1, 1]} : vector<6x1024xf32> to vector<1x512xf32>
    %282 = vector.extract_strided_slice %47 {offsets = [5, 0], sizes = [1, 512], strides = [1, 1]} : vector<6x1024xf32> to vector<1x512xf32>
    %283 = vector.extract_strided_slice %47 {offsets = [0, 512], sizes = [1, 512], strides = [1, 1]} : vector<6x1024xf32> to vector<1x512xf32>
    %284 = tpu.concatenate %278, %279, %280, %281, %282, %283 in 0 : vector<1x512xf32>, vector<1x512xf32>, vector<1x512xf32>, vector<1x512xf32>, vector<1x512xf32>, vector<1x512xf32> -> vector<6x512xf32>
    %285 = arith.truncf %270 : vector<6x128xf32> to vector<6x128xbf16>
    %286 = tpu.concatenate %285, %285, %285, %285, %285, %285 in 1 : vector<6x128xbf16>, vector<6x128xbf16>, vector<6x128xbf16>, vector<6x128xbf16>, vector<6x128xbf16>, vector<6x128xbf16> -> vector<6x768xbf16>
    %287 = arith.mulf %286, %16 : vector<6x768xbf16>
    %cst_47 = arith.constant dense<0.000000e+00> : vector<6x512xf32>
    %288 = tpu.matmul %287, %48, %cst_47 {dimension_numbers = #tpu.dot_dimension_numbers<[1], [0], [0], [1], [0, 0, 1, 1], [], []>} : vector<6x768xbf16>, vector<768x512xbf16>, vector<6x512xf32> -> vector<6x512xf32>
    %289 = arith.addf %284, %288 : vector<6x512xf32>
    %290 = vector.extract_strided_slice %289 {offsets = [0, 0], sizes = [6, 128], strides = [1, 1]} : vector<6x512xf32> to vector<6x128xf32>
    %291 = arith.negf %290 : vector<6x128xf32>
    %292 = math.exp %291 : vector<6x128xf32>
    %cst_48 = arith.constant 1.000000e+00 : f32
    %293 = vector.broadcast %cst_48 : f32 to vector<6x128xf32>
    %294 = arith.addf %293, %292 : vector<6x128xf32>
    %295 = arith.divf %293, %294 : vector<6x128xf32>
    %296 = vector.extract_strided_slice %289 {offsets = [0, 128], sizes = [6, 128], strides = [1, 1]} : vector<6x512xf32> to vector<6x128xf32>
    %297 = arith.negf %296 : vector<6x128xf32>
    %298 = math.exp %297 : vector<6x128xf32>
    %cst_49 = arith.constant 1.000000e+00 : f32
    %299 = vector.broadcast %cst_49 : f32 to vector<6x128xf32>
    %300 = arith.addf %299, %298 : vector<6x128xf32>
    %301 = arith.divf %299, %300 : vector<6x128xf32>
    %302 = vector.extract_strided_slice %289 {offsets = [0, 256], sizes = [6, 128], strides = [1, 1]} : vector<6x512xf32> to vector<6x128xf32>
    %303 = math.tanh %302 : vector<6x128xf32>
    %304 = vector.extract_strided_slice %289 {offsets = [0, 384], sizes = [6, 128], strides = [1, 1]} : vector<6x512xf32> to vector<6x128xf32>
    %305 = arith.negf %304 : vector<6x128xf32>
    %306 = math.exp %305 : vector<6x128xf32>
    %cst_50 = arith.constant 1.000000e+00 : f32
    %307 = vector.broadcast %cst_50 : f32 to vector<6x128xf32>
    %308 = arith.addf %307, %306 : vector<6x128xf32>
    %309 = arith.divf %307, %308 : vector<6x128xf32>
    %310 = arith.mulf %301, %277 : vector<6x128xf32>
    %311 = arith.mulf %295, %303 : vector<6x128xf32>
    %312 = arith.addf %310, %311 : vector<6x128xf32>
    %313 = math.tanh %312 : vector<6x128xf32>
    %314 = arith.mulf %309, %313 : vector<6x128xf32>
    %315 = vector.extract_strided_slice %314 {offsets = [0, 0], sizes = [1, 128], strides = [1, 1]} : vector<6x128xf32> to vector<1x128xf32>
    %316 = vector.extract_strided_slice %314 {offsets = [1, 0], sizes = [1, 128], strides = [1, 1]} : vector<6x128xf32> to vector<1x128xf32>
    %317 = vector.extract_strided_slice %270 {offsets = [2, 0], sizes = [1, 128], strides = [1, 1]} : vector<6x128xf32> to vector<1x128xf32>
    %318 = vector.extract_strided_slice %314 {offsets = [3, 0], sizes = [1, 128], strides = [1, 1]} : vector<6x128xf32> to vector<1x128xf32>
    %319 = vector.extract_strided_slice %270 {offsets = [4, 0], sizes = [1, 128], strides = [1, 1]} : vector<6x128xf32> to vector<1x128xf32>
    %320 = vector.extract_strided_slice %314 {offsets = [5, 0], sizes = [1, 128], strides = [1, 1]} : vector<6x128xf32> to vector<1x128xf32>
    %321 = tpu.concatenate %315, %316, %317, %318, %319, %320 in 0 : vector<1x128xf32>, vector<1x128xf32>, vector<1x128xf32>, vector<1x128xf32>, vector<1x128xf32>, vector<1x128xf32> -> vector<6x128xf32>
    %322 = vector.extract_strided_slice %94 {offsets = [0, 0], sizes = [1, 128], strides = [1, 1]} : vector<6x128xf32> to vector<1x128xf32>
    %323 = vector.extract_strided_slice %321 {offsets = [1, 0], sizes = [1, 128], strides = [1, 1]} : vector<6x128xf32> to vector<1x128xf32>
    %324 = tpu.concatenate %322, %323 in 1 : vector<1x128xf32>, vector<1x128xf32> -> vector<1x256xf32>
    %325 = vector.extract_strided_slice %145 {offsets = [0, 0], sizes = [1, 128], strides = [1, 1]} : vector<6x128xf32> to vector<1x128xf32>
    %326 = vector.extract_strided_slice %270 {offsets = [1, 0], sizes = [1, 128], strides = [1, 1]} : vector<6x128xf32> to vector<1x128xf32>
    %327 = tpu.concatenate %325, %326 in 1 : vector<1x128xf32>, vector<1x128xf32> -> vector<1x256xf32>
    %328 = vector.extract_strided_slice %189 {offsets = [0, 0], sizes = [1, 128], strides = [1, 1]} : vector<6x128xf32> to vector<1x128xf32>
    %329 = vector.extract_strided_slice %226 {offsets = [1, 0], sizes = [1, 128], strides = [1, 1]} : vector<6x128xf32> to vector<1x128xf32>
    %330 = tpu.concatenate %328, %329 in 1 : vector<1x128xf32>, vector<1x128xf32> -> vector<1x256xf32>
    %331 = vector.extract_strided_slice %226 {offsets = [0, 0], sizes = [1, 128], strides = [1, 1]} : vector<6x128xf32> to vector<1x128xf32>
    %332 = vector.extract_strided_slice %189 {offsets = [1, 0], sizes = [1, 128], strides = [1, 1]} : vector<6x128xf32> to vector<1x128xf32>
    %333 = tpu.concatenate %331, %332 in 1 : vector<1x128xf32>, vector<1x128xf32> -> vector<1x256xf32>
    %334 = vector.extract_strided_slice %270 {offsets = [0, 0], sizes = [1, 128], strides = [1, 1]} : vector<6x128xf32> to vector<1x128xf32>
    %335 = vector.extract_strided_slice %145 {offsets = [1, 0], sizes = [1, 128], strides = [1, 1]} : vector<6x128xf32> to vector<1x128xf32>
    %336 = tpu.concatenate %334, %335 in 1 : vector<1x128xf32>, vector<1x128xf32> -> vector<1x256xf32>
    %337 = vector.extract_strided_slice %321 {offsets = [0, 0], sizes = [1, 128], strides = [1, 1]} : vector<6x128xf32> to vector<1x128xf32>
    %338 = vector.extract_strided_slice %94 {offsets = [1, 0], sizes = [1, 128], strides = [1, 1]} : vector<6x128xf32> to vector<1x128xf32>
    %339 = tpu.concatenate %337, %338 in 1 : vector<1x128xf32>, vector<1x128xf32> -> vector<1x256xf32>
    %340 = tpu.concatenate %324, %327, %330, %333, %336, %339 in 0 : vector<1x256xf32>, vector<1x256xf32>, vector<1x256xf32>, vector<1x256xf32>, vector<1x256xf32>, vector<1x256xf32> -> vector<6x256xf32>
    %341 = vector.extract_strided_slice %94 {offsets = [2, 0], sizes = [1, 128], strides = [1, 1]} : vector<6x128xf32> to vector<1x128xf32>
    %342 = vector.extract_strided_slice %321 {offsets = [3, 0], sizes = [1, 128], strides = [1, 1]} : vector<6x128xf32> to vector<1x128xf32>
    %343 = tpu.concatenate %341, %342 in 1 : vector<1x128xf32>, vector<1x128xf32> -> vector<1x256xf32>
    %344 = vector.extract_strided_slice %145 {offsets = [2, 0], sizes = [1, 128], strides = [1, 1]} : vector<6x128xf32> to vector<1x128xf32>
    %345 = vector.extract_strided_slice %270 {offsets = [3, 0], sizes = [1, 128], strides = [1, 1]} : vector<6x128xf32> to vector<1x128xf32>
    %346 = tpu.concatenate %344, %345 in 1 : vector<1x128xf32>, vector<1x128xf32> -> vector<1x256xf32>
    %347 = vector.extract_strided_slice %189 {offsets = [2, 0], sizes = [1, 128], strides = [1, 1]} : vector<6x128xf32> to vector<1x128xf32>
    %348 = vector.extract_strided_slice %226 {offsets = [3, 0], sizes = [1, 128], strides = [1, 1]} : vector<6x128xf32> to vector<1x128xf32>
    %349 = tpu.concatenate %347, %348 in 1 : vector<1x128xf32>, vector<1x128xf32> -> vector<1x256xf32>
    %350 = vector.extract_strided_slice %226 {offsets = [2, 0], sizes = [1, 128], strides = [1, 1]} : vector<6x128xf32> to vector<1x128xf32>
    %351 = vector.extract_strided_slice %189 {offsets = [3, 0], sizes = [1, 128], strides = [1, 1]} : vector<6x128xf32> to vector<1x128xf32>
    %352 = tpu.concatenate %350, %351 in 1 : vector<1x128xf32>, vector<1x128xf32> -> vector<1x256xf32>
    %353 = vector.extract_strided_slice %270 {offsets = [2, 0], sizes = [1, 128], strides = [1, 1]} : vector<6x128xf32> to vector<1x128xf32>
    %354 = vector.extract_strided_slice %145 {offsets = [3, 0], sizes = [1, 128], strides = [1, 1]} : vector<6x128xf32> to vector<1x128xf32>
    %355 = tpu.concatenate %353, %354 in 1 : vector<1x128xf32>, vector<1x128xf32> -> vector<1x256xf32>
    %cst_51 = arith.constant 0.000000e+00 : f32
    %356 = vector.broadcast %cst_51 : f32 to vector<1x256xf32>
    %357 = tpu.concatenate %343, %346, %349, %352, %355, %356 in 0 : vector<1x256xf32>, vector<1x256xf32>, vector<1x256xf32>, vector<1x256xf32>, vector<1x256xf32>, vector<1x256xf32> -> vector<6x256xf32>
    %358 = vector.extract_strided_slice %94 {offsets = [4, 0], sizes = [1, 128], strides = [1, 1]} : vector<6x128xf32> to vector<1x128xf32>
    %359 = vector.extract_strided_slice %321 {offsets = [5, 0], sizes = [1, 128], strides = [1, 1]} : vector<6x128xf32> to vector<1x128xf32>
    %360 = tpu.concatenate %358, %359 in 1 : vector<1x128xf32>, vector<1x128xf32> -> vector<1x256xf32>
    %361 = vector.extract_strided_slice %145 {offsets = [4, 0], sizes = [1, 128], strides = [1, 1]} : vector<6x128xf32> to vector<1x128xf32>
    %362 = vector.extract_strided_slice %270 {offsets = [5, 0], sizes = [1, 128], strides = [1, 1]} : vector<6x128xf32> to vector<1x128xf32>
    %363 = tpu.concatenate %361, %362 in 1 : vector<1x128xf32>, vector<1x128xf32> -> vector<1x256xf32>
    %364 = vector.extract_strided_slice %189 {offsets = [4, 0], sizes = [1, 128], strides = [1, 1]} : vector<6x128xf32> to vector<1x128xf32>
    %365 = vector.extract_strided_slice %226 {offsets = [5, 0], sizes = [1, 128], strides = [1, 1]} : vector<6x128xf32> to vector<1x128xf32>
    %366 = tpu.concatenate %364, %365 in 1 : vector<1x128xf32>, vector<1x128xf32> -> vector<1x256xf32>
    %367 = vector.extract_strided_slice %226 {offsets = [4, 0], sizes = [1, 128], strides = [1, 1]} : vector<6x128xf32> to vector<1x128xf32>
    %368 = vector.extract_strided_slice %189 {offsets = [5, 0], sizes = [1, 128], strides = [1, 1]} : vector<6x128xf32> to vector<1x128xf32>
    %369 = tpu.concatenate %367, %368 in 1 : vector<1x128xf32>, vector<1x128xf32> -> vector<1x256xf32>
    %cst_52 = arith.constant 0.000000e+00 : f32
    %370 = vector.broadcast %cst_52 : f32 to vector<1x256xf32>
    %cst_53 = arith.constant 0.000000e+00 : f32
    %371 = vector.broadcast %cst_53 : f32 to vector<1x256xf32>
    %372 = tpu.concatenate %360, %363, %366, %369, %370, %371 in 0 : vector<1x256xf32>, vector<1x256xf32>, vector<1x256xf32>, vector<1x256xf32>, vector<1x256xf32>, vector<1x256xf32> -> vector<6x256xf32>
    %c0_i32_54 = arith.constant 0 : i32
    %373 = tpu.memref_slice %arg12[%c0_i32_54] : memref<2x!tpu.dma_semaphore, #tpu.memory_space<semaphore_mem>> -> memref<1x!tpu.dma_semaphore, #tpu.memory_space<semaphore_mem>>
    %374 = tpu.memref_squeeze %373 : memref<1x!tpu.dma_semaphore, #tpu.memory_space<semaphore_mem>> -> memref<!tpu.dma_semaphore, #tpu.memory_space<semaphore_mem>>
    tpu.wait_dma2 semaphore(%374 : memref<!tpu.dma_semaphore, #tpu.memory_space<semaphore_mem>>) src(%arg6 : memref<3x256x1024xbf16, #tpu.memory_space<any>>) dst(%arg10 : memref<3x256x1024xbf16, #tpu.memory_space<vmem>>)
    %c1_i32_55 = arith.constant 1 : i32
    %375 = tpu.memref_slice %arg12[%c1_i32_55] : memref<2x!tpu.dma_semaphore, #tpu.memory_space<semaphore_mem>> -> memref<1x!tpu.dma_semaphore, #tpu.memory_space<semaphore_mem>>
    %376 = tpu.memref_squeeze %375 : memref<1x!tpu.dma_semaphore, #tpu.memory_space<semaphore_mem>> -> memref<!tpu.dma_semaphore, #tpu.memory_space<semaphore_mem>>
    tpu.wait_dma2 semaphore(%376 : memref<!tpu.dma_semaphore, #tpu.memory_space<semaphore_mem>>) src(%arg7 : memref<768x512xbf16, #tpu.memory_space<any>>) dst(%arg11 : memref<768x512xbf16, #tpu.memory_space<vmem>>)
    %377 = arith.truncf %340 : vector<6x256xf32> to vector<6x256xbf16>
    %c0_56 = arith.constant 0 : index
    %c0_57 = arith.constant 0 : index
    %c0_58 = arith.constant 0 : index
    %378 = vector.load %arg10[%c0_56, %c0_57, %c0_58] : memref<3x256x1024xbf16, #tpu.memory_space<vmem>>, vector<1x256x1024xbf16>
    %379 = vector.shape_cast %378 : vector<1x256x1024xbf16> to vector<256x1024xbf16>
    %cst_59 = arith.constant dense<0.000000e+00> : vector<6x1024xf32>
    %380 = tpu.matmul %377, %379, %cst_59 {dimension_numbers = #tpu.dot_dimension_numbers<[1], [0], [0], [1], [0, 0, 1, 1], [], []>} : vector<6x256xbf16>, vector<256x1024xbf16>, vector<6x1024xf32> -> vector<6x1024xf32>
    %381 = vector.extract_strided_slice %17 {offsets = [1, 0, 0], sizes = [1, 1, 1024], strides = [1, 1, 1]} : vector<2x3x1024xf32> to vector<1x1x1024xf32>
    %382 = vector.shape_cast %381 : vector<1x1x1024xf32> to vector<1x1024xf32>
    %383 = vector.broadcast %382 : vector<1x1024xf32> to vector<6x1024xf32>
    %384 = arith.addf %380, %383 : vector<6x1024xf32>
    %385 = arith.truncf %357 : vector<6x256xf32> to vector<6x256xbf16>
    %c1_60 = arith.constant 1 : index
    %c0_61 = arith.constant 0 : index
    %c0_62 = arith.constant 0 : index
    %386 = vector.load %arg10[%c1_60, %c0_61, %c0_62] : memref<3x256x1024xbf16, #tpu.memory_space<vmem>>, vector<1x256x1024xbf16>
    %387 = vector.shape_cast %386 : vector<1x256x1024xbf16> to vector<256x1024xbf16>
    %cst_63 = arith.constant dense<0.000000e+00> : vector<6x1024xf32>
    %388 = tpu.matmul %385, %387, %cst_63 {dimension_numbers = #tpu.dot_dimension_numbers<[1], [0], [0], [1], [0, 0, 1, 1], [], []>} : vector<6x256xbf16>, vector<256x1024xbf16>, vector<6x1024xf32> -> vector<6x1024xf32>
    %389 = vector.extract_strided_slice %17 {offsets = [1, 1, 0], sizes = [1, 1, 1024], strides = [1, 1, 1]} : vector<2x3x1024xf32> to vector<1x1x1024xf32>
    %390 = vector.shape_cast %389 : vector<1x1x1024xf32> to vector<1x1024xf32>
    %391 = vector.broadcast %390 : vector<1x1024xf32> to vector<6x1024xf32>
    %392 = arith.addf %388, %391 : vector<6x1024xf32>
    %393 = arith.truncf %372 : vector<6x256xf32> to vector<6x256xbf16>
    %c2_64 = arith.constant 2 : index
    %c0_65 = arith.constant 0 : index
    %c0_66 = arith.constant 0 : index
    %394 = vector.load %arg10[%c2_64, %c0_65, %c0_66] : memref<3x256x1024xbf16, #tpu.memory_space<vmem>>, vector<1x256x1024xbf16>
    %395 = vector.shape_cast %394 : vector<1x256x1024xbf16> to vector<256x1024xbf16>
    %cst_67 = arith.constant dense<0.000000e+00> : vector<6x1024xf32>
    %396 = tpu.matmul %393, %395, %cst_67 {dimension_numbers = #tpu.dot_dimension_numbers<[1], [0], [0], [1], [0, 0, 1, 1], [], []>} : vector<6x256xbf16>, vector<256x1024xbf16>, vector<6x1024xf32> -> vector<6x1024xf32>
    %397 = vector.extract_strided_slice %17 {offsets = [1, 2, 0], sizes = [1, 1, 1024], strides = [1, 1, 1]} : vector<2x3x1024xf32> to vector<1x1x1024xf32>
    %398 = vector.shape_cast %397 : vector<1x1x1024xf32> to vector<1x1024xf32>
    %399 = vector.broadcast %398 : vector<1x1024xf32> to vector<6x1024xf32>
    %400 = arith.addf %396, %399 : vector<6x1024xf32>
    %c0_68 = arith.constant 0 : index
    %c0_69 = arith.constant 0 : index
    %401 = vector.load %arg11[%c0_68, %c0_69] : memref<768x512xbf16, #tpu.memory_space<vmem>>, vector<768x512xbf16>
    %cst_70 = arith.constant 0.000000e+00 : f32
    %402 = vector.broadcast %cst_70 : f32 to vector<6x128xf32>
    %cst_71 = arith.constant 0.000000e+00 : f32
    %403 = vector.broadcast %cst_71 : f32 to vector<6x128xf32>
    %404 = vector.extract_strided_slice %384 {offsets = [0, 0], sizes = [1, 512], strides = [1, 1]} : vector<6x1024xf32> to vector<1x512xf32>
    %405 = vector.extract_strided_slice %384 {offsets = [5, 512], sizes = [1, 512], strides = [1, 1]} : vector<6x1024xf32> to vector<1x512xf32>
    %406 = vector.extract_strided_slice %392 {offsets = [0, 0], sizes = [1, 512], strides = [1, 1]} : vector<6x1024xf32> to vector<1x512xf32>
    %407 = vector.extract_strided_slice %392 {offsets = [5, 512], sizes = [1, 512], strides = [1, 1]} : vector<6x1024xf32> to vector<1x512xf32>
    %408 = vector.extract_strided_slice %400 {offsets = [0, 0], sizes = [1, 512], strides = [1, 1]} : vector<6x1024xf32> to vector<1x512xf32>
    %409 = vector.extract_strided_slice %400 {offsets = [5, 512], sizes = [1, 512], strides = [1, 1]} : vector<6x1024xf32> to vector<1x512xf32>
    %410 = tpu.concatenate %404, %405, %406, %407, %408, %409 in 0 : vector<1x512xf32>, vector<1x512xf32>, vector<1x512xf32>, vector<1x512xf32>, vector<1x512xf32>, vector<1x512xf32> -> vector<6x512xf32>
    %411 = arith.truncf %402 : vector<6x128xf32> to vector<6x128xbf16>
    %412 = tpu.concatenate %411, %411, %411, %411, %411, %411 in 1 : vector<6x128xbf16>, vector<6x128xbf16>, vector<6x128xbf16>, vector<6x128xbf16>, vector<6x128xbf16>, vector<6x128xbf16> -> vector<6x768xbf16>
    %413 = arith.mulf %412, %16 : vector<6x768xbf16>
    %cst_72 = arith.constant dense<0.000000e+00> : vector<6x512xf32>
    %414 = tpu.matmul %413, %401, %cst_72 {dimension_numbers = #tpu.dot_dimension_numbers<[1], [0], [0], [1], [0, 0, 1, 1], [], []>} : vector<6x768xbf16>, vector<768x512xbf16>, vector<6x512xf32> -> vector<6x512xf32>
    %415 = arith.addf %410, %414 : vector<6x512xf32>
    %416 = vector.extract_strided_slice %415 {offsets = [0, 0], sizes = [6, 128], strides = [1, 1]} : vector<6x512xf32> to vector<6x128xf32>
    %417 = arith.negf %416 : vector<6x128xf32>
    %418 = math.exp %417 : vector<6x128xf32>
    %cst_73 = arith.constant 1.000000e+00 : f32
    %419 = vector.broadcast %cst_73 : f32 to vector<6x128xf32>
    %420 = arith.addf %419, %418 : vector<6x128xf32>
    %421 = arith.divf %419, %420 : vector<6x128xf32>
    %422 = vector.extract_strided_slice %415 {offsets = [0, 128], sizes = [6, 128], strides = [1, 1]} : vector<6x512xf32> to vector<6x128xf32>
    %423 = arith.negf %422 : vector<6x128xf32>
    %424 = math.exp %423 : vector<6x128xf32>
    %cst_74 = arith.constant 1.000000e+00 : f32
    %425 = vector.broadcast %cst_74 : f32 to vector<6x128xf32>
    %426 = arith.addf %425, %424 : vector<6x128xf32>
    %427 = arith.divf %425, %426 : vector<6x128xf32>
    %428 = vector.extract_strided_slice %415 {offsets = [0, 256], sizes = [6, 128], strides = [1, 1]} : vector<6x512xf32> to vector<6x128xf32>
    %429 = math.tanh %428 : vector<6x128xf32>
    %430 = vector.extract_strided_slice %415 {offsets = [0, 384], sizes = [6, 128], strides = [1, 1]} : vector<6x512xf32> to vector<6x128xf32>
    %431 = arith.negf %430 : vector<6x128xf32>
    %432 = math.exp %431 : vector<6x128xf32>
    %cst_75 = arith.constant 1.000000e+00 : f32
    %433 = vector.broadcast %cst_75 : f32 to vector<6x128xf32>
    %434 = arith.addf %433, %432 : vector<6x128xf32>
    %435 = arith.divf %433, %434 : vector<6x128xf32>
    %436 = arith.mulf %427, %403 : vector<6x128xf32>
    %437 = arith.mulf %421, %429 : vector<6x128xf32>
    %438 = arith.addf %436, %437 : vector<6x128xf32>
    %439 = math.tanh %438 : vector<6x128xf32>
    %440 = arith.mulf %435, %439 : vector<6x128xf32>
    %441 = vector.extract_strided_slice %440 {offsets = [0, 0], sizes = [1, 128], strides = [1, 1]} : vector<6x128xf32> to vector<1x128xf32>
    %442 = vector.extract_strided_slice %440 {offsets = [1, 0], sizes = [1, 128], strides = [1, 1]} : vector<6x128xf32> to vector<1x128xf32>
    %443 = vector.extract_strided_slice %440 {offsets = [2, 0], sizes = [1, 128], strides = [1, 1]} : vector<6x128xf32> to vector<1x128xf32>
    %444 = vector.extract_strided_slice %402 {offsets = [3, 0], sizes = [1, 128], strides = [1, 1]} : vector<6x128xf32> to vector<1x128xf32>
    %445 = vector.extract_strided_slice %440 {offsets = [4, 0], sizes = [1, 128], strides = [1, 1]} : vector<6x128xf32> to vector<1x128xf32>
    %446 = vector.extract_strided_slice %402 {offsets = [5, 0], sizes = [1, 128], strides = [1, 1]} : vector<6x128xf32> to vector<1x128xf32>
    %447 = tpu.concatenate %441, %442, %443, %444, %445, %446 in 0 : vector<1x128xf32>, vector<1x128xf32>, vector<1x128xf32>, vector<1x128xf32>, vector<1x128xf32>, vector<1x128xf32> -> vector<6x128xf32>
    %448 = vector.extract_strided_slice %438 {offsets = [0, 0], sizes = [1, 128], strides = [1, 1]} : vector<6x128xf32> to vector<1x128xf32>
    %449 = vector.extract_strided_slice %438 {offsets = [1, 0], sizes = [1, 128], strides = [1, 1]} : vector<6x128xf32> to vector<1x128xf32>
    %450 = vector.extract_strided_slice %438 {offsets = [2, 0], sizes = [1, 128], strides = [1, 1]} : vector<6x128xf32> to vector<1x128xf32>
    %451 = vector.extract_strided_slice %403 {offsets = [3, 0], sizes = [1, 128], strides = [1, 1]} : vector<6x128xf32> to vector<1x128xf32>
    %452 = vector.extract_strided_slice %438 {offsets = [4, 0], sizes = [1, 128], strides = [1, 1]} : vector<6x128xf32> to vector<1x128xf32>
    %453 = vector.extract_strided_slice %403 {offsets = [5, 0], sizes = [1, 128], strides = [1, 1]} : vector<6x128xf32> to vector<1x128xf32>
    %454 = tpu.concatenate %448, %449, %450, %451, %452, %453 in 0 : vector<1x128xf32>, vector<1x128xf32>, vector<1x128xf32>, vector<1x128xf32>, vector<1x128xf32>, vector<1x128xf32> -> vector<6x128xf32>
    %455 = vector.extract_strided_slice %384 {offsets = [1, 0], sizes = [1, 512], strides = [1, 1]} : vector<6x1024xf32> to vector<1x512xf32>
    %456 = vector.extract_strided_slice %384 {offsets = [4, 512], sizes = [1, 512], strides = [1, 1]} : vector<6x1024xf32> to vector<1x512xf32>
    %457 = vector.extract_strided_slice %392 {offsets = [1, 0], sizes = [1, 512], strides = [1, 1]} : vector<6x1024xf32> to vector<1x512xf32>
    %458 = vector.extract_strided_slice %392 {offsets = [4, 512], sizes = [1, 512], strides = [1, 1]} : vector<6x1024xf32> to vector<1x512xf32>
    %459 = vector.extract_strided_slice %400 {offsets = [1, 0], sizes = [1, 512], strides = [1, 1]} : vector<6x1024xf32> to vector<1x512xf32>
    %460 = vector.extract_strided_slice %400 {offsets = [4, 512], sizes = [1, 512], strides = [1, 1]} : vector<6x1024xf32> to vector<1x512xf32>
    %461 = tpu.concatenate %455, %456, %457, %458, %459, %460 in 0 : vector<1x512xf32>, vector<1x512xf32>, vector<1x512xf32>, vector<1x512xf32>, vector<1x512xf32>, vector<1x512xf32> -> vector<6x512xf32>
    %462 = arith.truncf %447 : vector<6x128xf32> to vector<6x128xbf16>
    %463 = tpu.concatenate %462, %462, %462, %462, %462, %462 in 1 : vector<6x128xbf16>, vector<6x128xbf16>, vector<6x128xbf16>, vector<6x128xbf16>, vector<6x128xbf16>, vector<6x128xbf16> -> vector<6x768xbf16>
    %464 = arith.mulf %463, %16 : vector<6x768xbf16>
    %cst_76 = arith.constant dense<0.000000e+00> : vector<6x512xf32>
    %465 = tpu.matmul %464, %401, %cst_76 {dimension_numbers = #tpu.dot_dimension_numbers<[1], [0], [0], [1], [0, 0, 1, 1], [], []>} : vector<6x768xbf16>, vector<768x512xbf16>, vector<6x512xf32> -> vector<6x512xf32>
    %466 = arith.addf %461, %465 : vector<6x512xf32>
    %467 = vector.extract_strided_slice %466 {offsets = [0, 0], sizes = [6, 128], strides = [1, 1]} : vector<6x512xf32> to vector<6x128xf32>
    %468 = arith.negf %467 : vector<6x128xf32>
    %469 = math.exp %468 : vector<6x128xf32>
    %cst_77 = arith.constant 1.000000e+00 : f32
    %470 = vector.broadcast %cst_77 : f32 to vector<6x128xf32>
    %471 = arith.addf %470, %469 : vector<6x128xf32>
    %472 = arith.divf %470, %471 : vector<6x128xf32>
    %473 = vector.extract_strided_slice %466 {offsets = [0, 128], sizes = [6, 128], strides = [1, 1]} : vector<6x512xf32> to vector<6x128xf32>
    %474 = arith.negf %473 : vector<6x128xf32>
    %475 = math.exp %474 : vector<6x128xf32>
    %cst_78 = arith.constant 1.000000e+00 : f32
    %476 = vector.broadcast %cst_78 : f32 to vector<6x128xf32>
    %477 = arith.addf %476, %475 : vector<6x128xf32>
    %478 = arith.divf %476, %477 : vector<6x128xf32>
    %479 = vector.extract_strided_slice %466 {offsets = [0, 256], sizes = [6, 128], strides = [1, 1]} : vector<6x512xf32> to vector<6x128xf32>
    %480 = math.tanh %479 : vector<6x128xf32>
    %481 = vector.extract_strided_slice %466 {offsets = [0, 384], sizes = [6, 128], strides = [1, 1]} : vector<6x512xf32> to vector<6x128xf32>
    %482 = arith.negf %481 : vector<6x128xf32>
    %483 = math.exp %482 : vector<6x128xf32>
    %cst_79 = arith.constant 1.000000e+00 : f32
    %484 = vector.broadcast %cst_79 : f32 to vector<6x128xf32>
    %485 = arith.addf %484, %483 : vector<6x128xf32>
    %486 = arith.divf %484, %485 : vector<6x128xf32>
    %487 = arith.mulf %478, %454 : vector<6x128xf32>
    %488 = arith.mulf %472, %480 : vector<6x128xf32>
    %489 = arith.addf %487, %488 : vector<6x128xf32>
    %490 = math.tanh %489 : vector<6x128xf32>
    %491 = arith.mulf %486, %490 : vector<6x128xf32>
    %492 = vector.extract_strided_slice %491 {offsets = [0, 0], sizes = [1, 128], strides = [1, 1]} : vector<6x128xf32> to vector<1x128xf32>
    %493 = vector.extract_strided_slice %491 {offsets = [1, 0], sizes = [1, 128], strides = [1, 1]} : vector<6x128xf32> to vector<1x128xf32>
    %494 = vector.extract_strided_slice %491 {offsets = [2, 0], sizes = [1, 128], strides = [1, 1]} : vector<6x128xf32> to vector<1x128xf32>
    %495 = vector.extract_strided_slice %491 {offsets = [3, 0], sizes = [1, 128], strides = [1, 1]} : vector<6x128xf32> to vector<1x128xf32>
    %496 = vector.extract_strided_slice %491 {offsets = [4, 0], sizes = [1, 128], strides = [1, 1]} : vector<6x128xf32> to vector<1x128xf32>
    %497 = vector.extract_strided_slice %447 {offsets = [5, 0], sizes = [1, 128], strides = [1, 1]} : vector<6x128xf32> to vector<1x128xf32>
    %498 = tpu.concatenate %492, %493, %494, %495, %496, %497 in 0 : vector<1x128xf32>, vector<1x128xf32>, vector<1x128xf32>, vector<1x128xf32>, vector<1x128xf32>, vector<1x128xf32> -> vector<6x128xf32>
    %499 = vector.extract_strided_slice %489 {offsets = [0, 0], sizes = [1, 128], strides = [1, 1]} : vector<6x128xf32> to vector<1x128xf32>
    %500 = vector.extract_strided_slice %489 {offsets = [1, 0], sizes = [1, 128], strides = [1, 1]} : vector<6x128xf32> to vector<1x128xf32>
    %501 = vector.extract_strided_slice %489 {offsets = [2, 0], sizes = [1, 128], strides = [1, 1]} : vector<6x128xf32> to vector<1x128xf32>
    %502 = vector.extract_strided_slice %489 {offsets = [3, 0], sizes = [1, 128], strides = [1, 1]} : vector<6x128xf32> to vector<1x128xf32>
    %503 = vector.extract_strided_slice %489 {offsets = [4, 0], sizes = [1, 128], strides = [1, 1]} : vector<6x128xf32> to vector<1x128xf32>
    %504 = vector.extract_strided_slice %454 {offsets = [5, 0], sizes = [1, 128], strides = [1, 1]} : vector<6x128xf32> to vector<1x128xf32>
    %505 = tpu.concatenate %499, %500, %501, %502, %503, %504 in 0 : vector<1x128xf32>, vector<1x128xf32>, vector<1x128xf32>, vector<1x128xf32>, vector<1x128xf32>, vector<1x128xf32> -> vector<6x128xf32>
    %506 = vector.extract_strided_slice %384 {offsets = [2, 0], sizes = [1, 512], strides = [1, 1]} : vector<6x1024xf32> to vector<1x512xf32>
    %507 = vector.extract_strided_slice %384 {offsets = [3, 512], sizes = [1, 512], strides = [1, 1]} : vector<6x1024xf32> to vector<1x512xf32>
    %508 = vector.extract_strided_slice %392 {offsets = [2, 0], sizes = [1, 512], strides = [1, 1]} : vector<6x1024xf32> to vector<1x512xf32>
    %509 = vector.extract_strided_slice %392 {offsets = [3, 512], sizes = [1, 512], strides = [1, 1]} : vector<6x1024xf32> to vector<1x512xf32>
    %510 = vector.extract_strided_slice %400 {offsets = [2, 0], sizes = [1, 512], strides = [1, 1]} : vector<6x1024xf32> to vector<1x512xf32>
    %511 = vector.extract_strided_slice %400 {offsets = [3, 512], sizes = [1, 512], strides = [1, 1]} : vector<6x1024xf32> to vector<1x512xf32>
    %512 = tpu.concatenate %506, %507, %508, %509, %510, %511 in 0 : vector<1x512xf32>, vector<1x512xf32>, vector<1x512xf32>, vector<1x512xf32>, vector<1x512xf32>, vector<1x512xf32> -> vector<6x512xf32>
    %513 = arith.truncf %498 : vector<6x128xf32> to vector<6x128xbf16>
    %514 = tpu.concatenate %513, %513, %513, %513, %513, %513 in 1 : vector<6x128xbf16>, vector<6x128xbf16>, vector<6x128xbf16>, vector<6x128xbf16>, vector<6x128xbf16>, vector<6x128xbf16> -> vector<6x768xbf16>
    %515 = arith.mulf %514, %16 : vector<6x768xbf16>
    %cst_80 = arith.constant dense<0.000000e+00> : vector<6x512xf32>
    %516 = tpu.matmul %515, %401, %cst_80 {dimension_numbers = #tpu.dot_dimension_numbers<[1], [0], [0], [1], [0, 0, 1, 1], [], []>} : vector<6x768xbf16>, vector<768x512xbf16>, vector<6x512xf32> -> vector<6x512xf32>
    %517 = arith.addf %512, %516 : vector<6x512xf32>
    %518 = vector.extract_strided_slice %517 {offsets = [0, 0], sizes = [6, 128], strides = [1, 1]} : vector<6x512xf32> to vector<6x128xf32>
    %519 = arith.negf %518 : vector<6x128xf32>
    %520 = math.exp %519 : vector<6x128xf32>
    %cst_81 = arith.constant 1.000000e+00 : f32
    %521 = vector.broadcast %cst_81 : f32 to vector<6x128xf32>
    %522 = arith.addf %521, %520 : vector<6x128xf32>
    %523 = arith.divf %521, %522 : vector<6x128xf32>
    %524 = vector.extract_strided_slice %517 {offsets = [0, 128], sizes = [6, 128], strides = [1, 1]} : vector<6x512xf32> to vector<6x128xf32>
    %525 = arith.negf %524 : vector<6x128xf32>
    %526 = math.exp %525 : vector<6x128xf32>
    %cst_82 = arith.constant 1.000000e+00 : f32
    %527 = vector.broadcast %cst_82 : f32 to vector<6x128xf32>
    %528 = arith.addf %527, %526 : vector<6x128xf32>
    %529 = arith.divf %527, %528 : vector<6x128xf32>
    %530 = vector.extract_strided_slice %517 {offsets = [0, 256], sizes = [6, 128], strides = [1, 1]} : vector<6x512xf32> to vector<6x128xf32>
    %531 = math.tanh %530 : vector<6x128xf32>
    %532 = vector.extract_strided_slice %517 {offsets = [0, 384], sizes = [6, 128], strides = [1, 1]} : vector<6x512xf32> to vector<6x128xf32>
    %533 = arith.negf %532 : vector<6x128xf32>
    %534 = math.exp %533 : vector<6x128xf32>
    %cst_83 = arith.constant 1.000000e+00 : f32
    %535 = vector.broadcast %cst_83 : f32 to vector<6x128xf32>
    %536 = arith.addf %535, %534 : vector<6x128xf32>
    %537 = arith.divf %535, %536 : vector<6x128xf32>
    %538 = arith.mulf %529, %505 : vector<6x128xf32>
    %539 = arith.mulf %523, %531 : vector<6x128xf32>
    %540 = arith.addf %538, %539 : vector<6x128xf32>
    %541 = math.tanh %540 : vector<6x128xf32>
    %542 = arith.mulf %537, %541 : vector<6x128xf32>
    %543 = vector.extract_strided_slice %384 {offsets = [3, 0], sizes = [1, 512], strides = [1, 1]} : vector<6x1024xf32> to vector<1x512xf32>
    %544 = vector.extract_strided_slice %384 {offsets = [2, 512], sizes = [1, 512], strides = [1, 1]} : vector<6x1024xf32> to vector<1x512xf32>
    %545 = vector.extract_strided_slice %392 {offsets = [3, 0], sizes = [1, 512], strides = [1, 1]} : vector<6x1024xf32> to vector<1x512xf32>
    %546 = vector.extract_strided_slice %392 {offsets = [2, 512], sizes = [1, 512], strides = [1, 1]} : vector<6x1024xf32> to vector<1x512xf32>
    %547 = vector.extract_strided_slice %400 {offsets = [3, 0], sizes = [1, 512], strides = [1, 1]} : vector<6x1024xf32> to vector<1x512xf32>
    %548 = vector.extract_strided_slice %400 {offsets = [2, 512], sizes = [1, 512], strides = [1, 1]} : vector<6x1024xf32> to vector<1x512xf32>
    %549 = tpu.concatenate %543, %544, %545, %546, %547, %548 in 0 : vector<1x512xf32>, vector<1x512xf32>, vector<1x512xf32>, vector<1x512xf32>, vector<1x512xf32>, vector<1x512xf32> -> vector<6x512xf32>
    %550 = arith.truncf %542 : vector<6x128xf32> to vector<6x128xbf16>
    %551 = tpu.concatenate %550, %550, %550, %550, %550, %550 in 1 : vector<6x128xbf16>, vector<6x128xbf16>, vector<6x128xbf16>, vector<6x128xbf16>, vector<6x128xbf16>, vector<6x128xbf16> -> vector<6x768xbf16>
    %552 = arith.mulf %551, %16 : vector<6x768xbf16>
    %cst_84 = arith.constant dense<0.000000e+00> : vector<6x512xf32>
    %553 = tpu.matmul %552, %401, %cst_84 {dimension_numbers = #tpu.dot_dimension_numbers<[1], [0], [0], [1], [0, 0, 1, 1], [], []>} : vector<6x768xbf16>, vector<768x512xbf16>, vector<6x512xf32> -> vector<6x512xf32>
    %554 = arith.addf %549, %553 : vector<6x512xf32>
    %555 = vector.extract_strided_slice %554 {offsets = [0, 0], sizes = [6, 128], strides = [1, 1]} : vector<6x512xf32> to vector<6x128xf32>
    %556 = arith.negf %555 : vector<6x128xf32>
    %557 = math.exp %556 : vector<6x128xf32>
    %cst_85 = arith.constant 1.000000e+00 : f32
    %558 = vector.broadcast %cst_85 : f32 to vector<6x128xf32>
    %559 = arith.addf %558, %557 : vector<6x128xf32>
    %560 = arith.divf %558, %559 : vector<6x128xf32>
    %561 = vector.extract_strided_slice %554 {offsets = [0, 128], sizes = [6, 128], strides = [1, 1]} : vector<6x512xf32> to vector<6x128xf32>
    %562 = arith.negf %561 : vector<6x128xf32>
    %563 = math.exp %562 : vector<6x128xf32>
    %cst_86 = arith.constant 1.000000e+00 : f32
    %564 = vector.broadcast %cst_86 : f32 to vector<6x128xf32>
    %565 = arith.addf %564, %563 : vector<6x128xf32>
    %566 = arith.divf %564, %565 : vector<6x128xf32>
    %567 = vector.extract_strided_slice %554 {offsets = [0, 256], sizes = [6, 128], strides = [1, 1]} : vector<6x512xf32> to vector<6x128xf32>
    %568 = math.tanh %567 : vector<6x128xf32>
    %569 = vector.extract_strided_slice %554 {offsets = [0, 384], sizes = [6, 128], strides = [1, 1]} : vector<6x512xf32> to vector<6x128xf32>
    %570 = arith.negf %569 : vector<6x128xf32>
    %571 = math.exp %570 : vector<6x128xf32>
    %cst_87 = arith.constant 1.000000e+00 : f32
    %572 = vector.broadcast %cst_87 : f32 to vector<6x128xf32>
    %573 = arith.addf %572, %571 : vector<6x128xf32>
    %574 = arith.divf %572, %573 : vector<6x128xf32>
    %575 = arith.mulf %566, %540 : vector<6x128xf32>
    %576 = arith.mulf %560, %568 : vector<6x128xf32>
    %577 = arith.addf %575, %576 : vector<6x128xf32>
    %578 = math.tanh %577 : vector<6x128xf32>
    %579 = arith.mulf %574, %578 : vector<6x128xf32>
    %580 = vector.extract_strided_slice %384 {offsets = [4, 0], sizes = [1, 512], strides = [1, 1]} : vector<6x1024xf32> to vector<1x512xf32>
    %581 = vector.extract_strided_slice %384 {offsets = [1, 512], sizes = [1, 512], strides = [1, 1]} : vector<6x1024xf32> to vector<1x512xf32>
    %582 = vector.extract_strided_slice %392 {offsets = [4, 0], sizes = [1, 512], strides = [1, 1]} : vector<6x1024xf32> to vector<1x512xf32>
    %583 = vector.extract_strided_slice %392 {offsets = [1, 512], sizes = [1, 512], strides = [1, 1]} : vector<6x1024xf32> to vector<1x512xf32>
    %584 = vector.extract_strided_slice %400 {offsets = [4, 0], sizes = [1, 512], strides = [1, 1]} : vector<6x1024xf32> to vector<1x512xf32>
    %585 = vector.extract_strided_slice %400 {offsets = [1, 512], sizes = [1, 512], strides = [1, 1]} : vector<6x1024xf32> to vector<1x512xf32>
    %586 = tpu.concatenate %580, %581, %582, %583, %584, %585 in 0 : vector<1x512xf32>, vector<1x512xf32>, vector<1x512xf32>, vector<1x512xf32>, vector<1x512xf32>, vector<1x512xf32> -> vector<6x512xf32>
    %587 = arith.truncf %579 : vector<6x128xf32> to vector<6x128xbf16>
    %588 = tpu.concatenate %587, %587, %587, %587, %587, %587 in 1 : vector<6x128xbf16>, vector<6x128xbf16>, vector<6x128xbf16>, vector<6x128xbf16>, vector<6x128xbf16>, vector<6x128xbf16> -> vector<6x768xbf16>
    %589 = arith.mulf %588, %16 : vector<6x768xbf16>
    %cst_88 = arith.constant dense<0.000000e+00> : vector<6x512xf32>
    %590 = tpu.matmul %589, %401, %cst_88 {dimension_numbers = #tpu.dot_dimension_numbers<[1], [0], [0], [1], [0, 0, 1, 1], [], []>} : vector<6x768xbf16>, vector<768x512xbf16>, vector<6x512xf32> -> vector<6x512xf32>
    %591 = arith.addf %586, %590 : vector<6x512xf32>
    %592 = vector.extract_strided_slice %591 {offsets = [0, 0], sizes = [6, 128], strides = [1, 1]} : vector<6x512xf32> to vector<6x128xf32>
    %593 = arith.negf %592 : vector<6x128xf32>
    %594 = math.exp %593 : vector<6x128xf32>
    %cst_89 = arith.constant 1.000000e+00 : f32
    %595 = vector.broadcast %cst_89 : f32 to vector<6x128xf32>
    %596 = arith.addf %595, %594 : vector<6x128xf32>
    %597 = arith.divf %595, %596 : vector<6x128xf32>
    %598 = vector.extract_strided_slice %591 {offsets = [0, 128], sizes = [6, 128], strides = [1, 1]} : vector<6x512xf32> to vector<6x128xf32>
    %599 = arith.negf %598 : vector<6x128xf32>
    %600 = math.exp %599 : vector<6x128xf32>
    %cst_90 = arith.constant 1.000000e+00 : f32
    %601 = vector.broadcast %cst_90 : f32 to vector<6x128xf32>
    %602 = arith.addf %601, %600 : vector<6x128xf32>
    %603 = arith.divf %601, %602 : vector<6x128xf32>
    %604 = vector.extract_strided_slice %591 {offsets = [0, 256], sizes = [6, 128], strides = [1, 1]} : vector<6x512xf32> to vector<6x128xf32>
    %605 = math.tanh %604 : vector<6x128xf32>
    %606 = vector.extract_strided_slice %591 {offsets = [0, 384], sizes = [6, 128], strides = [1, 1]} : vector<6x512xf32> to vector<6x128xf32>
    %607 = arith.negf %606 : vector<6x128xf32>
    %608 = math.exp %607 : vector<6x128xf32>
    %cst_91 = arith.constant 1.000000e+00 : f32
    %609 = vector.broadcast %cst_91 : f32 to vector<6x128xf32>
    %610 = arith.addf %609, %608 : vector<6x128xf32>
    %611 = arith.divf %609, %610 : vector<6x128xf32>
    %612 = arith.mulf %603, %577 : vector<6x128xf32>
    %613 = arith.mulf %597, %605 : vector<6x128xf32>
    %614 = arith.addf %612, %613 : vector<6x128xf32>
    %615 = math.tanh %614 : vector<6x128xf32>
    %616 = arith.mulf %611, %615 : vector<6x128xf32>
    %617 = vector.extract_strided_slice %616 {offsets = [0, 0], sizes = [1, 128], strides = [1, 1]} : vector<6x128xf32> to vector<1x128xf32>
    %618 = vector.extract_strided_slice %616 {offsets = [1, 0], sizes = [1, 128], strides = [1, 1]} : vector<6x128xf32> to vector<1x128xf32>
    %619 = vector.extract_strided_slice %616 {offsets = [2, 0], sizes = [1, 128], strides = [1, 1]} : vector<6x128xf32> to vector<1x128xf32>
    %620 = vector.extract_strided_slice %616 {offsets = [3, 0], sizes = [1, 128], strides = [1, 1]} : vector<6x128xf32> to vector<1x128xf32>
    %621 = vector.extract_strided_slice %579 {offsets = [4, 0], sizes = [1, 128], strides = [1, 1]} : vector<6x128xf32> to vector<1x128xf32>
    %622 = vector.extract_strided_slice %616 {offsets = [5, 0], sizes = [1, 128], strides = [1, 1]} : vector<6x128xf32> to vector<1x128xf32>
    %623 = tpu.concatenate %617, %618, %619, %620, %621, %622 in 0 : vector<1x128xf32>, vector<1x128xf32>, vector<1x128xf32>, vector<1x128xf32>, vector<1x128xf32>, vector<1x128xf32> -> vector<6x128xf32>
    %624 = vector.extract_strided_slice %614 {offsets = [0, 0], sizes = [1, 128], strides = [1, 1]} : vector<6x128xf32> to vector<1x128xf32>
    %625 = vector.extract_strided_slice %614 {offsets = [1, 0], sizes = [1, 128], strides = [1, 1]} : vector<6x128xf32> to vector<1x128xf32>
    %626 = vector.extract_strided_slice %614 {offsets = [2, 0], sizes = [1, 128], strides = [1, 1]} : vector<6x128xf32> to vector<1x128xf32>
    %627 = vector.extract_strided_slice %614 {offsets = [3, 0], sizes = [1, 128], strides = [1, 1]} : vector<6x128xf32> to vector<1x128xf32>
    %628 = vector.extract_strided_slice %577 {offsets = [4, 0], sizes = [1, 128], strides = [1, 1]} : vector<6x128xf32> to vector<1x128xf32>
    %629 = vector.extract_strided_slice %614 {offsets = [5, 0], sizes = [1, 128], strides = [1, 1]} : vector<6x128xf32> to vector<1x128xf32>
    %630 = tpu.concatenate %624, %625, %626, %627, %628, %629 in 0 : vector<1x128xf32>, vector<1x128xf32>, vector<1x128xf32>, vector<1x128xf32>, vector<1x128xf32>, vector<1x128xf32> -> vector<6x128xf32>
    %631 = vector.extract_strided_slice %384 {offsets = [5, 0], sizes = [1, 512], strides = [1, 1]} : vector<6x1024xf32> to vector<1x512xf32>
    %632 = vector.extract_strided_slice %384 {offsets = [0, 512], sizes = [1, 512], strides = [1, 1]} : vector<6x1024xf32> to vector<1x512xf32>
    %633 = vector.extract_strided_slice %392 {offsets = [5, 0], sizes = [1, 512], strides = [1, 1]} : vector<6x1024xf32> to vector<1x512xf32>
    %634 = vector.extract_strided_slice %392 {offsets = [0, 512], sizes = [1, 512], strides = [1, 1]} : vector<6x1024xf32> to vector<1x512xf32>
    %635 = vector.extract_strided_slice %400 {offsets = [5, 0], sizes = [1, 512], strides = [1, 1]} : vector<6x1024xf32> to vector<1x512xf32>
    %636 = vector.extract_strided_slice %400 {offsets = [0, 512], sizes = [1, 512], strides = [1, 1]} : vector<6x1024xf32> to vector<1x512xf32>
    %637 = tpu.concatenate %631, %632, %633, %634, %635, %636 in 0 : vector<1x512xf32>, vector<1x512xf32>, vector<1x512xf32>, vector<1x512xf32>, vector<1x512xf32>, vector<1x512xf32> -> vector<6x512xf32>
    %638 = arith.truncf %623 : vector<6x128xf32> to vector<6x128xbf16>
    %639 = tpu.concatenate %638, %638, %638, %638, %638, %638 in 1 : vector<6x128xbf16>, vector<6x128xbf16>, vector<6x128xbf16>, vector<6x128xbf16>, vector<6x128xbf16>, vector<6x128xbf16> -> vector<6x768xbf16>
    %640 = arith.mulf %639, %16 : vector<6x768xbf16>
    %cst_92 = arith.constant dense<0.000000e+00> : vector<6x512xf32>
    %641 = tpu.matmul %640, %401, %cst_92 {dimension_numbers = #tpu.dot_dimension_numbers<[1], [0], [0], [1], [0, 0, 1, 1], [], []>} : vector<6x768xbf16>, vector<768x512xbf16>, vector<6x512xf32> -> vector<6x512xf32>
    %642 = arith.addf %637, %641 : vector<6x512xf32>
    %643 = vector.extract_strided_slice %642 {offsets = [0, 0], sizes = [6, 128], strides = [1, 1]} : vector<6x512xf32> to vector<6x128xf32>
    %644 = arith.negf %643 : vector<6x128xf32>
    %645 = math.exp %644 : vector<6x128xf32>
    %cst_93 = arith.constant 1.000000e+00 : f32
    %646 = vector.broadcast %cst_93 : f32 to vector<6x128xf32>
    %647 = arith.addf %646, %645 : vector<6x128xf32>
    %648 = arith.divf %646, %647 : vector<6x128xf32>
    %649 = vector.extract_strided_slice %642 {offsets = [0, 128], sizes = [6, 128], strides = [1, 1]} : vector<6x512xf32> to vector<6x128xf32>
    %650 = arith.negf %649 : vector<6x128xf32>
    %651 = math.exp %650 : vector<6x128xf32>
    %cst_94 = arith.constant 1.000000e+00 : f32
    %652 = vector.broadcast %cst_94 : f32 to vector<6x128xf32>
    %653 = arith.addf %652, %651 : vector<6x128xf32>
    %654 = arith.divf %652, %653 : vector<6x128xf32>
    %655 = vector.extract_strided_slice %642 {offsets = [0, 256], sizes = [6, 128], strides = [1, 1]} : vector<6x512xf32> to vector<6x128xf32>
    %656 = math.tanh %655 : vector<6x128xf32>
    %657 = vector.extract_strided_slice %642 {offsets = [0, 384], sizes = [6, 128], strides = [1, 1]} : vector<6x512xf32> to vector<6x128xf32>
    %658 = arith.negf %657 : vector<6x128xf32>
    %659 = math.exp %658 : vector<6x128xf32>
    %cst_95 = arith.constant 1.000000e+00 : f32
    %660 = vector.broadcast %cst_95 : f32 to vector<6x128xf32>
    %661 = arith.addf %660, %659 : vector<6x128xf32>
    %662 = arith.divf %660, %661 : vector<6x128xf32>
    %663 = arith.mulf %654, %630 : vector<6x128xf32>
    %664 = arith.mulf %648, %656 : vector<6x128xf32>
    %665 = arith.addf %663, %664 : vector<6x128xf32>
    %666 = math.tanh %665 : vector<6x128xf32>
    %667 = arith.mulf %662, %666 : vector<6x128xf32>
    %668 = vector.extract_strided_slice %667 {offsets = [0, 0], sizes = [1, 128], strides = [1, 1]} : vector<6x128xf32> to vector<1x128xf32>
    %669 = vector.extract_strided_slice %667 {offsets = [1, 0], sizes = [1, 128], strides = [1, 1]} : vector<6x128xf32> to vector<1x128xf32>
    %670 = vector.extract_strided_slice %623 {offsets = [2, 0], sizes = [1, 128], strides = [1, 1]} : vector<6x128xf32> to vector<1x128xf32>
    %671 = vector.extract_strided_slice %667 {offsets = [3, 0], sizes = [1, 128], strides = [1, 1]} : vector<6x128xf32> to vector<1x128xf32>
    %672 = vector.extract_strided_slice %623 {offsets = [4, 0], sizes = [1, 128], strides = [1, 1]} : vector<6x128xf32> to vector<1x128xf32>
    %673 = vector.extract_strided_slice %667 {offsets = [5, 0], sizes = [1, 128], strides = [1, 1]} : vector<6x128xf32> to vector<1x128xf32>
    %674 = tpu.concatenate %668, %669, %670, %671, %672, %673 in 0 : vector<1x128xf32>, vector<1x128xf32>, vector<1x128xf32>, vector<1x128xf32>, vector<1x128xf32>, vector<1x128xf32> -> vector<6x128xf32>
    %675 = vector.extract_strided_slice %447 {offsets = [0, 0], sizes = [1, 128], strides = [1, 1]} : vector<6x128xf32> to vector<1x128xf32>
    %676 = vector.extract_strided_slice %674 {offsets = [1, 0], sizes = [1, 128], strides = [1, 1]} : vector<6x128xf32> to vector<1x128xf32>
    %677 = tpu.concatenate %675, %676 in 1 : vector<1x128xf32>, vector<1x128xf32> -> vector<1x256xf32>
    %678 = vector.extract_strided_slice %498 {offsets = [0, 0], sizes = [1, 128], strides = [1, 1]} : vector<6x128xf32> to vector<1x128xf32>
    %679 = vector.extract_strided_slice %623 {offsets = [1, 0], sizes = [1, 128], strides = [1, 1]} : vector<6x128xf32> to vector<1x128xf32>
    %680 = tpu.concatenate %678, %679 in 1 : vector<1x128xf32>, vector<1x128xf32> -> vector<1x256xf32>
    %681 = vector.extract_strided_slice %542 {offsets = [0, 0], sizes = [1, 128], strides = [1, 1]} : vector<6x128xf32> to vector<1x128xf32>
    %682 = vector.extract_strided_slice %579 {offsets = [1, 0], sizes = [1, 128], strides = [1, 1]} : vector<6x128xf32> to vector<1x128xf32>
    %683 = tpu.concatenate %681, %682 in 1 : vector<1x128xf32>, vector<1x128xf32> -> vector<1x256xf32>
    %684 = vector.extract_strided_slice %579 {offsets = [0, 0], sizes = [1, 128], strides = [1, 1]} : vector<6x128xf32> to vector<1x128xf32>
    %685 = vector.extract_strided_slice %542 {offsets = [1, 0], sizes = [1, 128], strides = [1, 1]} : vector<6x128xf32> to vector<1x128xf32>
    %686 = tpu.concatenate %684, %685 in 1 : vector<1x128xf32>, vector<1x128xf32> -> vector<1x256xf32>
    %687 = vector.extract_strided_slice %623 {offsets = [0, 0], sizes = [1, 128], strides = [1, 1]} : vector<6x128xf32> to vector<1x128xf32>
    %688 = vector.extract_strided_slice %498 {offsets = [1, 0], sizes = [1, 128], strides = [1, 1]} : vector<6x128xf32> to vector<1x128xf32>
    %689 = tpu.concatenate %687, %688 in 1 : vector<1x128xf32>, vector<1x128xf32> -> vector<1x256xf32>
    %690 = vector.extract_strided_slice %674 {offsets = [0, 0], sizes = [1, 128], strides = [1, 1]} : vector<6x128xf32> to vector<1x128xf32>
    %691 = vector.extract_strided_slice %447 {offsets = [1, 0], sizes = [1, 128], strides = [1, 1]} : vector<6x128xf32> to vector<1x128xf32>
    %692 = tpu.concatenate %690, %691 in 1 : vector<1x128xf32>, vector<1x128xf32> -> vector<1x256xf32>
    %693 = tpu.concatenate %677, %680, %683, %686, %689, %692 in 0 : vector<1x256xf32>, vector<1x256xf32>, vector<1x256xf32>, vector<1x256xf32>, vector<1x256xf32>, vector<1x256xf32> -> vector<6x256xf32>
    %694 = vector.extract_strided_slice %447 {offsets = [2, 0], sizes = [1, 128], strides = [1, 1]} : vector<6x128xf32> to vector<1x128xf32>
    %695 = vector.extract_strided_slice %674 {offsets = [3, 0], sizes = [1, 128], strides = [1, 1]} : vector<6x128xf32> to vector<1x128xf32>
    %696 = tpu.concatenate %694, %695 in 1 : vector<1x128xf32>, vector<1x128xf32> -> vector<1x256xf32>
    %697 = vector.extract_strided_slice %498 {offsets = [2, 0], sizes = [1, 128], strides = [1, 1]} : vector<6x128xf32> to vector<1x128xf32>
    %698 = vector.extract_strided_slice %623 {offsets = [3, 0], sizes = [1, 128], strides = [1, 1]} : vector<6x128xf32> to vector<1x128xf32>
    %699 = tpu.concatenate %697, %698 in 1 : vector<1x128xf32>, vector<1x128xf32> -> vector<1x256xf32>
    %700 = vector.extract_strided_slice %542 {offsets = [2, 0], sizes = [1, 128], strides = [1, 1]} : vector<6x128xf32> to vector<1x128xf32>
    %701 = vector.extract_strided_slice %579 {offsets = [3, 0], sizes = [1, 128], strides = [1, 1]} : vector<6x128xf32> to vector<1x128xf32>
    %702 = tpu.concatenate %700, %701 in 1 : vector<1x128xf32>, vector<1x128xf32> -> vector<1x256xf32>
    %703 = vector.extract_strided_slice %579 {offsets = [2, 0], sizes = [1, 128], strides = [1, 1]} : vector<6x128xf32> to vector<1x128xf32>
    %704 = vector.extract_strided_slice %542 {offsets = [3, 0], sizes = [1, 128], strides = [1, 1]} : vector<6x128xf32> to vector<1x128xf32>
    %705 = tpu.concatenate %703, %704 in 1 : vector<1x128xf32>, vector<1x128xf32> -> vector<1x256xf32>
    %706 = vector.extract_strided_slice %623 {offsets = [2, 0], sizes = [1, 128], strides = [1, 1]} : vector<6x128xf32> to vector<1x128xf32>
    %707 = vector.extract_strided_slice %498 {offsets = [3, 0], sizes = [1, 128], strides = [1, 1]} : vector<6x128xf32> to vector<1x128xf32>
    %708 = tpu.concatenate %706, %707 in 1 : vector<1x128xf32>, vector<1x128xf32> -> vector<1x256xf32>
    %cst_96 = arith.constant 0.000000e+00 : f32
    %709 = vector.broadcast %cst_96 : f32 to vector<1x256xf32>
    %710 = tpu.concatenate %696, %699, %702, %705, %708, %709 in 0 : vector<1x256xf32>, vector<1x256xf32>, vector<1x256xf32>, vector<1x256xf32>, vector<1x256xf32>, vector<1x256xf32> -> vector<6x256xf32>
    %711 = vector.extract_strided_slice %447 {offsets = [4, 0], sizes = [1, 128], strides = [1, 1]} : vector<6x128xf32> to vector<1x128xf32>
    %712 = vector.extract_strided_slice %674 {offsets = [5, 0], sizes = [1, 128], strides = [1, 1]} : vector<6x128xf32> to vector<1x128xf32>
    %713 = tpu.concatenate %711, %712 in 1 : vector<1x128xf32>, vector<1x128xf32> -> vector<1x256xf32>
    %714 = vector.extract_strided_slice %498 {offsets = [4, 0], sizes = [1, 128], strides = [1, 1]} : vector<6x128xf32> to vector<1x128xf32>
    %715 = vector.extract_strided_slice %623 {offsets = [5, 0], sizes = [1, 128], strides = [1, 1]} : vector<6x128xf32> to vector<1x128xf32>
    %716 = tpu.concatenate %714, %715 in 1 : vector<1x128xf32>, vector<1x128xf32> -> vector<1x256xf32>
    %717 = vector.extract_strided_slice %542 {offsets = [4, 0], sizes = [1, 128], strides = [1, 1]} : vector<6x128xf32> to vector<1x128xf32>
    %718 = vector.extract_strided_slice %579 {offsets = [5, 0], sizes = [1, 128], strides = [1, 1]} : vector<6x128xf32> to vector<1x128xf32>
    %719 = tpu.concatenate %717, %718 in 1 : vector<1x128xf32>, vector<1x128xf32> -> vector<1x256xf32>
    %720 = vector.extract_strided_slice %579 {offsets = [4, 0], sizes = [1, 128], strides = [1, 1]} : vector<6x128xf32> to vector<1x128xf32>
    %721 = vector.extract_strided_slice %542 {offsets = [5, 0], sizes = [1, 128], strides = [1, 1]} : vector<6x128xf32> to vector<1x128xf32>
    %722 = tpu.concatenate %720, %721 in 1 : vector<1x128xf32>, vector<1x128xf32> -> vector<1x256xf32>
    %cst_97 = arith.constant 0.000000e+00 : f32
    %723 = vector.broadcast %cst_97 : f32 to vector<1x256xf32>
    %cst_98 = arith.constant 0.000000e+00 : f32
    %724 = vector.broadcast %cst_98 : f32 to vector<1x256xf32>
    %725 = tpu.concatenate %713, %716, %719, %722, %723, %724 in 0 : vector<1x256xf32>, vector<1x256xf32>, vector<1x256xf32>, vector<1x256xf32>, vector<1x256xf32>, vector<1x256xf32> -> vector<6x256xf32>
    %726 = vector.extract_strided_slice %693 {offsets = [0, 0], sizes = [5, 256], strides = [1, 1]} : vector<6x256xf32> to vector<5x256xf32>
    %727 = vector.extract_strided_slice %710 {offsets = [0, 0], sizes = [4, 256], strides = [1, 1]} : vector<6x256xf32> to vector<4x256xf32>
    %728 = vector.extract_strided_slice %725 {offsets = [0, 0], sizes = [3, 256], strides = [1, 1]} : vector<6x256xf32> to vector<3x256xf32>
    %729 = tpu.concatenate %726, %727, %728 in 0 : vector<5x256xf32>, vector<4x256xf32>, vector<3x256xf32> -> vector<12x256xf32>
    %c0_99 = arith.constant 0 : index
    %c100 = arith.constant 100 : index
    %730 = vector.load %arg4[%c0_99, %c100] : memref<256x128xf32, #tpu.memory_space<vmem>>, vector<256x1xf32>
    %cst_100 = arith.constant dense<0.000000e+00> : vector<12x1xf32>
    %731 = tpu.matmul %729, %730, %cst_100 {dimension_numbers = #tpu.dot_dimension_numbers<[1], [0], [0], [1], [0, 0, 1, 1], [], []>} : vector<12x256xf32>, vector<256x1xf32>, vector<12x1xf32> -> vector<12x1xf32>
    %cst_101 = arith.constant dense<0xFF800000> : vector<1xf32>
    %732 = vector.multi_reduction <maximumf>, %731, %cst_101 [0] : vector<12x1xf32> to vector<1xf32>
    %733 = vector.shape_cast %732 : vector<1xf32> to vector<1x1xf32>
    %734 = vector.broadcast %733 : vector<1x1xf32> to vector<12x1xf32>
    %735 = arith.subf %731, %734 : vector<12x1xf32>
    %736 = math.exp %735 : vector<12x1xf32>
    %cst_102 = arith.constant dense<0.000000e+00> : vector<1xf32>
    %737 = vector.multi_reduction <add>, %736, %cst_102 [0] : vector<12x1xf32> to vector<1xf32>
    %738 = vector.shape_cast %737 : vector<1xf32> to vector<1x1xf32>
    %739 = vector.broadcast %738 : vector<1x1xf32> to vector<12x1xf32>
    %740 = arith.divf %736, %739 : vector<12x1xf32>
    %c0_103 = arith.constant 0 : index
    %c0_104 = arith.constant 0 : index
    %741 = vector.load %arg9[%c0_103, %c0_104] : memref<12x1xf32, #tpu.memory_space<vmem>>, vector<12x1xf32>
    tpu.vector_store %arg9[%c0_103, %c0_104], %740 {strides = array<i32>} : memref<12x1xf32, #tpu.memory_space<vmem>>, vector<12x1xf32>,
    %742 = vector.broadcast %740 : vector<12x1xf32> to vector<12x256xf32>
    %743 = arith.mulf %729, %742 : vector<12x256xf32>
    %cst_105 = arith.constant dense<0.000000e+00> : vector<256xf32>
    %744 = vector.multi_reduction <add>, %743, %cst_105 [0] : vector<12x256xf32> to vector<256xf32>
    %745 = vector.shape_cast %744 : vector<256xf32> to vector<1x256xf32>
    %c0_106 = arith.constant 0 : index
    %c0_107 = arith.constant 0 : index
    %746 = vector.load %arg4[%c0_106, %c0_107] : memref<256x128xf32, #tpu.memory_space<vmem>>, vector<256x100xf32>
    %c104 = arith.constant 104 : index
    %c0_108 = arith.constant 0 : index
    %747 = vector.load %arg5[%c104, %c0_108] : memref<112x128xf32, #tpu.memory_space<vmem>>, vector<1x100xf32>
    %c0_109 = arith.constant 0 : index
    %c0_110 = arith.constant 0 : index
    %748 = vector.load %arg5[%c0_109, %c0_110] : memref<112x128xf32, #tpu.memory_space<vmem>>, vector<100x50xf32>
    %c105 = arith.constant 105 : index
    %c0_111 = arith.constant 0 : index
    %749 = vector.load %arg5[%c105, %c0_111] : memref<112x128xf32, #tpu.memory_space<vmem>>, vector<1x50xf32>
    %c0_112 = arith.constant 0 : index
    %c50 = arith.constant 50 : index
    %750 = vector.load %arg5[%c0_112, %c50] : memref<112x128xf32, #tpu.memory_space<vmem>>, vector<50x4xf32>
    %c106 = arith.constant 106 : index
    %c0_113 = arith.constant 0 : index
    %751 = vector.load %arg5[%c106, %c0_113] : memref<112x128xf32, #tpu.memory_space<vmem>>, vector<1x4xf32>
    %cst_114 = arith.constant dense<0.000000e+00> : vector<1x100xf32>
    %752 = tpu.matmul %745, %746, %cst_114 {dimension_numbers = #tpu.dot_dimension_numbers<[1], [0], [0], [1], [0, 0, 1, 1], [], []>} : vector<1x256xf32>, vector<256x100xf32>, vector<1x100xf32> -> vector<1x100xf32>
    %753 = arith.addf %752, %747 : vector<1x100xf32>
    %cst_115 = arith.constant 0.000000e+00 : f32
    %754 = vector.broadcast %cst_115 : f32 to vector<1x100xf32>
    %755 = arith.maximumf %753, %754 : vector<1x100xf32>
    %cst_116 = arith.constant dense<0.000000e+00> : vector<1x50xf32>
    %756 = tpu.matmul %755, %748, %cst_116 {dimension_numbers = #tpu.dot_dimension_numbers<[1], [0], [0], [1], [0, 0, 1, 1], [], []>} : vector<1x100xf32>, vector<100x50xf32>, vector<1x50xf32> -> vector<1x50xf32>
    %757 = arith.addf %756, %749 : vector<1x50xf32>
    %cst_117 = arith.constant dense<0.000000e+00> : vector<1x4xf32>
    %758 = tpu.matmul %757, %750, %cst_117 {dimension_numbers = #tpu.dot_dimension_numbers<[1], [0], [0], [1], [0, 0, 1, 1], [], []>} : vector<1x50xf32>, vector<50x4xf32>, vector<1x4xf32> -> vector<1x4xf32>
    %759 = arith.addf %758, %751 : vector<1x4xf32>
    %c0_118 = arith.constant 0 : index
    %c0_119 = arith.constant 0 : index
    %760 = vector.load %arg8[%c0_118, %c0_119] : memref<1x4xf32, #tpu.memory_space<vmem>>, vector<1x4xf32>
    tpu.vector_store %arg8[%c0_118, %c0_119], %759 {strides = array<i32>} : memref<1x4xf32, #tpu.memory_space<vmem>>, vector<1x4xf32>,
    return
  }
}

</mosaic_0001>

<llo_original>
// kernel: tpu_custom_call.1
$region0: #{tpu_custom_call.1}
  #allocation0 [shape = 'u32[]', space=smem, size = 0x4, offset = 0x4, fixed_abs, tag = 'smem constant byte address 0x4 - core index']
  #allocation1 [shape = 'u32[144,128]{1,0:T(1,128)}', space=vmem, size = 0x12000, scoped, tag = 'internal scratch']
  #allocation2 [shape = 'bf16[3,256,1024]{2,1,0:T(16,128)(2,1)}', space=vmem, size = 0x180000, scoped, tag = 'scratch operand']
  #allocation3 [shape = 'bf16[768,512]{1,0:T(16,128)(2,1)}', space=vmem, size = 0xc0000, scoped, tag = 'scratch operand']
  #allocation4 [shape = 's32[2]{0}', space=sflag, size = 0x8, scoped, tag = 'scratch operand']
  #allocation15 [shape = 's32[]', space=sflag, size = 0x4, offset = 0, fixed_abs, tag = 'sflag constant byte address 0x0 - dummy sync flag']
  #allocation17 [shape = 's32[]', space=sflag, size = 0x4, offset = 0, fixed_abs, tag = 'sflag constant byte address 0x0 - dummy sync flag']
  %s0 = inlined_call_operand.hbm [shape: f32[3,6,8], index: 0, kind: input, shape index: {}]
  %s1 = inlined_call_operand.hbm [shape: bf16[3,8,1024], index: 1, kind: input, shape index: {}]
  %s2 = inlined_call_operand.hbm [shape: bf16[768,512], index: 2, kind: input, shape index: {}]
  %s3 = inlined_call_operand.vmem [shape: f32[2,3,1024], index: 3, kind: input, shape index: {}]
  %s4 = inlined_call_operand.hbm [shape: f32[256,128], index: 4, kind: input, shape index: {}]
  %s5 = inlined_call_operand.hbm [shape: f32[112,128], index: 5, kind: input, shape index: {}]
  %s6 = inlined_call_operand.hbm [shape: bf16[3,256,1024], index: 6, kind: input, shape index: {}]
  %s7 = inlined_call_operand.hbm [shape: bf16[768,512], index: 7, kind: input, shape index: {}]
  %s8 = inlined_call_operand.hbm [shape: f32[1,4], index: 8, kind: output, shape index: {0}]
  %s9 = inlined_call_operand.vmem [shape: f32[12,1], index: 9, kind: output, shape index: {1}]
  %10 = xla_tuple %s8, %s9
  %s11 = sld [smem:[#allocation0]]
  $region62: #{tpu_custom_call.1} parent=0
    _
  %s13 = ssub.s32 1, %s11
  %s14 = scalar_select 0, %s13, %s11
  $region1: #{tpu_custom_call.1} parent=0
    #allocation5 [shape = 'u8[12288]{0}', space=vmem, size = 0x3000, scoped, tag = 'input window, operand 0, single buffered']
    #allocation6 [shape = 's32[1]{0}', space=sflag, size = 0x4, scoped, tag = 'scoped memory for tpu_custom_call.1']
    #allocation7 [shape = 's32[1]{0}', space=sflag, size = 0x4, scoped, tag = 'scoped memory for tpu_custom_call.1']
    #allocation8 [shape = 'u8[49152]{0}', space=vmem, size = 0xc000, scoped, tag = 'input window, operand 1, single buffered']
    #allocation9 [shape = 's32[1]{0}', space=sflag, size = 0x4, scoped, tag = 'scoped memory for tpu_custom_call.1']
    #allocation10 [shape = 'u8[786432]{0}', space=vmem, size = 0xc0000, scoped, tag = 'input window, operand 2, single buffered']
    #allocation11 [shape = 'u8[131072]{0}', space=vmem, size = 0x20000, scoped, tag = 'input window, operand 4, single buffered']
    #allocation12 [shape = 's32[1]{0}', space=sflag, size = 0x4, scoped, tag = 'scoped memory for tpu_custom_call.1']
    #allocation13 [shape = 'u8[57344]{0}', space=vmem, size = 0xe000, scoped, tag = 'input window, operand 5, single buffered']
    #allocation14 [shape = 'u8[512]{0}', space=vmem, size = 0x400, scoped, tag = 'output window, operand 0, single buffered']
    #allocation16 [shape = 'u32[9]{0}', space=smem, size = 0x24, scoped, tag = 'DMA stride descriptor']
    #allocation18 [shape = 'u32[9]{0}', space=smem, size = 0x24, scoped, tag = 'DMA stride descriptor']
    %15 = vsyncpa [#allocation6], 0
    %16 = vsyncpa [#allocation9], 0
    %17 = vsyncpa [#allocation12], 0
    %18 = vsyncpa [#allocation7], 0
    // Predicated region
    $region2: #{tpu_custom_call.1} parent=1 // pred_check
      _
    $region3: #{tpu_custom_call.1} parent=1 // pred_check_branch
      %20 = sbr.rel (0) target = $region5
    $region4: #{tpu_custom_call.1} parent=1 // pred_region
      %s22 = ssub.s32 384, 384
      %23 = vsyncadd [#allocation6], %s22
      %s24 = sshll.u32 [#allocation5], 4
      %s25 = int_to_ptr.vmem [resolvable:$true] %s24
      %30 = dma.hbm_to_vmem [thread:$0]  %s0, 384, %s25, [#allocation6], 128, 128, 8
    $region5: #{tpu_custom_call.1} parent=1 // pred_fallthru
      _
    // Predicated region
    $region6: #{tpu_custom_call.1} parent=1 // pred_check
      _
    $region7: #{tpu_custom_call.1} parent=1 // pred_check_branch
      %32 = sbr.rel (0) target = $region9
    $region8: #{tpu_custom_call.1} parent=1 // pred_region
      %s34 = ssub.s32 1536, 1536
      %35 = vsyncadd [#allocation9], %s34
      %s36 = sshll.u32 [#allocation8], 4
      %s37 = int_to_ptr.vmem [resolvable:$true] %s36
      %42 = dma.hbm_to_vmem [thread:$0]  %s1, 1536, %s37, [#allocation9], 512, 512, 32
    $region9: #{tpu_custom_call.1} parent=1 // pred_fallthru
      _
    // Predicated region
    $region10: #{tpu_custom_call.1} parent=1 // pred_check
      _
    $region11: #{tpu_custom_call.1} parent=1 // pred_check_branch
      %44 = sbr.rel (0) target = $region13
    $region12: #{tpu_custom_call.1} parent=1 // pred_region
      %s46 = ssub.s32 24576, 24576
      %47 = vsyncadd [#allocation9], %s46
      %s48 = sshll.u32 [#allocation10], 4
      %s49 = int_to_ptr.vmem [resolvable:$true] %s48
      %54 = dma.hbm_to_vmem [thread:$0]  %s2, 24576, %s49, [#allocation9], 256, 256, 16
    $region13: #{tpu_custom_call.1} parent=1 // pred_fallthru
      _
    // Predicated region
    $region14: #{tpu_custom_call.1} parent=1 // pred_check
      _
    $region15: #{tpu_custom_call.1} parent=1 // pred_check_branch
      %56 = sbr.rel (0) target = $region17
    $region16: #{tpu_custom_call.1} parent=1 // pred_region
      _
    $region17: #{tpu_custom_call.1} parent=1 // pred_fallthru
      _
    // Predicated region
    $region18: #{tpu_custom_call.1} parent=1 // pred_check
      _
    $region19: #{tpu_custom_call.1} parent=1 // pred_check_branch
      %58 = sbr.rel (0) target = $region21
    $region20: #{tpu_custom_call.1} parent=1 // pred_region
      %s60 = ssub.s32 4096, 4096
      %61 = vsyncadd [#allocation12], %s60
      %s62 = sshll.u32 [#allocation11], 4
      %s63 = int_to_ptr.vmem [resolvable:$true] %s62
      %68 = dma.hbm_to_vmem [thread:$0]  %s4, 4096, %s63, [#allocation12], 128, 128, 8
    $region21: #{tpu_custom_call.1} parent=1 // pred_fallthru
      _
    // Predicated region
    $region22: #{tpu_custom_call.1} parent=1 // pred_check
      _
    $region23: #{tpu_custom_call.1} parent=1 // pred_check_branch
      %70 = sbr.rel (0) target = $region25
    $region24: #{tpu_custom_call.1} parent=1 // pred_region
      %s72 = ssub.s32 1792, 1792
      %73 = vsyncadd [#allocation12], %s72
      %s74 = sshll.u32 [#allocation13], 4
      %s75 = int_to_ptr.vmem [resolvable:$true] %s74
      %80 = dma.hbm_to_vmem [thread:$0]  %s5, 1792, %s75, [#allocation12], 128, 128, 8
    $region25: #{tpu_custom_call.1} parent=1 // pred_fallthru
      _
    // Predicated region
    $region26: #{tpu_custom_call.1} parent=1 // pred_check
      _
    $region27: #{tpu_custom_call.1} parent=1 // pred_check_branch
      %82 = sbr.rel (0) target = $region29
    $region28: #{tpu_custom_call.1} parent=1 // pred_region
      %83 = dma.done [#allocation6], 384
    $region29: #{tpu_custom_call.1} parent=1 // pred_fallthru
      _
    // Predicated region
    $region30: #{tpu_custom_call.1} parent=1 // pred_check
      _
    $region31: #{tpu_custom_call.1} parent=1 // pred_check_branch
      %85 = sbr.rel (0) target = $region33
    $region32: #{tpu_custom_call.1} parent=1 // pred_region
      %86 = dma.done [#allocation9], 1536
    $region33: #{tpu_custom_call.1} parent=1 // pred_fallthru
      _
    // Predicated region
    $region34: #{tpu_custom_call.1} parent=1 // pred_check
      _
    $region35: #{tpu_custom_call.1} parent=1 // pred_check_branch
      %88 = sbr.rel (0) target = $region37
    $region36: #{tpu_custom_call.1} parent=1 // pred_region
      %89 = dma.done [#allocation9], 24576
    $region37: #{tpu_custom_call.1} parent=1 // pred_fallthru
      _
    // Predicated region
    $region38: #{tpu_custom_call.1} parent=1 // pred_check
      _
    $region39: #{tpu_custom_call.1} parent=1 // pred_check_branch
      %91 = sbr.rel (0) target = $region41
    $region40: #{tpu_custom_call.1} parent=1 // pred_region
      %92 = dma.done [#allocation12], 4096
    $region41: #{tpu_custom_call.1} parent=1 // pred_fallthru
      _
    // Predicated region
    $region42: #{tpu_custom_call.1} parent=1 // pred_check
      _
    $region43: #{tpu_custom_call.1} parent=1 // pred_check_branch
      %94 = sbr.rel (0) target = $region45
    $region44: #{tpu_custom_call.1} parent=1 // pred_region
      %95 = dma.done [#allocation12], 1792
    $region45: #{tpu_custom_call.1} parent=1 // pred_fallthru
      _
    %s98 = sshll.u32 1, 14
    %s99 = sxor.u32 4294967295, %s98
    %s101 = sld [smem:[#allocation0]]
    %s102 = sadd.s32 2, %s101
    %s104 = sshll.u32 7, 26
    %s105 = sxor.u32 4294967295, %s104
    %s106 = sand.u32 0, %s105
    %s107 = sshll.u32 %s102, 26
    %s108 = sor.u32 %s106, %s107
    %s109 = sshll.u32 [#allocation2], 4
    %s110 = int_to_ptr.vmem [resolvable:$true] %s109
    %113 = sst [smem:[#allocation16]] 1024
    %s114 = scalar_lea.smem [#allocation16], 1
    %115 = sst [smem:[%s114]] 1024
    %s116 = scalar_lea.smem [#allocation16], 2
    %117 = sst [smem:[%s116]] 8
    %s118 = scalar_lea.smem [#allocation16], 3
    %119 = sst [smem:[%s118]] 64
    %s120 = scalar_lea.smem [#allocation16], 4
    %121 = sst [smem:[%s120]] 128
    %s122 = scalar_lea.smem [#allocation16], 5
    %123 = sst [smem:[%s122]] 2
    %s124 = scalar_lea.smem [#allocation16], 6
    %125 = sst [smem:[%s124]] 512
    %s126 = scalar_lea.smem [#allocation16], 7
    %127 = sst [smem:[%s126]] 64
    %s128 = scalar_lea.smem [#allocation16], 8
    %129 = sst [smem:[%s128]] 4
    %131 = dma.general %s6, 49152, %s110, [#allocation4], [#allocation15], [#allocation16], %s108, 0
    %s132 = scalar_lea.sflag [#allocation4], 1
    %s134 = sshll.u32 1, 14
    %s135 = sxor.u32 4294967295, %s134
    %s137 = sadd.s32 2, %s101
    %s139 = sshll.u32 7, 26
    %s140 = sxor.u32 4294967295, %s139
    %s141 = sand.u32 0, %s140
    %s142 = sshll.u32 %s137, 26
    %s143 = sor.u32 %s141, %s142
    %s144 = sshll.u32 [#allocation3], 4
    %s145 = int_to_ptr.vmem [resolvable:$true] %s144
    %148 = sst [smem:[#allocation18]] 512
    %s149 = scalar_lea.smem [#allocation18], 1
    %150 = sst [smem:[%s149]] 512
    %s151 = scalar_lea.smem [#allocation18], 2
    %152 = sst [smem:[%s151]] 4
    %s153 = scalar_lea.smem [#allocation18], 3
    %154 = sst [smem:[%s153]] 64
    %s155 = scalar_lea.smem [#allocation18], 4
    %156 = sst [smem:[%s155]] 128
    %s157 = scalar_lea.smem [#allocation18], 5
    %158 = sst [smem:[%s157]] 2
    %s159 = scalar_lea.smem [#allocation18], 6
    %160 = sst [smem:[%s159]] 256
    %s161 = scalar_lea.smem [#allocation18], 7
    %162 = sst [smem:[%s161]] 64
    %s163 = scalar_lea.smem [#allocation18], 8
    %164 = sst [smem:[%s163]] 4
    %166 = dma.general %s7, 24576, %s145, %s132, [#allocation17], [#allocation18], %s143, 0
    %v167 = vlaneseq
    %v168 = vand.u32 %v167, 127
    %v169 = vadd.s32 %v168, 128
    %v170 = vadd.s32 %v168, 256
    %v171 = vadd.s32 %v168, 384
    %v172 = vadd.s32 %v168, 512
    %v173 = vadd.s32 %v168, 640
    %v174 = vlaneseq
    %v175 = vshrl.u32 %v174, 7
    %v176 = vmul.u32 %v175, 128
    %vm177 = vcmp.ge.s32.totalorder %v168, %v176
    %vm178 = vcmp.ge.s32.totalorder %v169, %v176
    %vm179 = vcmp.ge.s32.totalorder %v170, %v176
    %vm180 = vcmp.ge.s32.totalorder %v171, %v176
    %vm181 = vcmp.ge.s32.totalorder %v172, %v176
    %vm182 = vcmp.ge.s32.totalorder %v173, %v176
    %v183 = vadd.s32 %v176, 128
    %vm184 = vcmp.lt.s32.totalorder %v168, %v183
    %vm185 = vcmp.lt.s32.totalorder %v169, %v183
    %vm186 = vcmp.lt.s32.totalorder %v170, %v183
    %vm187 = vcmp.lt.s32.totalorder %v171, %v183
    %vm188 = vcmp.lt.s32.totalorder %v172, %v183
    %vm189 = vcmp.lt.s32.totalorder %v173, %v183
    %vm190 = vmand %vm177, %vm184
    %vm191 = vmand %vm178, %vm185
    %vm192 = vmand %vm179, %vm186
    %vm193 = vmand %vm180, %vm187
    %vm194 = vmand %vm181, %vm188
    %vm195 = vmand %vm182, %vm189
    %v196 = vsel %vm190, 1.0, 0.0
    %v197 = vsel %vm191, 1.0, 0.0
    %v198 = vsel %vm192, 1.0, 0.0
    %v199 = vsel %vm193, 1.0, 0.0
    %v200 = vsel %vm194, 1.0, 0.0
    %v201 = vsel %vm195, 1.0, 0.0
    %v202 = vpack.c.bf16 %v196, %v196
    %v203 = vpack.c.bf16 %v197, %v197
    %v204 = vpack.c.bf16 %v198, %v198
    %v205 = vpack.c.bf16 %v199, %v199
    %v206 = vpack.c.bf16 %v200, %v200
    %v207 = vpack.c.bf16 %v201, %v201
    %v208 = vld [vmem:[%s3] sm:$0x77]
    %v209 = vld [vmem:[%s3 + $0x8] sm:$0x77]
    %v210 = vld [vmem:[%s3 + $0x10] sm:$0x77]
    %v211 = vld [vmem:[%s3 + $0x18] sm:$0x77]
    %v212 = vld [vmem:[%s3 + $0x20] sm:$0x77]
    %v213 = vld [vmem:[%s3 + $0x28] sm:$0x77]
    %v214 = vld [vmem:[%s3 + $0x30] sm:$0x77]
    %v215 = vld [vmem:[%s3 + $0x38] sm:$0x77]
    %v216 = vld [vmem:[#allocation5] sm:$0x3f]
    %v217 = vpack.c.bf16 %v216, %v216
    %v218 = vld [vmem:[#allocation8] sm:$0xff]
    %v219 = vld [vmem:[#allocation8 + $0x8] sm:$0xff]
    %v220 = vld [vmem:[#allocation8 + $0x10] sm:$0xff]
    %v221 = vld [vmem:[#allocation8 + $0x18] sm:$0xff]
    %v226 = vlaneseq
    %v227 = vshrl.u32 %v226, 7
    %v228 = vsub.s32 0, %v227
    %v229 = vrot.slane %v208, %v228
    %v230 = vlaneseq
    %v231 = vshrl.u32 %v230, 7
    %v232 = vsub.s32 4, %v231
    %v233 = vrot.slane %v208, %v232
    %v234 = vlaneseq
    %v235 = vshrl.u32 %v234, 7
    %v236 = vsub.s32 0, %v235
    %v237 = vrot.slane %v209, %v236
    %v238 = vlaneseq
    %v239 = vshrl.u32 %v238, 7
    %v240 = vsub.s32 4, %v239
    %v241 = vrot.slane %v209, %v240
    %v242 = vlaneseq
    %v243 = vshrl.u32 %v242, 7
    %v244 = vsub.s32 0, %v243
    %v245 = vrot.slane %v210, %v244
    %v246 = vlaneseq
    %v247 = vshrl.u32 %v246, 7
    %v248 = vsub.s32 4, %v247
    %v249 = vrot.slane %v210, %v248
    %v250 = vlaneseq
    %v251 = vshrl.u32 %v250, 7
    %v252 = vsub.s32 0, %v251
    %v253 = vrot.slane %v211, %v252
    %v254 = vlaneseq
    %v255 = vshrl.u32 %v254, 7
    %v256 = vsub.s32 4, %v255
    %v257 = vrot.slane %v211, %v256
    %v266 = vlaneseq
    %v267 = vshrl.u32 %v266, 7
    %v268 = vsub.s32 0, %v267
    %v269 = vrot.slane %v229, %v268
    %v270 = vlaneseq
    %v271 = vshrl.u32 %v270, 7
    %v272 = vsub.s32 0, %v271
    %v273 = vrot.slane %v233, %v272
    %v274 = vlaneseq
    %v275 = vshrl.u32 %v274, 7
    %v276 = vsub.s32 0, %v275
    %v277 = vrot.slane %v237, %v276
    %v278 = vlaneseq
    %v279 = vshrl.u32 %v278, 7
    %v280 = vsub.s32 0, %v279
    %v281 = vrot.slane %v241, %v280
    %v282 = vlaneseq
    %v283 = vshrl.u32 %v282, 7
    %v284 = vsub.s32 0, %v283
    %v285 = vrot.slane %v245, %v284
    %v286 = vlaneseq
    %v287 = vshrl.u32 %v286, 7
    %v288 = vsub.s32 0, %v287
    %v289 = vrot.slane %v249, %v288
    %v290 = vlaneseq
    %v291 = vshrl.u32 %v290, 7
    %v292 = vsub.s32 0, %v291
    %v293 = vrot.slane %v253, %v292
    %v294 = vlaneseq
    %v295 = vshrl.u32 %v294, 7
    %v296 = vsub.s32 0, %v295
    %v297 = vrot.slane %v257, %v296
    %v302 = vunpack.c.l.b16 %v218
    %v303 = vunpack.c.h.b16 %v218
    %v304 = vunpack.c.l.b16 %v219
    %v305 = vunpack.c.h.b16 %v219
    %v306 = vunpack.c.l.b16 %v220
    %v307 = vunpack.c.h.b16 %v220
    %v308 = vunpack.c.l.b16 %v221
    %v309 = vunpack.c.h.b16 %v221
    %v310 = vpack.c.b16 %v302, %v302
    %v311 = vpack.c.b16 %v303, %v303
    %v312 = vpack.c.b16 %v304, %v304
    %v313 = vpack.c.b16 %v305, %v305
    %v314 = vpack.c.b16 %v306, %v306
    %v315 = vpack.c.b16 %v307, %v307
    %v316 = vpack.c.b16 %v308, %v308
    %v317 = vpack.c.b16 %v309, %v309
    %vm318 = vcmask 64512
    %v320 = vsel %vm318, %v217, 0
    %vm322 = vcmask 1043456
    %v324 = vsel %vm322, %v310, 0
    %v327 = vsel %vm322, %v311, 0
    %v330 = vsel %vm322, %v312, 0
    %v333 = vsel %vm322, %v313, 0
    %v336 = vsel %vm322, %v314, 0
    %v339 = vsel %vm322, %v315, 0
    %v342 = vsel %vm322, %v316, 0
    %v345 = vsel %vm322, %v317, 0
    %347 = vmatprep.subr.bf16.mxu0 %v327
    %348 = vmatpush1.bf16.msra.mxu0 %v324
    %349 = vmatprep.subr.bf16.mxu0 0
    %350 = vmatpush1.bf16.msra.mxu0 0
    %351 = vmatprep.subr.bf16.mxu0 0
    %352 = vmatpush1.bf16.msra.mxu0 0
    %353 = vmatprep.subr.bf16.mxu0 0
    %354 = vmatpush1.bf16.msra.mxu0 0
    %355 = vmatprep.subr.bf16.mxu0 0
    %356 = vmatpush1.bf16.msra.mxu0 0
    %357 = vmatprep.subr.bf16.mxu0 0
    %358 = vmatpush1.bf16.msra.mxu0 0
    %359 = vmatprep.subr.bf16.mxu0 0
    %360 = vmatpush1.bf16.msra.mxu0 0
    %361 = vmatprep.subr.bf16.mxu0 0
    %362 = vmatpush1.bf16.msra.mxu0 0
    %363 = vmatprep.subr.bf16.mxu0 0
    %364 = vmatpush1.bf16.msra.mxu0 0
    %365 = vmatprep.subr.bf16.mxu0 0
    %366 = vmatpush1.bf16.msra.mxu0 0
    %367 = vmatprep.subr.bf16.mxu0 0
    %368 = vmatpush1.bf16.msra.mxu0 0
    %369 = vmatprep.subr.bf16.mxu0 0
    %370 = vmatpush1.bf16.msra.mxu0 0
    %371 = vmatprep.subr.bf16.mxu0 0
    %372 = vmatpush1.bf16.msra.mxu0 0
    %373 = vmatprep.subr.bf16.mxu0 0
    %374 = vmatpush1.bf16.msra.mxu0 0
    %375 = vmatprep.subr.bf16.mxu0 0
    %376 = vmatpush1.bf16.msra.mxu0 0
    %377 = vmatprep.subr.bf16.mxu0 0
    %378 = vmatpush1.bf16.msra.mxu0 0
    %379 = vmatprep.mubr.bf16.mxu0 0
    %380 = vmatmul.mubr.bf16.gmra.mrb[0].mxu0 %v320
    %v381 = vpop.f32.mrb[0].mxu0
    %v382 = vadd.f32 %v269, %v381
    %v383 = vpop.f32.mrb[0].mxu0
    %v384 = vadd.f32 %v273, %v383
    %v385 = vpop.f32.mrb[0].mxu0
    %v386 = vpop.f32.mrb[0].mxu0
    %387 = vdwg.mxu0
    %388 = vmatprep.subr.bf16.mxu0 %v333
    %389 = vmatpush1.bf16.msra.mxu0 %v330
    %390 = vmatprep.subr.bf16.mxu0 0
    %391 = vmatpush1.bf16.msra.mxu0 0
    %392 = vmatprep.subr.bf16.mxu0 0
    %393 = vmatpush1.bf16.msra.mxu0 0
    %394 = vmatprep.subr.bf16.mxu0 0
    %395 = vmatpush1.bf16.msra.mxu0 0
    %396 = vmatprep.subr.bf16.mxu0 0
    %397 = vmatpush1.bf16.msra.mxu0 0
    %398 = vmatprep.subr.bf16.mxu0 0
    %399 = vmatpush1.bf16.msra.mxu0 0
    %400 = vmatprep.subr.bf16.mxu0 0
    %401 = vmatpush1.bf16.msra.mxu0 0
    %402 = vmatprep.subr.bf16.mxu0 0
    %403 = vmatpush1.bf16.msra.mxu0 0
    %404 = vmatprep.subr.bf16.mxu0 0
    %405 = vmatpush1.bf16.msra.mxu0 0
    %406 = vmatprep.subr.bf16.mxu0 0
    %407 = vmatpush1.bf16.msra.mxu0 0
    %408 = vmatprep.subr.bf16.mxu0 0
    %409 = vmatpush1.bf16.msra.mxu0 0
    %410 = vmatprep.subr.bf16.mxu0 0
    %411 = vmatpush1.bf16.msra.mxu0 0
    %412 = vmatprep.subr.bf16.mxu0 0
    %413 = vmatpush1.bf16.msra.mxu0 0
    %414 = vmatprep.subr.bf16.mxu0 0
    %415 = vmatpush1.bf16.msra.mxu0 0
    %416 = vmatprep.subr.bf16.mxu0 0
    %417 = vmatpush1.bf16.msra.mxu0 0
    %418 = vmatprep.subr.bf16.mxu0 0
    %419 = vmatpush1.bf16.msra.mxu0 0
    %420 = vmatprep.mubr.bf16.mxu0 0
    %421 = vmatmul.mubr.bf16.gmra.mrb[0].mxu0 %v320
    %v422 = vpop.f32.mrb[0].mxu0
    %v423 = vadd.f32 %v277, %v422
    %v424 = vpop.f32.mrb[0].mxu0
    %v425 = vadd.f32 %v281, %v424
    %v426 = vpop.f32.mrb[0].mxu0
    %v427 = vpop.f32.mrb[0].mxu0
    %428 = vdwg.mxu0
    %429 = vmatprep.subr.bf16.mxu0 %v339
    %430 = vmatpush1.bf16.msra.mxu0 %v336
    %431 = vmatprep.subr.bf16.mxu0 0
    %432 = vmatpush1.bf16.msra.mxu0 0
    %433 = vmatprep.subr.bf16.mxu0 0
    %434 = vmatpush1.bf16.msra.mxu0 0
    %435 = vmatprep.subr.bf16.mxu0 0
    %436 = vmatpush1.bf16.msra.mxu0 0
    %437 = vmatprep.subr.bf16.mxu0 0
    %438 = vmatpush1.bf16.msra.mxu0 0
    %439 = vmatprep.subr.bf16.mxu0 0
    %440 = vmatpush1.bf16.msra.mxu0 0
    %441 = vmatprep.subr.bf16.mxu0 0
    %442 = vmatpush1.bf16.msra.mxu0 0
    %443 = vmatprep.subr.bf16.mxu0 0
    %444 = vmatpush1.bf16.msra.mxu0 0
    %445 = vmatprep.subr.bf16.mxu0 0
    %446 = vmatpush1.bf16.msra.mxu0 0
    %447 = vmatprep.subr.bf16.mxu0 0
    %448 = vmatpush1.bf16.msra.mxu0 0
    %449 = vmatprep.subr.bf16.mxu0 0
    %450 = vmatpush1.bf16.msra.mxu0 0
    %451 = vmatprep.subr.bf16.mxu0 0
    %452 = vmatpush1.bf16.msra.mxu0 0
    %453 = vmatprep.subr.bf16.mxu0 0
    %454 = vmatpush1.bf16.msra.mxu0 0
    %455 = vmatprep.subr.bf16.mxu0 0
    %456 = vmatpush1.bf16.msra.mxu0 0
    %457 = vmatprep.subr.bf16.mxu0 0
    %458 = vmatpush1.bf16.msra.mxu0 0
    %459 = vmatprep.subr.bf16.mxu0 0
    %460 = vmatpush1.bf16.msra.mxu0 0
    %461 = vmatprep.mubr.bf16.mxu0 0
    %462 = vmatmul.mubr.bf16.gmra.mrb[0].mxu0 %v320
    %v463 = vpop.f32.mrb[0].mxu0
    %v464 = vadd.f32 %v285, %v463
    %v465 = vpop.f32.mrb[0].mxu0
    %v466 = vadd.f32 %v289, %v465
    %v467 = vpop.f32.mrb[0].mxu0
    %v468 = vpop.f32.mrb[0].mxu0
    %469 = vdwg.mxu0
    %470 = vmatprep.subr.bf16.mxu0 %v345
    %471 = vmatpush1.bf16.msra.mxu0 %v342
    %472 = vmatprep.subr.bf16.mxu0 0
    %473 = vmatpush1.bf16.msra.mxu0 0
    %474 = vmatprep.subr.bf16.mxu0 0
    %475 = vmatpush1.bf16.msra.mxu0 0
    %476 = vmatprep.subr.bf16.mxu0 0
    %477 = vmatpush1.bf16.msra.mxu0 0
    %478 = vmatprep.subr.bf16.mxu0 0
    %479 = vmatpush1.bf16.msra.mxu0 0
    %480 = vmatprep.subr.bf16.mxu0 0
    %481 = vmatpush1.bf16.msra.mxu0 0
    %482 = vmatprep.subr.bf16.mxu0 0
    %483 = vmatpush1.bf16.msra.mxu0 0
    %484 = vmatprep.subr.bf16.mxu0 0
    %485 = vmatpush1.bf16.msra.mxu0 0
    %486 = vmatprep.subr.bf16.mxu0 0
    %487 = vmatpush1.bf16.msra.mxu0 0
    %488 = vmatprep.subr.bf16.mxu0 0
    %489 = vmatpush1.bf16.msra.mxu0 0
    %490 = vmatprep.subr.bf16.mxu0 0
    %491 = vmatpush1.bf16.msra.mxu0 0
    %492 = vmatprep.subr.bf16.mxu0 0
    %493 = vmatpush1.bf16.msra.mxu0 0
    %494 = vmatprep.subr.bf16.mxu0 0
    %495 = vmatpush1.bf16.msra.mxu0 0
    %496 = vmatprep.subr.bf16.mxu0 0
    %497 = vmatpush1.bf16.msra.mxu0 0
    %498 = vmatprep.subr.bf16.mxu0 0
    %499 = vmatpush1.bf16.msra.mxu0 0
    %500 = vmatprep.subr.bf16.mxu0 0
    %501 = vmatpush1.bf16.msra.mxu0 0
    %502 = vmatprep.mubr.bf16.mxu0 0
    %503 = vmatmul.mubr.bf16.gmra.mrb[0].mxu0 %v320
    %v504 = vpop.f32.mrb[0].mxu0
    %v505 = vadd.f32 %v293, %v504
    %v506 = vpop.f32.mrb[0].mxu0
    %v507 = vadd.f32 %v297, %v506
    %v508 = vpop.f32.mrb[0].mxu0
    %v509 = vpop.f32.mrb[0].mxu0
    %510 = vdwg.mxu0
    %s511 = scalar_lea.vmem [#allocation5], 8
    %v512 = vld [vmem:[%s511] sm:$0x3f]
    %v513 = vpack.c.bf16 %v512, %v512
    %s514 = scalar_lea.vmem [#allocation8], 32
    %v515 = vld [vmem:[%s514] sm:$0xff]
    %v516 = vld [vmem:[%s514 + $0x8] sm:$0xff]
    %v517 = vld [vmem:[%s514 + $0x10] sm:$0xff]
    %v518 = vld [vmem:[%s514 + $0x18] sm:$0xff]
    %v519 = vlaneseq
    %v520 = vshrl.u32 %v519, 7
    %v521 = vsub.s32 1, %v520
    %v522 = vrot.slane %v208, %v521
    %v523 = vlaneseq
    %v524 = vshrl.u32 %v523, 7
    %v525 = vsub.s32 5, %v524
    %v526 = vrot.slane %v208, %v525
    %v527 = vlaneseq
    %v528 = vshrl.u32 %v527, 7
    %v529 = vsub.s32 1, %v528
    %v530 = vrot.slane %v209, %v529
    %v531 = vlaneseq
    %v532 = vshrl.u32 %v531, 7
    %v533 = vsub.s32 5, %v532
    %v534 = vrot.slane %v209, %v533
    %v535 = vlaneseq
    %v536 = vshrl.u32 %v535, 7
    %v537 = vsub.s32 1, %v536
    %v538 = vrot.slane %v210, %v537
    %v539 = vlaneseq
    %v540 = vshrl.u32 %v539, 7
    %v541 = vsub.s32 5, %v540
    %v542 = vrot.slane %v210, %v541
    %v543 = vlaneseq
    %v544 = vshrl.u32 %v543, 7
    %v545 = vsub.s32 1, %v544
    %v546 = vrot.slane %v211, %v545
    %v547 = vlaneseq
    %v548 = vshrl.u32 %v547, 7
    %v549 = vsub.s32 5, %v548
    %v550 = vrot.slane %v211, %v549
    %v559 = vlaneseq
    %v560 = vshrl.u32 %v559, 7
    %v561 = vsub.s32 1, %v560
    %v562 = vrot.slane %v522, %v561
    %v563 = vlaneseq
    %v564 = vshrl.u32 %v563, 7
    %v565 = vsub.s32 1, %v564
    %v566 = vrot.slane %v526, %v565
    %v567 = vlaneseq
    %v568 = vshrl.u32 %v567, 7
    %v569 = vsub.s32 1, %v568
    %v570 = vrot.slane %v530, %v569
    %v571 = vlaneseq
    %v572 = vshrl.u32 %v571, 7
    %v573 = vsub.s32 1, %v572
    %v574 = vrot.slane %v534, %v573
    %v575 = vlaneseq
    %v576 = vshrl.u32 %v575, 7
    %v577 = vsub.s32 1, %v576
    %v578 = vrot.slane %v538, %v577
    %v579 = vlaneseq
    %v580 = vshrl.u32 %v579, 7
    %v581 = vsub.s32 1, %v580
    %v582 = vrot.slane %v542, %v581
    %v583 = vlaneseq
    %v584 = vshrl.u32 %v583, 7
    %v585 = vsub.s32 1, %v584
    %v586 = vrot.slane %v546, %v585
    %v587 = vlaneseq
    %v588 = vshrl.u32 %v587, 7
    %v589 = vsub.s32 1, %v588
    %v590 = vrot.slane %v550, %v589
    %v595 = vunpack.c.l.b16 %v515
    %v596 = vunpack.c.h.b16 %v515
    %v597 = vunpack.c.l.b16 %v516
    %v598 = vunpack.c.h.b16 %v516
    %v599 = vunpack.c.l.b16 %v517
    %v600 = vunpack.c.h.b16 %v517
    %v601 = vunpack.c.l.b16 %v518
    %v602 = vunpack.c.h.b16 %v518
    %v603 = vpack.c.b16 %v595, %v595
    %v604 = vpack.c.b16 %v596, %v596
    %v605 = vpack.c.b16 %v597, %v597
    %v606 = vpack.c.b16 %v598, %v598
    %v607 = vpack.c.b16 %v599, %v599
    %v608 = vpack.c.b16 %v600, %v600
    %v609 = vpack.c.b16 %v601, %v601
    %v610 = vpack.c.b16 %v602, %v602
    %v612 = vsel %vm318, %v513, 0
    %v615 = vsel %vm322, %v603, 0
    %v618 = vsel %vm322, %v604, 0
    %v621 = vsel %vm322, %v605, 0
    %v624 = vsel %vm322, %v606, 0
    %v627 = vsel %vm322, %v607, 0
    %v630 = vsel %vm322, %v608, 0
    %v633 = vsel %vm322, %v609, 0
    %v636 = vsel %vm322, %v610, 0
    %638 = vmatprep.subr.bf16.mxu0 %v618
    %639 = vmatpush1.bf16.msra.mxu0 %v615
    %640 = vmatprep.subr.bf16.mxu0 0
    %641 = vmatpush1.bf16.msra.mxu0 0
    %642 = vmatprep.subr.bf16.mxu0 0
    %643 = vmatpush1.bf16.msra.mxu0 0
    %644 = vmatprep.subr.bf16.mxu0 0
    %645 = vmatpush1.bf16.msra.mxu0 0
    %646 = vmatprep.subr.bf16.mxu0 0
    %647 = vmatpush1.bf16.msra.mxu0 0
    %648 = vmatprep.subr.bf16.mxu0 0
    %649 = vmatpush1.bf16.msra.mxu0 0
    %650 = vmatprep.subr.bf16.mxu0 0
    %651 = vmatpush1.bf16.msra.mxu0 0
    %652 = vmatprep.subr.bf16.mxu0 0
    %653 = vmatpush1.bf16.msra.mxu0 0
    %654 = vmatprep.subr.bf16.mxu0 0
    %655 = vmatpush1.bf16.msra.mxu0 0
    %656 = vmatprep.subr.bf16.mxu0 0
    %657 = vmatpush1.bf16.msra.mxu0 0
    %658 = vmatprep.subr.bf16.mxu0 0
    %659 = vmatpush1.bf16.msra.mxu0 0
    %660 = vmatprep.subr.bf16.mxu0 0
    %661 = vmatpush1.bf16.msra.mxu0 0
    %662 = vmatprep.subr.bf16.mxu0 0
    %663 = vmatpush1.bf16.msra.mxu0 0
    %664 = vmatprep.subr.bf16.mxu0 0
    %665 = vmatpush1.bf16.msra.mxu0 0
    %666 = vmatprep.subr.bf16.mxu0 0
    %667 = vmatpush1.bf16.msra.mxu0 0
    %668 = vmatprep.subr.bf16.mxu0 0
    %669 = vmatpush1.bf16.msra.mxu0 0
    %670 = vmatprep.mubr.bf16.mxu0 0
    %671 = vmatmul.mubr.bf16.gmra.mrb[0].mxu0 %v612
    %v672 = vpop.f32.mrb[0].mxu0
    %v673 = vadd.f32 %v562, %v672
    %v674 = vpop.f32.mrb[0].mxu0
    %v675 = vadd.f32 %v566, %v674
    %v676 = vpop.f32.mrb[0].mxu0
    %v677 = vpop.f32.mrb[0].mxu0
    %678 = vdwg.mxu0
    %679 = vmatprep.subr.bf16.mxu0 %v624
    %680 = vmatpush1.bf16.msra.mxu0 %v621
    %681 = vmatprep.subr.bf16.mxu0 0
    %682 = vmatpush1.bf16.msra.mxu0 0
    %683 = vmatprep.subr.bf16.mxu0 0
    %684 = vmatpush1.bf16.msra.mxu0 0
    %685 = vmatprep.subr.bf16.mxu0 0
    %686 = vmatpush1.bf16.msra.mxu0 0
    %687 = vmatprep.subr.bf16.mxu0 0
    %688 = vmatpush1.bf16.msra.mxu0 0
    %689 = vmatprep.subr.bf16.mxu0 0
    %690 = vmatpush1.bf16.msra.mxu0 0
    %691 = vmatprep.subr.bf16.mxu0 0
    %692 = vmatpush1.bf16.msra.mxu0 0
    %693 = vmatprep.subr.bf16.mxu0 0
    %694 = vmatpush1.bf16.msra.mxu0 0
    %695 = vmatprep.subr.bf16.mxu0 0
    %696 = vmatpush1.bf16.msra.mxu0 0
    %697 = vmatprep.subr.bf16.mxu0 0
    %698 = vmatpush1.bf16.msra.mxu0 0
    %699 = vmatprep.subr.bf16.mxu0 0
    %700 = vmatpush1.bf16.msra.mxu0 0
    %701 = vmatprep.subr.bf16.mxu0 0
    %702 = vmatpush1.bf16.msra.mxu0 0
    %703 = vmatprep.subr.bf16.mxu0 0
    %704 = vmatpush1.bf16.msra.mxu0 0
    %705 = vmatprep.subr.bf16.mxu0 0
    %706 = vmatpush1.bf16.msra.mxu0 0
    %707 = vmatprep.subr.bf16.mxu0 0
    %708 = vmatpush1.bf16.msra.mxu0 0
    %709 = vmatprep.subr.bf16.mxu0 0
    %710 = vmatpush1.bf16.msra.mxu0 0
    %711 = vmatprep.mubr.bf16.mxu0 0
    %712 = vmatmul.mubr.bf16.gmra.mrb[0].mxu0 %v612
    %v713 = vpop.f32.mrb[0].mxu0
    %v714 = vadd.f32 %v570, %v713
    %v715 = vpop.f32.mrb[0].mxu0
    %v716 = vadd.f32 %v574, %v715
    %v717 = vpop.f32.mrb[0].mxu0
    %v718 = vpop.f32.mrb[0].mxu0
    %719 = vdwg.mxu0
    %720 = vmatprep.subr.bf16.mxu0 %v630
    %721 = vmatpush1.bf16.msra.mxu0 %v627
    %722 = vmatprep.subr.bf16.mxu0 0
    %723 = vmatpush1.bf16.msra.mxu0 0
    %724 = vmatprep.subr.bf16.mxu0 0
    %725 = vmatpush1.bf16.msra.mxu0 0
    %726 = vmatprep.subr.bf16.mxu0 0
    %727 = vmatpush1.bf16.msra.mxu0 0
    %728 = vmatprep.subr.bf16.mxu0 0
    %729 = vmatpush1.bf16.msra.mxu0 0
    %730 = vmatprep.subr.bf16.mxu0 0
    %731 = vmatpush1.bf16.msra.mxu0 0
    %732 = vmatprep.subr.bf16.mxu0 0
    %733 = vmatpush1.bf16.msra.mxu0 0
    %734 = vmatprep.subr.bf16.mxu0 0
    %735 = vmatpush1.bf16.msra.mxu0 0
    %736 = vmatprep.subr.bf16.mxu0 0
    %737 = vmatpush1.bf16.msra.mxu0 0
    %738 = vmatprep.subr.bf16.mxu0 0
    %739 = vmatpush1.bf16.msra.mxu0 0
    %740 = vmatprep.subr.bf16.mxu0 0
    %741 = vmatpush1.bf16.msra.mxu0 0
    %742 = vmatprep.subr.bf16.mxu0 0
    %743 = vmatpush1.bf16.msra.mxu0 0
    %744 = vmatprep.subr.bf16.mxu0 0
    %745 = vmatpush1.bf16.msra.mxu0 0
    %746 = vmatprep.subr.bf16.mxu0 0
    %747 = vmatpush1.bf16.msra.mxu0 0
    %748 = vmatprep.subr.bf16.mxu0 0
    %749 = vmatpush1.bf16.msra.mxu0 0
    %750 = vmatprep.subr.bf16.mxu0 0
    %751 = vmatpush1.bf16.msra.mxu0 0
    %752 = vmatprep.mubr.bf16.mxu0 0
    %753 = vmatmul.mubr.bf16.gmra.mrb[0].mxu0 %v612
    %v754 = vpop.f32.mrb[0].mxu0
    %v755 = vadd.f32 %v578, %v754
    %v756 = vpop.f32.mrb[0].mxu0
    %v757 = vadd.f32 %v582, %v756
    %v758 = vpop.f32.mrb[0].mxu0
    %v759 = vpop.f32.mrb[0].mxu0
    %760 = vdwg.mxu0
    %761 = vmatprep.subr.bf16.mxu0 %v636
    %762 = vmatpush1.bf16.msra.mxu0 %v633
    %763 = vmatprep.subr.bf16.mxu0 0
    %764 = vmatpush1.bf16.msra.mxu0 0
    %765 = vmatprep.subr.bf16.mxu0 0
    %766 = vmatpush1.bf16.msra.mxu0 0
    %767 = vmatprep.subr.bf16.mxu0 0
    %768 = vmatpush1.bf16.msra.mxu0 0
    %769 = vmatprep.subr.bf16.mxu0 0
    %770 = vmatpush1.bf16.msra.mxu0 0
    %771 = vmatprep.subr.bf16.mxu0 0
    %772 = vmatpush1.bf16.msra.mxu0 0
    %773 = vmatprep.subr.bf16.mxu0 0
    %774 = vmatpush1.bf16.msra.mxu0 0
    %775 = vmatprep.subr.bf16.mxu0 0
    %776 = vmatpush1.bf16.msra.mxu0 0
    %777 = vmatprep.subr.bf16.mxu0 0
    %778 = vmatpush1.bf16.msra.mxu0 0
    %779 = vmatprep.subr.bf16.mxu0 0
    %780 = vmatpush1.bf16.msra.mxu0 0
    %781 = vmatprep.subr.bf16.mxu0 0
    %782 = vmatpush1.bf16.msra.mxu0 0
    %783 = vmatprep.subr.bf16.mxu0 0
    %784 = vmatpush1.bf16.msra.mxu0 0
    %785 = vmatprep.subr.bf16.mxu0 0
    %786 = vmatpush1.bf16.msra.mxu0 0
    %787 = vmatprep.subr.bf16.mxu0 0
    %788 = vmatpush1.bf16.msra.mxu0 0
    %789 = vmatprep.subr.bf16.mxu0 0
    %790 = vmatpush1.bf16.msra.mxu0 0
    %791 = vmatprep.subr.bf16.mxu0 0
    %792 = vmatpush1.bf16.msra.mxu0 0
    %793 = vmatprep.mubr.bf16.mxu0 0
    %794 = vmatmul.mubr.bf16.gmra.mrb[0].mxu0 %v612
    %v795 = vpop.f32.mrb[0].mxu0
    %v796 = vadd.f32 %v586, %v795
    %v797 = vpop.f32.mrb[0].mxu0
    %v798 = vadd.f32 %v590, %v797
    %v799 = vpop.f32.mrb[0].mxu0
    %v800 = vpop.f32.mrb[0].mxu0
    %801 = vdwg.mxu0
    %s802 = scalar_lea.vmem [#allocation5], 16
    %v803 = vld [vmem:[%s802] sm:$0x3f]
    %v804 = vpack.c.bf16 %v803, %v803
    %s805 = scalar_lea.vmem [#allocation8], 64
    %v806 = vld [vmem:[%s805] sm:$0xff]
    %v807 = vld [vmem:[%s805 + $0x8] sm:$0xff]
    %v808 = vld [vmem:[%s805 + $0x10] sm:$0xff]
    %v809 = vld [vmem:[%s805 + $0x18] sm:$0xff]
    %v810 = vlaneseq
    %v811 = vshrl.u32 %v810, 7
    %v812 = vsub.s32 2, %v811
    %v813 = vrot.slane %v208, %v812
    %v814 = vlaneseq
    %v815 = vshrl.u32 %v814, 7
    %v816 = vsub.s32 6, %v815
    %v817 = vrot.slane %v208, %v816
    %v818 = vlaneseq
    %v819 = vshrl.u32 %v818, 7
    %v820 = vsub.s32 2, %v819
    %v821 = vrot.slane %v209, %v820
    %v822 = vlaneseq
    %v823 = vshrl.u32 %v822, 7
    %v824 = vsub.s32 6, %v823
    %v825 = vrot.slane %v209, %v824
    %v826 = vlaneseq
    %v827 = vshrl.u32 %v826, 7
    %v828 = vsub.s32 2, %v827
    %v829 = vrot.slane %v210, %v828
    %v830 = vlaneseq
    %v831 = vshrl.u32 %v830, 7
    %v832 = vsub.s32 6, %v831
    %v833 = vrot.slane %v210, %v832
    %v834 = vlaneseq
    %v835 = vshrl.u32 %v834, 7
    %v836 = vsub.s32 2, %v835
    %v837 = vrot.slane %v211, %v836
    %v838 = vlaneseq
    %v839 = vshrl.u32 %v838, 7
    %v840 = vsub.s32 6, %v839
    %v841 = vrot.slane %v211, %v840
    %v850 = vlaneseq
    %v851 = vshrl.u32 %v850, 7
    %v852 = vsub.s32 2, %v851
    %v853 = vrot.slane %v813, %v852
    %v854 = vlaneseq
    %v855 = vshrl.u32 %v854, 7
    %v856 = vsub.s32 2, %v855
    %v857 = vrot.slane %v817, %v856
    %v858 = vlaneseq
    %v859 = vshrl.u32 %v858, 7
    %v860 = vsub.s32 2, %v859
    %v861 = vrot.slane %v821, %v860
    %v862 = vlaneseq
    %v863 = vshrl.u32 %v862, 7
    %v864 = vsub.s32 2, %v863
    %v865 = vrot.slane %v825, %v864
    %v866 = vlaneseq
    %v867 = vshrl.u32 %v866, 7
    %v868 = vsub.s32 2, %v867
    %v869 = vrot.slane %v829, %v868
    %v870 = vlaneseq
    %v871 = vshrl.u32 %v870, 7
    %v872 = vsub.s32 2, %v871
    %v873 = vrot.slane %v833, %v872
    %v874 = vlaneseq
    %v875 = vshrl.u32 %v874, 7
    %v876 = vsub.s32 2, %v875
    %v877 = vrot.slane %v837, %v876
    %v878 = vlaneseq
    %v879 = vshrl.u32 %v878, 7
    %v880 = vsub.s32 2, %v879
    %v881 = vrot.slane %v841, %v880
    %v886 = vunpack.c.l.b16 %v806
    %v887 = vunpack.c.h.b16 %v806
    %v888 = vunpack.c.l.b16 %v807
    %v889 = vunpack.c.h.b16 %v807
    %v890 = vunpack.c.l.b16 %v808
    %v891 = vunpack.c.h.b16 %v808
    %v892 = vunpack.c.l.b16 %v809
    %v893 = vunpack.c.h.b16 %v809
    %v894 = vpack.c.b16 %v886, %v886
    %v895 = vpack.c.b16 %v887, %v887
    %v896 = vpack.c.b16 %v888, %v888
    %v897 = vpack.c.b16 %v889, %v889
    %v898 = vpack.c.b16 %v890, %v890
    %v899 = vpack.c.b16 %v891, %v891
    %v900 = vpack.c.b16 %v892, %v892
    %v901 = vpack.c.b16 %v893, %v893
    %v903 = vsel %vm318, %v804, 0
    %v906 = vsel %vm322, %v894, 0
    %v909 = vsel %vm322, %v895, 0
    %v912 = vsel %vm322, %v896, 0
    %v915 = vsel %vm322, %v897, 0
    %v918 = vsel %vm322, %v898, 0
    %v921 = vsel %vm322, %v899, 0
    %v924 = vsel %vm322, %v900, 0
    %v927 = vsel %vm322, %v901, 0
    %929 = vmatprep.subr.bf16.mxu0 %v909
    %930 = vmatpush1.bf16.msra.mxu0 %v906
    %931 = vmatprep.subr.bf16.mxu0 0
    %932 = vmatpush1.bf16.msra.mxu0 0
    %933 = vmatprep.subr.bf16.mxu0 0
    %934 = vmatpush1.bf16.msra.mxu0 0
    %935 = vmatprep.subr.bf16.mxu0 0
    %936 = vmatpush1.bf16.msra.mxu0 0
    %937 = vmatprep.subr.bf16.mxu0 0
    %938 = vmatpush1.bf16.msra.mxu0 0
    %939 = vmatprep.subr.bf16.mxu0 0
    %940 = vmatpush1.bf16.msra.mxu0 0
    %941 = vmatprep.subr.bf16.mxu0 0
    %942 = vmatpush1.bf16.msra.mxu0 0
    %943 = vmatprep.subr.bf16.mxu0 0
    %944 = vmatpush1.bf16.msra.mxu0 0
    %945 = vmatprep.subr.bf16.mxu0 0
    %946 = vmatpush1.bf16.msra.mxu0 0
    %947 = vmatprep.subr.bf16.mxu0 0
    %948 = vmatpush1.bf16.msra.mxu0 0
    %949 = vmatprep.subr.bf16.mxu0 0
    %950 = vmatpush1.bf16.msra.mxu0 0
    %951 = vmatprep.subr.bf16.mxu0 0
    %952 = vmatpush1.bf16.msra.mxu0 0
    %953 = vmatprep.subr.bf16.mxu0 0
    %954 = vmatpush1.bf16.msra.mxu0 0
    %955 = vmatprep.subr.bf16.mxu0 0
    %956 = vmatpush1.bf16.msra.mxu0 0
    %957 = vmatprep.subr.bf16.mxu0 0
    %958 = vmatpush1.bf16.msra.mxu0 0
    %959 = vmatprep.subr.bf16.mxu0 0
    %960 = vmatpush1.bf16.msra.mxu0 0
    %961 = vmatprep.mubr.bf16.mxu0 0
    %962 = vmatmul.mubr.bf16.gmra.mrb[0].mxu0 %v903
    %v963 = vpop.f32.mrb[0].mxu0
    %v964 = vadd.f32 %v853, %v963
    %v965 = vpop.f32.mrb[0].mxu0
    %v966 = vadd.f32 %v857, %v965
    %v967 = vpop.f32.mrb[0].mxu0
    %v968 = vpop.f32.mrb[0].mxu0
    %969 = vdwg.mxu0
    %970 = vmatprep.subr.bf16.mxu0 %v915
    %971 = vmatpush1.bf16.msra.mxu0 %v912
    %972 = vmatprep.subr.bf16.mxu0 0
    %973 = vmatpush1.bf16.msra.mxu0 0
    %974 = vmatprep.subr.bf16.mxu0 0
    %975 = vmatpush1.bf16.msra.mxu0 0
    %976 = vmatprep.subr.bf16.mxu0 0
    %977 = vmatpush1.bf16.msra.mxu0 0
    %978 = vmatprep.subr.bf16.mxu0 0
    %979 = vmatpush1.bf16.msra.mxu0 0
    %980 = vmatprep.subr.bf16.mxu0 0
    %981 = vmatpush1.bf16.msra.mxu0 0
    %982 = vmatprep.subr.bf16.mxu0 0
    %983 = vmatpush1.bf16.msra.mxu0 0
    %984 = vmatprep.subr.bf16.mxu0 0
    %985 = vmatpush1.bf16.msra.mxu0 0
    %986 = vmatprep.subr.bf16.mxu0 0
    %987 = vmatpush1.bf16.msra.mxu0 0
    %988 = vmatprep.subr.bf16.mxu0 0
    %989 = vmatpush1.bf16.msra.mxu0 0
    %990 = vmatprep.subr.bf16.mxu0 0
    %991 = vmatpush1.bf16.msra.mxu0 0
    %992 = vmatprep.subr.bf16.mxu0 0
    %993 = vmatpush1.bf16.msra.mxu0 0
    %994 = vmatprep.subr.bf16.mxu0 0
    %995 = vmatpush1.bf16.msra.mxu0 0
    %996 = vmatprep.subr.bf16.mxu0 0
    %997 = vmatpush1.bf16.msra.mxu0 0
    %998 = vmatprep.subr.bf16.mxu0 0
    %999 = vmatpush1.bf16.msra.mxu0 0
    %1000 = vmatprep.subr.bf16.mxu0 0
    %1001 = vmatpush1.bf16.msra.mxu0 0
    %1002 = vmatprep.mubr.bf16.mxu0 0
    %1003 = vmatmul.mubr.bf16.gmra.mrb[0].mxu0 %v903
    %v1004 = vpop.f32.mrb[0].mxu0
    %v1005 = vadd.f32 %v861, %v1004
    %v1006 = vpop.f32.mrb[0].mxu0
    %v1007 = vadd.f32 %v865, %v1006
    %v1008 = vpop.f32.mrb[0].mxu0
    %v1009 = vpop.f32.mrb[0].mxu0
    %1010 = vdwg.mxu0
    %1011 = vmatprep.subr.bf16.mxu0 %v921
    %1012 = vmatpush1.bf16.msra.mxu0 %v918
    %1013 = vmatprep.subr.bf16.mxu0 0
    %1014 = vmatpush1.bf16.msra.mxu0 0
    %1015 = vmatprep.subr.bf16.mxu0 0
    %1016 = vmatpush1.bf16.msra.mxu0 0
    %1017 = vmatprep.subr.bf16.mxu0 0
    %1018 = vmatpush1.bf16.msra.mxu0 0
    %1019 = vmatprep.subr.bf16.mxu0 0
    %1020 = vmatpush1.bf16.msra.mxu0 0
    %1021 = vmatprep.subr.bf16.mxu0 0
    %1022 = vmatpush1.bf16.msra.mxu0 0
    %1023 = vmatprep.subr.bf16.mxu0 0
    %1024 = vmatpush1.bf16.msra.mxu0 0
    %1025 = vmatprep.subr.bf16.mxu0 0
    %1026 = vmatpush1.bf16.msra.mxu0 0
    %1027 = vmatprep.subr.bf16.mxu0 0
    %1028 = vmatpush1.bf16.msra.mxu0 0
    %1029 = vmatprep.subr.bf16.mxu0 0
    %1030 = vmatpush1.bf16.msra.mxu0 0
    %1031 = vmatprep.subr.bf16.mxu0 0
    %1032 = vmatpush1.bf16.msra.mxu0 0
    %1033 = vmatprep.subr.bf16.mxu0 0
    %1034 = vmatpush1.bf16.msra.mxu0 0
    %1035 = vmatprep.subr.bf16.mxu0 0
    %1036 = vmatpush1.bf16.msra.mxu0 0
    %1037 = vmatprep.subr.bf16.mxu0 0
    %1038 = vmatpush1.bf16.msra.mxu0 0
    %1039 = vmatprep.subr.bf16.mxu0 0
    %1040 = vmatpush1.bf16.msra.mxu0 0
    %1041 = vmatprep.subr.bf16.mxu0 0
    %1042 = vmatpush1.bf16.msra.mxu0 0
    %1043 = vmatprep.mubr.bf16.mxu0 0
    %1044 = vmatmul.mubr.bf16.gmra.mrb[0].mxu0 %v903
    %v1045 = vpop.f32.mrb[0].mxu0
    %v1046 = vadd.f32 %v869, %v1045
    %v1047 = vpop.f32.mrb[0].mxu0
    %v1048 = vadd.f32 %v873, %v1047
    %v1049 = vpop.f32.mrb[0].mxu0
    %v1050 = vpop.f32.mrb[0].mxu0
    %1051 = vdwg.mxu0
    %1052 = vmatprep.subr.bf16.mxu0 %v927
    %1053 = vmatpush1.bf16.msra.mxu0 %v924
    %1054 = vmatprep.subr.bf16.mxu0 0
    %1055 = vmatpush1.bf16.msra.mxu0 0
    %1056 = vmatprep.subr.bf16.mxu0 0
    %1057 = vmatpush1.bf16.msra.mxu0 0
    %1058 = vmatprep.subr.bf16.mxu0 0
    %1059 = vmatpush1.bf16.msra.mxu0 0
    %1060 = vmatprep.subr.bf16.mxu0 0
    %1061 = vmatpush1.bf16.msra.mxu0 0
    %1062 = vmatprep.subr.bf16.mxu0 0
    %1063 = vmatpush1.bf16.msra.mxu0 0
    %1064 = vmatprep.subr.bf16.mxu0 0
    %1065 = vmatpush1.bf16.msra.mxu0 0
    %1066 = vmatprep.subr.bf16.mxu0 0
    %1067 = vmatpush1.bf16.msra.mxu0 0
    %1068 = vmatprep.subr.bf16.mxu0 0
    %1069 = vmatpush1.bf16.msra.mxu0 0
    %1070 = vmatprep.subr.bf16.mxu0 0
    %1071 = vmatpush1.bf16.msra.mxu0 0
    %1072 = vmatprep.subr.bf16.mxu0 0
    %1073 = vmatpush1.bf16.msra.mxu0 0
    %1074 = vmatprep.subr.bf16.mxu0 0
    %1075 = vmatpush1.bf16.msra.mxu0 0
    %1076 = vmatprep.subr.bf16.mxu0 0
    %1077 = vmatpush1.bf16.msra.mxu0 0
    %1078 = vmatprep.subr.bf16.mxu0 0
    %1079 = vmatpush1.bf16.msra.mxu0 0
    %1080 = vmatprep.subr.bf16.mxu0 0
    %1081 = vmatpush1.bf16.msra.mxu0 0
    %1082 = vmatprep.subr.bf16.mxu0 0
    %1083 = vmatpush1.bf16.msra.mxu0 0
    %1084 = vmatprep.mubr.bf16.mxu0 0
    %1085 = vmatmul.mubr.bf16.gmra.mrb[0].mxu0 %v903
    %v1086 = vpop.f32.mrb[0].mxu0
    %v1087 = vadd.f32 %v877, %v1086
    %v1088 = vpop.f32.mrb[0].mxu0
    %v1089 = vadd.f32 %v881, %v1088
    %v1090 = vpop.f32.mrb[0].mxu0
    %v1091 = vpop.f32.mrb[0].mxu0
    %1092 = vdwg.mxu0
    %v1093 = vld [vmem:[#allocation10] sm:$0xff]
    %v1094 = vld [vmem:[#allocation10 + $0x8] sm:$0xff]
    %v1095 = vld [vmem:[#allocation10 + $0x10] sm:$0xff]
    %v1096 = vld [vmem:[#allocation10 + $0x18] sm:$0xff]
    %v1097 = vld [vmem:[#allocation10 + $0x20] sm:$0xff]
    %v1098 = vld [vmem:[#allocation10 + $0x28] sm:$0xff]
    %v1099 = vld [vmem:[#allocation10 + $0x30] sm:$0xff]
    %v1100 = vld [vmem:[#allocation10 + $0x38] sm:$0xff]
    %v1101 = vld [vmem:[#allocation10 + $0x40] sm:$0xff]
    %v1102 = vld [vmem:[#allocation10 + $0x48] sm:$0xff]
    %v1103 = vld [vmem:[#allocation10 + $0x50] sm:$0xff]
    %v1104 = vld [vmem:[#allocation10 + $0x58] sm:$0xff]
    %v1105 = vld [vmem:[#allocation10 + $0x60] sm:$0xff]
    %v1106 = vld [vmem:[#allocation10 + $0x68] sm:$0xff]
    %v1107 = vld [vmem:[#allocation10 + $0x70] sm:$0xff]
    %v1108 = vld [vmem:[#allocation10 + $0x78] sm:$0xff]
    %v1109 = vld [vmem:[#allocation10 + $0x80] sm:$0xff]
    %v1110 = vld [vmem:[#allocation10 + $0x88] sm:$0xff]
    %v1111 = vld [vmem:[#allocation10 + $0x90] sm:$0xff]
    %v1112 = vld [vmem:[#allocation10 + $0x98] sm:$0xff]
    %v1113 = vld [vmem:[#allocation10 + $0xa0] sm:$0xff]
    %v1114 = vld [vmem:[#allocation10 + $0xa8] sm:$0xff]
    %v1115 = vld [vmem:[#allocation10 + $0xb0] sm:$0xff]
    %v1116 = vld [vmem:[#allocation10 + $0xb8] sm:$0xff]
    %v1117 = vld [vmem:[#allocation10 + $0xc0] sm:$0xff]
    %v1118 = vld [vmem:[#allocation10 + $0xc8] sm:$0xff]
    %v1119 = vld [vmem:[#allocation10 + $0xd0] sm:$0xff]
    %v1120 = vld [vmem:[#allocation10 + $0xd8] sm:$0xff]
    %v1121 = vld [vmem:[#allocation10 + $0xe0] sm:$0xff]
    %v1122 = vld [vmem:[#allocation10 + $0xe8] sm:$0xff]
    %v1123 = vld [vmem:[#allocation10 + $0xf0] sm:$0xff]
    %v1124 = vld [vmem:[#allocation10 + $0xf8] sm:$0xff]
    %v1125 = vld [vmem:[#allocation10 + $0x100] sm:$0xff]
    %v1126 = vld [vmem:[#allocation10 + $0x108] sm:$0xff]
    %v1127 = vld [vmem:[#allocation10 + $0x110] sm:$0xff]
    %v1128 = vld [vmem:[#allocation10 + $0x118] sm:$0xff]
    %v1129 = vld [vmem:[#allocation10 + $0x120] sm:$0xff]
    %v1130 = vld [vmem:[#allocation10 + $0x128] sm:$0xff]
    %v1131 = vld [vmem:[#allocation10 + $0x130] sm:$0xff]
    %v1132 = vld [vmem:[#allocation10 + $0x138] sm:$0xff]
    %v1133 = vld [vmem:[#allocation10 + $0x140] sm:$0xff]
    %v1134 = vld [vmem:[#allocation10 + $0x148] sm:$0xff]
    %v1135 = vld [vmem:[#allocation10 + $0x150] sm:$0xff]
    %v1136 = vld [vmem:[#allocation10 + $0x158] sm:$0xff]
    %v1137 = vld [vmem:[#allocation10 + $0x160] sm:$0xff]
    %v1138 = vld [vmem:[#allocation10 + $0x168] sm:$0xff]
    %v1139 = vld [vmem:[#allocation10 + $0x170] sm:$0xff]
    %v1140 = vld [vmem:[#allocation10 + $0x178] sm:$0xff]
    %v1141 = vld [vmem:[#allocation10 + $0x180] sm:$0xff]
    %v1142 = vld [vmem:[#allocation10 + $0x188] sm:$0xff]
    %v1143 = vld [vmem:[#allocation10 + $0x190] sm:$0xff]
    %v1144 = vld [vmem:[#allocation10 + $0x198] sm:$0xff]
    %v1145 = vld [vmem:[#allocation10 + $0x1a0] sm:$0xff]
    %v1146 = vld [vmem:[#allocation10 + $0x1a8] sm:$0xff]
    %v1147 = vld [vmem:[#allocation10 + $0x1b0] sm:$0xff]
    %v1148 = vld [vmem:[#allocation10 + $0x1b8] sm:$0xff]
    %v1149 = vld [vmem:[#allocation10 + $0x1c0] sm:$0xff]
    %v1150 = vld [vmem:[#allocation10 + $0x1c8] sm:$0xff]
    %v1151 = vld [vmem:[#allocation10 + $0x1d0] sm:$0xff]
    %v1152 = vld [vmem:[#allocation10 + $0x1d8] sm:$0xff]
    %v1153 = vld [vmem:[#allocation10 + $0x1e0] sm:$0xff]
    %v1154 = vld [vmem:[#allocation10 + $0x1e8] sm:$0xff]
    %v1155 = vld [vmem:[#allocation10 + $0x1f0] sm:$0xff]
    %v1156 = vld [vmem:[#allocation10 + $0x1f8] sm:$0xff]
    %v1157 = vld [vmem:[#allocation10 + $0x200] sm:$0xff]
    %v1158 = vld [vmem:[#allocation10 + $0x208] sm:$0xff]
    %v1159 = vld [vmem:[#allocation10 + $0x210] sm:$0xff]
    %v1160 = vld [vmem:[#allocation10 + $0x218] sm:$0xff]
    %v1161 = vld [vmem:[#allocation10 + $0x220] sm:$0xff]
    %v1162 = vld [vmem:[#allocation10 + $0x228] sm:$0xff]
    %v1163 = vld [vmem:[#allocation10 + $0x230] sm:$0xff]
    %v1164 = vld [vmem:[#allocation10 + $0x238] sm:$0xff]
    %v1165 = vld [vmem:[#allocation10 + $0x240] sm:$0xff]
    %v1166 = vld [vmem:[#allocation10 + $0x248] sm:$0xff]
    %v1167 = vld [vmem:[#allocation10 + $0x250] sm:$0xff]
    %v1168 = vld [vmem:[#allocation10 + $0x258] sm:$0xff]
    %v1169 = vld [vmem:[#allocation10 + $0x260] sm:$0xff]
    %v1170 = vld [vmem:[#allocation10 + $0x268] sm:$0xff]
    %v1171 = vld [vmem:[#allocation10 + $0x270] sm:$0xff]
    %v1172 = vld [vmem:[#allocation10 + $0x278] sm:$0xff]
    %v1173 = vld [vmem:[#allocation10 + $0x280] sm:$0xff]
    %v1174 = vld [vmem:[#allocation10 + $0x288] sm:$0xff]
    %v1175 = vld [vmem:[#allocation10 + $0x290] sm:$0xff]
    %v1176 = vld [vmem:[#allocation10 + $0x298] sm:$0xff]
    %v1177 = vld [vmem:[#allocation10 + $0x2a0] sm:$0xff]
    %v1178 = vld [vmem:[#allocation10 + $0x2a8] sm:$0xff]
    %v1179 = vld [vmem:[#allocation10 + $0x2b0] sm:$0xff]
    %v1180 = vld [vmem:[#allocation10 + $0x2b8] sm:$0xff]
    %v1181 = vld [vmem:[#allocation10 + $0x2c0] sm:$0xff]
    %v1182 = vld [vmem:[#allocation10 + $0x2c8] sm:$0xff]
    %v1183 = vld [vmem:[#allocation10 + $0x2d0] sm:$0xff]
    %v1184 = vld [vmem:[#allocation10 + $0x2d8] sm:$0xff]
    %v1185 = vld [vmem:[#allocation10 + $0x2e0] sm:$0xff]
    %v1186 = vld [vmem:[#allocation10 + $0x2e8] sm:$0xff]
    %v1187 = vld [vmem:[#allocation10 + $0x2f0] sm:$0xff]
    %v1188 = vld [vmem:[#allocation10 + $0x2f8] sm:$0xff]
    %v1189 = vld [vmem:[#allocation10 + $0x300] sm:$0xff]
    %v1190 = vld [vmem:[#allocation10 + $0x308] sm:$0xff]
    %v1191 = vld [vmem:[#allocation10 + $0x310] sm:$0xff]
    %v1192 = vld [vmem:[#allocation10 + $0x318] sm:$0xff]
    %v1193 = vld [vmem:[#allocation10 + $0x320] sm:$0xff]
    %v1194 = vld [vmem:[#allocation10 + $0x328] sm:$0xff]
    %v1195 = vld [vmem:[#allocation10 + $0x330] sm:$0xff]
    %v1196 = vld [vmem:[#allocation10 + $0x338] sm:$0xff]
    %v1197 = vld [vmem:[#allocation10 + $0x340] sm:$0xff]
    %v1198 = vld [vmem:[#allocation10 + $0x348] sm:$0xff]
    %v1199 = vld [vmem:[#allocation10 + $0x350] sm:$0xff]
    %v1200 = vld [vmem:[#allocation10 + $0x358] sm:$0xff]
    %v1201 = vld [vmem:[#allocation10 + $0x360] sm:$0xff]
    %v1202 = vld [vmem:[#allocation10 + $0x368] sm:$0xff]
    %v1203 = vld [vmem:[#allocation10 + $0x370] sm:$0xff]
    %v1204 = vld [vmem:[#allocation10 + $0x378] sm:$0xff]
    %v1205 = vld [vmem:[#allocation10 + $0x380] sm:$0xff]
    %v1206 = vld [vmem:[#allocation10 + $0x388] sm:$0xff]
    %v1207 = vld [vmem:[#allocation10 + $0x390] sm:$0xff]
    %v1208 = vld [vmem:[#allocation10 + $0x398] sm:$0xff]
    %v1209 = vld [vmem:[#allocation10 + $0x3a0] sm:$0xff]
    %v1210 = vld [vmem:[#allocation10 + $0x3a8] sm:$0xff]
    %v1211 = vld [vmem:[#allocation10 + $0x3b0] sm:$0xff]
    %v1212 = vld [vmem:[#allocation10 + $0x3b8] sm:$0xff]
    %v1213 = vld [vmem:[#allocation10 + $0x3c0] sm:$0xff]
    %v1214 = vld [vmem:[#allocation10 + $0x3c8] sm:$0xff]
    %v1215 = vld [vmem:[#allocation10 + $0x3d0] sm:$0xff]
    %v1216 = vld [vmem:[#allocation10 + $0x3d8] sm:$0xff]
    %v1217 = vld [vmem:[#allocation10 + $0x3e0] sm:$0xff]
    %v1218 = vld [vmem:[#allocation10 + $0x3e8] sm:$0xff]
    %v1219 = vld [vmem:[#allocation10 + $0x3f0] sm:$0xff]
    %v1220 = vld [vmem:[#allocation10 + $0x3f8] sm:$0xff]
    %v1221 = vld [vmem:[#allocation10 + $0x400] sm:$0xff]
    %v1222 = vld [vmem:[#allocation10 + $0x408] sm:$0xff]
    %v1223 = vld [vmem:[#allocation10 + $0x410] sm:$0xff]
    %v1224 = vld [vmem:[#allocation10 + $0x418] sm:$0xff]
    %v1225 = vld [vmem:[#allocation10 + $0x420] sm:$0xff]
    %v1226 = vld [vmem:[#allocation10 + $0x428] sm:$0xff]
    %v1227 = vld [vmem:[#allocation10 + $0x430] sm:$0xff]
    %v1228 = vld [vmem:[#allocation10 + $0x438] sm:$0xff]
    %v1229 = vld [vmem:[#allocation10 + $0x440] sm:$0xff]
    %v1230 = vld [vmem:[#allocation10 + $0x448] sm:$0xff]
    %v1231 = vld [vmem:[#allocation10 + $0x450] sm:$0xff]
    %v1232 = vld [vmem:[#allocation10 + $0x458] sm:$0xff]
    %v1233 = vld [vmem:[#allocation10 + $0x460] sm:$0xff]
    %v1234 = vld [vmem:[#allocation10 + $0x468] sm:$0xff]
    %v1235 = vld [vmem:[#allocation10 + $0x470] sm:$0xff]
    %v1236 = vld [vmem:[#allocation10 + $0x478] sm:$0xff]
    %v1237 = vld [vmem:[#allocation10 + $0x480] sm:$0xff]
    %v1238 = vld [vmem:[#allocation10 + $0x488] sm:$0xff]
    %v1239 = vld [vmem:[#allocation10 + $0x490] sm:$0xff]
    %v1240 = vld [vmem:[#allocation10 + $0x498] sm:$0xff]
    %v1241 = vld [vmem:[#allocation10 + $0x4a0] sm:$0xff]
    %v1242 = vld [vmem:[#allocation10 + $0x4a8] sm:$0xff]
    %v1243 = vld [vmem:[#allocation10 + $0x4b0] sm:$0xff]
    %v1244 = vld [vmem:[#allocation10 + $0x4b8] sm:$0xff]
    %v1245 = vld [vmem:[#allocation10 + $0x4c0] sm:$0xff]
    %v1246 = vld [vmem:[#allocation10 + $0x4c8] sm:$0xff]
    %v1247 = vld [vmem:[#allocation10 + $0x4d0] sm:$0xff]
    %v1248 = vld [vmem:[#allocation10 + $0x4d8] sm:$0xff]
    %v1249 = vld [vmem:[#allocation10 + $0x4e0] sm:$0xff]
    %v1250 = vld [vmem:[#allocation10 + $0x4e8] sm:$0xff]
    %v1251 = vld [vmem:[#allocation10 + $0x4f0] sm:$0xff]
    %v1252 = vld [vmem:[#allocation10 + $0x4f8] sm:$0xff]
    %v1253 = vld [vmem:[#allocation10 + $0x500] sm:$0xff]
    %v1254 = vld [vmem:[#allocation10 + $0x508] sm:$0xff]
    %v1255 = vld [vmem:[#allocation10 + $0x510] sm:$0xff]
    %v1256 = vld [vmem:[#allocation10 + $0x518] sm:$0xff]
    %v1257 = vld [vmem:[#allocation10 + $0x520] sm:$0xff]
    %v1258 = vld [vmem:[#allocation10 + $0x528] sm:$0xff]
    %v1259 = vld [vmem:[#allocation10 + $0x530] sm:$0xff]
    %v1260 = vld [vmem:[#allocation10 + $0x538] sm:$0xff]
    %v1261 = vld [vmem:[#allocation10 + $0x540] sm:$0xff]
    %v1262 = vld [vmem:[#allocation10 + $0x548] sm:$0xff]
    %v1263 = vld [vmem:[#allocation10 + $0x550] sm:$0xff]
    %v1264 = vld [vmem:[#allocation10 + $0x558] sm:$0xff]
    %v1265 = vld [vmem:[#allocation10 + $0x560] sm:$0xff]
    %v1266 = vld [vmem:[#allocation10 + $0x568] sm:$0xff]
    %v1267 = vld [vmem:[#allocation10 + $0x570] sm:$0xff]
    %v1268 = vld [vmem:[#allocation10 + $0x578] sm:$0xff]
    %v1269 = vld [vmem:[#allocation10 + $0x580] sm:$0xff]
    %v1270 = vld [vmem:[#allocation10 + $0x588] sm:$0xff]
    %v1271 = vld [vmem:[#allocation10 + $0x590] sm:$0xff]
    %v1272 = vld [vmem:[#allocation10 + $0x598] sm:$0xff]
    %v1273 = vld [vmem:[#allocation10 + $0x5a0] sm:$0xff]
    %v1274 = vld [vmem:[#allocation10 + $0x5a8] sm:$0xff]
    %v1275 = vld [vmem:[#allocation10 + $0x5b0] sm:$0xff]
    %v1276 = vld [vmem:[#allocation10 + $0x5b8] sm:$0xff]
    %v1277 = vld [vmem:[#allocation10 + $0x5c0] sm:$0xff]
    %v1278 = vld [vmem:[#allocation10 + $0x5c8] sm:$0xff]
    %v1279 = vld [vmem:[#allocation10 + $0x5d0] sm:$0xff]
    %v1280 = vld [vmem:[#allocation10 + $0x5d8] sm:$0xff]
    %v1281 = vld [vmem:[#allocation10 + $0x5e0] sm:$0xff]
    %v1282 = vld [vmem:[#allocation10 + $0x5e8] sm:$0xff]
    %v1283 = vld [vmem:[#allocation10 + $0x5f0] sm:$0xff]
    %v1284 = vld [vmem:[#allocation10 + $0x5f8] sm:$0xff]
    %v1289 = vrot.slane %v464, 4
    %v1290 = vrot.slane %v466, 4
    %v1291 = vrot.slane %v505, 4
    %v1292 = vrot.slane %v507, 4
    %v1301 = vrot.slane %v673, 6
    %v1302 = vrot.slane %v675, 6
    %v1303 = vrot.slane %v714, 6
    %v1304 = vrot.slane %v716, 6
    %v1313 = vrot.slane %v755, 2
    %v1314 = vrot.slane %v757, 2
    %v1315 = vrot.slane %v796, 2
    %v1316 = vrot.slane %v798, 2
    %v1325 = vrot.slane %v964, 4
    %v1326 = vrot.slane %v966, 4
    %v1327 = vrot.slane %v1005, 4
    %v1328 = vrot.slane %v1007, 4
    %vm1333 = vcmask 1040384
    %v1334 = vsel %vm1333, %v382, %v1289
    %v1335 = vsel %vm1333, %v384, %v1290
    %v1336 = vsel %vm1333, %v423, %v1291
    %v1337 = vsel %vm1333, %v425, %v1292
    %vm1338 = vcmask 1041408
    %v1339 = vsel %vm1338, %v1334, %v1301
    %v1340 = vsel %vm1338, %v1335, %v1302
    %v1341 = vsel %vm1338, %v1336, %v1303
    %v1342 = vsel %vm1338, %v1337, %v1304
    %vm1343 = vcmask 1042432
    %v1344 = vsel %vm1343, %v1339, %v1313
    %v1345 = vsel %vm1343, %v1340, %v1314
    %v1346 = vsel %vm1343, %v1341, %v1315
    %v1347 = vsel %vm1343, %v1342, %v1316
    %v1348 = vsel %vm322, %v1344, %v1325
    %v1349 = vsel %vm322, %v1345, %v1326
    %v1350 = vsel %vm322, %v1346, %v1327
    %v1351 = vsel %vm322, %v1347, %v1328
    %vm1352 = vcmask 1044480
    %v1353 = vsel %vm1352, %v1348, %v1046
    %v1354 = vsel %vm1352, %v1349, %v1048
    %v1355 = vsel %vm1352, %v1350, %v1087
    %v1356 = vsel %vm1352, %v1351, %v1089
    %v1357 = vmul.bf16 %v202, 0
    %v1358 = vmul.bf16 %v203, 0
    %v1359 = vmul.bf16 %v204, 0
    %v1360 = vmul.bf16 %v205, 0
    %v1361 = vmul.bf16 %v206, 0
    %v1362 = vmul.bf16 %v207, 0
    %v1555 = vunpack.c.l.b16 %v1093
    %v1556 = vunpack.c.h.b16 %v1093
    %v1557 = vunpack.c.l.b16 %v1094
    %v1558 = vunpack.c.h.b16 %v1094
    %v1559 = vunpack.c.l.b16 %v1095
    %v1560 = vunpack.c.h.b16 %v1095
    %v1561 = vunpack.c.l.b16 %v1096
    %v1562 = vunpack.c.h.b16 %v1096
    %v1563 = vunpack.c.l.b16 %v1097
    %v1564 = vunpack.c.h.b16 %v1097
    %v1565 = vunpack.c.l.b16 %v1098
    %v1566 = vunpack.c.h.b16 %v1098
    %v1567 = vunpack.c.l.b16 %v1099
    %v1568 = vunpack.c.h.b16 %v1099
    %v1569 = vunpack.c.l.b16 %v1100
    %v1570 = vunpack.c.h.b16 %v1100
    %v1571 = vunpack.c.l.b16 %v1101
    %v1572 = vunpack.c.h.b16 %v1101
    %v1573 = vunpack.c.l.b16 %v1102
    %v1574 = vunpack.c.h.b16 %v1102
    %v1575 = vunpack.c.l.b16 %v1103
    %v1576 = vunpack.c.h.b16 %v1103
    %v1577 = vunpack.c.l.b16 %v1104
    %v1578 = vunpack.c.h.b16 %v1104
    %v1579 = vunpack.c.l.b16 %v1105
    %v1580 = vunpack.c.h.b16 %v1105
    %v1581 = vunpack.c.l.b16 %v1106
    %v1582 = vunpack.c.h.b16 %v1106
    %v1583 = vunpack.c.l.b16 %v1107
    %v1584 = vunpack.c.h.b16 %v1107
    %v1585 = vunpack.c.l.b16 %v1108
    %v1586 = vunpack.c.h.b16 %v1108
    %v1587 = vunpack.c.l.b16 %v1109
    %v1588 = vunpack.c.h.b16 %v1109
    %v1589 = vunpack.c.l.b16 %v1110
    %v1590 = vunpack.c.h.b16 %v1110
    %v1591 = vunpack.c.l.b16 %v1111
    %v1592 = vunpack.c.h.b16 %v1111
    %v1593 = vunpack.c.l.b16 %v1112
    %v1594 = vunpack.c.h.b16 %v1112
    %v1595 = vunpack.c.l.b16 %v1113
    %v1596 = vunpack.c.h.b16 %v1113
    %v1597 = vunpack.c.l.b16 %v1114
    %v1598 = vunpack.c.h.b16 %v1114
    %v1599 = vunpack.c.l.b16 %v1115
    %v1600 = vunpack.c.h.b16 %v1115
    %v1601 = vunpack.c.l.b16 %v1116
    %v1602 = vunpack.c.h.b16 %v1116
    %v1603 = vunpack.c.l.b16 %v1117
    %v1604 = vunpack.c.h.b16 %v1117
    %v1605 = vunpack.c.l.b16 %v1118
    %v1606 = vunpack.c.h.b16 %v1118
    %v1607 = vunpack.c.l.b16 %v1119
    %v1608 = vunpack.c.h.b16 %v1119
    %v1609 = vunpack.c.l.b16 %v1120
    %v1610 = vunpack.c.h.b16 %v1120
    %v1611 = vunpack.c.l.b16 %v1121
    %v1612 = vunpack.c.h.b16 %v1121
    %v1613 = vunpack.c.l.b16 %v1122
    %v1614 = vunpack.c.h.b16 %v1122
    %v1615 = vunpack.c.l.b16 %v1123
    %v1616 = vunpack.c.h.b16 %v1123
    %v1617 = vunpack.c.l.b16 %v1124
    %v1618 = vunpack.c.h.b16 %v1124
    %v1619 = vunpack.c.l.b16 %v1125
    %v1620 = vunpack.c.h.b16 %v1125
    %v1621 = vunpack.c.l.b16 %v1126
    %v1622 = vunpack.c.h.b16 %v1126
    %v1623 = vunpack.c.l.b16 %v1127
    %v1624 = vunpack.c.h.b16 %v1127
    %v1625 = vunpack.c.l.b16 %v1128
    %v1626 = vunpack.c.h.b16 %v1128
    %v1627 = vunpack.c.l.b16 %v1129
    %v1628 = vunpack.c.h.b16 %v1129
    %v1629 = vunpack.c.l.b16 %v1130
    %v1630 = vunpack.c.h.b16 %v1130
    %v1631 = vunpack.c.l.b16 %v1131
    %v1632 = vunpack.c.h.b16 %v1131
    %v1633 = vunpack.c.l.b16 %v1132
    %v1634 = vunpack.c.h.b16 %v1132
    %v1635 = vunpack.c.l.b16 %v1133
    %v1636 = vunpack.c.h.b16 %v1133
    %v1637 = vunpack.c.l.b16 %v1134
    %v1638 = vunpack.c.h.b16 %v1134
    %v1639 = vunpack.c.l.b16 %v1135
    %v1640 = vunpack.c.h.b16 %v1135
    %v1641 = vunpack.c.l.b16 %v1136
    %v1642 = vunpack.c.h.b16 %v1136
    %v1643 = vunpack.c.l.b16 %v1137
    %v1644 = vunpack.c.h.b16 %v1137
    %v1645 = vunpack.c.l.b16 %v1138
    %v1646 = vunpack.c.h.b16 %v1138
    %v1647 = vunpack.c.l.b16 %v1139
    %v1648 = vunpack.c.h.b16 %v1139
    %v1649 = vunpack.c.l.b16 %v1140
    %v1650 = vunpack.c.h.b16 %v1140
    %v1651 = vunpack.c.l.b16 %v1141
    %v1652 = vunpack.c.h.b16 %v1141
    %v1653 = vunpack.c.l.b16 %v1142
    %v1654 = vunpack.c.h.b16 %v1142
    %v1655 = vunpack.c.l.b16 %v1143
    %v1656 = vunpack.c.h.b16 %v1143
    %v1657 = vunpack.c.l.b16 %v1144
    %v1658 = vunpack.c.h.b16 %v1144
    %v1659 = vunpack.c.l.b16 %v1145
    %v1660 = vunpack.c.h.b16 %v1145
    %v1661 = vunpack.c.l.b16 %v1146
    %v1662 = vunpack.c.h.b16 %v1146
    %v1663 = vunpack.c.l.b16 %v1147
    %v1664 = vunpack.c.h.b16 %v1147
    %v1665 = vunpack.c.l.b16 %v1148
    %v1666 = vunpack.c.h.b16 %v1148
    %v1667 = vunpack.c.l.b16 %v1149
    %v1668 = vunpack.c.h.b16 %v1149
    %v1669 = vunpack.c.l.b16 %v1150
    %v1670 = vunpack.c.h.b16 %v1150
    %v1671 = vunpack.c.l.b16 %v1151
    %v1672 = vunpack.c.h.b16 %v1151
    %v1673 = vunpack.c.l.b16 %v1152
    %v1674 = vunpack.c.h.b16 %v1152
    %v1675 = vunpack.c.l.b16 %v1153
    %v1676 = vunpack.c.h.b16 %v1153
    %v1677 = vunpack.c.l.b16 %v1154
    %v1678 = vunpack.c.h.b16 %v1154
    %v1679 = vunpack.c.l.b16 %v1155
    %v1680 = vunpack.c.h.b16 %v1155
    %v1681 = vunpack.c.l.b16 %v1156
    %v1682 = vunpack.c.h.b16 %v1156
    %v1683 = vunpack.c.l.b16 %v1157
    %v1684 = vunpack.c.h.b16 %v1157
    %v1685 = vunpack.c.l.b16 %v1158
    %v1686 = vunpack.c.h.b16 %v1158
    %v1687 = vunpack.c.l.b16 %v1159
    %v1688 = vunpack.c.h.b16 %v1159
    %v1689 = vunpack.c.l.b16 %v1160
    %v1690 = vunpack.c.h.b16 %v1160
    %v1691 = vunpack.c.l.b16 %v1161
    %v1692 = vunpack.c.h.b16 %v1161
    %v1693 = vunpack.c.l.b16 %v1162
    %v1694 = vunpack.c.h.b16 %v1162
    %v1695 = vunpack.c.l.b16 %v1163
    %v1696 = vunpack.c.h.b16 %v1163
    %v1697 = vunpack.c.l.b16 %v1164
    %v1698 = vunpack.c.h.b16 %v1164
    %v1699 = vunpack.c.l.b16 %v1165
    %v1700 = vunpack.c.h.b16 %v1165
    %v1701 = vunpack.c.l.b16 %v1166
    %v1702 = vunpack.c.h.b16 %v1166
    %v1703 = vunpack.c.l.b16 %v1167
    %v1704 = vunpack.c.h.b16 %v1167
    %v1705 = vunpack.c.l.b16 %v1168
    %v1706 = vunpack.c.h.b16 %v1168
    %v1707 = vunpack.c.l.b16 %v1169
    %v1708 = vunpack.c.h.b16 %v1169
    %v1709 = vunpack.c.l.b16 %v1170
    %v1710 = vunpack.c.h.b16 %v1170
    %v1711 = vunpack.c.l.b16 %v1171
    %v1712 = vunpack.c.h.b16 %v1171
    %v1713 = vunpack.c.l.b16 %v1172
    %v1714 = vunpack.c.h.b16 %v1172
    %v1715 = vunpack.c.l.b16 %v1173
    %v1716 = vunpack.c.h.b16 %v1173
    %v1717 = vunpack.c.l.b16 %v1174
    %v1718 = vunpack.c.h.b16 %v1174
    %v1719 = vunpack.c.l.b16 %v1175
    %v1720 = vunpack.c.h.b16 %v1175
    %v1721 = vunpack.c.l.b16 %v1176
    %v1722 = vunpack.c.h.b16 %v1176
    %v1723 = vunpack.c.l.b16 %v1177
    %v1724 = vunpack.c.h.b16 %v1177
    %v1725 = vunpack.c.l.b16 %v1178
    %v1726 = vunpack.c.h.b16 %v1178
    %v1727 = vunpack.c.l.b16 %v1179
    %v1728 = vunpack.c.h.b16 %v1179
    %v1729 = vunpack.c.l.b16 %v1180
    %v1730 = vunpack.c.h.b16 %v1180
    %v1731 = vunpack.c.l.b16 %v1181
    %v1732 = vunpack.c.h.b16 %v1181
    %v1733 = vunpack.c.l.b16 %v1182
    %v1734 = vunpack.c.h.b16 %v1182
    %v1735 = vunpack.c.l.b16 %v1183
    %v1736 = vunpack.c.h.b16 %v1183
    %v1737 = vunpack.c.l.b16 %v1184
    %v1738 = vunpack.c.h.b16 %v1184
    %v1739 = vunpack.c.l.b16 %v1185
    %v1740 = vunpack.c.h.b16 %v1185
    %v1741 = vunpack.c.l.b16 %v1186
    %v1742 = vunpack.c.h.b16 %v1186
    %v1743 = vunpack.c.l.b16 %v1187
    %v1744 = vunpack.c.h.b16 %v1187
    %v1745 = vunpack.c.l.b16 %v1188
    %v1746 = vunpack.c.h.b16 %v1188
    %v1747 = vunpack.c.l.b16 %v1189
    %v1748 = vunpack.c.h.b16 %v1189
    %v1749 = vunpack.c.l.b16 %v1190
    %v1750 = vunpack.c.h.b16 %v1190
    %v1751 = vunpack.c.l.b16 %v1191
    %v1752 = vunpack.c.h.b16 %v1191
    %v1753 = vunpack.c.l.b16 %v1192
    %v1754 = vunpack.c.h.b16 %v1192
    %v1755 = vunpack.c.l.b16 %v1193
    %v1756 = vunpack.c.h.b16 %v1193
    %v1757 = vunpack.c.l.b16 %v1194
    %v1758 = vunpack.c.h.b16 %v1194
    %v1759 = vunpack.c.l.b16 %v1195
    %v1760 = vunpack.c.h.b16 %v1195
    %v1761 = vunpack.c.l.b16 %v1196
    %v1762 = vunpack.c.h.b16 %v1196
    %v1763 = vunpack.c.l.b16 %v1197
    %v1764 = vunpack.c.h.b16 %v1197
    %v1765 = vunpack.c.l.b16 %v1198
    %v1766 = vunpack.c.h.b16 %v1198
    %v1767 = vunpack.c.l.b16 %v1199
    %v1768 = vunpack.c.h.b16 %v1199
    %v1769 = vunpack.c.l.b16 %v1200
    %v1770 = vunpack.c.h.b16 %v1200
    %v1771 = vunpack.c.l.b16 %v1201
    %v1772 = vunpack.c.h.b16 %v1201
    %v1773 = vunpack.c.l.b16 %v1202
    %v1774 = vunpack.c.h.b16 %v1202
    %v1775 = vunpack.c.l.b16 %v1203
    %v1776 = vunpack.c.h.b16 %v1203
    %v1777 = vunpack.c.l.b16 %v1204
    %v1778 = vunpack.c.h.b16 %v1204
    %v1779 = vunpack.c.l.b16 %v1205
    %v1780 = vunpack.c.h.b16 %v1205
    %v1781 = vunpack.c.l.b16 %v1206
    %v1782 = vunpack.c.h.b16 %v1206
    %v1783 = vunpack.c.l.b16 %v1207
    %v1784 = vunpack.c.h.b16 %v1207
    %v1785 = vunpack.c.l.b16 %v1208
    %v1786 = vunpack.c.h.b16 %v1208
    %v1787 = vunpack.c.l.b16 %v1209
    %v1788 = vunpack.c.h.b16 %v1209
    %v1789 = vunpack.c.l.b16 %v1210
    %v1790 = vunpack.c.h.b16 %v1210
    %v1791 = vunpack.c.l.b16 %v1211
    %v1792 = vunpack.c.h.b16 %v1211
    %v1793 = vunpack.c.l.b16 %v1212
    %v1794 = vunpack.c.h.b16 %v1212
    %v1795 = vunpack.c.l.b16 %v1213
    %v1796 = vunpack.c.h.b16 %v1213
    %v1797 = vunpack.c.l.b16 %v1214
    %v1798 = vunpack.c.h.b16 %v1214
    %v1799 = vunpack.c.l.b16 %v1215
    %v1800 = vunpack.c.h.b16 %v1215
    %v1801 = vunpack.c.l.b16 %v1216
    %v1802 = vunpack.c.h.b16 %v1216
    %v1803 = vunpack.c.l.b16 %v1217
    %v1804 = vunpack.c.h.b16 %v1217
    %v1805 = vunpack.c.l.b16 %v1218
    %v1806 = vunpack.c.h.b16 %v1218
    %v1807 = vunpack.c.l.b16 %v1219
    %v1808 = vunpack.c.h.b16 %v1219
    %v1809 = vunpack.c.l.b16 %v1220
    %v1810 = vunpack.c.h.b16 %v1220
    %v1811 = vunpack.c.l.b16 %v1221
    %v1812 = vunpack.c.h.b16 %v1221
    %v1813 = vunpack.c.l.b16 %v1222
    %v1814 = vunpack.c.h.b16 %v1222
    %v1815 = vunpack.c.l.b16 %v1223
    %v1816 = vunpack.c.h.b16 %v1223
    %v1817 = vunpack.c.l.b16 %v1224
    %v1818 = vunpack.c.h.b16 %v1224
    %v1819 = vunpack.c.l.b16 %v1225
    %v1820 = vunpack.c.h.b16 %v1225
    %v1821 = vunpack.c.l.b16 %v1226
    %v1822 = vunpack.c.h.b16 %v1226
    %v1823 = vunpack.c.l.b16 %v1227
    %v1824 = vunpack.c.h.b16 %v1227
    %v1825 = vunpack.c.l.b16 %v1228
    %v1826 = vunpack.c.h.b16 %v1228
    %v1827 = vunpack.c.l.b16 %v1229
    %v1828 = vunpack.c.h.b16 %v1229
    %v1829 = vunpack.c.l.b16 %v1230
    %v1830 = vunpack.c.h.b16 %v1230
    %v1831 = vunpack.c.l.b16 %v1231
    %v1832 = vunpack.c.h.b16 %v1231
    %v1833 = vunpack.c.l.b16 %v1232
    %v1834 = vunpack.c.h.b16 %v1232
    %v1835 = vunpack.c.l.b16 %v1233
    %v1836 = vunpack.c.h.b16 %v1233
    %v1837 = vunpack.c.l.b16 %v1234
    %v1838 = vunpack.c.h.b16 %v1234
    %v1839 = vunpack.c.l.b16 %v1235
    %v1840 = vunpack.c.h.b16 %v1235
    %v1841 = vunpack.c.l.b16 %v1236
    %v1842 = vunpack.c.h.b16 %v1236
    %v1843 = vunpack.c.l.b16 %v1237
    %v1844 = vunpack.c.h.b16 %v1237
    %v1845 = vunpack.c.l.b16 %v1238
    %v1846 = vunpack.c.h.b16 %v1238
    %v1847 = vunpack.c.l.b16 %v1239
    %v1848 = vunpack.c.h.b16 %v1239
    %v1849 = vunpack.c.l.b16 %v1240
    %v1850 = vunpack.c.h.b16 %v1240
    %v1851 = vunpack.c.l.b16 %v1241
    %v1852 = vunpack.c.h.b16 %v1241
    %v1853 = vunpack.c.l.b16 %v1242
    %v1854 = vunpack.c.h.b16 %v1242
    %v1855 = vunpack.c.l.b16 %v1243
    %v1856 = vunpack.c.h.b16 %v1243
    %v1857 = vunpack.c.l.b16 %v1244
    %v1858 = vunpack.c.h.b16 %v1244
    %v1859 = vunpack.c.l.b16 %v1245
    %v1860 = vunpack.c.h.b16 %v1245
    %v1861 = vunpack.c.l.b16 %v1246
    %v1862 = vunpack.c.h.b16 %v1246
    %v1863 = vunpack.c.l.b16 %v1247
    %v1864 = vunpack.c.h.b16 %v1247
    %v1865 = vunpack.c.l.b16 %v1248
    %v1866 = vunpack.c.h.b16 %v1248
    %v1867 = vunpack.c.l.b16 %v1249
    %v1868 = vunpack.c.h.b16 %v1249
    %v1869 = vunpack.c.l.b16 %v1250
    %v1870 = vunpack.c.h.b16 %v1250
    %v1871 = vunpack.c.l.b16 %v1251
    %v1872 = vunpack.c.h.b16 %v1251
    %v1873 = vunpack.c.l.b16 %v1252
    %v1874 = vunpack.c.h.b16 %v1252
    %v1875 = vunpack.c.l.b16 %v1253
    %v1876 = vunpack.c.h.b16 %v1253
    %v1877 = vunpack.c.l.b16 %v1254
    %v1878 = vunpack.c.h.b16 %v1254
    %v1879 = vunpack.c.l.b16 %v1255
    %v1880 = vunpack.c.h.b16 %v1255
    %v1881 = vunpack.c.l.b16 %v1256
    %v1882 = vunpack.c.h.b16 %v1256
    %v1883 = vunpack.c.l.b16 %v1257
    %v1884 = vunpack.c.h.b16 %v1257
    %v1885 = vunpack.c.l.b16 %v1258
    %v1886 = vunpack.c.h.b16 %v1258
    %v1887 = vunpack.c.l.b16 %v1259
    %v1888 = vunpack.c.h.b16 %v1259
    %v1889 = vunpack.c.l.b16 %v1260
    %v1890 = vunpack.c.h.b16 %v1260
    %v1891 = vunpack.c.l.b16 %v1261
    %v1892 = vunpack.c.h.b16 %v1261
    %v1893 = vunpack.c.l.b16 %v1262
    %v1894 = vunpack.c.h.b16 %v1262
    %v1895 = vunpack.c.l.b16 %v1263
    %v1896 = vunpack.c.h.b16 %v1263
    %v1897 = vunpack.c.l.b16 %v1264
    %v1898 = vunpack.c.h.b16 %v1264
    %v1899 = vunpack.c.l.b16 %v1265
    %v1900 = vunpack.c.h.b16 %v1265
    %v1901 = vunpack.c.l.b16 %v1266
    %v1902 = vunpack.c.h.b16 %v1266
    %v1903 = vunpack.c.l.b16 %v1267
    %v1904 = vunpack.c.h.b16 %v1267
    %v1905 = vunpack.c.l.b16 %v1268
    %v1906 = vunpack.c.h.b16 %v1268
    %v1907 = vunpack.c.l.b16 %v1269
    %v1908 = vunpack.c.h.b16 %v1269
    %v1909 = vunpack.c.l.b16 %v1270
    %v1910 = vunpack.c.h.b16 %v1270
    %v1911 = vunpack.c.l.b16 %v1271
    %v1912 = vunpack.c.h.b16 %v1271
    %v1913 = vunpack.c.l.b16 %v1272
    %v1914 = vunpack.c.h.b16 %v1272
    %v1915 = vunpack.c.l.b16 %v1273
    %v1916 = vunpack.c.h.b16 %v1273
    %v1917 = vunpack.c.l.b16 %v1274
    %v1918 = vunpack.c.h.b16 %v1274
    %v1919 = vunpack.c.l.b16 %v1275
    %v1920 = vunpack.c.h.b16 %v1275
    %v1921 = vunpack.c.l.b16 %v1276
    %v1922 = vunpack.c.h.b16 %v1276
    %v1923 = vunpack.c.l.b16 %v1277
    %v1924 = vunpack.c.h.b16 %v1277
    %v1925 = vunpack.c.l.b16 %v1278
    %v1926 = vunpack.c.h.b16 %v1278
    %v1927 = vunpack.c.l.b16 %v1279
    %v1928 = vunpack.c.h.b16 %v1279
    %v1929 = vunpack.c.l.b16 %v1280
    %v1930 = vunpack.c.h.b16 %v1280
    %v1931 = vunpack.c.l.b16 %v1281
    %v1932 = vunpack.c.h.b16 %v1281
    %v1933 = vunpack.c.l.b16 %v1282
    %v1934 = vunpack.c.h.b16 %v1282
    %v1935 = vunpack.c.l.b16 %v1283
    %v1936 = vunpack.c.h.b16 %v1283
    %v1937 = vunpack.c.l.b16 %v1284
    %v1938 = vunpack.c.h.b16 %v1284
    %v1939 = vpack.c.b16 %v1559, %v1555
    %v1940 = vpack.c.b16 %v1560, %v1556
    %v1941 = vpack.c.b16 %v1561, %v1557
    %v1942 = vpack.c.b16 %v1562, %v1558
    %v1943 = vpack.c.b16 %v1567, %v1563
    %v1944 = vpack.c.b16 %v1568, %v1564
    %v1945 = vpack.c.b16 %v1569, %v1565
    %v1946 = vpack.c.b16 %v1570, %v1566
    %v1947 = vpack.c.b16 %v1575, %v1571
    %v1948 = vpack.c.b16 %v1576, %v1572
    %v1949 = vpack.c.b16 %v1577, %v1573
    %v1950 = vpack.c.b16 %v1578, %v1574
    %v1951 = vpack.c.b16 %v1583, %v1579
    %v1952 = vpack.c.b16 %v1584, %v1580
    %v1953 = vpack.c.b16 %v1585, %v1581
    %v1954 = vpack.c.b16 %v1586, %v1582
    %v1955 = vpack.c.b16 %v1591, %v1587
    %v1956 = vpack.c.b16 %v1592, %v1588
    %v1957 = vpack.c.b16 %v1593, %v1589
    %v1958 = vpack.c.b16 %v1594, %v1590
    %v1959 = vpack.c.b16 %v1599, %v1595
    %v1960 = vpack.c.b16 %v1600, %v1596
    %v1961 = vpack.c.b16 %v1601, %v1597
    %v1962 = vpack.c.b16 %v1602, %v1598
    %v1963 = vpack.c.b16 %v1607, %v1603
    %v1964 = vpack.c.b16 %v1608, %v1604
    %v1965 = vpack.c.b16 %v1609, %v1605
    %v1966 = vpack.c.b16 %v1610, %v1606
    %v1967 = vpack.c.b16 %v1615, %v1611
    %v1968 = vpack.c.b16 %v1616, %v1612
    %v1969 = vpack.c.b16 %v1617, %v1613
    %v1970 = vpack.c.b16 %v1618, %v1614
    %v1971 = vpack.c.b16 %v1623, %v1619
    %v1972 = vpack.c.b16 %v1624, %v1620
    %v1973 = vpack.c.b16 %v1625, %v1621
    %v1974 = vpack.c.b16 %v1626, %v1622
    %v1975 = vpack.c.b16 %v1631, %v1627
    %v1976 = vpack.c.b16 %v1632, %v1628
    %v1977 = vpack.c.b16 %v1633, %v1629
    %v1978 = vpack.c.b16 %v1634, %v1630
    %v1979 = vpack.c.b16 %v1639, %v1635
    %v1980 = vpack.c.b16 %v1640, %v1636
    %v1981 = vpack.c.b16 %v1641, %v1637
    %v1982 = vpack.c.b16 %v1642, %v1638
    %v1983 = vpack.c.b16 %v1647, %v1643
    %v1984 = vpack.c.b16 %v1648, %v1644
    %v1985 = vpack.c.b16 %v1649, %v1645
    %v1986 = vpack.c.b16 %v1650, %v1646
    %v1987 = vpack.c.b16 %v1655, %v1651
    %v1988 = vpack.c.b16 %v1656, %v1652
    %v1989 = vpack.c.b16 %v1657, %v1653
    %v1990 = vpack.c.b16 %v1658, %v1654
    %v1991 = vpack.c.b16 %v1663, %v1659
    %v1992 = vpack.c.b16 %v1664, %v1660
    %v1993 = vpack.c.b16 %v1665, %v1661
    %v1994 = vpack.c.b16 %v1666, %v1662
    %v1995 = vpack.c.b16 %v1671, %v1667
    %v1996 = vpack.c.b16 %v1672, %v1668
    %v1997 = vpack.c.b16 %v1673, %v1669
    %v1998 = vpack.c.b16 %v1674, %v1670
    %v1999 = vpack.c.b16 %v1679, %v1675
    %v2000 = vpack.c.b16 %v1680, %v1676
    %v2001 = vpack.c.b16 %v1681, %v1677
    %v2002 = vpack.c.b16 %v1682, %v1678
    %v2003 = vpack.c.b16 %v1687, %v1683
    %v2004 = vpack.c.b16 %v1688, %v1684
    %v2005 = vpack.c.b16 %v1689, %v1685
    %v2006 = vpack.c.b16 %v1690, %v1686
    %v2007 = vpack.c.b16 %v1695, %v1691
    %v2008 = vpack.c.b16 %v1696, %v1692
    %v2009 = vpack.c.b16 %v1697, %v1693
    %v2010 = vpack.c.b16 %v1698, %v1694
    %v2011 = vpack.c.b16 %v1703, %v1699
    %v2012 = vpack.c.b16 %v1704, %v1700
    %v2013 = vpack.c.b16 %v1705, %v1701
    %v2014 = vpack.c.b16 %v1706, %v1702
    %v2015 = vpack.c.b16 %v1711, %v1707
    %v2016 = vpack.c.b16 %v1712, %v1708
    %v2017 = vpack.c.b16 %v1713, %v1709
    %v2018 = vpack.c.b16 %v1714, %v1710
    %v2019 = vpack.c.b16 %v1719, %v1715
    %v2020 = vpack.c.b16 %v1720, %v1716
    %v2021 = vpack.c.b16 %v1721, %v1717
    %v2022 = vpack.c.b16 %v1722, %v1718
    %v2023 = vpack.c.b16 %v1727, %v1723
    %v2024 = vpack.c.b16 %v1728, %v1724
    %v2025 = vpack.c.b16 %v1729, %v1725
    %v2026 = vpack.c.b16 %v1730, %v1726
    %v2027 = vpack.c.b16 %v1735, %v1731
    %v2028 = vpack.c.b16 %v1736, %v1732
    %v2029 = vpack.c.b16 %v1737, %v1733
    %v2030 = vpack.c.b16 %v1738, %v1734
    %v2031 = vpack.c.b16 %v1743, %v1739
    %v2032 = vpack.c.b16 %v1744, %v1740
    %v2033 = vpack.c.b16 %v1745, %v1741
    %v2034 = vpack.c.b16 %v1746, %v1742
    %v2035 = vpack.c.b16 %v1751, %v1747
    %v2036 = vpack.c.b16 %v1752, %v1748
    %v2037 = vpack.c.b16 %v1753, %v1749
    %v2038 = vpack.c.b16 %v1754, %v1750
    %v2039 = vpack.c.b16 %v1759, %v1755
    %v2040 = vpack.c.b16 %v1760, %v1756
    %v2041 = vpack.c.b16 %v1761, %v1757
    %v2042 = vpack.c.b16 %v1762, %v1758
    %v2043 = vpack.c.b16 %v1767, %v1763
    %v2044 = vpack.c.b16 %v1768, %v1764
    %v2045 = vpack.c.b16 %v1769, %v1765
    %v2046 = vpack.c.b16 %v1770, %v1766
    %v2047 = vpack.c.b16 %v1775, %v1771
    %v2048 = vpack.c.b16 %v1776, %v1772
    %v2049 = vpack.c.b16 %v1777, %v1773
    %v2050 = vpack.c.b16 %v1778, %v1774
    %v2051 = vpack.c.b16 %v1783, %v1779
    %v2052 = vpack.c.b16 %v1784, %v1780
    %v2053 = vpack.c.b16 %v1785, %v1781
    %v2054 = vpack.c.b16 %v1786, %v1782
    %v2055 = vpack.c.b16 %v1791, %v1787
    %v2056 = vpack.c.b16 %v1792, %v1788
    %v2057 = vpack.c.b16 %v1793, %v1789
    %v2058 = vpack.c.b16 %v1794, %v1790
    %v2059 = vpack.c.b16 %v1799, %v1795
    %v2060 = vpack.c.b16 %v1800, %v1796
    %v2061 = vpack.c.b16 %v1801, %v1797
    %v2062 = vpack.c.b16 %v1802, %v1798
    %v2063 = vpack.c.b16 %v1807, %v1803
    %v2064 = vpack.c.b16 %v1808, %v1804
    %v2065 = vpack.c.b16 %v1809, %v1805
    %v2066 = vpack.c.b16 %v1810, %v1806
    %v2067 = vpack.c.b16 %v1815, %v1811
    %v2068 = vpack.c.b16 %v1816, %v1812
    %v2069 = vpack.c.b16 %v1817, %v1813
    %v2070 = vpack.c.b16 %v1818, %v1814
    %v2071 = vpack.c.b16 %v1823, %v1819
    %v2072 = vpack.c.b16 %v1824, %v1820
    %v2073 = vpack.c.b16 %v1825, %v1821
    %v2074 = vpack.c.b16 %v1826, %v1822
    %v2075 = vpack.c.b16 %v1831, %v1827
    %v2076 = vpack.c.b16 %v1832, %v1828
    %v2077 = vpack.c.b16 %v1833, %v1829
    %v2078 = vpack.c.b16 %v1834, %v1830
    %v2079 = vpack.c.b16 %v1839, %v1835
    %v2080 = vpack.c.b16 %v1840, %v1836
    %v2081 = vpack.c.b16 %v1841, %v1837
    %v2082 = vpack.c.b16 %v1842, %v1838
    %v2083 = vpack.c.b16 %v1847, %v1843
    %v2084 = vpack.c.b16 %v1848, %v1844
    %v2085 = vpack.c.b16 %v1849, %v1845
    %v2086 = vpack.c.b16 %v1850, %v1846
    %v2087 = vpack.c.b16 %v1855, %v1851
    %v2088 = vpack.c.b16 %v1856, %v1852
    %v2089 = vpack.c.b16 %v1857, %v1853
    %v2090 = vpack.c.b16 %v1858, %v1854
    %v2091 = vpack.c.b16 %v1863, %v1859
    %v2092 = vpack.c.b16 %v1864, %v1860
    %v2093 = vpack.c.b16 %v1865, %v1861
    %v2094 = vpack.c.b16 %v1866, %v1862
    %v2095 = vpack.c.b16 %v1871, %v1867
    %v2096 = vpack.c.b16 %v1872, %v1868
    %v2097 = vpack.c.b16 %v1873, %v1869
    %v2098 = vpack.c.b16 %v1874, %v1870
    %v2099 = vpack.c.b16 %v1879, %v1875
    %v2100 = vpack.c.b16 %v1880, %v1876
    %v2101 = vpack.c.b16 %v1881, %v1877
    %v2102 = vpack.c.b16 %v1882, %v1878
    %v2103 = vpack.c.b16 %v1887, %v1883
    %v2104 = vpack.c.b16 %v1888, %v1884
    %v2105 = vpack.c.b16 %v1889, %v1885
    %v2106 = vpack.c.b16 %v1890, %v1886
    %v2107 = vpack.c.b16 %v1895, %v1891
    %v2108 = vpack.c.b16 %v1896, %v1892
    %v2109 = vpack.c.b16 %v1897, %v1893
    %v2110 = vpack.c.b16 %v1898, %v1894
    %v2111 = vpack.c.b16 %v1903, %v1899
    %v2112 = vpack.c.b16 %v1904, %v1900
    %v2113 = vpack.c.b16 %v1905, %v1901
    %v2114 = vpack.c.b16 %v1906, %v1902
    %v2115 = vpack.c.b16 %v1911, %v1907
    %v2116 = vpack.c.b16 %v1912, %v1908
    %v2117 = vpack.c.b16 %v1913, %v1909
    %v2118 = vpack.c.b16 %v1914, %v1910
    %v2119 = vpack.c.b16 %v1919, %v1915
    %v2120 = vpack.c.b16 %v1920, %v1916
    %v2121 = vpack.c.b16 %v1921, %v1917
    %v2122 = vpack.c.b16 %v1922, %v1918
    %v2123 = vpack.c.b16 %v1927, %v1923
    %v2124 = vpack.c.b16 %v1928, %v1924
    %v2125 = vpack.c.b16 %v1929, %v1925
    %v2126 = vpack.c.b16 %v1930, %v1926
    %v2127 = vpack.c.b16 %v1935, %v1931
    %v2128 = vpack.c.b16 %v1936, %v1932
    %v2129 = vpack.c.b16 %v1937, %v1933
    %v2130 = vpack.c.b16 %v1938, %v1934
    %2323 = vmatprep.subr.bf16.mxu0 %v1940
    %2324 = vmatpush1.bf16.msra.mxu0 %v1939
    %2325 = vmatprep.subr.bf16.mxu0 %v1944
    %2326 = vmatpush1.bf16.msra.mxu0 %v1943
    %2327 = vmatprep.subr.bf16.mxu0 %v1948
    %2328 = vmatpush1.bf16.msra.mxu0 %v1947
    %2329 = vmatprep.subr.bf16.mxu0 %v1952
    %2330 = vmatpush1.bf16.msra.mxu0 %v1951
    %2331 = vmatprep.subr.bf16.mxu0 %v1956
    %2332 = vmatpush1.bf16.msra.mxu0 %v1955
    %2333 = vmatprep.subr.bf16.mxu0 %v1960
    %2334 = vmatpush1.bf16.msra.mxu0 %v1959
    %2335 = vmatprep.subr.bf16.mxu0 %v1964
    %2336 = vmatpush1.bf16.msra.mxu0 %v1963
    %2337 = vmatprep.subr.bf16.mxu0 %v1968
    %2338 = vmatpush1.bf16.msra.mxu0 %v1967
    %2339 = vmatprep.subr.bf16.mxu0 %v1972
    %2340 = vmatpush1.bf16.msra.mxu0 %v1971
    %2341 = vmatprep.subr.bf16.mxu0 %v1976
    %2342 = vmatpush1.bf16.msra.mxu0 %v1975
    %2343 = vmatprep.subr.bf16.mxu0 %v1980
    %2344 = vmatpush1.bf16.msra.mxu0 %v1979
    %2345 = vmatprep.subr.bf16.mxu0 %v1984
    %2346 = vmatpush1.bf16.msra.mxu0 %v1983
    %2347 = vmatprep.subr.bf16.mxu0 %v1988
    %2348 = vmatpush1.bf16.msra.mxu0 %v1987
    %2349 = vmatprep.subr.bf16.mxu0 %v1992
    %2350 = vmatpush1.bf16.msra.mxu0 %v1991
    %2351 = vmatprep.subr.bf16.mxu0 %v1996
    %2352 = vmatpush1.bf16.msra.mxu0 %v1995
    %2353 = vmatprep.subr.bf16.mxu0 %v2000
    %2354 = vmatpush1.bf16.msra.mxu0 %v1999
    %2355 = vmatprep.mubr.bf16.mxu0 %v1358
    %2356 = vmatmul.mubr.bf16.gmra.mrb[0].mxu0 %v1357
    %v2357 = vpop.f32.mrb[0].mxu0
    %v2358 = vadd.f32 0.0, %v2357
    %v2359 = vpop.f32.mrb[0].mxu0
    %v2360 = vadd.f32 0.0, %v2359
    %v2361 = vpop.f32.mrb[0].mxu0
    %v2362 = vpop.f32.mrb[0].mxu0
    %2363 = vdwg.mxu0
    %2364 = vmatprep.subr.bf16.mxu0 %v2004
    %2365 = vmatpush1.bf16.msra.mxu0 %v2003
    %2366 = vmatprep.subr.bf16.mxu0 %v2008
    %2367 = vmatpush1.bf16.msra.mxu0 %v2007
    %2368 = vmatprep.subr.bf16.mxu0 %v2012
    %2369 = vmatpush1.bf16.msra.mxu0 %v2011
    %2370 = vmatprep.subr.bf16.mxu0 %v2016
    %2371 = vmatpush1.bf16.msra.mxu0 %v2015
    %2372 = vmatprep.subr.bf16.mxu0 %v2020
    %2373 = vmatpush1.bf16.msra.mxu0 %v2019
    %2374 = vmatprep.subr.bf16.mxu0 %v2024
    %2375 = vmatpush1.bf16.msra.mxu0 %v2023
    %2376 = vmatprep.subr.bf16.mxu0 %v2028
    %2377 = vmatpush1.bf16.msra.mxu0 %v2027
    %2378 = vmatprep.subr.bf16.mxu0 %v2032
    %2379 = vmatpush1.bf16.msra.mxu0 %v2031
    %2380 = vmatprep.subr.bf16.mxu0 %v2036
    %2381 = vmatpush1.bf16.msra.mxu0 %v2035
    %2382 = vmatprep.subr.bf16.mxu0 %v2040
    %2383 = vmatpush1.bf16.msra.mxu0 %v2039
    %2384 = vmatprep.subr.bf16.mxu0 %v2044
    %2385 = vmatpush1.bf16.msra.mxu0 %v2043
    %2386 = vmatprep.subr.bf16.mxu0 %v2048
    %2387 = vmatpush1.bf16.msra.mxu0 %v2047
    %2388 = vmatprep.subr.bf16.mxu0 %v2052
    %2389 = vmatpush1.bf16.msra.mxu0 %v2051
    %2390 = vmatprep.subr.bf16.mxu0 %v2056
    %2391 = vmatpush1.bf16.msra.mxu0 %v2055
    %2392 = vmatprep.subr.bf16.mxu0 %v2060
    %2393 = vmatpush1.bf16.msra.mxu0 %v2059
    %2394 = vmatprep.subr.bf16.mxu0 %v2064
    %2395 = vmatpush1.bf16.msra.mxu0 %v2063
    %2396 = vmatprep.mubr.bf16.mxu0 %v1360
    %2397 = vmatmul.mubr.bf16.gmra.mrb[0].mxu0 %v1359
    %v2398 = vpop.f32.mrb[0].mxu0
    %v2399 = vadd.f32 %v2358, %v2398
    %v2400 = vpop.f32.mrb[0].mxu0
    %v2401 = vadd.f32 %v2360, %v2400
    %v2402 = vpop.f32.mrb[0].mxu0
    %v2403 = vpop.f32.mrb[0].mxu0
    %2404 = vdwg.mxu0
    %2405 = vmatprep.subr.bf16.mxu0 %v2068
    %2406 = vmatpush1.bf16.msra.mxu0 %v2067
    %2407 = vmatprep.subr.bf16.mxu0 %v2072
    %2408 = vmatpush1.bf16.msra.mxu0 %v2071
    %2409 = vmatprep.subr.bf16.mxu0 %v2076
    %2410 = vmatpush1.bf16.msra.mxu0 %v2075
    %2411 = vmatprep.subr.bf16.mxu0 %v2080
    %2412 = vmatpush1.bf16.msra.mxu0 %v2079
    %2413 = vmatprep.subr.bf16.mxu0 %v2084
    %2414 = vmatpush1.bf16.msra.mxu0 %v2083
    %2415 = vmatprep.subr.bf16.mxu0 %v2088
    %2416 = vmatpush1.bf16.msra.mxu0 %v2087
    %2417 = vmatprep.subr.bf16.mxu0 %v2092
    %2418 = vmatpush1.bf16.msra.mxu0 %v2091
    %2419 = vmatprep.subr.bf16.mxu0 %v2096
    %2420 = vmatpush1.bf16.msra.mxu0 %v2095
    %2421 = vmatprep.subr.bf16.mxu0 %v2100
    %2422 = vmatpush1.bf16.msra.mxu0 %v2099
    %2423 = vmatprep.subr.bf16.mxu0 %v2104
    %2424 = vmatpush1.bf16.msra.mxu0 %v2103
    %2425 = vmatprep.subr.bf16.mxu0 %v2108
    %2426 = vmatpush1.bf16.msra.mxu0 %v2107
    %2427 = vmatprep.subr.bf16.mxu0 %v2112
    %2428 = vmatpush1.bf16.msra.mxu0 %v2111
    %2429 = vmatprep.subr.bf16.mxu0 %v2116
    %2430 = vmatpush1.bf16.msra.mxu0 %v2115
    %2431 = vmatprep.subr.bf16.mxu0 %v2120
    %2432 = vmatpush1.bf16.msra.mxu0 %v2119
    %2433 = vmatprep.subr.bf16.mxu0 %v2124
    %2434 = vmatpush1.bf16.msra.mxu0 %v2123
    %2435 = vmatprep.subr.bf16.mxu0 %v2128
    %2436 = vmatpush1.bf16.msra.mxu0 %v2127
    %2437 = vmatprep.mubr.bf16.mxu0 %v1362
    %2438 = vmatmul.mubr.bf16.gmra.mrb[0].mxu0 %v1361
    %v2439 = vpop.f32.mrb[0].mxu0
    %v2440 = vadd.f32 %v2399, %v2439
    %v2441 = vpop.f32.mrb[0].mxu0
    %v2442 = vadd.f32 %v2401, %v2441
    %v2443 = vpop.f32.mrb[0].mxu0
    %v2444 = vpop.f32.mrb[0].mxu0
    %2445 = vdwg.mxu0
    %2446 = vmatprep.subr.bf16.mxu0 %v1942
    %2447 = vmatpush1.bf16.msra.mxu0 %v1941
    %2448 = vmatprep.subr.bf16.mxu0 %v1946
    %2449 = vmatpush1.bf16.msra.mxu0 %v1945
    %2450 = vmatprep.subr.bf16.mxu0 %v1950
    %2451 = vmatpush1.bf16.msra.mxu0 %v1949
    %2452 = vmatprep.subr.bf16.mxu0 %v1954
    %2453 = vmatpush1.bf16.msra.mxu0 %v1953
    %2454 = vmatprep.subr.bf16.mxu0 %v1958
    %2455 = vmatpush1.bf16.msra.mxu0 %v1957
    %2456 = vmatprep.subr.bf16.mxu0 %v1962
    %2457 = vmatpush1.bf16.msra.mxu0 %v1961
    %2458 = vmatprep.subr.bf16.mxu0 %v1966
    %2459 = vmatpush1.bf16.msra.mxu0 %v1965
    %2460 = vmatprep.subr.bf16.mxu0 %v1970
    %2461 = vmatpush1.bf16.msra.mxu0 %v1969
    %2462 = vmatprep.subr.bf16.mxu0 %v1974
    %2463 = vmatpush1.bf16.msra.mxu0 %v1973
    %2464 = vmatprep.subr.bf16.mxu0 %v1978
    %2465 = vmatpush1.bf16.msra.mxu0 %v1977
    %2466 = vmatprep.subr.bf16.mxu0 %v1982
    %2467 = vmatpush1.bf16.msra.mxu0 %v1981
    %2468 = vmatprep.subr.bf16.mxu0 %v1986
    %2469 = vmatpush1.bf16.msra.mxu0 %v1985
    %2470 = vmatprep.subr.bf16.mxu0 %v1990
    %2471 = vmatpush1.bf16.msra.mxu0 %v1989
    %2472 = vmatprep.subr.bf16.mxu0 %v1994
    %2473 = vmatpush1.bf16.msra.mxu0 %v1993
    %2474 = vmatprep.subr.bf16.mxu0 %v1998
    %2475 = vmatpush1.bf16.msra.mxu0 %v1997
    %2476 = vmatprep.subr.bf16.mxu0 %v2002
    %2477 = vmatpush1.bf16.msra.mxu0 %v2001
    %2478 = vmatprep.mubr.bf16.mxu0 %v1358
    %2479 = vmatmul.mubr.bf16.gmra.mrb[0].mxu0 %v1357
    %v2480 = vpop.f32.mrb[0].mxu0
    %v2481 = vadd.f32 0.0, %v2480
    %v2482 = vpop.f32.mrb[0].mxu0
    %v2483 = vadd.f32 0.0, %v2482
    %v2484 = vpop.f32.mrb[0].mxu0
    %v2485 = vpop.f32.mrb[0].mxu0
    %2486 = vdwg.mxu0
    %2487 = vmatprep.subr.bf16.mxu0 %v2006
    %2488 = vmatpush1.bf16.msra.mxu0 %v2005
    %2489 = vmatprep.subr.bf16.mxu0 %v2010
    %2490 = vmatpush1.bf16.msra.mxu0 %v2009
    %2491 = vmatprep.subr.bf16.mxu0 %v2014
    %2492 = vmatpush1.bf16.msra.mxu0 %v2013
    %2493 = vmatprep.subr.bf16.mxu0 %v2018
    %2494 = vmatpush1.bf16.msra.mxu0 %v2017
    %2495 = vmatprep.subr.bf16.mxu0 %v2022
    %2496 = vmatpush1.bf16.msra.mxu0 %v2021
    %2497 = vmatprep.subr.bf16.mxu0 %v2026
    %2498 = vmatpush1.bf16.msra.mxu0 %v2025
    %2499 = vmatprep.subr.bf16.mxu0 %v2030
    %2500 = vmatpush1.bf16.msra.mxu0 %v2029
    %2501 = vmatprep.subr.bf16.mxu0 %v2034
    %2502 = vmatpush1.bf16.msra.mxu0 %v2033
    %2503 = vmatprep.subr.bf16.mxu0 %v2038
    %2504 = vmatpush1.bf16.msra.mxu0 %v2037
    %2505 = vmatprep.subr.bf16.mxu0 %v2042
    %2506 = vmatpush1.bf16.msra.mxu0 %v2041
    %2507 = vmatprep.subr.bf16.mxu0 %v2046
    %2508 = vmatpush1.bf16.msra.mxu0 %v2045
    %2509 = vmatprep.subr.bf16.mxu0 %v2050
    %2510 = vmatpush1.bf16.msra.mxu0 %v2049
    %2511 = vmatprep.subr.bf16.mxu0 %v2054
    %2512 = vmatpush1.bf16.msra.mxu0 %v2053
    %2513 = vmatprep.subr.bf16.mxu0 %v2058
    %2514 = vmatpush1.bf16.msra.mxu0 %v2057
    %2515 = vmatprep.subr.bf16.mxu0 %v2062
    %2516 = vmatpush1.bf16.msra.mxu0 %v2061
    %2517 = vmatprep.subr.bf16.mxu0 %v2066
    %2518 = vmatpush1.bf16.msra.mxu0 %v2065
    %2519 = vmatprep.mubr.bf16.mxu0 %v1360
    %2520 = vmatmul.mubr.bf16.gmra.mrb[0].mxu0 %v1359
    %v2521 = vpop.f32.mrb[0].mxu0
    %v2522 = vadd.f32 %v2481, %v2521
    %v2523 = vpop.f32.mrb[0].mxu0
    %v2524 = vadd.f32 %v2483, %v2523
    %v2525 = vpop.f32.mrb[0].mxu0
    %v2526 = vpop.f32.mrb[0].mxu0
    %2527 = vdwg.mxu0
    %2528 = vmatprep.subr.bf16.mxu0 %v2070
    %2529 = vmatpush1.bf16.msra.mxu0 %v2069
    %2530 = vmatprep.subr.bf16.mxu0 %v2074
    %2531 = vmatpush1.bf16.msra.mxu0 %v2073
    %2532 = vmatprep.subr.bf16.mxu0 %v2078
    %2533 = vmatpush1.bf16.msra.mxu0 %v2077
    %2534 = vmatprep.subr.bf16.mxu0 %v2082
    %2535 = vmatpush1.bf16.msra.mxu0 %v2081
    %2536 = vmatprep.subr.bf16.mxu0 %v2086
    %2537 = vmatpush1.bf16.msra.mxu0 %v2085
    %2538 = vmatprep.subr.bf16.mxu0 %v2090
    %2539 = vmatpush1.bf16.msra.mxu0 %v2089
    %2540 = vmatprep.subr.bf16.mxu0 %v2094
    %2541 = vmatpush1.bf16.msra.mxu0 %v2093
    %2542 = vmatprep.subr.bf16.mxu0 %v2098
    %2543 = vmatpush1.bf16.msra.mxu0 %v2097
    %2544 = vmatprep.subr.bf16.mxu0 %v2102
    %2545 = vmatpush1.bf16.msra.mxu0 %v2101
    %2546 = vmatprep.subr.bf16.mxu0 %v2106
    %2547 = vmatpush1.bf16.msra.mxu0 %v2105
    %2548 = vmatprep.subr.bf16.mxu0 %v2110
    %2549 = vmatpush1.bf16.msra.mxu0 %v2109
    %2550 = vmatprep.subr.bf16.mxu0 %v2114
    %2551 = vmatpush1.bf16.msra.mxu0 %v2113
    %2552 = vmatprep.subr.bf16.mxu0 %v2118
    %2553 = vmatpush1.bf16.msra.mxu0 %v2117
    %2554 = vmatprep.subr.bf16.mxu0 %v2122
    %2555 = vmatpush1.bf16.msra.mxu0 %v2121
    %2556 = vmatprep.subr.bf16.mxu0 %v2126
    %2557 = vmatpush1.bf16.msra.mxu0 %v2125
    %2558 = vmatprep.subr.bf16.mxu0 %v2130
    %2559 = vmatpush1.bf16.msra.mxu0 %v2129
    %2560 = vmatprep.mubr.bf16.mxu0 %v1362
    %2561 = vmatmul.mubr.bf16.gmra.mrb[0].mxu0 %v1361
    %v2562 = vpop.f32.mrb[0].mxu0
    %v2563 = vadd.f32 %v2522, %v2562
    %v2564 = vpop.f32.mrb[0].mxu0
    %v2565 = vadd.f32 %v2524, %v2564
    %v2566 = vpop.f32.mrb[0].mxu0
    %v2567 = vpop.f32.mrb[0].mxu0
    %2568 = vdwg.mxu0
    %v2569 = vadd.f32 %v1353, %v2440
    %v2570 = vadd.f32 %v1354, %v2442
    %v2571 = vadd.f32 %v1355, %v2563
    %v2572 = vadd.f32 %v1356, %v2565
    %v2573 = vxor.u32 %v2569, 2147483648
    %v2574 = vmul.f32 %v2573, 1.442695
    %v2575 = vpow.pop %v2574
    %v2576 = vadd.f32 %v2575, 1.0
    %v2577 = vrcp.pop %v2576
    %v2578 = vmul.f32 1.0, %v2577
    %v2579 = vxor.u32 %v2570, 2147483648
    %v2580 = vmul.f32 %v2579, 1.442695
    %v2581 = vpow.pop %v2580
    %v2582 = vadd.f32 %v2581, 1.0
    %v2583 = vrcp.pop %v2582
    %v2584 = vmul.f32 1.0, %v2583
    %v2585 = vtanh.pop %v2571
    %v2586 = vxor.u32 %v2572, 2147483648
    %v2587 = vmul.f32 %v2586, 1.442695
    %v2588 = vpow.pop %v2587
    %v2589 = vadd.f32 %v2588, 1.0
    %v2590 = vrcp.pop %v2589
    %v2591 = vmul.f32 1.0, %v2590
    %v2592 = vmul.f32 %v2584, 0.0
    %v2593 = vmul.f32 %v2578, %v2585
    %v2594 = vadd.f32 %v2592, %v2593
    %v2595 = vtanh.pop %v2594
    %v2596 = vmul.f32 %v2591, %v2595
    %v2597 = vsel %vm1343, %v2596, 0.0
    %v2598 = vsel %vm322, %v2597, %v2596
    %v2599 = vsel %vm1352, %v2598, 0.0
    %v2600 = vsel %vm1343, %v2594, 0.0
    %v2601 = vsel %vm322, %v2600, %v2594
    %v2602 = vsel %vm1352, %v2601, 0.0
    %v2607 = vrot.slane %v382, 1
    %v2608 = vrot.slane %v384, 1
    %v2609 = vrot.slane %v423, 1
    %v2610 = vrot.slane %v425, 1
    %v2615 = vrot.slane %v464, 3
    %v2616 = vrot.slane %v466, 3
    %v2617 = vrot.slane %v505, 3
    %v2618 = vrot.slane %v507, 3
    %v2623 = vrot.slane %v673, 7
    %v2624 = vrot.slane %v675, 7
    %v2625 = vrot.slane %v714, 7
    %v2626 = vrot.slane %v716, 7
    %v2631 = vrot.slane %v755, 1
    %v2632 = vrot.slane %v757, 1
    %v2633 = vrot.slane %v796, 1
    %v2634 = vrot.slane %v798, 1
    %v2639 = vrot.slane %v964, 5
    %v2640 = vrot.slane %v966, 5
    %v2641 = vrot.slane %v1005, 5
    %v2642 = vrot.slane %v1007, 5
    %v2651 = vrot.slane %v1046, 7
    %v2652 = vrot.slane %v1048, 7
    %v2653 = vrot.slane %v1087, 7
    %v2654 = vrot.slane %v1089, 7
    %v2659 = vsel %vm1333, %v2607, %v2615
    %v2660 = vsel %vm1333, %v2608, %v2616
    %v2661 = vsel %vm1333, %v2609, %v2617
    %v2662 = vsel %vm1333, %v2610, %v2618
    %v2663 = vsel %vm1338, %v2659, %v2623
    %v2664 = vsel %vm1338, %v2660, %v2624
    %v2665 = vsel %vm1338, %v2661, %v2625
    %v2666 = vsel %vm1338, %v2662, %v2626
    %v2667 = vsel %vm1343, %v2663, %v2631
    %v2668 = vsel %vm1343, %v2664, %v2632
    %v2669 = vsel %vm1343, %v2665, %v2633
    %v2670 = vsel %vm1343, %v2666, %v2634
    %v2671 = vsel %vm322, %v2667, %v2639
    %v2672 = vsel %vm322, %v2668, %v2640
    %v2673 = vsel %vm322, %v2669, %v2641
    %v2674 = vsel %vm322, %v2670, %v2642
    %v2675 = vsel %vm1352, %v2671, %v2651
    %v2676 = vsel %vm1352, %v2672, %v2652
    %v2677 = vsel %vm1352, %v2673, %v2653
    %v2678 = vsel %vm1352, %v2674, %v2654
    %v2679 = vpack.c.bf16 %v2599, %v2599
    %v2680 = vmul.bf16 %v2679, %v202
    %v2681 = vmul.bf16 %v2679, %v203
    %v2682 = vmul.bf16 %v2679, %v204
    %v2683 = vmul.bf16 %v2679, %v205
    %v2684 = vmul.bf16 %v2679, %v206
    %v2685 = vmul.bf16 %v2679, %v207
    %2686 = vmatprep.subr.bf16.mxu0 %v1940
    %2687 = vmatpush1.bf16.msra.mxu0 %v1939
    %2688 = vmatprep.subr.bf16.mxu0 %v1944
    %2689 = vmatpush1.bf16.msra.mxu0 %v1943
    %2690 = vmatprep.subr.bf16.mxu0 %v1948
    %2691 = vmatpush1.bf16.msra.mxu0 %v1947
    %2692 = vmatprep.subr.bf16.mxu0 %v1952
    %2693 = vmatpush1.bf16.msra.mxu0 %v1951
    %2694 = vmatprep.subr.bf16.mxu0 %v1956
    %2695 = vmatpush1.bf16.msra.mxu0 %v1955
    %2696 = vmatprep.subr.bf16.mxu0 %v1960
    %2697 = vmatpush1.bf16.msra.mxu0 %v1959
    %2698 = vmatprep.subr.bf16.mxu0 %v1964
    %2699 = vmatpush1.bf16.msra.mxu0 %v1963
    %2700 = vmatprep.subr.bf16.mxu0 %v1968
    %2701 = vmatpush1.bf16.msra.mxu0 %v1967
    %2702 = vmatprep.subr.bf16.mxu0 %v1972
    %2703 = vmatpush1.bf16.msra.mxu0 %v1971
    %2704 = vmatprep.subr.bf16.mxu0 %v1976
    %2705 = vmatpush1.bf16.msra.mxu0 %v1975
    %2706 = vmatprep.subr.bf16.mxu0 %v1980
    %2707 = vmatpush1.bf16.msra.mxu0 %v1979
    %2708 = vmatprep.subr.bf16.mxu0 %v1984
    %2709 = vmatpush1.bf16.msra.mxu0 %v1983
    %2710 = vmatprep.subr.bf16.mxu0 %v1988
    %2711 = vmatpush1.bf16.msra.mxu0 %v1987
    %2712 = vmatprep.subr.bf16.mxu0 %v1992
    %2713 = vmatpush1.bf16.msra.mxu0 %v1991
    %2714 = vmatprep.subr.bf16.mxu0 %v1996
    %2715 = vmatpush1.bf16.msra.mxu0 %v1995
    %2716 = vmatprep.subr.bf16.mxu0 %v2000
    %2717 = vmatpush1.bf16.msra.mxu0 %v1999
    %2718 = vmatprep.mubr.bf16.mxu0 %v2681
    %2719 = vmatmul.mubr.bf16.gmra.mrb[0].mxu0 %v2680
    %v2720 = vpop.f32.mrb[0].mxu0
    %v2721 = vadd.f32 0.0, %v2720
    %v2722 = vpop.f32.mrb[0].mxu0
    %v2723 = vadd.f32 0.0, %v2722
    %v2724 = vpop.f32.mrb[0].mxu0
    %v2725 = vpop.f32.mrb[0].mxu0
    %2726 = vdwg.mxu0
    %2727 = vmatprep.subr.bf16.mxu0 %v2004
    %2728 = vmatpush1.bf16.msra.mxu0 %v2003
    %2729 = vmatprep.subr.bf16.mxu0 %v2008
    %2730 = vmatpush1.bf16.msra.mxu0 %v2007
    %2731 = vmatprep.subr.bf16.mxu0 %v2012
    %2732 = vmatpush1.bf16.msra.mxu0 %v2011
    %2733 = vmatprep.subr.bf16.mxu0 %v2016
    %2734 = vmatpush1.bf16.msra.mxu0 %v2015
    %2735 = vmatprep.subr.bf16.mxu0 %v2020
    %2736 = vmatpush1.bf16.msra.mxu0 %v2019
    %2737 = vmatprep.subr.bf16.mxu0 %v2024
    %2738 = vmatpush1.bf16.msra.mxu0 %v2023
    %2739 = vmatprep.subr.bf16.mxu0 %v2028
    %2740 = vmatpush1.bf16.msra.mxu0 %v2027
    %2741 = vmatprep.subr.bf16.mxu0 %v2032
    %2742 = vmatpush1.bf16.msra.mxu0 %v2031
    %2743 = vmatprep.subr.bf16.mxu0 %v2036
    %2744 = vmatpush1.bf16.msra.mxu0 %v2035
    %2745 = vmatprep.subr.bf16.mxu0 %v2040
    %2746 = vmatpush1.bf16.msra.mxu0 %v2039
    %2747 = vmatprep.subr.bf16.mxu0 %v2044
    %2748 = vmatpush1.bf16.msra.mxu0 %v2043
    %2749 = vmatprep.subr.bf16.mxu0 %v2048
    %2750 = vmatpush1.bf16.msra.mxu0 %v2047
    %2751 = vmatprep.subr.bf16.mxu0 %v2052
    %2752 = vmatpush1.bf16.msra.mxu0 %v2051
    %2753 = vmatprep.subr.bf16.mxu0 %v2056
    %2754 = vmatpush1.bf16.msra.mxu0 %v2055
    %2755 = vmatprep.subr.bf16.mxu0 %v2060
    %2756 = vmatpush1.bf16.msra.mxu0 %v2059
    %2757 = vmatprep.subr.bf16.mxu0 %v2064
    %2758 = vmatpush1.bf16.msra.mxu0 %v2063
    %2759 = vmatprep.mubr.bf16.mxu0 %v2683
    %2760 = vmatmul.mubr.bf16.gmra.mrb[0].mxu0 %v2682
    %v2761 = vpop.f32.mrb[0].mxu0
    %v2762 = vadd.f32 %v2721, %v2761
    %v2763 = vpop.f32.mrb[0].mxu0
    %v2764 = vadd.f32 %v2723, %v2763
    %v2765 = vpop.f32.mrb[0].mxu0
    %v2766 = vpop.f32.mrb[0].mxu0
    %2767 = vdwg.mxu0
    %2768 = vmatprep.subr.bf16.mxu0 %v2068
    %2769 = vmatpush1.bf16.msra.mxu0 %v2067
    %2770 = vmatprep.subr.bf16.mxu0 %v2072
    %2771 = vmatpush1.bf16.msra.mxu0 %v2071
    %2772 = vmatprep.subr.bf16.mxu0 %v2076
    %2773 = vmatpush1.bf16.msra.mxu0 %v2075
    %2774 = vmatprep.subr.bf16.mxu0 %v2080
    %2775 = vmatpush1.bf16.msra.mxu0 %v2079
    %2776 = vmatprep.subr.bf16.mxu0 %v2084
    %2777 = vmatpush1.bf16.msra.mxu0 %v2083
    %2778 = vmatprep.subr.bf16.mxu0 %v2088
    %2779 = vmatpush1.bf16.msra.mxu0 %v2087
    %2780 = vmatprep.subr.bf16.mxu0 %v2092
    %2781 = vmatpush1.bf16.msra.mxu0 %v2091
    %2782 = vmatprep.subr.bf16.mxu0 %v2096
    %2783 = vmatpush1.bf16.msra.mxu0 %v2095
    %2784 = vmatprep.subr.bf16.mxu0 %v2100
    %2785 = vmatpush1.bf16.msra.mxu0 %v2099
    %2786 = vmatprep.subr.bf16.mxu0 %v2104
    %2787 = vmatpush1.bf16.msra.mxu0 %v2103
    %2788 = vmatprep.subr.bf16.mxu0 %v2108
    %2789 = vmatpush1.bf16.msra.mxu0 %v2107
    %2790 = vmatprep.subr.bf16.mxu0 %v2112
    %2791 = vmatpush1.bf16.msra.mxu0 %v2111
    %2792 = vmatprep.subr.bf16.mxu0 %v2116
    %2793 = vmatpush1.bf16.msra.mxu0 %v2115
    %2794 = vmatprep.subr.bf16.mxu0 %v2120
    %2795 = vmatpush1.bf16.msra.mxu0 %v2119
    %2796 = vmatprep.subr.bf16.mxu0 %v2124
    %2797 = vmatpush1.bf16.msra.mxu0 %v2123
    %2798 = vmatprep.subr.bf16.mxu0 %v2128
    %2799 = vmatpush1.bf16.msra.mxu0 %v2127
    %2800 = vmatprep.mubr.bf16.mxu0 %v2685
    %2801 = vmatmul.mubr.bf16.gmra.mrb[0].mxu0 %v2684
    %v2802 = vpop.f32.mrb[0].mxu0
    %v2803 = vadd.f32 %v2762, %v2802
    %v2804 = vpop.f32.mrb[0].mxu0
    %v2805 = vadd.f32 %v2764, %v2804
    %v2806 = vpop.f32.mrb[0].mxu0
    %v2807 = vpop.f32.mrb[0].mxu0
    %2808 = vdwg.mxu0
    %2809 = vmatprep.subr.bf16.mxu0 %v1942
    %2810 = vmatpush1.bf16.msra.mxu0 %v1941
    %2811 = vmatprep.subr.bf16.mxu0 %v1946
    %2812 = vmatpush1.bf16.msra.mxu0 %v1945
    %2813 = vmatprep.subr.bf16.mxu0 %v1950
    %2814 = vmatpush1.bf16.msra.mxu0 %v1949
    %2815 = vmatprep.subr.bf16.mxu0 %v1954
    %2816 = vmatpush1.bf16.msra.mxu0 %v1953
    %2817 = vmatprep.subr.bf16.mxu0 %v1958
    %2818 = vmatpush1.bf16.msra.mxu0 %v1957
    %2819 = vmatprep.subr.bf16.mxu0 %v1962
    %2820 = vmatpush1.bf16.msra.mxu0 %v1961
    %2821 = vmatprep.subr.bf16.mxu0 %v1966
    %2822 = vmatpush1.bf16.msra.mxu0 %v1965
    %2823 = vmatprep.subr.bf16.mxu0 %v1970
    %2824 = vmatpush1.bf16.msra.mxu0 %v1969
    %2825 = vmatprep.subr.bf16.mxu0 %v1974
    %2826 = vmatpush1.bf16.msra.mxu0 %v1973
    %2827 = vmatprep.subr.bf16.mxu0 %v1978
    %2828 = vmatpush1.bf16.msra.mxu0 %v1977
    %2829 = vmatprep.subr.bf16.mxu0 %v1982
    %2830 = vmatpush1.bf16.msra.mxu0 %v1981
    %2831 = vmatprep.subr.bf16.mxu0 %v1986
    %2832 = vmatpush1.bf16.msra.mxu0 %v1985
    %2833 = vmatprep.subr.bf16.mxu0 %v1990
    %2834 = vmatpush1.bf16.msra.mxu0 %v1989
    %2835 = vmatprep.subr.bf16.mxu0 %v1994
    %2836 = vmatpush1.bf16.msra.mxu0 %v1993
    %2837 = vmatprep.subr.bf16.mxu0 %v1998
    %2838 = vmatpush1.bf16.msra.mxu0 %v1997
    %2839 = vmatprep.subr.bf16.mxu0 %v2002
    %2840 = vmatpush1.bf16.msra.mxu0 %v2001
    %2841 = vmatprep.mubr.bf16.mxu0 %v2681
    %2842 = vmatmul.mubr.bf16.gmra.mrb[0].mxu0 %v2680
    %v2843 = vpop.f32.mrb[0].mxu0
    %v2844 = vadd.f32 0.0, %v2843
    %v2845 = vpop.f32.mrb[0].mxu0
    %v2846 = vadd.f32 0.0, %v2845
    %v2847 = vpop.f32.mrb[0].mxu0
    %v2848 = vpop.f32.mrb[0].mxu0
    %2849 = vdwg.mxu0
    %2850 = vmatprep.subr.bf16.mxu0 %v2006
    %2851 = vmatpush1.bf16.msra.mxu0 %v2005
    %2852 = vmatprep.subr.bf16.mxu0 %v2010
    %2853 = vmatpush1.bf16.msra.mxu0 %v2009
    %2854 = vmatprep.subr.bf16.mxu0 %v2014
    %2855 = vmatpush1.bf16.msra.mxu0 %v2013
    %2856 = vmatprep.subr.bf16.mxu0 %v2018
    %2857 = vmatpush1.bf16.msra.mxu0 %v2017
    %2858 = vmatprep.subr.bf16.mxu0 %v2022
    %2859 = vmatpush1.bf16.msra.mxu0 %v2021
    %2860 = vmatprep.subr.bf16.mxu0 %v2026
    %2861 = vmatpush1.bf16.msra.mxu0 %v2025
    %2862 = vmatprep.subr.bf16.mxu0 %v2030
    %2863 = vmatpush1.bf16.msra.mxu0 %v2029
    %2864 = vmatprep.subr.bf16.mxu0 %v2034
    %2865 = vmatpush1.bf16.msra.mxu0 %v2033
    %2866 = vmatprep.subr.bf16.mxu0 %v2038
    %2867 = vmatpush1.bf16.msra.mxu0 %v2037
    %2868 = vmatprep.subr.bf16.mxu0 %v2042
    %2869 = vmatpush1.bf16.msra.mxu0 %v2041
    %2870 = vmatprep.subr.bf16.mxu0 %v2046
    %2871 = vmatpush1.bf16.msra.mxu0 %v2045
    %2872 = vmatprep.subr.bf16.mxu0 %v2050
    %2873 = vmatpush1.bf16.msra.mxu0 %v2049
    %2874 = vmatprep.subr.bf16.mxu0 %v2054
    %2875 = vmatpush1.bf16.msra.mxu0 %v2053
    %2876 = vmatprep.subr.bf16.mxu0 %v2058
    %2877 = vmatpush1.bf16.msra.mxu0 %v2057
    %2878 = vmatprep.subr.bf16.mxu0 %v2062
    %2879 = vmatpush1.bf16.msra.mxu0 %v2061
    %2880 = vmatprep.subr.bf16.mxu0 %v2066
    %2881 = vmatpush1.bf16.msra.mxu0 %v2065
    %2882 = vmatprep.mubr.bf16.mxu0 %v2683
    %2883 = vmatmul.mubr.bf16.gmra.mrb[0].mxu0 %v2682
    %v2884 = vpop.f32.mrb[0].mxu0
    %v2885 = vadd.f32 %v2844, %v2884
    %v2886 = vpop.f32.mrb[0].mxu0
    %v2887 = vadd.f32 %v2846, %v2886
    %v2888 = vpop.f32.mrb[0].mxu0
    %v2889 = vpop.f32.mrb[0].mxu0
    %2890 = vdwg.mxu0
    %2891 = vmatprep.subr.bf16.mxu0 %v2070
    %2892 = vmatpush1.bf16.msra.mxu0 %v2069
    %2893 = vmatprep.subr.bf16.mxu0 %v2074
    %2894 = vmatpush1.bf16.msra.mxu0 %v2073
    %2895 = vmatprep.subr.bf16.mxu0 %v2078
    %2896 = vmatpush1.bf16.msra.mxu0 %v2077
    %2897 = vmatprep.subr.bf16.mxu0 %v2082
    %2898 = vmatpush1.bf16.msra.mxu0 %v2081
    %2899 = vmatprep.subr.bf16.mxu0 %v2086
    %2900 = vmatpush1.bf16.msra.mxu0 %v2085
    %2901 = vmatprep.subr.bf16.mxu0 %v2090
    %2902 = vmatpush1.bf16.msra.mxu0 %v2089
    %2903 = vmatprep.subr.bf16.mxu0 %v2094
    %2904 = vmatpush1.bf16.msra.mxu0 %v2093
    %2905 = vmatprep.subr.bf16.mxu0 %v2098
    %2906 = vmatpush1.bf16.msra.mxu0 %v2097
    %2907 = vmatprep.subr.bf16.mxu0 %v2102
    %2908 = vmatpush1.bf16.msra.mxu0 %v2101
    %2909 = vmatprep.subr.bf16.mxu0 %v2106
    %2910 = vmatpush1.bf16.msra.mxu0 %v2105
    %2911 = vmatprep.subr.bf16.mxu0 %v2110
    %2912 = vmatpush1.bf16.msra.mxu0 %v2109
    %2913 = vmatprep.subr.bf16.mxu0 %v2114
    %2914 = vmatpush1.bf16.msra.mxu0 %v2113
    %2915 = vmatprep.subr.bf16.mxu0 %v2118
    %2916 = vmatpush1.bf16.msra.mxu0 %v2117
    %2917 = vmatprep.subr.bf16.mxu0 %v2122
    %2918 = vmatpush1.bf16.msra.mxu0 %v2121
    %2919 = vmatprep.subr.bf16.mxu0 %v2126
    %2920 = vmatpush1.bf16.msra.mxu0 %v2125
    %2921 = vmatprep.subr.bf16.mxu0 %v2130
    %2922 = vmatpush1.bf16.msra.mxu0 %v2129
    %2923 = vmatprep.mubr.bf16.mxu0 %v2685
    %2924 = vmatmul.mubr.bf16.gmra.mrb[0].mxu0 %v2684
    %v2925 = vpop.f32.mrb[0].mxu0
    %v2926 = vadd.f32 %v2885, %v2925
    %v2927 = vpop.f32.mrb[0].mxu0
    %v2928 = vadd.f32 %v2887, %v2927
    %v2929 = vpop.f32.mrb[0].mxu0
    %v2930 = vpop.f32.mrb[0].mxu0
    %2931 = vdwg.mxu0
    %v2932 = vadd.f32 %v2675, %v2803
    %v2933 = vadd.f32 %v2676, %v2805
    %v2934 = vadd.f32 %v2677, %v2926
    %v2935 = vadd.f32 %v2678, %v2928
    %v2936 = vxor.u32 %v2932, 2147483648
    %v2937 = vmul.f32 %v2936, 1.442695
    %v2938 = vpow.pop %v2937
    %v2939 = vadd.f32 %v2938, 1.0
    %v2940 = vrcp.pop %v2939
    %v2941 = vmul.f32 1.0, %v2940
    %v2942 = vxor.u32 %v2933, 2147483648
    %v2943 = vmul.f32 %v2942, 1.442695
    %v2944 = vpow.pop %v2943
    %v2945 = vadd.f32 %v2944, 1.0
    %v2946 = vrcp.pop %v2945
    %v2947 = vmul.f32 1.0, %v2946
    %v2948 = vtanh.pop %v2934
    %v2949 = vxor.u32 %v2935, 2147483648
    %v2950 = vmul.f32 %v2949, 1.442695
    %v2951 = vpow.pop %v2950
    %v2952 = vadd.f32 %v2951, 1.0
    %v2953 = vrcp.pop %v2952
    %v2954 = vmul.f32 1.0, %v2953
    %v2955 = vmul.f32 %v2947, %v2602
    %v2956 = vmul.f32 %v2941, %v2948
    %v2957 = vadd.f32 %v2955, %v2956
    %v2958 = vtanh.pop %v2957
    %v2959 = vmul.f32 %v2954, %v2958
    %v2960 = vsel %vm1352, %v2959, %v2599
    %v2961 = vsel %vm1352, %v2957, %v2602
    %v2962 = vrot.slane %v382, 2
    %v2963 = vrot.slane %v384, 2
    %v2964 = vrot.slane %v423, 2
    %v2965 = vrot.slane %v425, 2
    %v2970 = vrot.slane %v464, 2
    %v2971 = vrot.slane %v466, 2
    %v2972 = vrot.slane %v505, 2
    %v2973 = vrot.slane %v507, 2
    %v2978 = vrot.slane %v964, 6
    %v2979 = vrot.slane %v966, 6
    %v2980 = vrot.slane %v1005, 6
    %v2981 = vrot.slane %v1007, 6
    %v2986 = vrot.slane %v1046, 6
    %v2987 = vrot.slane %v1048, 6
    %v2988 = vrot.slane %v1087, 6
    %v2989 = vrot.slane %v1089, 6
    %v2994 = vsel %vm1333, %v2962, %v2970
    %v2995 = vsel %vm1333, %v2963, %v2971
    %v2996 = vsel %vm1333, %v2964, %v2972
    %v2997 = vsel %vm1333, %v2965, %v2973
    %v2998 = vsel %vm1338, %v2994, %v673
    %v2999 = vsel %vm1338, %v2995, %v675
    %v3000 = vsel %vm1338, %v2996, %v714
    %v3001 = vsel %vm1338, %v2997, %v716
    %v3002 = vsel %vm1343, %v2998, %v755
    %v3003 = vsel %vm1343, %v2999, %v757
    %v3004 = vsel %vm1343, %v3000, %v796
    %v3005 = vsel %vm1343, %v3001, %v798
    %v3006 = vsel %vm322, %v3002, %v2978
    %v3007 = vsel %vm322, %v3003, %v2979
    %v3008 = vsel %vm322, %v3004, %v2980
    %v3009 = vsel %vm322, %v3005, %v2981
    %v3010 = vsel %vm1352, %v3006, %v2986
    %v3011 = vsel %vm1352, %v3007, %v2987
    %v3012 = vsel %vm1352, %v3008, %v2988
    %v3013 = vsel %vm1352, %v3009, %v2989
    %v3014 = vpack.c.bf16 %v2960, %v2960
    %v3015 = vmul.bf16 %v3014, %v202
    %v3016 = vmul.bf16 %v3014, %v203
    %v3017 = vmul.bf16 %v3014, %v204
    %v3018 = vmul.bf16 %v3014, %v205
    %v3019 = vmul.bf16 %v3014, %v206
    %v3020 = vmul.bf16 %v3014, %v207
    %3021 = vmatprep.subr.bf16.mxu0 %v1940
    %3022 = vmatpush1.bf16.msra.mxu0 %v1939
    %3023 = vmatprep.subr.bf16.mxu0 %v1944
    %3024 = vmatpush1.bf16.msra.mxu0 %v1943
    %3025 = vmatprep.subr.bf16.mxu0 %v1948
    %3026 = vmatpush1.bf16.msra.mxu0 %v1947
    %3027 = vmatprep.subr.bf16.mxu0 %v1952
    %3028 = vmatpush1.bf16.msra.mxu0 %v1951
    %3029 = vmatprep.subr.bf16.mxu0 %v1956
    %3030 = vmatpush1.bf16.msra.mxu0 %v1955
    %3031 = vmatprep.subr.bf16.mxu0 %v1960
    %3032 = vmatpush1.bf16.msra.mxu0 %v1959
    %3033 = vmatprep.subr.bf16.mxu0 %v1964
    %3034 = vmatpush1.bf16.msra.mxu0 %v1963
    %3035 = vmatprep.subr.bf16.mxu0 %v1968
    %3036 = vmatpush1.bf16.msra.mxu0 %v1967
    %3037 = vmatprep.subr.bf16.mxu0 %v1972
    %3038 = vmatpush1.bf16.msra.mxu0 %v1971
    %3039 = vmatprep.subr.bf16.mxu0 %v1976
    %3040 = vmatpush1.bf16.msra.mxu0 %v1975
    %3041 = vmatprep.subr.bf16.mxu0 %v1980
    %3042 = vmatpush1.bf16.msra.mxu0 %v1979
    %3043 = vmatprep.subr.bf16.mxu0 %v1984
    %3044 = vmatpush1.bf16.msra.mxu0 %v1983
    %3045 = vmatprep.subr.bf16.mxu0 %v1988
    %3046 = vmatpush1.bf16.msra.mxu0 %v1987
    %3047 = vmatprep.subr.bf16.mxu0 %v1992
    %3048 = vmatpush1.bf16.msra.mxu0 %v1991
    %3049 = vmatprep.subr.bf16.mxu0 %v1996
    %3050 = vmatpush1.bf16.msra.mxu0 %v1995
    %3051 = vmatprep.subr.bf16.mxu0 %v2000
    %3052 = vmatpush1.bf16.msra.mxu0 %v1999
    %3053 = vmatprep.mubr.bf16.mxu0 %v3016
    %3054 = vmatmul.mubr.bf16.gmra.mrb[0].mxu0 %v3015
    %v3055 = vpop.f32.mrb[0].mxu0
    %v3056 = vadd.f32 0.0, %v3055
    %v3057 = vpop.f32.mrb[0].mxu0
    %v3058 = vadd.f32 0.0, %v3057
    %v3059 = vpop.f32.mrb[0].mxu0
    %v3060 = vpop.f32.mrb[0].mxu0
    %3061 = vdwg.mxu0
    %3062 = vmatprep.subr.bf16.mxu0 %v2004
    %3063 = vmatpush1.bf16.msra.mxu0 %v2003
    %3064 = vmatprep.subr.bf16.mxu0 %v2008
    %3065 = vmatpush1.bf16.msra.mxu0 %v2007
    %3066 = vmatprep.subr.bf16.mxu0 %v2012
    %3067 = vmatpush1.bf16.msra.mxu0 %v2011
    %3068 = vmatprep.subr.bf16.mxu0 %v2016
    %3069 = vmatpush1.bf16.msra.mxu0 %v2015
    %3070 = vmatprep.subr.bf16.mxu0 %v2020
    %3071 = vmatpush1.bf16.msra.mxu0 %v2019
    %3072 = vmatprep.subr.bf16.mxu0 %v2024
    %3073 = vmatpush1.bf16.msra.mxu0 %v2023
    %3074 = vmatprep.subr.bf16.mxu0 %v2028
    %3075 = vmatpush1.bf16.msra.mxu0 %v2027
    %3076 = vmatprep.subr.bf16.mxu0 %v2032
    %3077 = vmatpush1.bf16.msra.mxu0 %v2031
    %3078 = vmatprep.subr.bf16.mxu0 %v2036
    %3079 = vmatpush1.bf16.msra.mxu0 %v2035
    %3080 = vmatprep.subr.bf16.mxu0 %v2040
    %3081 = vmatpush1.bf16.msra.mxu0 %v2039
    %3082 = vmatprep.subr.bf16.mxu0 %v2044
    %3083 = vmatpush1.bf16.msra.mxu0 %v2043
    %3084 = vmatprep.subr.bf16.mxu0 %v2048
    %3085 = vmatpush1.bf16.msra.mxu0 %v2047
    %3086 = vmatprep.subr.bf16.mxu0 %v2052
    %3087 = vmatpush1.bf16.msra.mxu0 %v2051
    %3088 = vmatprep.subr.bf16.mxu0 %v2056
    %3089 = vmatpush1.bf16.msra.mxu0 %v2055
    %3090 = vmatprep.subr.bf16.mxu0 %v2060
    %3091 = vmatpush1.bf16.msra.mxu0 %v2059
    %3092 = vmatprep.subr.bf16.mxu0 %v2064
    %3093 = vmatpush1.bf16.msra.mxu0 %v2063
    %3094 = vmatprep.mubr.bf16.mxu0 %v3018
    %3095 = vmatmul.mubr.bf16.gmra.mrb[0].mxu0 %v3017
    %v3096 = vpop.f32.mrb[0].mxu0
    %v3097 = vadd.f32 %v3056, %v3096
    %v3098 = vpop.f32.mrb[0].mxu0
    %v3099 = vadd.f32 %v3058, %v3098
    %v3100 = vpop.f32.mrb[0].mxu0
    %v3101 = vpop.f32.mrb[0].mxu0
    %3102 = vdwg.mxu0
    %3103 = vmatprep.subr.bf16.mxu0 %v2068
    %3104 = vmatpush1.bf16.msra.mxu0 %v2067
    %3105 = vmatprep.subr.bf16.mxu0 %v2072
    %3106 = vmatpush1.bf16.msra.mxu0 %v2071
    %3107 = vmatprep.subr.bf16.mxu0 %v2076
    %3108 = vmatpush1.bf16.msra.mxu0 %v2075
    %3109 = vmatprep.subr.bf16.mxu0 %v2080
    %3110 = vmatpush1.bf16.msra.mxu0 %v2079
    %3111 = vmatprep.subr.bf16.mxu0 %v2084
    %3112 = vmatpush1.bf16.msra.mxu0 %v2083
    %3113 = vmatprep.subr.bf16.mxu0 %v2088
    %3114 = vmatpush1.bf16.msra.mxu0 %v2087
    %3115 = vmatprep.subr.bf16.mxu0 %v2092
    %3116 = vmatpush1.bf16.msra.mxu0 %v2091
    %3117 = vmatprep.subr.bf16.mxu0 %v2096
    %3118 = vmatpush1.bf16.msra.mxu0 %v2095
    %3119 = vmatprep.subr.bf16.mxu0 %v2100
    %3120 = vmatpush1.bf16.msra.mxu0 %v2099
    %3121 = vmatprep.subr.bf16.mxu0 %v2104
    %3122 = vmatpush1.bf16.msra.mxu0 %v2103
    %3123 = vmatprep.subr.bf16.mxu0 %v2108
    %3124 = vmatpush1.bf16.msra.mxu0 %v2107
    %3125 = vmatprep.subr.bf16.mxu0 %v2112
    %3126 = vmatpush1.bf16.msra.mxu0 %v2111
    %3127 = vmatprep.subr.bf16.mxu0 %v2116
    %3128 = vmatpush1.bf16.msra.mxu0 %v2115
    %3129 = vmatprep.subr.bf16.mxu0 %v2120
    %3130 = vmatpush1.bf16.msra.mxu0 %v2119
    %3131 = vmatprep.subr.bf16.mxu0 %v2124
    %3132 = vmatpush1.bf16.msra.mxu0 %v2123
    %3133 = vmatprep.subr.bf16.mxu0 %v2128
    %3134 = vmatpush1.bf16.msra.mxu0 %v2127
    %3135 = vmatprep.mubr.bf16.mxu0 %v3020
    %3136 = vmatmul.mubr.bf16.gmra.mrb[0].mxu0 %v3019
    %v3137 = vpop.f32.mrb[0].mxu0
    %v3138 = vadd.f32 %v3097, %v3137
    %v3139 = vpop.f32.mrb[0].mxu0
    %v3140 = vadd.f32 %v3099, %v3139
    %v3141 = vpop.f32.mrb[0].mxu0
    %v3142 = vpop.f32.mrb[0].mxu0
    %3143 = vdwg.mxu0
    %3144 = vmatprep.subr.bf16.mxu0 %v1942
    %3145 = vmatpush1.bf16.msra.mxu0 %v1941
    %3146 = vmatprep.subr.bf16.mxu0 %v1946
    %3147 = vmatpush1.bf16.msra.mxu0 %v1945
    %3148 = vmatprep.subr.bf16.mxu0 %v1950
    %3149 = vmatpush1.bf16.msra.mxu0 %v1949
    %3150 = vmatprep.subr.bf16.mxu0 %v1954
    %3151 = vmatpush1.bf16.msra.mxu0 %v1953
    %3152 = vmatprep.subr.bf16.mxu0 %v1958
    %3153 = vmatpush1.bf16.msra.mxu0 %v1957
    %3154 = vmatprep.subr.bf16.mxu0 %v1962
    %3155 = vmatpush1.bf16.msra.mxu0 %v1961
    %3156 = vmatprep.subr.bf16.mxu0 %v1966
    %3157 = vmatpush1.bf16.msra.mxu0 %v1965
    %3158 = vmatprep.subr.bf16.mxu0 %v1970
    %3159 = vmatpush1.bf16.msra.mxu0 %v1969
    %3160 = vmatprep.subr.bf16.mxu0 %v1974
    %3161 = vmatpush1.bf16.msra.mxu0 %v1973
    %3162 = vmatprep.subr.bf16.mxu0 %v1978
    %3163 = vmatpush1.bf16.msra.mxu0 %v1977
    %3164 = vmatprep.subr.bf16.mxu0 %v1982
    %3165 = vmatpush1.bf16.msra.mxu0 %v1981
    %3166 = vmatprep.subr.bf16.mxu0 %v1986
    %3167 = vmatpush1.bf16.msra.mxu0 %v1985
    %3168 = vmatprep.subr.bf16.mxu0 %v1990
    %3169 = vmatpush1.bf16.msra.mxu0 %v1989
    %3170 = vmatprep.subr.bf16.mxu0 %v1994
    %3171 = vmatpush1.bf16.msra.mxu0 %v1993
    %3172 = vmatprep.subr.bf16.mxu0 %v1998
    %3173 = vmatpush1.bf16.msra.mxu0 %v1997
    %3174 = vmatprep.subr.bf16.mxu0 %v2002
    %3175 = vmatpush1.bf16.msra.mxu0 %v2001
    %3176 = vmatprep.mubr.bf16.mxu0 %v3016
    %3177 = vmatmul.mubr.bf16.gmra.mrb[0].mxu0 %v3015
    %v3178 = vpop.f32.mrb[0].mxu0
    %v3179 = vadd.f32 0.0, %v3178
    %v3180 = vpop.f32.mrb[0].mxu0
    %v3181 = vadd.f32 0.0, %v3180
    %v3182 = vpop.f32.mrb[0].mxu0
    %v3183 = vpop.f32.mrb[0].mxu0
    %3184 = vdwg.mxu0
    %3185 = vmatprep.subr.bf16.mxu0 %v2006
    %3186 = vmatpush1.bf16.msra.mxu0 %v2005
    %3187 = vmatprep.subr.bf16.mxu0 %v2010
    %3188 = vmatpush1.bf16.msra.mxu0 %v2009
    %3189 = vmatprep.subr.bf16.mxu0 %v2014
    %3190 = vmatpush1.bf16.msra.mxu0 %v2013
    %3191 = vmatprep.subr.bf16.mxu0 %v2018
    %3192 = vmatpush1.bf16.msra.mxu0 %v2017
    %3193 = vmatprep.subr.bf16.mxu0 %v2022
    %3194 = vmatpush1.bf16.msra.mxu0 %v2021
    %3195 = vmatprep.subr.bf16.mxu0 %v2026
    %3196 = vmatpush1.bf16.msra.mxu0 %v2025
    %3197 = vmatprep.subr.bf16.mxu0 %v2030
    %3198 = vmatpush1.bf16.msra.mxu0 %v2029
    %3199 = vmatprep.subr.bf16.mxu0 %v2034
    %3200 = vmatpush1.bf16.msra.mxu0 %v2033
    %3201 = vmatprep.subr.bf16.mxu0 %v2038
    %3202 = vmatpush1.bf16.msra.mxu0 %v2037
    %3203 = vmatprep.subr.bf16.mxu0 %v2042
    %3204 = vmatpush1.bf16.msra.mxu0 %v2041
    %3205 = vmatprep.subr.bf16.mxu0 %v2046
    %3206 = vmatpush1.bf16.msra.mxu0 %v2045
    %3207 = vmatprep.subr.bf16.mxu0 %v2050
    %3208 = vmatpush1.bf16.msra.mxu0 %v2049
    %3209 = vmatprep.subr.bf16.mxu0 %v2054
    %3210 = vmatpush1.bf16.msra.mxu0 %v2053
    %3211 = vmatprep.subr.bf16.mxu0 %v2058
    %3212 = vmatpush1.bf16.msra.mxu0 %v2057
    %3213 = vmatprep.subr.bf16.mxu0 %v2062
    %3214 = vmatpush1.bf16.msra.mxu0 %v2061
    %3215 = vmatprep.subr.bf16.mxu0 %v2066
    %3216 = vmatpush1.bf16.msra.mxu0 %v2065
    %3217 = vmatprep.mubr.bf16.mxu0 %v3018
    %3218 = vmatmul.mubr.bf16.gmra.mrb[0].mxu0 %v3017
    %v3219 = vpop.f32.mrb[0].mxu0
    %v3220 = vadd.f32 %v3179, %v3219
    %v3221 = vpop.f32.mrb[0].mxu0
    %v3222 = vadd.f32 %v3181, %v3221
    %v3223 = vpop.f32.mrb[0].mxu0
    %v3224 = vpop.f32.mrb[0].mxu0
    %3225 = vdwg.mxu0
    %3226 = vmatprep.subr.bf16.mxu0 %v2070
    %3227 = vmatpush1.bf16.msra.mxu0 %v2069
    %3228 = vmatprep.subr.bf16.mxu0 %v2074
    %3229 = vmatpush1.bf16.msra.mxu0 %v2073
    %3230 = vmatprep.subr.bf16.mxu0 %v2078
    %3231 = vmatpush1.bf16.msra.mxu0 %v2077
    %3232 = vmatprep.subr.bf16.mxu0 %v2082
    %3233 = vmatpush1.bf16.msra.mxu0 %v2081
    %3234 = vmatprep.subr.bf16.mxu0 %v2086
    %3235 = vmatpush1.bf16.msra.mxu0 %v2085
    %3236 = vmatprep.subr.bf16.mxu0 %v2090
    %3237 = vmatpush1.bf16.msra.mxu0 %v2089
    %3238 = vmatprep.subr.bf16.mxu0 %v2094
    %3239 = vmatpush1.bf16.msra.mxu0 %v2093
    %3240 = vmatprep.subr.bf16.mxu0 %v2098
    %3241 = vmatpush1.bf16.msra.mxu0 %v2097
    %3242 = vmatprep.subr.bf16.mxu0 %v2102
    %3243 = vmatpush1.bf16.msra.mxu0 %v2101
    %3244 = vmatprep.subr.bf16.mxu0 %v2106
    %3245 = vmatpush1.bf16.msra.mxu0 %v2105
    %3246 = vmatprep.subr.bf16.mxu0 %v2110
    %3247 = vmatpush1.bf16.msra.mxu0 %v2109
    %3248 = vmatprep.subr.bf16.mxu0 %v2114
    %3249 = vmatpush1.bf16.msra.mxu0 %v2113
    %3250 = vmatprep.subr.bf16.mxu0 %v2118
    %3251 = vmatpush1.bf16.msra.mxu0 %v2117
    %3252 = vmatprep.subr.bf16.mxu0 %v2122
    %3253 = vmatpush1.bf16.msra.mxu0 %v2121
    %3254 = vmatprep.subr.bf16.mxu0 %v2126
    %3255 = vmatpush1.bf16.msra.mxu0 %v2125
    %3256 = vmatprep.subr.bf16.mxu0 %v2130
    %3257 = vmatpush1.bf16.msra.mxu0 %v2129
    %3258 = vmatprep.mubr.bf16.mxu0 %v3020
    %3259 = vmatmul.mubr.bf16.gmra.mrb[0].mxu0 %v3019
    %v3260 = vpop.f32.mrb[0].mxu0
    %v3261 = vadd.f32 %v3220, %v3260
    %v3262 = vpop.f32.mrb[0].mxu0
    %v3263 = vadd.f32 %v3222, %v3262
    %v3264 = vpop.f32.mrb[0].mxu0
    %v3265 = vpop.f32.mrb[0].mxu0
    %3266 = vdwg.mxu0
    %v3267 = vadd.f32 %v3010, %v3138
    %v3268 = vadd.f32 %v3011, %v3140
    %v3269 = vadd.f32 %v3012, %v3261
    %v3270 = vadd.f32 %v3013, %v3263
    %v3271 = vxor.u32 %v3267, 2147483648
    %v3272 = vmul.f32 %v3271, 1.442695
    %v3273 = vpow.pop %v3272
    %v3274 = vadd.f32 %v3273, 1.0
    %v3275 = vrcp.pop %v3274
    %v3276 = vmul.f32 1.0, %v3275
    %v3277 = vxor.u32 %v3268, 2147483648
    %v3278 = vmul.f32 %v3277, 1.442695
    %v3279 = vpow.pop %v3278
    %v3280 = vadd.f32 %v3279, 1.0
    %v3281 = vrcp.pop %v3280
    %v3282 = vmul.f32 1.0, %v3281
    %v3283 = vtanh.pop %v3269
    %v3284 = vxor.u32 %v3270, 2147483648
    %v3285 = vmul.f32 %v3284, 1.442695
    %v3286 = vpow.pop %v3285
    %v3287 = vadd.f32 %v3286, 1.0
    %v3288 = vrcp.pop %v3287
    %v3289 = vmul.f32 1.0, %v3288
    %v3290 = vmul.f32 %v3282, %v2961
    %v3291 = vmul.f32 %v3276, %v3283
    %v3292 = vadd.f32 %v3290, %v3291
    %v3293 = vtanh.pop %v3292
    %v3294 = vmul.f32 %v3289, %v3293
    %v3295 = vrot.slane %v382, 3
    %v3296 = vrot.slane %v384, 3
    %v3297 = vrot.slane %v423, 3
    %v3298 = vrot.slane %v425, 3
    %v3303 = vrot.slane %v464, 1
    %v3304 = vrot.slane %v466, 1
    %v3305 = vrot.slane %v505, 1
    %v3306 = vrot.slane %v507, 1
    %v3311 = vrot.slane %v673, 1
    %v3312 = vrot.slane %v675, 1
    %v3313 = vrot.slane %v714, 1
    %v3314 = vrot.slane %v716, 1
    %v3319 = vrot.slane %v755, 7
    %v3320 = vrot.slane %v757, 7
    %v3321 = vrot.slane %v796, 7
    %v3322 = vrot.slane %v798, 7
    %v3327 = vrot.slane %v964, 7
    %v3328 = vrot.slane %v966, 7
    %v3329 = vrot.slane %v1005, 7
    %v3330 = vrot.slane %v1007, 7
    %v3335 = vrot.slane %v1046, 5
    %v3336 = vrot.slane %v1048, 5
    %v3337 = vrot.slane %v1087, 5
    %v3338 = vrot.slane %v1089, 5
    %v3343 = vsel %vm1333, %v3295, %v3303
    %v3344 = vsel %vm1333, %v3296, %v3304
    %v3345 = vsel %vm1333, %v3297, %v3305
    %v3346 = vsel %vm1333, %v3298, %v3306
    %v3347 = vsel %vm1338, %v3343, %v3311
    %v3348 = vsel %vm1338, %v3344, %v3312
    %v3349 = vsel %vm1338, %v3345, %v3313
    %v3350 = vsel %vm1338, %v3346, %v3314
    %v3351 = vsel %vm1343, %v3347, %v3319
    %v3352 = vsel %vm1343, %v3348, %v3320
    %v3353 = vsel %vm1343, %v3349, %v3321
    %v3354 = vsel %vm1343, %v3350, %v3322
    %v3355 = vsel %vm322, %v3351, %v3327
    %v3356 = vsel %vm322, %v3352, %v3328
    %v3357 = vsel %vm322, %v3353, %v3329
    %v3358 = vsel %vm322, %v3354, %v3330
    %v3359 = vsel %vm1352, %v3355, %v3335
    %v3360 = vsel %vm1352, %v3356, %v3336
    %v3361 = vsel %vm1352, %v3357, %v3337
    %v3362 = vsel %vm1352, %v3358, %v3338
    %v3363 = vpack.c.bf16 %v3294, %v3294
    %v3364 = vmul.bf16 %v3363, %v202
    %v3365 = vmul.bf16 %v3363, %v203
    %v3366 = vmul.bf16 %v3363, %v204
    %v3367 = vmul.bf16 %v3363, %v205
    %v3368 = vmul.bf16 %v3363, %v206
    %v3369 = vmul.bf16 %v3363, %v207
    %3370 = vmatprep.subr.bf16.mxu0 %v1940
    %3371 = vmatpush1.bf16.msra.mxu0 %v1939
    %3372 = vmatprep.subr.bf16.mxu0 %v1944
    %3373 = vmatpush1.bf16.msra.mxu0 %v1943
    %3374 = vmatprep.subr.bf16.mxu0 %v1948
    %3375 = vmatpush1.bf16.msra.mxu0 %v1947
    %3376 = vmatprep.subr.bf16.mxu0 %v1952
    %3377 = vmatpush1.bf16.msra.mxu0 %v1951
    %3378 = vmatprep.subr.bf16.mxu0 %v1956
    %3379 = vmatpush1.bf16.msra.mxu0 %v1955
    %3380 = vmatprep.subr.bf16.mxu0 %v1960
    %3381 = vmatpush1.bf16.msra.mxu0 %v1959
    %3382 = vmatprep.subr.bf16.mxu0 %v1964
    %3383 = vmatpush1.bf16.msra.mxu0 %v1963
    %3384 = vmatprep.subr.bf16.mxu0 %v1968
    %3385 = vmatpush1.bf16.msra.mxu0 %v1967
    %3386 = vmatprep.subr.bf16.mxu0 %v1972
    %3387 = vmatpush1.bf16.msra.mxu0 %v1971
    %3388 = vmatprep.subr.bf16.mxu0 %v1976
    %3389 = vmatpush1.bf16.msra.mxu0 %v1975
    %3390 = vmatprep.subr.bf16.mxu0 %v1980
    %3391 = vmatpush1.bf16.msra.mxu0 %v1979
    %3392 = vmatprep.subr.bf16.mxu0 %v1984
    %3393 = vmatpush1.bf16.msra.mxu0 %v1983
    %3394 = vmatprep.subr.bf16.mxu0 %v1988
    %3395 = vmatpush1.bf16.msra.mxu0 %v1987
    %3396 = vmatprep.subr.bf16.mxu0 %v1992
    %3397 = vmatpush1.bf16.msra.mxu0 %v1991
    %3398 = vmatprep.subr.bf16.mxu0 %v1996
    %3399 = vmatpush1.bf16.msra.mxu0 %v1995
    %3400 = vmatprep.subr.bf16.mxu0 %v2000
    %3401 = vmatpush1.bf16.msra.mxu0 %v1999
    %3402 = vmatprep.mubr.bf16.mxu0 %v3365
    %3403 = vmatmul.mubr.bf16.gmra.mrb[0].mxu0 %v3364
    %v3404 = vpop.f32.mrb[0].mxu0
    %v3405 = vadd.f32 0.0, %v3404
    %v3406 = vpop.f32.mrb[0].mxu0
    %v3407 = vadd.f32 0.0, %v3406
    %v3408 = vpop.f32.mrb[0].mxu0
    %v3409 = vpop.f32.mrb[0].mxu0
    %3410 = vdwg.mxu0
    %3411 = vmatprep.subr.bf16.mxu0 %v2004
    %3412 = vmatpush1.bf16.msra.mxu0 %v2003
    %3413 = vmatprep.subr.bf16.mxu0 %v2008
    %3414 = vmatpush1.bf16.msra.mxu0 %v2007
    %3415 = vmatprep.subr.bf16.mxu0 %v2012
    %3416 = vmatpush1.bf16.msra.mxu0 %v2011
    %3417 = vmatprep.subr.bf16.mxu0 %v2016
    %3418 = vmatpush1.bf16.msra.mxu0 %v2015
    %3419 = vmatprep.subr.bf16.mxu0 %v2020
    %3420 = vmatpush1.bf16.msra.mxu0 %v2019
    %3421 = vmatprep.subr.bf16.mxu0 %v2024
    %3422 = vmatpush1.bf16.msra.mxu0 %v2023
    %3423 = vmatprep.subr.bf16.mxu0 %v2028
    %3424 = vmatpush1.bf16.msra.mxu0 %v2027
    %3425 = vmatprep.subr.bf16.mxu0 %v2032
    %3426 = vmatpush1.bf16.msra.mxu0 %v2031
    %3427 = vmatprep.subr.bf16.mxu0 %v2036
    %3428 = vmatpush1.bf16.msra.mxu0 %v2035
    %3429 = vmatprep.subr.bf16.mxu0 %v2040
    %3430 = vmatpush1.bf16.msra.mxu0 %v2039
    %3431 = vmatprep.subr.bf16.mxu0 %v2044
    %3432 = vmatpush1.bf16.msra.mxu0 %v2043
    %3433 = vmatprep.subr.bf16.mxu0 %v2048
    %3434 = vmatpush1.bf16.msra.mxu0 %v2047
    %3435 = vmatprep.subr.bf16.mxu0 %v2052
    %3436 = vmatpush1.bf16.msra.mxu0 %v2051
    %3437 = vmatprep.subr.bf16.mxu0 %v2056
    %3438 = vmatpush1.bf16.msra.mxu0 %v2055
    %3439 = vmatprep.subr.bf16.mxu0 %v2060
    %3440 = vmatpush1.bf16.msra.mxu0 %v2059
    %3441 = vmatprep.subr.bf16.mxu0 %v2064
    %3442 = vmatpush1.bf16.msra.mxu0 %v2063
    %3443 = vmatprep.mubr.bf16.mxu0 %v3367
    %3444 = vmatmul.mubr.bf16.gmra.mrb[0].mxu0 %v3366
    %v3445 = vpop.f32.mrb[0].mxu0
    %v3446 = vadd.f32 %v3405, %v3445
    %v3447 = vpop.f32.mrb[0].mxu0
    %v3448 = vadd.f32 %v3407, %v3447
    %v3449 = vpop.f32.mrb[0].mxu0
    %v3450 = vpop.f32.mrb[0].mxu0
    %3451 = vdwg.mxu0
    %3452 = vmatprep.subr.bf16.mxu0 %v2068
    %3453 = vmatpush1.bf16.msra.mxu0 %v2067
    %3454 = vmatprep.subr.bf16.mxu0 %v2072
    %3455 = vmatpush1.bf16.msra.mxu0 %v2071
    %3456 = vmatprep.subr.bf16.mxu0 %v2076
    %3457 = vmatpush1.bf16.msra.mxu0 %v2075
    %3458 = vmatprep.subr.bf16.mxu0 %v2080
    %3459 = vmatpush1.bf16.msra.mxu0 %v2079
    %3460 = vmatprep.subr.bf16.mxu0 %v2084
    %3461 = vmatpush1.bf16.msra.mxu0 %v2083
    %3462 = vmatprep.subr.bf16.mxu0 %v2088
    %3463 = vmatpush1.bf16.msra.mxu0 %v2087
    %3464 = vmatprep.subr.bf16.mxu0 %v2092
    %3465 = vmatpush1.bf16.msra.mxu0 %v2091
    %3466 = vmatprep.subr.bf16.mxu0 %v2096
    %3467 = vmatpush1.bf16.msra.mxu0 %v2095
    %3468 = vmatprep.subr.bf16.mxu0 %v2100
    %3469 = vmatpush1.bf16.msra.mxu0 %v2099
    %3470 = vmatprep.subr.bf16.mxu0 %v2104
    %3471 = vmatpush1.bf16.msra.mxu0 %v2103
    %3472 = vmatprep.subr.bf16.mxu0 %v2108
    %3473 = vmatpush1.bf16.msra.mxu0 %v2107
    %3474 = vmatprep.subr.bf16.mxu0 %v2112
    %3475 = vmatpush1.bf16.msra.mxu0 %v2111
    %3476 = vmatprep.subr.bf16.mxu0 %v2116
    %3477 = vmatpush1.bf16.msra.mxu0 %v2115
    %3478 = vmatprep.subr.bf16.mxu0 %v2120
    %3479 = vmatpush1.bf16.msra.mxu0 %v2119
    %3480 = vmatprep.subr.bf16.mxu0 %v2124
    %3481 = vmatpush1.bf16.msra.mxu0 %v2123
    %3482 = vmatprep.subr.bf16.mxu0 %v2128
    %3483 = vmatpush1.bf16.msra.mxu0 %v2127
    %3484 = vmatprep.mubr.bf16.mxu0 %v3369
    %3485 = vmatmul.mubr.bf16.gmra.mrb[0].mxu0 %v3368
    %v3486 = vpop.f32.mrb[0].mxu0
    %v3487 = vadd.f32 %v3446, %v3486
    %v3488 = vpop.f32.mrb[0].mxu0
    %v3489 = vadd.f32 %v3448, %v3488
    %v3490 = vpop.f32.mrb[0].mxu0
    %v3491 = vpop.f32.mrb[0].mxu0
    %3492 = vdwg.mxu0
    %3493 = vmatprep.subr.bf16.mxu0 %v1942
    %3494 = vmatpush1.bf16.msra.mxu0 %v1941
    %3495 = vmatprep.subr.bf16.mxu0 %v1946
    %3496 = vmatpush1.bf16.msra.mxu0 %v1945
    %3497 = vmatprep.subr.bf16.mxu0 %v1950
    %3498 = vmatpush1.bf16.msra.mxu0 %v1949
    %3499 = vmatprep.subr.bf16.mxu0 %v1954
    %3500 = vmatpush1.bf16.msra.mxu0 %v1953
    %3501 = vmatprep.subr.bf16.mxu0 %v1958
    %3502 = vmatpush1.bf16.msra.mxu0 %v1957
    %3503 = vmatprep.subr.bf16.mxu0 %v1962
    %3504 = vmatpush1.bf16.msra.mxu0 %v1961
    %3505 = vmatprep.subr.bf16.mxu0 %v1966
    %3506 = vmatpush1.bf16.msra.mxu0 %v1965
    %3507 = vmatprep.subr.bf16.mxu0 %v1970
    %3508 = vmatpush1.bf16.msra.mxu0 %v1969
    %3509 = vmatprep.subr.bf16.mxu0 %v1974
    %3510 = vmatpush1.bf16.msra.mxu0 %v1973
    %3511 = vmatprep.subr.bf16.mxu0 %v1978
    %3512 = vmatpush1.bf16.msra.mxu0 %v1977
    %3513 = vmatprep.subr.bf16.mxu0 %v1982
    %3514 = vmatpush1.bf16.msra.mxu0 %v1981
    %3515 = vmatprep.subr.bf16.mxu0 %v1986
    %3516 = vmatpush1.bf16.msra.mxu0 %v1985
    %3517 = vmatprep.subr.bf16.mxu0 %v1990
    %3518 = vmatpush1.bf16.msra.mxu0 %v1989
    %3519 = vmatprep.subr.bf16.mxu0 %v1994
    %3520 = vmatpush1.bf16.msra.mxu0 %v1993
    %3521 = vmatprep.subr.bf16.mxu0 %v1998
    %3522 = vmatpush1.bf16.msra.mxu0 %v1997
    %3523 = vmatprep.subr.bf16.mxu0 %v2002
    %3524 = vmatpush1.bf16.msra.mxu0 %v2001
    %3525 = vmatprep.mubr.bf16.mxu0 %v3365
    %3526 = vmatmul.mubr.bf16.gmra.mrb[0].mxu0 %v3364
    %v3527 = vpop.f32.mrb[0].mxu0
    %v3528 = vadd.f32 0.0, %v3527
    %v3529 = vpop.f32.mrb[0].mxu0
    %v3530 = vadd.f32 0.0, %v3529
    %v3531 = vpop.f32.mrb[0].mxu0
    %v3532 = vpop.f32.mrb[0].mxu0
    %3533 = vdwg.mxu0
    %3534 = vmatprep.subr.bf16.mxu0 %v2006
    %3535 = vmatpush1.bf16.msra.mxu0 %v2005
    %3536 = vmatprep.subr.bf16.mxu0 %v2010
    %3537 = vmatpush1.bf16.msra.mxu0 %v2009
    %3538 = vmatprep.subr.bf16.mxu0 %v2014
    %3539 = vmatpush1.bf16.msra.mxu0 %v2013
    %3540 = vmatprep.subr.bf16.mxu0 %v2018
    %3541 = vmatpush1.bf16.msra.mxu0 %v2017
    %3542 = vmatprep.subr.bf16.mxu0 %v2022
    %3543 = vmatpush1.bf16.msra.mxu0 %v2021
    %3544 = vmatprep.subr.bf16.mxu0 %v2026
    %3545 = vmatpush1.bf16.msra.mxu0 %v2025
    %3546 = vmatprep.subr.bf16.mxu0 %v2030
    %3547 = vmatpush1.bf16.msra.mxu0 %v2029
    %3548 = vmatprep.subr.bf16.mxu0 %v2034
    %3549 = vmatpush1.bf16.msra.mxu0 %v2033
    %3550 = vmatprep.subr.bf16.mxu0 %v2038
    %3551 = vmatpush1.bf16.msra.mxu0 %v2037
    %3552 = vmatprep.subr.bf16.mxu0 %v2042
    %3553 = vmatpush1.bf16.msra.mxu0 %v2041
    %3554 = vmatprep.subr.bf16.mxu0 %v2046
    %3555 = vmatpush1.bf16.msra.mxu0 %v2045
    %3556 = vmatprep.subr.bf16.mxu0 %v2050
    %3557 = vmatpush1.bf16.msra.mxu0 %v2049
    %3558 = vmatprep.subr.bf16.mxu0 %v2054
    %3559 = vmatpush1.bf16.msra.mxu0 %v2053
    %3560 = vmatprep.subr.bf16.mxu0 %v2058
    %3561 = vmatpush1.bf16.msra.mxu0 %v2057
    %3562 = vmatprep.subr.bf16.mxu0 %v2062
    %3563 = vmatpush1.bf16.msra.mxu0 %v2061
    %3564 = vmatprep.subr.bf16.mxu0 %v2066
    %3565 = vmatpush1.bf16.msra.mxu0 %v2065
    %3566 = vmatprep.mubr.bf16.mxu0 %v3367
    %3567 = vmatmul.mubr.bf16.gmra.mrb[0].mxu0 %v3366
    %v3568 = vpop.f32.mrb[0].mxu0
    %v3569 = vadd.f32 %v3528, %v3568
    %v3570 = vpop.f32.mrb[0].mxu0
    %v3571 = vadd.f32 %v3530, %v3570
    %v3572 = vpop.f32.mrb[0].mxu0
    %v3573 = vpop.f32.mrb[0].mxu0
    %3574 = vdwg.mxu0
    %3575 = vmatprep.subr.bf16.mxu0 %v2070
    %3576 = vmatpush1.bf16.msra.mxu0 %v2069
    %3577 = vmatprep.subr.bf16.mxu0 %v2074
    %3578 = vmatpush1.bf16.msra.mxu0 %v2073
    %3579 = vmatprep.subr.bf16.mxu0 %v2078
    %3580 = vmatpush1.bf16.msra.mxu0 %v2077
    %3581 = vmatprep.subr.bf16.mxu0 %v2082
    %3582 = vmatpush1.bf16.msra.mxu0 %v2081
    %3583 = vmatprep.subr.bf16.mxu0 %v2086
    %3584 = vmatpush1.bf16.msra.mxu0 %v2085
    %3585 = vmatprep.subr.bf16.mxu0 %v2090
    %3586 = vmatpush1.bf16.msra.mxu0 %v2089
    %3587 = vmatprep.subr.bf16.mxu0 %v2094
    %3588 = vmatpush1.bf16.msra.mxu0 %v2093
    %3589 = vmatprep.subr.bf16.mxu0 %v2098
    %3590 = vmatpush1.bf16.msra.mxu0 %v2097
    %3591 = vmatprep.subr.bf16.mxu0 %v2102
    %3592 = vmatpush1.bf16.msra.mxu0 %v2101
    %3593 = vmatprep.subr.bf16.mxu0 %v2106
    %3594 = vmatpush1.bf16.msra.mxu0 %v2105
    %3595 = vmatprep.subr.bf16.mxu0 %v2110
    %3596 = vmatpush1.bf16.msra.mxu0 %v2109
    %3597 = vmatprep.subr.bf16.mxu0 %v2114
    %3598 = vmatpush1.bf16.msra.mxu0 %v2113
    %3599 = vmatprep.subr.bf16.mxu0 %v2118
    %3600 = vmatpush1.bf16.msra.mxu0 %v2117
    %3601 = vmatprep.subr.bf16.mxu0 %v2122
    %3602 = vmatpush1.bf16.msra.mxu0 %v2121
    %3603 = vmatprep.subr.bf16.mxu0 %v2126
    %3604 = vmatpush1.bf16.msra.mxu0 %v2125
    %3605 = vmatprep.subr.bf16.mxu0 %v2130
    %3606 = vmatpush1.bf16.msra.mxu0 %v2129
    %3607 = vmatprep.mubr.bf16.mxu0 %v3369
    %3608 = vmatmul.mubr.bf16.gmra.mrb[0].mxu0 %v3368
    %v3609 = vpop.f32.mrb[0].mxu0
    %v3610 = vadd.f32 %v3569, %v3609
    %v3611 = vpop.f32.mrb[0].mxu0
    %v3612 = vadd.f32 %v3571, %v3611
    %v3613 = vpop.f32.mrb[0].mxu0
    %v3614 = vpop.f32.mrb[0].mxu0
    %3615 = vdwg.mxu0
    %v3616 = vadd.f32 %v3359, %v3487
    %v3617 = vadd.f32 %v3360, %v3489
    %v3618 = vadd.f32 %v3361, %v3610
    %v3619 = vadd.f32 %v3362, %v3612
    %v3620 = vxor.u32 %v3616, 2147483648
    %v3621 = vmul.f32 %v3620, 1.442695
    %v3622 = vpow.pop %v3621
    %v3623 = vadd.f32 %v3622, 1.0
    %v3624 = vrcp.pop %v3623
    %v3625 = vmul.f32 1.0, %v3624
    %v3626 = vxor.u32 %v3617, 2147483648
    %v3627 = vmul.f32 %v3626, 1.442695
    %v3628 = vpow.pop %v3627
    %v3629 = vadd.f32 %v3628, 1.0
    %v3630 = vrcp.pop %v3629
    %v3631 = vmul.f32 1.0, %v3630
    %v3632 = vtanh.pop %v3618
    %v3633 = vxor.u32 %v3619, 2147483648
    %v3634 = vmul.f32 %v3633, 1.442695
    %v3635 = vpow.pop %v3634
    %v3636 = vadd.f32 %v3635, 1.0
    %v3637 = vrcp.pop %v3636
    %v3638 = vmul.f32 1.0, %v3637
    %v3639 = vmul.f32 %v3631, %v3292
    %v3640 = vmul.f32 %v3625, %v3632
    %v3641 = vadd.f32 %v3639, %v3640
    %v3642 = vtanh.pop %v3641
    %v3643 = vmul.f32 %v3638, %v3642
    %v3644 = vrot.slane %v382, 4
    %v3645 = vrot.slane %v384, 4
    %v3646 = vrot.slane %v423, 4
    %v3647 = vrot.slane %v425, 4
    %v3652 = vrot.slane %v673, 2
    %v3653 = vrot.slane %v675, 2
    %v3654 = vrot.slane %v714, 2
    %v3655 = vrot.slane %v716, 2
    %v3660 = vrot.slane %v755, 6
    %v3661 = vrot.slane %v757, 6
    %v3662 = vrot.slane %v796, 6
    %v3663 = vrot.slane %v798, 6
    %v3668 = vrot.slane %v1046, 4
    %v3669 = vrot.slane %v1048, 4
    %v3670 = vrot.slane %v1087, 4
    %v3671 = vrot.slane %v1089, 4
    %v3676 = vsel %vm1333, %v3644, %v464
    %v3677 = vsel %vm1333, %v3645, %v466
    %v3678 = vsel %vm1333, %v3646, %v505
    %v3679 = vsel %vm1333, %v3647, %v507
    %v3680 = vsel %vm1338, %v3676, %v3652
    %v3681 = vsel %vm1338, %v3677, %v3653
    %v3682 = vsel %vm1338, %v3678, %v3654
    %v3683 = vsel %vm1338, %v3679, %v3655
    %v3684 = vsel %vm1343, %v3680, %v3660
    %v3685 = vsel %vm1343, %v3681, %v3661
    %v3686 = vsel %vm1343, %v3682, %v3662
    %v3687 = vsel %vm1343, %v3683, %v3663
    %v3688 = vsel %vm322, %v3684, %v964
    %v3689 = vsel %vm322, %v3685, %v966
    %v3690 = vsel %vm322, %v3686, %v1005
    %v3691 = vsel %vm322, %v3687, %v1007
    %v3692 = vsel %vm1352, %v3688, %v3668
    %v3693 = vsel %vm1352, %v3689, %v3669
    %v3694 = vsel %vm1352, %v3690, %v3670
    %v3695 = vsel %vm1352, %v3691, %v3671
    %v3696 = vpack.c.bf16 %v3643, %v3643
    %v3697 = vmul.bf16 %v3696, %v202
    %v3698 = vmul.bf16 %v3696, %v203
    %v3699 = vmul.bf16 %v3696, %v204
    %v3700 = vmul.bf16 %v3696, %v205
    %v3701 = vmul.bf16 %v3696, %v206
    %v3702 = vmul.bf16 %v3696, %v207
    %3703 = vmatprep.subr.bf16.mxu0 %v1940
    %3704 = vmatpush1.bf16.msra.mxu0 %v1939
    %3705 = vmatprep.subr.bf16.mxu0 %v1944
    %3706 = vmatpush1.bf16.msra.mxu0 %v1943
    %3707 = vmatprep.subr.bf16.mxu0 %v1948
    %3708 = vmatpush1.bf16.msra.mxu0 %v1947
    %3709 = vmatprep.subr.bf16.mxu0 %v1952
    %3710 = vmatpush1.bf16.msra.mxu0 %v1951
    %3711 = vmatprep.subr.bf16.mxu0 %v1956
    %3712 = vmatpush1.bf16.msra.mxu0 %v1955
    %3713 = vmatprep.subr.bf16.mxu0 %v1960
    %3714 = vmatpush1.bf16.msra.mxu0 %v1959
    %3715 = vmatprep.subr.bf16.mxu0 %v1964
    %3716 = vmatpush1.bf16.msra.mxu0 %v1963
    %3717 = vmatprep.subr.bf16.mxu0 %v1968
    %3718 = vmatpush1.bf16.msra.mxu0 %v1967
    %3719 = vmatprep.subr.bf16.mxu0 %v1972
    %3720 = vmatpush1.bf16.msra.mxu0 %v1971
    %3721 = vmatprep.subr.bf16.mxu0 %v1976
    %3722 = vmatpush1.bf16.msra.mxu0 %v1975
    %3723 = vmatprep.subr.bf16.mxu0 %v1980
    %3724 = vmatpush1.bf16.msra.mxu0 %v1979
    %3725 = vmatprep.subr.bf16.mxu0 %v1984
    %3726 = vmatpush1.bf16.msra.mxu0 %v1983
    %3727 = vmatprep.subr.bf16.mxu0 %v1988
    %3728 = vmatpush1.bf16.msra.mxu0 %v1987
    %3729 = vmatprep.subr.bf16.mxu0 %v1992
    %3730 = vmatpush1.bf16.msra.mxu0 %v1991
    %3731 = vmatprep.subr.bf16.mxu0 %v1996
    %3732 = vmatpush1.bf16.msra.mxu0 %v1995
    %3733 = vmatprep.subr.bf16.mxu0 %v2000
    %3734 = vmatpush1.bf16.msra.mxu0 %v1999
    %3735 = vmatprep.mubr.bf16.mxu0 %v3698
    %3736 = vmatmul.mubr.bf16.gmra.mrb[0].mxu0 %v3697
    %v3737 = vpop.f32.mrb[0].mxu0
    %v3738 = vadd.f32 0.0, %v3737
    %v3739 = vpop.f32.mrb[0].mxu0
    %v3740 = vadd.f32 0.0, %v3739
    %v3741 = vpop.f32.mrb[0].mxu0
    %v3742 = vpop.f32.mrb[0].mxu0
    %3743 = vdwg.mxu0
    %3744 = vmatprep.subr.bf16.mxu0 %v2004
    %3745 = vmatpush1.bf16.msra.mxu0 %v2003
    %3746 = vmatprep.subr.bf16.mxu0 %v2008
    %3747 = vmatpush1.bf16.msra.mxu0 %v2007
    %3748 = vmatprep.subr.bf16.mxu0 %v2012
    %3749 = vmatpush1.bf16.msra.mxu0 %v2011
    %3750 = vmatprep.subr.bf16.mxu0 %v2016
    %3751 = vmatpush1.bf16.msra.mxu0 %v2015
    %3752 = vmatprep.subr.bf16.mxu0 %v2020
    %3753 = vmatpush1.bf16.msra.mxu0 %v2019
    %3754 = vmatprep.subr.bf16.mxu0 %v2024
    %3755 = vmatpush1.bf16.msra.mxu0 %v2023
    %3756 = vmatprep.subr.bf16.mxu0 %v2028
    %3757 = vmatpush1.bf16.msra.mxu0 %v2027
    %3758 = vmatprep.subr.bf16.mxu0 %v2032
    %3759 = vmatpush1.bf16.msra.mxu0 %v2031
    %3760 = vmatprep.subr.bf16.mxu0 %v2036
    %3761 = vmatpush1.bf16.msra.mxu0 %v2035
    %3762 = vmatprep.subr.bf16.mxu0 %v2040
    %3763 = vmatpush1.bf16.msra.mxu0 %v2039
    %3764 = vmatprep.subr.bf16.mxu0 %v2044
    %3765 = vmatpush1.bf16.msra.mxu0 %v2043
    %3766 = vmatprep.subr.bf16.mxu0 %v2048
    %3767 = vmatpush1.bf16.msra.mxu0 %v2047
    %3768 = vmatprep.subr.bf16.mxu0 %v2052
    %3769 = vmatpush1.bf16.msra.mxu0 %v2051
    %3770 = vmatprep.subr.bf16.mxu0 %v2056
    %3771 = vmatpush1.bf16.msra.mxu0 %v2055
    %3772 = vmatprep.subr.bf16.mxu0 %v2060
    %3773 = vmatpush1.bf16.msra.mxu0 %v2059
    %3774 = vmatprep.subr.bf16.mxu0 %v2064
    %3775 = vmatpush1.bf16.msra.mxu0 %v2063
    %3776 = vmatprep.mubr.bf16.mxu0 %v3700
    %3777 = vmatmul.mubr.bf16.gmra.mrb[0].mxu0 %v3699
    %v3778 = vpop.f32.mrb[0].mxu0
    %v3779 = vadd.f32 %v3738, %v3778
    %v3780 = vpop.f32.mrb[0].mxu0
    %v3781 = vadd.f32 %v3740, %v3780
    %v3782 = vpop.f32.mrb[0].mxu0
    %v3783 = vpop.f32.mrb[0].mxu0
    %3784 = vdwg.mxu0
    %3785 = vmatprep.subr.bf16.mxu0 %v2068
    %3786 = vmatpush1.bf16.msra.mxu0 %v2067
    %3787 = vmatprep.subr.bf16.mxu0 %v2072
    %3788 = vmatpush1.bf16.msra.mxu0 %v2071
    %3789 = vmatprep.subr.bf16.mxu0 %v2076
    %3790 = vmatpush1.bf16.msra.mxu0 %v2075
    %3791 = vmatprep.subr.bf16.mxu0 %v2080
    %3792 = vmatpush1.bf16.msra.mxu0 %v2079
    %3793 = vmatprep.subr.bf16.mxu0 %v2084
    %3794 = vmatpush1.bf16.msra.mxu0 %v2083
    %3795 = vmatprep.subr.bf16.mxu0 %v2088
    %3796 = vmatpush1.bf16.msra.mxu0 %v2087
    %3797 = vmatprep.subr.bf16.mxu0 %v2092
    %3798 = vmatpush1.bf16.msra.mxu0 %v2091
    %3799 = vmatprep.subr.bf16.mxu0 %v2096
    %3800 = vmatpush1.bf16.msra.mxu0 %v2095
    %3801 = vmatprep.subr.bf16.mxu0 %v2100
    %3802 = vmatpush1.bf16.msra.mxu0 %v2099
    %3803 = vmatprep.subr.bf16.mxu0 %v2104
    %3804 = vmatpush1.bf16.msra.mxu0 %v2103
    %3805 = vmatprep.subr.bf16.mxu0 %v2108
    %3806 = vmatpush1.bf16.msra.mxu0 %v2107
    %3807 = vmatprep.subr.bf16.mxu0 %v2112
    %3808 = vmatpush1.bf16.msra.mxu0 %v2111
    %3809 = vmatprep.subr.bf16.mxu0 %v2116
    %3810 = vmatpush1.bf16.msra.mxu0 %v2115
    %3811 = vmatprep.subr.bf16.mxu0 %v2120
    %3812 = vmatpush1.bf16.msra.mxu0 %v2119
    %3813 = vmatprep.subr.bf16.mxu0 %v2124
    %3814 = vmatpush1.bf16.msra.mxu0 %v2123
    %3815 = vmatprep.subr.bf16.mxu0 %v2128
    %3816 = vmatpush1.bf16.msra.mxu0 %v2127
    %3817 = vmatprep.mubr.bf16.mxu0 %v3702
    %3818 = vmatmul.mubr.bf16.gmra.mrb[0].mxu0 %v3701
    %v3819 = vpop.f32.mrb[0].mxu0
    %v3820 = vadd.f32 %v3779, %v3819
    %v3821 = vpop.f32.mrb[0].mxu0
    %v3822 = vadd.f32 %v3781, %v3821
    %v3823 = vpop.f32.mrb[0].mxu0
    %v3824 = vpop.f32.mrb[0].mxu0
    %3825 = vdwg.mxu0
    %3826 = vmatprep.subr.bf16.mxu0 %v1942
    %3827 = vmatpush1.bf16.msra.mxu0 %v1941
    %3828 = vmatprep.subr.bf16.mxu0 %v1946
    %3829 = vmatpush1.bf16.msra.mxu0 %v1945
    %3830 = vmatprep.subr.bf16.mxu0 %v1950
    %3831 = vmatpush1.bf16.msra.mxu0 %v1949
    %3832 = vmatprep.subr.bf16.mxu0 %v1954
    %3833 = vmatpush1.bf16.msra.mxu0 %v1953
    %3834 = vmatprep.subr.bf16.mxu0 %v1958
    %3835 = vmatpush1.bf16.msra.mxu0 %v1957
    %3836 = vmatprep.subr.bf16.mxu0 %v1962
    %3837 = vmatpush1.bf16.msra.mxu0 %v1961
    %3838 = vmatprep.subr.bf16.mxu0 %v1966
    %3839 = vmatpush1.bf16.msra.mxu0 %v1965
    %3840 = vmatprep.subr.bf16.mxu0 %v1970
    %3841 = vmatpush1.bf16.msra.mxu0 %v1969
    %3842 = vmatprep.subr.bf16.mxu0 %v1974
    %3843 = vmatpush1.bf16.msra.mxu0 %v1973
    %3844 = vmatprep.subr.bf16.mxu0 %v1978
    %3845 = vmatpush1.bf16.msra.mxu0 %v1977
    %3846 = vmatprep.subr.bf16.mxu0 %v1982
    %3847 = vmatpush1.bf16.msra.mxu0 %v1981
    %3848 = vmatprep.subr.bf16.mxu0 %v1986
    %3849 = vmatpush1.bf16.msra.mxu0 %v1985
    %3850 = vmatprep.subr.bf16.mxu0 %v1990
    %3851 = vmatpush1.bf16.msra.mxu0 %v1989
    %3852 = vmatprep.subr.bf16.mxu0 %v1994
    %3853 = vmatpush1.bf16.msra.mxu0 %v1993
    %3854 = vmatprep.subr.bf16.mxu0 %v1998
    %3855 = vmatpush1.bf16.msra.mxu0 %v1997
    %3856 = vmatprep.subr.bf16.mxu0 %v2002
    %3857 = vmatpush1.bf16.msra.mxu0 %v2001
    %3858 = vmatprep.mubr.bf16.mxu0 %v3698
    %3859 = vmatmul.mubr.bf16.gmra.mrb[0].mxu0 %v3697
    %v3860 = vpop.f32.mrb[0].mxu0
    %v3861 = vadd.f32 0.0, %v3860
    %v3862 = vpop.f32.mrb[0].mxu0
    %v3863 = vadd.f32 0.0, %v3862
    %v3864 = vpop.f32.mrb[0].mxu0
    %v3865 = vpop.f32.mrb[0].mxu0
    %3866 = vdwg.mxu0
    %3867 = vmatprep.subr.bf16.mxu0 %v2006
    %3868 = vmatpush1.bf16.msra.mxu0 %v2005
    %3869 = vmatprep.subr.bf16.mxu0 %v2010
    %3870 = vmatpush1.bf16.msra.mxu0 %v2009
    %3871 = vmatprep.subr.bf16.mxu0 %v2014
    %3872 = vmatpush1.bf16.msra.mxu0 %v2013
    %3873 = vmatprep.subr.bf16.mxu0 %v2018
    %3874 = vmatpush1.bf16.msra.mxu0 %v2017
    %3875 = vmatprep.subr.bf16.mxu0 %v2022
    %3876 = vmatpush1.bf16.msra.mxu0 %v2021
    %3877 = vmatprep.subr.bf16.mxu0 %v2026
    %3878 = vmatpush1.bf16.msra.mxu0 %v2025
    %3879 = vmatprep.subr.bf16.mxu0 %v2030
    %3880 = vmatpush1.bf16.msra.mxu0 %v2029
    %3881 = vmatprep.subr.bf16.mxu0 %v2034
    %3882 = vmatpush1.bf16.msra.mxu0 %v2033
    %3883 = vmatprep.subr.bf16.mxu0 %v2038
    %3884 = vmatpush1.bf16.msra.mxu0 %v2037
    %3885 = vmatprep.subr.bf16.mxu0 %v2042
    %3886 = vmatpush1.bf16.msra.mxu0 %v2041
    %3887 = vmatprep.subr.bf16.mxu0 %v2046
    %3888 = vmatpush1.bf16.msra.mxu0 %v2045
    %3889 = vmatprep.subr.bf16.mxu0 %v2050
    %3890 = vmatpush1.bf16.msra.mxu0 %v2049
    %3891 = vmatprep.subr.bf16.mxu0 %v2054
    %3892 = vmatpush1.bf16.msra.mxu0 %v2053
    %3893 = vmatprep.subr.bf16.mxu0 %v2058
    %3894 = vmatpush1.bf16.msra.mxu0 %v2057
    %3895 = vmatprep.subr.bf16.mxu0 %v2062
    %3896 = vmatpush1.bf16.msra.mxu0 %v2061
    %3897 = vmatprep.subr.bf16.mxu0 %v2066
    %3898 = vmatpush1.bf16.msra.mxu0 %v2065
    %3899 = vmatprep.mubr.bf16.mxu0 %v3700
    %3900 = vmatmul.mubr.bf16.gmra.mrb[0].mxu0 %v3699
    %v3901 = vpop.f32.mrb[0].mxu0
    %v3902 = vadd.f32 %v3861, %v3901
    %v3903 = vpop.f32.mrb[0].mxu0
    %v3904 = vadd.f32 %v3863, %v3903
    %v3905 = vpop.f32.mrb[0].mxu0
    %v3906 = vpop.f32.mrb[0].mxu0
    %3907 = vdwg.mxu0
    %3908 = vmatprep.subr.bf16.mxu0 %v2070
    %3909 = vmatpush1.bf16.msra.mxu0 %v2069
    %3910 = vmatprep.subr.bf16.mxu0 %v2074
    %3911 = vmatpush1.bf16.msra.mxu0 %v2073
    %3912 = vmatprep.subr.bf16.mxu0 %v2078
    %3913 = vmatpush1.bf16.msra.mxu0 %v2077
    %3914 = vmatprep.subr.bf16.mxu0 %v2082
    %3915 = vmatpush1.bf16.msra.mxu0 %v2081
    %3916 = vmatprep.subr.bf16.mxu0 %v2086
    %3917 = vmatpush1.bf16.msra.mxu0 %v2085
    %3918 = vmatprep.subr.bf16.mxu0 %v2090
    %3919 = vmatpush1.bf16.msra.mxu0 %v2089
    %3920 = vmatprep.subr.bf16.mxu0 %v2094
    %3921 = vmatpush1.bf16.msra.mxu0 %v2093
    %3922 = vmatprep.subr.bf16.mxu0 %v2098
    %3923 = vmatpush1.bf16.msra.mxu0 %v2097
    %3924 = vmatprep.subr.bf16.mxu0 %v2102
    %3925 = vmatpush1.bf16.msra.mxu0 %v2101
    %3926 = vmatprep.subr.bf16.mxu0 %v2106
    %3927 = vmatpush1.bf16.msra.mxu0 %v2105
    %3928 = vmatprep.subr.bf16.mxu0 %v2110
    %3929 = vmatpush1.bf16.msra.mxu0 %v2109
    %3930 = vmatprep.subr.bf16.mxu0 %v2114
    %3931 = vmatpush1.bf16.msra.mxu0 %v2113
    %3932 = vmatprep.subr.bf16.mxu0 %v2118
    %3933 = vmatpush1.bf16.msra.mxu0 %v2117
    %3934 = vmatprep.subr.bf16.mxu0 %v2122
    %3935 = vmatpush1.bf16.msra.mxu0 %v2121
    %3936 = vmatprep.subr.bf16.mxu0 %v2126
    %3937 = vmatpush1.bf16.msra.mxu0 %v2125
    %3938 = vmatprep.subr.bf16.mxu0 %v2130
    %3939 = vmatpush1.bf16.msra.mxu0 %v2129
    %3940 = vmatprep.mubr.bf16.mxu0 %v3702
    %3941 = vmatmul.mubr.bf16.gmra.mrb[0].mxu0 %v3701
    %v3942 = vpop.f32.mrb[0].mxu0
    %v3943 = vadd.f32 %v3902, %v3942
    %v3944 = vpop.f32.mrb[0].mxu0
    %v3945 = vadd.f32 %v3904, %v3944
    %v3946 = vpop.f32.mrb[0].mxu0
    %v3947 = vpop.f32.mrb[0].mxu0
    %3948 = vdwg.mxu0
    %v3949 = vadd.f32 %v3692, %v3820
    %v3950 = vadd.f32 %v3693, %v3822
    %v3951 = vadd.f32 %v3694, %v3943
    %v3952 = vadd.f32 %v3695, %v3945
    %v3953 = vxor.u32 %v3949, 2147483648
    %v3954 = vmul.f32 %v3953, 1.442695
    %v3955 = vpow.pop %v3954
    %v3956 = vadd.f32 %v3955, 1.0
    %v3957 = vrcp.pop %v3956
    %v3958 = vmul.f32 1.0, %v3957
    %v3959 = vxor.u32 %v3950, 2147483648
    %v3960 = vmul.f32 %v3959, 1.442695
    %v3961 = vpow.pop %v3960
    %v3962 = vadd.f32 %v3961, 1.0
    %v3963 = vrcp.pop %v3962
    %v3964 = vmul.f32 1.0, %v3963
    %v3965 = vtanh.pop %v3951
    %v3966 = vxor.u32 %v3952, 2147483648
    %v3967 = vmul.f32 %v3966, 1.442695
    %v3968 = vpow.pop %v3967
    %v3969 = vadd.f32 %v3968, 1.0
    %v3970 = vrcp.pop %v3969
    %v3971 = vmul.f32 1.0, %v3970
    %v3972 = vmul.f32 %v3964, %v3641
    %v3973 = vmul.f32 %v3958, %v3965
    %v3974 = vadd.f32 %v3972, %v3973
    %v3975 = vtanh.pop %v3974
    %v3976 = vmul.f32 %v3971, %v3975
    %v3977 = vsel %vm322, %v3976, %v3643
    %v3978 = vsel %vm1352, %v3977, %v3976
    %v3979 = vsel %vm322, %v3974, %v3641
    %v3980 = vsel %vm1352, %v3979, %v3974
    %v3981 = vrot.slane %v382, 5
    %v3982 = vrot.slane %v384, 5
    %v3983 = vrot.slane %v423, 5
    %v3984 = vrot.slane %v425, 5
    %v3989 = vrot.slane %v464, 7
    %v3990 = vrot.slane %v466, 7
    %v3991 = vrot.slane %v505, 7
    %v3992 = vrot.slane %v507, 7
    %v3997 = vrot.slane %v673, 3
    %v3998 = vrot.slane %v675, 3
    %v3999 = vrot.slane %v714, 3
    %v4000 = vrot.slane %v716, 3
    %v4005 = vrot.slane %v755, 5
    %v4006 = vrot.slane %v757, 5
    %v4007 = vrot.slane %v796, 5
    %v4008 = vrot.slane %v798, 5
    %v4013 = vrot.slane %v964, 1
    %v4014 = vrot.slane %v966, 1
    %v4015 = vrot.slane %v1005, 1
    %v4016 = vrot.slane %v1007, 1
    %v4021 = vrot.slane %v1046, 3
    %v4022 = vrot.slane %v1048, 3
    %v4023 = vrot.slane %v1087, 3
    %v4024 = vrot.slane %v1089, 3
    %v4029 = vsel %vm1333, %v3981, %v3989
    %v4030 = vsel %vm1333, %v3982, %v3990
    %v4031 = vsel %vm1333, %v3983, %v3991
    %v4032 = vsel %vm1333, %v3984, %v3992
    %v4033 = vsel %vm1338, %v4029, %v3997
    %v4034 = vsel %vm1338, %v4030, %v3998
    %v4035 = vsel %vm1338, %v4031, %v3999
    %v4036 = vsel %vm1338, %v4032, %v4000
    %v4037 = vsel %vm1343, %v4033, %v4005
    %v4038 = vsel %vm1343, %v4034, %v4006
    %v4039 = vsel %vm1343, %v4035, %v4007
    %v4040 = vsel %vm1343, %v4036, %v4008
    %v4041 = vsel %vm322, %v4037, %v4013
    %v4042 = vsel %vm322, %v4038, %v4014
    %v4043 = vsel %vm322, %v4039, %v4015
    %v4044 = vsel %vm322, %v4040, %v4016
    %v4045 = vsel %vm1352, %v4041, %v4021
    %v4046 = vsel %vm1352, %v4042, %v4022
    %v4047 = vsel %vm1352, %v4043, %v4023
    %v4048 = vsel %vm1352, %v4044, %v4024
    %v4049 = vpack.c.bf16 %v3978, %v3978
    %v4050 = vmul.bf16 %v4049, %v202
    %v4051 = vmul.bf16 %v4049, %v203
    %v4052 = vmul.bf16 %v4049, %v204
    %v4053 = vmul.bf16 %v4049, %v205
    %v4054 = vmul.bf16 %v4049, %v206
    %v4055 = vmul.bf16 %v4049, %v207
    %4056 = vmatprep.subr.bf16.mxu0 %v1940
    %4057 = vmatpush1.bf16.msra.mxu0 %v1939
    %4058 = vmatprep.subr.bf16.mxu0 %v1944
    %4059 = vmatpush1.bf16.msra.mxu0 %v1943
    %4060 = vmatprep.subr.bf16.mxu0 %v1948
    %4061 = vmatpush1.bf16.msra.mxu0 %v1947
    %4062 = vmatprep.subr.bf16.mxu0 %v1952
    %4063 = vmatpush1.bf16.msra.mxu0 %v1951
    %4064 = vmatprep.subr.bf16.mxu0 %v1956
    %4065 = vmatpush1.bf16.msra.mxu0 %v1955
    %4066 = vmatprep.subr.bf16.mxu0 %v1960
    %4067 = vmatpush1.bf16.msra.mxu0 %v1959
    %4068 = vmatprep.subr.bf16.mxu0 %v1964
    %4069 = vmatpush1.bf16.msra.mxu0 %v1963
    %4070 = vmatprep.subr.bf16.mxu0 %v1968
    %4071 = vmatpush1.bf16.msra.mxu0 %v1967
    %4072 = vmatprep.subr.bf16.mxu0 %v1972
    %4073 = vmatpush1.bf16.msra.mxu0 %v1971
    %4074 = vmatprep.subr.bf16.mxu0 %v1976
    %4075 = vmatpush1.bf16.msra.mxu0 %v1975
    %4076 = vmatprep.subr.bf16.mxu0 %v1980
    %4077 = vmatpush1.bf16.msra.mxu0 %v1979
    %4078 = vmatprep.subr.bf16.mxu0 %v1984
    %4079 = vmatpush1.bf16.msra.mxu0 %v1983
    %4080 = vmatprep.subr.bf16.mxu0 %v1988
    %4081 = vmatpush1.bf16.msra.mxu0 %v1987
    %4082 = vmatprep.subr.bf16.mxu0 %v1992
    %4083 = vmatpush1.bf16.msra.mxu0 %v1991
    %4084 = vmatprep.subr.bf16.mxu0 %v1996
    %4085 = vmatpush1.bf16.msra.mxu0 %v1995
    %4086 = vmatprep.subr.bf16.mxu0 %v2000
    %4087 = vmatpush1.bf16.msra.mxu0 %v1999
    %4088 = vmatprep.mubr.bf16.mxu0 %v4051
    %4089 = vmatmul.mubr.bf16.gmra.mrb[0].mxu0 %v4050
    %v4090 = vpop.f32.mrb[0].mxu0
    %v4091 = vadd.f32 0.0, %v4090
    %v4092 = vpop.f32.mrb[0].mxu0
    %v4093 = vadd.f32 0.0, %v4092
    %v4094 = vpop.f32.mrb[0].mxu0
    %v4095 = vpop.f32.mrb[0].mxu0
    %4096 = vdwg.mxu0
    %4097 = vmatprep.subr.bf16.mxu0 %v2004
    %4098 = vmatpush1.bf16.msra.mxu0 %v2003
    %4099 = vmatprep.subr.bf16.mxu0 %v2008
    %4100 = vmatpush1.bf16.msra.mxu0 %v2007
    %4101 = vmatprep.subr.bf16.mxu0 %v2012
    %4102 = vmatpush1.bf16.msra.mxu0 %v2011
    %4103 = vmatprep.subr.bf16.mxu0 %v2016
    %4104 = vmatpush1.bf16.msra.mxu0 %v2015
    %4105 = vmatprep.subr.bf16.mxu0 %v2020
    %4106 = vmatpush1.bf16.msra.mxu0 %v2019
    %4107 = vmatprep.subr.bf16.mxu0 %v2024
    %4108 = vmatpush1.bf16.msra.mxu0 %v2023
    %4109 = vmatprep.subr.bf16.mxu0 %v2028
    %4110 = vmatpush1.bf16.msra.mxu0 %v2027
    %4111 = vmatprep.subr.bf16.mxu0 %v2032
    %4112 = vmatpush1.bf16.msra.mxu0 %v2031
    %4113 = vmatprep.subr.bf16.mxu0 %v2036
    %4114 = vmatpush1.bf16.msra.mxu0 %v2035
    %4115 = vmatprep.subr.bf16.mxu0 %v2040
    %4116 = vmatpush1.bf16.msra.mxu0 %v2039
    %4117 = vmatprep.subr.bf16.mxu0 %v2044
    %4118 = vmatpush1.bf16.msra.mxu0 %v2043
    %4119 = vmatprep.subr.bf16.mxu0 %v2048
    %4120 = vmatpush1.bf16.msra.mxu0 %v2047
    %4121 = vmatprep.subr.bf16.mxu0 %v2052
    %4122 = vmatpush1.bf16.msra.mxu0 %v2051
    %4123 = vmatprep.subr.bf16.mxu0 %v2056
    %4124 = vmatpush1.bf16.msra.mxu0 %v2055
    %4125 = vmatprep.subr.bf16.mxu0 %v2060
    %4126 = vmatpush1.bf16.msra.mxu0 %v2059
    %4127 = vmatprep.subr.bf16.mxu0 %v2064
    %4128 = vmatpush1.bf16.msra.mxu0 %v2063
    %4129 = vmatprep.mubr.bf16.mxu0 %v4053
    %4130 = vmatmul.mubr.bf16.gmra.mrb[0].mxu0 %v4052
    %v4131 = vpop.f32.mrb[0].mxu0
    %v4132 = vadd.f32 %v4091, %v4131
    %v4133 = vpop.f32.mrb[0].mxu0
    %v4134 = vadd.f32 %v4093, %v4133
    %v4135 = vpop.f32.mrb[0].mxu0
    %v4136 = vpop.f32.mrb[0].mxu0
    %4137 = vdwg.mxu0
    %4138 = vmatprep.subr.bf16.mxu0 %v2068
    %4139 = vmatpush1.bf16.msra.mxu0 %v2067
    %4140 = vmatprep.subr.bf16.mxu0 %v2072
    %4141 = vmatpush1.bf16.msra.mxu0 %v2071
    %4142 = vmatprep.subr.bf16.mxu0 %v2076
    %4143 = vmatpush1.bf16.msra.mxu0 %v2075
    %4144 = vmatprep.subr.bf16.mxu0 %v2080
    %4145 = vmatpush1.bf16.msra.mxu0 %v2079
    %4146 = vmatprep.subr.bf16.mxu0 %v2084
    %4147 = vmatpush1.bf16.msra.mxu0 %v2083
    %4148 = vmatprep.subr.bf16.mxu0 %v2088
    %4149 = vmatpush1.bf16.msra.mxu0 %v2087
    %4150 = vmatprep.subr.bf16.mxu0 %v2092
    %4151 = vmatpush1.bf16.msra.mxu0 %v2091
    %4152 = vmatprep.subr.bf16.mxu0 %v2096
    %4153 = vmatpush1.bf16.msra.mxu0 %v2095
    %4154 = vmatprep.subr.bf16.mxu0 %v2100
    %4155 = vmatpush1.bf16.msra.mxu0 %v2099
    %4156 = vmatprep.subr.bf16.mxu0 %v2104
    %4157 = vmatpush1.bf16.msra.mxu0 %v2103
    %4158 = vmatprep.subr.bf16.mxu0 %v2108
    %4159 = vmatpush1.bf16.msra.mxu0 %v2107
    %4160 = vmatprep.subr.bf16.mxu0 %v2112
    %4161 = vmatpush1.bf16.msra.mxu0 %v2111
    %4162 = vmatprep.subr.bf16.mxu0 %v2116
    %4163 = vmatpush1.bf16.msra.mxu0 %v2115
    %4164 = vmatprep.subr.bf16.mxu0 %v2120
    %4165 = vmatpush1.bf16.msra.mxu0 %v2119
    %4166 = vmatprep.subr.bf16.mxu0 %v2124
    %4167 = vmatpush1.bf16.msra.mxu0 %v2123
    %4168 = vmatprep.subr.bf16.mxu0 %v2128
    %4169 = vmatpush1.bf16.msra.mxu0 %v2127
    %4170 = vmatprep.mubr.bf16.mxu0 %v4055
    %4171 = vmatmul.mubr.bf16.gmra.mrb[0].mxu0 %v4054
    %v4172 = vpop.f32.mrb[0].mxu0
    %v4173 = vadd.f32 %v4132, %v4172
    %v4174 = vpop.f32.mrb[0].mxu0
    %v4175 = vadd.f32 %v4134, %v4174
    %v4176 = vpop.f32.mrb[0].mxu0
    %v4177 = vpop.f32.mrb[0].mxu0
    %4178 = vdwg.mxu0
    %4179 = vmatprep.subr.bf16.mxu0 %v1942
    %4180 = vmatpush1.bf16.msra.mxu0 %v1941
    %4181 = vmatprep.subr.bf16.mxu0 %v1946
    %4182 = vmatpush1.bf16.msra.mxu0 %v1945
    %4183 = vmatprep.subr.bf16.mxu0 %v1950
    %4184 = vmatpush1.bf16.msra.mxu0 %v1949
    %4185 = vmatprep.subr.bf16.mxu0 %v1954
    %4186 = vmatpush1.bf16.msra.mxu0 %v1953
    %4187 = vmatprep.subr.bf16.mxu0 %v1958
    %4188 = vmatpush1.bf16.msra.mxu0 %v1957
    %4189 = vmatprep.subr.bf16.mxu0 %v1962
    %4190 = vmatpush1.bf16.msra.mxu0 %v1961
    %4191 = vmatprep.subr.bf16.mxu0 %v1966
    %4192 = vmatpush1.bf16.msra.mxu0 %v1965
    %4193 = vmatprep.subr.bf16.mxu0 %v1970
    %4194 = vmatpush1.bf16.msra.mxu0 %v1969
    %4195 = vmatprep.subr.bf16.mxu0 %v1974
    %4196 = vmatpush1.bf16.msra.mxu0 %v1973
    %4197 = vmatprep.subr.bf16.mxu0 %v1978
    %4198 = vmatpush1.bf16.msra.mxu0 %v1977
    %4199 = vmatprep.subr.bf16.mxu0 %v1982
    %4200 = vmatpush1.bf16.msra.mxu0 %v1981
    %4201 = vmatprep.subr.bf16.mxu0 %v1986
    %4202 = vmatpush1.bf16.msra.mxu0 %v1985
    %4203 = vmatprep.subr.bf16.mxu0 %v1990
    %4204 = vmatpush1.bf16.msra.mxu0 %v1989
    %4205 = vmatprep.subr.bf16.mxu0 %v1994
    %4206 = vmatpush1.bf16.msra.mxu0 %v1993
    %4207 = vmatprep.subr.bf16.mxu0 %v1998
    %4208 = vmatpush1.bf16.msra.mxu0 %v1997
    %4209 = vmatprep.subr.bf16.mxu0 %v2002
    %4210 = vmatpush1.bf16.msra.mxu0 %v2001
    %4211 = vmatprep.mubr.bf16.mxu0 %v4051
    %4212 = vmatmul.mubr.bf16.gmra.mrb[0].mxu0 %v4050
    %v4213 = vpop.f32.mrb[0].mxu0
    %v4214 = vadd.f32 0.0, %v4213
    %v4215 = vpop.f32.mrb[0].mxu0
    %v4216 = vadd.f32 0.0, %v4215
    %v4217 = vpop.f32.mrb[0].mxu0
    %v4218 = vpop.f32.mrb[0].mxu0
    %4219 = vdwg.mxu0
    %4220 = vmatprep.subr.bf16.mxu0 %v2006
    %4221 = vmatpush1.bf16.msra.mxu0 %v2005
    %4222 = vmatprep.subr.bf16.mxu0 %v2010
    %4223 = vmatpush1.bf16.msra.mxu0 %v2009
    %4224 = vmatprep.subr.bf16.mxu0 %v2014
    %4225 = vmatpush1.bf16.msra.mxu0 %v2013
    %4226 = vmatprep.subr.bf16.mxu0 %v2018
    %4227 = vmatpush1.bf16.msra.mxu0 %v2017
    %4228 = vmatprep.subr.bf16.mxu0 %v2022
    %4229 = vmatpush1.bf16.msra.mxu0 %v2021
    %4230 = vmatprep.subr.bf16.mxu0 %v2026
    %4231 = vmatpush1.bf16.msra.mxu0 %v2025
    %4232 = vmatprep.subr.bf16.mxu0 %v2030
    %4233 = vmatpush1.bf16.msra.mxu0 %v2029
    %4234 = vmatprep.subr.bf16.mxu0 %v2034
    %4235 = vmatpush1.bf16.msra.mxu0 %v2033
    %4236 = vmatprep.subr.bf16.mxu0 %v2038
    %4237 = vmatpush1.bf16.msra.mxu0 %v2037
    %4238 = vmatprep.subr.bf16.mxu0 %v2042
    %4239 = vmatpush1.bf16.msra.mxu0 %v2041
    %4240 = vmatprep.subr.bf16.mxu0 %v2046
    %4241 = vmatpush1.bf16.msra.mxu0 %v2045
    %4242 = vmatprep.subr.bf16.mxu0 %v2050
    %4243 = vmatpush1.bf16.msra.mxu0 %v2049
    %4244 = vmatprep.subr.bf16.mxu0 %v2054
    %4245 = vmatpush1.bf16.msra.mxu0 %v2053
    %4246 = vmatprep.subr.bf16.mxu0 %v2058
    %4247 = vmatpush1.bf16.msra.mxu0 %v2057
    %4248 = vmatprep.subr.bf16.mxu0 %v2062
    %4249 = vmatpush1.bf16.msra.mxu0 %v2061
    %4250 = vmatprep.subr.bf16.mxu0 %v2066
    %4251 = vmatpush1.bf16.msra.mxu0 %v2065
    %4252 = vmatprep.mubr.bf16.mxu0 %v4053
    %4253 = vmatmul.mubr.bf16.gmra.mrb[0].mxu0 %v4052
    %v4254 = vpop.f32.mrb[0].mxu0
    %v4255 = vadd.f32 %v4214, %v4254
    %v4256 = vpop.f32.mrb[0].mxu0
    %v4257 = vadd.f32 %v4216, %v4256
    %v4258 = vpop.f32.mrb[0].mxu0
    %v4259 = vpop.f32.mrb[0].mxu0
    %4260 = vdwg.mxu0
    %4261 = vmatprep.subr.bf16.mxu0 %v2070
    %4262 = vmatpush1.bf16.msra.mxu0 %v2069
    %4263 = vmatprep.subr.bf16.mxu0 %v2074
    %4264 = vmatpush1.bf16.msra.mxu0 %v2073
    %4265 = vmatprep.subr.bf16.mxu0 %v2078
    %4266 = vmatpush1.bf16.msra.mxu0 %v2077
    %4267 = vmatprep.subr.bf16.mxu0 %v2082
    %4268 = vmatpush1.bf16.msra.mxu0 %v2081
    %4269 = vmatprep.subr.bf16.mxu0 %v2086
    %4270 = vmatpush1.bf16.msra.mxu0 %v2085
    %4271 = vmatprep.subr.bf16.mxu0 %v2090
    %4272 = vmatpush1.bf16.msra.mxu0 %v2089
    %4273 = vmatprep.subr.bf16.mxu0 %v2094
    %4274 = vmatpush1.bf16.msra.mxu0 %v2093
    %4275 = vmatprep.subr.bf16.mxu0 %v2098
    %4276 = vmatpush1.bf16.msra.mxu0 %v2097
    %4277 = vmatprep.subr.bf16.mxu0 %v2102
    %4278 = vmatpush1.bf16.msra.mxu0 %v2101
    %4279 = vmatprep.subr.bf16.mxu0 %v2106
    %4280 = vmatpush1.bf16.msra.mxu0 %v2105
    %4281 = vmatprep.subr.bf16.mxu0 %v2110
    %4282 = vmatpush1.bf16.msra.mxu0 %v2109
    %4283 = vmatprep.subr.bf16.mxu0 %v2114
    %4284 = vmatpush1.bf16.msra.mxu0 %v2113
    %4285 = vmatprep.subr.bf16.mxu0 %v2118
    %4286 = vmatpush1.bf16.msra.mxu0 %v2117
    %4287 = vmatprep.subr.bf16.mxu0 %v2122
    %4288 = vmatpush1.bf16.msra.mxu0 %v2121
    %4289 = vmatprep.subr.bf16.mxu0 %v2126
    %4290 = vmatpush1.bf16.msra.mxu0 %v2125
    %4291 = vmatprep.subr.bf16.mxu0 %v2130
    %4292 = vmatpush1.bf16.msra.mxu0 %v2129
    %4293 = vmatprep.mubr.bf16.mxu0 %v4055
    %4294 = vmatmul.mubr.bf16.gmra.mrb[0].mxu0 %v4054
    %v4295 = vpop.f32.mrb[0].mxu0
    %v4296 = vadd.f32 %v4255, %v4295
    %v4297 = vpop.f32.mrb[0].mxu0
    %v4298 = vadd.f32 %v4257, %v4297
    %v4299 = vpop.f32.mrb[0].mxu0
    %v4300 = vpop.f32.mrb[0].mxu0
    %4301 = vdwg.mxu0
    %v4302 = vadd.f32 %v4045, %v4173
    %v4303 = vadd.f32 %v4046, %v4175
    %v4304 = vadd.f32 %v4047, %v4296
    %v4305 = vadd.f32 %v4048, %v4298
    %v4306 = vxor.u32 %v4302, 2147483648
    %v4307 = vmul.f32 %v4306, 1.442695
    %v4308 = vpow.pop %v4307
    %v4309 = vadd.f32 %v4308, 1.0
    %v4310 = vrcp.pop %v4309
    %v4311 = vmul.f32 1.0, %v4310
    %v4312 = vxor.u32 %v4303, 2147483648
    %v4313 = vmul.f32 %v4312, 1.442695
    %v4314 = vpow.pop %v4313
    %v4315 = vadd.f32 %v4314, 1.0
    %v4316 = vrcp.pop %v4315
    %v4317 = vmul.f32 1.0, %v4316
    %v4318 = vtanh.pop %v4304
    %v4319 = vxor.u32 %v4305, 2147483648
    %v4320 = vmul.f32 %v4319, 1.442695
    %v4321 = vpow.pop %v4320
    %v4322 = vadd.f32 %v4321, 1.0
    %v4323 = vrcp.pop %v4322
    %v4324 = vmul.f32 1.0, %v4323
    %v4325 = vmul.f32 %v4317, %v3980
    %v4326 = vmul.f32 %v4311, %v4318
    %v4327 = vadd.f32 %v4325, %v4326
    %v4328 = vtanh.pop %v4327
    %v4329 = vmul.f32 %v4324, %v4328
    %v4330 = vsel %vm1338, %v4329, %v3978
    %v4331 = vsel %vm1343, %v4330, %v4329
    %v4332 = vsel %vm322, %v4331, %v3978
    %v4333 = vsel %vm1352, %v4332, %v4329
    %v4335 = vrot.slane %v4333, 1
    %v4338 = vrot.slane %v3978, 1
    %v4340 = vrot.slane %v3643, 1
    %v4342 = vrot.slane %v3294, 1
    %v4344 = vrot.slane %v2960, 1
    %v4346 = vrot.slane %v2599, 1
    %v4347 = vrot.slane %v2960, 7
    %v4348 = vrot.slane %v4338, 7
    %v4351 = vrot.slane %v3294, 6
    %v4352 = vrot.slane %v4340, 6
    %v4355 = vrot.slane %v3643, 5
    %v4356 = vrot.slane %v4342, 5
    %v4359 = vrot.slane %v3978, 4
    %v4360 = vrot.slane %v4344, 4
    %v4363 = vrot.slane %v4333, 3
    %v4364 = vrot.slane %v4346, 3
    %v4367 = vsel %vm1333, %v2599, %v4347
    %v4368 = vsel %vm1333, %v4335, %v4348
    %v4369 = vsel %vm1338, %v4367, %v4351
    %v4370 = vsel %vm1338, %v4368, %v4352
    %v4371 = vsel %vm1343, %v4369, %v4355
    %v4372 = vsel %vm1343, %v4370, %v4356
    %v4373 = vsel %vm322, %v4371, %v4359
    %v4374 = vsel %vm322, %v4372, %v4360
    %v4375 = vsel %vm1352, %v4373, %v4363
    %v4376 = vsel %vm1352, %v4374, %v4364
    %v4378 = vrot.slane %v2599, 2
    %v4379 = vrot.slane %v4335, 2
    %v4382 = vrot.slane %v4338, 1
    %v4385 = vrot.slane %v3643, 7
    %v4386 = vrot.slane %v4342, 7
    %v4389 = vrot.slane %v3978, 6
    %v4390 = vrot.slane %v4344, 6
    %v4393 = vsel %vm1333, %v4378, %v4344
    %v4394 = vsel %vm1333, %v4379, %v4382
    %v4395 = vsel %vm1338, %v4393, %v3294
    %v4396 = vsel %vm1338, %v4394, %v4340
    %v4397 = vsel %vm1343, %v4395, %v4385
    %v4398 = vsel %vm1343, %v4396, %v4386
    %v4399 = vsel %vm322, %v4397, %v4389
    %v4400 = vsel %vm322, %v4398, %v4390
    %v4401 = vsel %vm1352, %v4399, 0.0
    %v4402 = vsel %vm1352, %v4400, 0.0
    %v4403 = vrot.slane %v2599, 4
    %v4404 = vrot.slane %v4335, 4
    %v4407 = vrot.slane %v2960, 3
    %v4408 = vrot.slane %v4338, 3
    %v4411 = vrot.slane %v3294, 2
    %v4412 = vrot.slane %v4340, 2
    %v4415 = vrot.slane %v4342, 1
    %v4417 = vsel %vm1333, %v4403, %v4407
    %v4418 = vsel %vm1333, %v4404, %v4408
    %v4419 = vsel %vm1338, %v4417, %v4411
    %v4420 = vsel %vm1338, %v4418, %v4412
    %v4421 = vsel %vm1343, %v4419, %v4340
    %v4422 = vsel %vm1343, %v4420, %v4415
    %v4423 = vsel %vm322, %v4421, 0.0
    %v4424 = vsel %vm322, %v4422, 0.0
    %v4425 = vsel %vm1352, %v4423, 0.0
    %v4426 = vsel %vm1352, %v4424, 0.0
    %s4427 = smul.u32 4, 3
    %s4428 = smul.u32 %s4427, 32
    %s4429 = smul.u32 %s4428, 8
    %s4430 = sshll.u32 %s4429, 4
    %4431 = dma.done [#allocation4], %s4430
    %s4432 = smul.u32 4, 96
    %s4433 = smul.u32 %s4432, 4
    %s4434 = sshll.u32 %s4433, 4
    %4435 = dma.done %s132, %s4434
    %v4436 = vpack.c.bf16 %v4375, %v4375
    %v4437 = vpack.c.bf16 %v4376, %v4376
    %v4438 = vld [vmem:[#allocation2] sm:$0xff]
    %v4439 = vld [vmem:[#allocation2 + $0x8] sm:$0xff]
    %v4440 = vld [vmem:[#allocation2 + $0x10] sm:$0xff]
    %v4441 = vld [vmem:[#allocation2 + $0x18] sm:$0xff]
    %v4442 = vld [vmem:[#allocation2 + $0x20] sm:$0xff]
    %v4443 = vld [vmem:[#allocation2 + $0x28] sm:$0xff]
    %v4444 = vld [vmem:[#allocation2 + $0x30] sm:$0xff]
    %v4445 = vld [vmem:[#allocation2 + $0x38] sm:$0xff]
    %v4446 = vld [vmem:[#allocation2 + $0x40] sm:$0xff]
    %v4447 = vld [vmem:[#allocation2 + $0x48] sm:$0xff]
    %v4448 = vld [vmem:[#allocation2 + $0x50] sm:$0xff]
    %v4449 = vld [vmem:[#allocation2 + $0x58] sm:$0xff]
    %v4450 = vld [vmem:[#allocation2 + $0x60] sm:$0xff]
    %v4451 = vld [vmem:[#allocation2 + $0x68] sm:$0xff]
    %v4452 = vld [vmem:[#allocation2 + $0x70] sm:$0xff]
    %v4453 = vld [vmem:[#allocation2 + $0x78] sm:$0xff]
    %v4454 = vld [vmem:[#allocation2 + $0x80] sm:$0xff]
    %v4455 = vld [vmem:[#allocation2 + $0x88] sm:$0xff]
    %v4456 = vld [vmem:[#allocation2 + $0x90] sm:$0xff]
    %v4457 = vld [vmem:[#allocation2 + $0x98] sm:$0xff]
    %v4458 = vld [vmem:[#allocation2 + $0xa0] sm:$0xff]
    %v4459 = vld [vmem:[#allocation2 + $0xa8] sm:$0xff]
    %v4460 = vld [vmem:[#allocation2 + $0xb0] sm:$0xff]
    %v4461 = vld [vmem:[#allocation2 + $0xb8] sm:$0xff]
    %v4462 = vld [vmem:[#allocation2 + $0xc0] sm:$0xff]
    %v4463 = vld [vmem:[#allocation2 + $0xc8] sm:$0xff]
    %v4464 = vld [vmem:[#allocation2 + $0xd0] sm:$0xff]
    %v4465 = vld [vmem:[#allocation2 + $0xd8] sm:$0xff]
    %v4466 = vld [vmem:[#allocation2 + $0xe0] sm:$0xff]
    %v4467 = vld [vmem:[#allocation2 + $0xe8] sm:$0xff]
    %v4468 = vld [vmem:[#allocation2 + $0xf0] sm:$0xff]
    %v4469 = vld [vmem:[#allocation2 + $0xf8] sm:$0xff]
    %v4470 = vld [vmem:[#allocation2 + $0x100] sm:$0xff]
    %v4471 = vld [vmem:[#allocation2 + $0x108] sm:$0xff]
    %v4472 = vld [vmem:[#allocation2 + $0x110] sm:$0xff]
    %v4473 = vld [vmem:[#allocation2 + $0x118] sm:$0xff]
    %v4474 = vld [vmem:[#allocation2 + $0x120] sm:$0xff]
    %v4475 = vld [vmem:[#allocation2 + $0x128] sm:$0xff]
    %v4476 = vld [vmem:[#allocation2 + $0x130] sm:$0xff]
    %v4477 = vld [vmem:[#allocation2 + $0x138] sm:$0xff]
    %v4478 = vld [vmem:[#allocation2 + $0x140] sm:$0xff]
    %v4479 = vld [vmem:[#allocation2 + $0x148] sm:$0xff]
    %v4480 = vld [vmem:[#allocation2 + $0x150] sm:$0xff]
    %v4481 = vld [vmem:[#allocation2 + $0x158] sm:$0xff]
    %v4482 = vld [vmem:[#allocation2 + $0x160] sm:$0xff]
    %v4483 = vld [vmem:[#allocation2 + $0x168] sm:$0xff]
    %v4484 = vld [vmem:[#allocation2 + $0x170] sm:$0xff]
    %v4485 = vld [vmem:[#allocation2 + $0x178] sm:$0xff]
    %v4486 = vld [vmem:[#allocation2 + $0x180] sm:$0xff]
    %v4487 = vld [vmem:[#allocation2 + $0x188] sm:$0xff]
    %v4488 = vld [vmem:[#allocation2 + $0x190] sm:$0xff]
    %v4489 = vld [vmem:[#allocation2 + $0x198] sm:$0xff]
    %v4490 = vld [vmem:[#allocation2 + $0x1a0] sm:$0xff]
    %v4491 = vld [vmem:[#allocation2 + $0x1a8] sm:$0xff]
    %v4492 = vld [vmem:[#allocation2 + $0x1b0] sm:$0xff]
    %v4493 = vld [vmem:[#allocation2 + $0x1b8] sm:$0xff]
    %v4494 = vld [vmem:[#allocation2 + $0x1c0] sm:$0xff]
    %v4495 = vld [vmem:[#allocation2 + $0x1c8] sm:$0xff]
    %v4496 = vld [vmem:[#allocation2 + $0x1d0] sm:$0xff]
    %v4497 = vld [vmem:[#allocation2 + $0x1d8] sm:$0xff]
    %v4498 = vld [vmem:[#allocation2 + $0x1e0] sm:$0xff]
    %v4499 = vld [vmem:[#allocation2 + $0x1e8] sm:$0xff]
    %v4500 = vld [vmem:[#allocation2 + $0x1f0] sm:$0xff]
    %v4501 = vld [vmem:[#allocation2 + $0x1f8] sm:$0xff]
    %v4502 = vld [vmem:[#allocation2 + $0x200] sm:$0xff]
    %v4503 = vld [vmem:[#allocation2 + $0x208] sm:$0xff]
    %v4504 = vld [vmem:[#allocation2 + $0x210] sm:$0xff]
    %v4505 = vld [vmem:[#allocation2 + $0x218] sm:$0xff]
    %v4506 = vld [vmem:[#allocation2 + $0x220] sm:$0xff]
    %v4507 = vld [vmem:[#allocation2 + $0x228] sm:$0xff]
    %v4508 = vld [vmem:[#allocation2 + $0x230] sm:$0xff]
    %v4509 = vld [vmem:[#allocation2 + $0x238] sm:$0xff]
    %v4510 = vld [vmem:[#allocation2 + $0x240] sm:$0xff]
    %v4511 = vld [vmem:[#allocation2 + $0x248] sm:$0xff]
    %v4512 = vld [vmem:[#allocation2 + $0x250] sm:$0xff]
    %v4513 = vld [vmem:[#allocation2 + $0x258] sm:$0xff]
    %v4514 = vld [vmem:[#allocation2 + $0x260] sm:$0xff]
    %v4515 = vld [vmem:[#allocation2 + $0x268] sm:$0xff]
    %v4516 = vld [vmem:[#allocation2 + $0x270] sm:$0xff]
    %v4517 = vld [vmem:[#allocation2 + $0x278] sm:$0xff]
    %v4518 = vld [vmem:[#allocation2 + $0x280] sm:$0xff]
    %v4519 = vld [vmem:[#allocation2 + $0x288] sm:$0xff]
    %v4520 = vld [vmem:[#allocation2 + $0x290] sm:$0xff]
    %v4521 = vld [vmem:[#allocation2 + $0x298] sm:$0xff]
    %v4522 = vld [vmem:[#allocation2 + $0x2a0] sm:$0xff]
    %v4523 = vld [vmem:[#allocation2 + $0x2a8] sm:$0xff]
    %v4524 = vld [vmem:[#allocation2 + $0x2b0] sm:$0xff]
    %v4525 = vld [vmem:[#allocation2 + $0x2b8] sm:$0xff]
    %v4526 = vld [vmem:[#allocation2 + $0x2c0] sm:$0xff]
    %v4527 = vld [vmem:[#allocation2 + $0x2c8] sm:$0xff]
    %v4528 = vld [vmem:[#allocation2 + $0x2d0] sm:$0xff]
    %v4529 = vld [vmem:[#allocation2 + $0x2d8] sm:$0xff]
    %v4530 = vld [vmem:[#allocation2 + $0x2e0] sm:$0xff]
    %v4531 = vld [vmem:[#allocation2 + $0x2e8] sm:$0xff]
    %v4532 = vld [vmem:[#allocation2 + $0x2f0] sm:$0xff]
    %v4533 = vld [vmem:[#allocation2 + $0x2f8] sm:$0xff]
    %v4534 = vld [vmem:[#allocation2 + $0x300] sm:$0xff]
    %v4535 = vld [vmem:[#allocation2 + $0x308] sm:$0xff]
    %v4536 = vld [vmem:[#allocation2 + $0x310] sm:$0xff]
    %v4537 = vld [vmem:[#allocation2 + $0x318] sm:$0xff]
    %v4538 = vld [vmem:[#allocation2 + $0x320] sm:$0xff]
    %v4539 = vld [vmem:[#allocation2 + $0x328] sm:$0xff]
    %v4540 = vld [vmem:[#allocation2 + $0x330] sm:$0xff]
    %v4541 = vld [vmem:[#allocation2 + $0x338] sm:$0xff]
    %v4542 = vld [vmem:[#allocation2 + $0x340] sm:$0xff]
    %v4543 = vld [vmem:[#allocation2 + $0x348] sm:$0xff]
    %v4544 = vld [vmem:[#allocation2 + $0x350] sm:$0xff]
    %v4545 = vld [vmem:[#allocation2 + $0x358] sm:$0xff]
    %v4546 = vld [vmem:[#allocation2 + $0x360] sm:$0xff]
    %v4547 = vld [vmem:[#allocation2 + $0x368] sm:$0xff]
    %v4548 = vld [vmem:[#allocation2 + $0x370] sm:$0xff]
    %v4549 = vld [vmem:[#allocation2 + $0x378] sm:$0xff]
    %v4550 = vld [vmem:[#allocation2 + $0x380] sm:$0xff]
    %v4551 = vld [vmem:[#allocation2 + $0x388] sm:$0xff]
    %v4552 = vld [vmem:[#allocation2 + $0x390] sm:$0xff]
    %v4553 = vld [vmem:[#allocation2 + $0x398] sm:$0xff]
    %v4554 = vld [vmem:[#allocation2 + $0x3a0] sm:$0xff]
    %v4555 = vld [vmem:[#allocation2 + $0x3a8] sm:$0xff]
    %v4556 = vld [vmem:[#allocation2 + $0x3b0] sm:$0xff]
    %v4557 = vld [vmem:[#allocation2 + $0x3b8] sm:$0xff]
    %v4558 = vld [vmem:[#allocation2 + $0x3c0] sm:$0xff]
    %v4559 = vld [vmem:[#allocation2 + $0x3c8] sm:$0xff]
    %v4560 = vld [vmem:[#allocation2 + $0x3d0] sm:$0xff]
    %v4561 = vld [vmem:[#allocation2 + $0x3d8] sm:$0xff]
    %v4562 = vld [vmem:[#allocation2 + $0x3e0] sm:$0xff]
    %v4563 = vld [vmem:[#allocation2 + $0x3e8] sm:$0xff]
    %v4564 = vld [vmem:[#allocation2 + $0x3f0] sm:$0xff]
    %v4565 = vld [vmem:[#allocation2 + $0x3f8] sm:$0xff]
    %v4570 = vlaneseq
    %v4571 = vshrl.u32 %v4570, 7
    %v4572 = vsub.s32 0, %v4571
    %v4573 = vrot.slane %v212, %v4572
    %v4574 = vlaneseq
    %v4575 = vshrl.u32 %v4574, 7
    %v4576 = vsub.s32 4, %v4575
    %v4577 = vrot.slane %v212, %v4576
    %v4578 = vlaneseq
    %v4579 = vshrl.u32 %v4578, 7
    %v4580 = vsub.s32 0, %v4579
    %v4581 = vrot.slane %v213, %v4580
    %v4582 = vlaneseq
    %v4583 = vshrl.u32 %v4582, 7
    %v4584 = vsub.s32 4, %v4583
    %v4585 = vrot.slane %v213, %v4584
    %v4586 = vlaneseq
    %v4587 = vshrl.u32 %v4586, 7
    %v4588 = vsub.s32 0, %v4587
    %v4589 = vrot.slane %v214, %v4588
    %v4590 = vlaneseq
    %v4591 = vshrl.u32 %v4590, 7
    %v4592 = vsub.s32 4, %v4591
    %v4593 = vrot.slane %v214, %v4592
    %v4594 = vlaneseq
    %v4595 = vshrl.u32 %v4594, 7
    %v4596 = vsub.s32 0, %v4595
    %v4597 = vrot.slane %v215, %v4596
    %v4598 = vlaneseq
    %v4599 = vshrl.u32 %v4598, 7
    %v4600 = vsub.s32 4, %v4599
    %v4601 = vrot.slane %v215, %v4600
    %v4610 = vlaneseq
    %v4611 = vshrl.u32 %v4610, 7
    %v4612 = vsub.s32 0, %v4611
    %v4613 = vrot.slane %v4573, %v4612
    %v4614 = vlaneseq
    %v4615 = vshrl.u32 %v4614, 7
    %v4616 = vsub.s32 0, %v4615
    %v4617 = vrot.slane %v4577, %v4616
    %v4618 = vlaneseq
    %v4619 = vshrl.u32 %v4618, 7
    %v4620 = vsub.s32 0, %v4619
    %v4621 = vrot.slane %v4581, %v4620
    %v4622 = vlaneseq
    %v4623 = vshrl.u32 %v4622, 7
    %v4624 = vsub.s32 0, %v4623
    %v4625 = vrot.slane %v4585, %v4624
    %v4626 = vlaneseq
    %v4627 = vshrl.u32 %v4626, 7
    %v4628 = vsub.s32 0, %v4627
    %v4629 = vrot.slane %v4589, %v4628
    %v4630 = vlaneseq
    %v4631 = vshrl.u32 %v4630, 7
    %v4632 = vsub.s32 0, %v4631
    %v4633 = vrot.slane %v4593, %v4632
    %v4634 = vlaneseq
    %v4635 = vshrl.u32 %v4634, 7
    %v4636 = vsub.s32 0, %v4635
    %v4637 = vrot.slane %v4597, %v4636
    %v4638 = vlaneseq
    %v4639 = vshrl.u32 %v4638, 7
    %v4640 = vsub.s32 0, %v4639
    %v4641 = vrot.slane %v4601, %v4640
    %4642 = vmatprep.subr.bf16.mxu0 %v4439
    %4643 = vmatpush1.bf16.msra.mxu0 %v4438
    %4644 = vmatprep.subr.bf16.mxu0 %v4447
    %4645 = vmatpush1.bf16.msra.mxu0 %v4446
    %4646 = vmatprep.subr.bf16.mxu0 %v4455
    %4647 = vmatpush1.bf16.msra.mxu0 %v4454
    %4648 = vmatprep.subr.bf16.mxu0 %v4463
    %4649 = vmatpush1.bf16.msra.mxu0 %v4462
    %4650 = vmatprep.subr.bf16.mxu0 %v4471
    %4651 = vmatpush1.bf16.msra.mxu0 %v4470
    %4652 = vmatprep.subr.bf16.mxu0 %v4479
    %4653 = vmatpush1.bf16.msra.mxu0 %v4478
    %4654 = vmatprep.subr.bf16.mxu0 %v4487
    %4655 = vmatpush1.bf16.msra.mxu0 %v4486
    %4656 = vmatprep.subr.bf16.mxu0 %v4495
    %4657 = vmatpush1.bf16.msra.mxu0 %v4494
    %4658 = vmatprep.subr.bf16.mxu0 %v4503
    %4659 = vmatpush1.bf16.msra.mxu0 %v4502
    %4660 = vmatprep.subr.bf16.mxu0 %v4511
    %4661 = vmatpush1.bf16.msra.mxu0 %v4510
    %4662 = vmatprep.subr.bf16.mxu0 %v4519
    %4663 = vmatpush1.bf16.msra.mxu0 %v4518
    %4664 = vmatprep.subr.bf16.mxu0 %v4527
    %4665 = vmatpush1.bf16.msra.mxu0 %v4526
    %4666 = vmatprep.subr.bf16.mxu0 %v4535
    %4667 = vmatpush1.bf16.msra.mxu0 %v4534
    %4668 = vmatprep.subr.bf16.mxu0 %v4543
    %4669 = vmatpush1.bf16.msra.mxu0 %v4542
    %4670 = vmatprep.subr.bf16.mxu0 %v4551
    %4671 = vmatpush1.bf16.msra.mxu0 %v4550
    %4672 = vmatprep.subr.bf16.mxu0 %v4559
    %4673 = vmatpush1.bf16.msra.mxu0 %v4558
    %4674 = vmatprep.mubr.bf16.mxu0 %v4437
    %4675 = vmatmul.mubr.bf16.gmra.mrb[0].mxu0 %v4436
    %v4676 = vpop.f32.mrb[0].mxu0
    %v4677 = vadd.f32 %v4613, %v4676
    %v4678 = vpop.f32.mrb[0].mxu0
    %v4679 = vadd.f32 %v4617, %v4678
    %v4680 = vpop.f32.mrb[0].mxu0
    %v4681 = vpop.f32.mrb[0].mxu0
    %4682 = vdwg.mxu0
    %4683 = vmatprep.subr.bf16.mxu0 %v4441
    %4684 = vmatpush1.bf16.msra.mxu0 %v4440
    %4685 = vmatprep.subr.bf16.mxu0 %v4449
    %4686 = vmatpush1.bf16.msra.mxu0 %v4448
    %4687 = vmatprep.subr.bf16.mxu0 %v4457
    %4688 = vmatpush1.bf16.msra.mxu0 %v4456
    %4689 = vmatprep.subr.bf16.mxu0 %v4465
    %4690 = vmatpush1.bf16.msra.mxu0 %v4464
    %4691 = vmatprep.subr.bf16.mxu0 %v4473
    %4692 = vmatpush1.bf16.msra.mxu0 %v4472
    %4693 = vmatprep.subr.bf16.mxu0 %v4481
    %4694 = vmatpush1.bf16.msra.mxu0 %v4480
    %4695 = vmatprep.subr.bf16.mxu0 %v4489
    %4696 = vmatpush1.bf16.msra.mxu0 %v4488
    %4697 = vmatprep.subr.bf16.mxu0 %v4497
    %4698 = vmatpush1.bf16.msra.mxu0 %v4496
    %4699 = vmatprep.subr.bf16.mxu0 %v4505
    %4700 = vmatpush1.bf16.msra.mxu0 %v4504
    %4701 = vmatprep.subr.bf16.mxu0 %v4513
    %4702 = vmatpush1.bf16.msra.mxu0 %v4512
    %4703 = vmatprep.subr.bf16.mxu0 %v4521
    %4704 = vmatpush1.bf16.msra.mxu0 %v4520
    %4705 = vmatprep.subr.bf16.mxu0 %v4529
    %4706 = vmatpush1.bf16.msra.mxu0 %v4528
    %4707 = vmatprep.subr.bf16.mxu0 %v4537
    %4708 = vmatpush1.bf16.msra.mxu0 %v4536
    %4709 = vmatprep.subr.bf16.mxu0 %v4545
    %4710 = vmatpush1.bf16.msra.mxu0 %v4544
    %4711 = vmatprep.subr.bf16.mxu0 %v4553
    %4712 = vmatpush1.bf16.msra.mxu0 %v4552
    %4713 = vmatprep.subr.bf16.mxu0 %v4561
    %4714 = vmatpush1.bf16.msra.mxu0 %v4560
    %4715 = vmatprep.mubr.bf16.mxu0 %v4437
    %4716 = vmatmul.mubr.bf16.gmra.mrb[0].mxu0 %v4436
    %v4717 = vpop.f32.mrb[0].mxu0
    %v4718 = vadd.f32 %v4621, %v4717
    %v4719 = vpop.f32.mrb[0].mxu0
    %v4720 = vadd.f32 %v4625, %v4719
    %v4721 = vpop.f32.mrb[0].mxu0
    %v4722 = vpop.f32.mrb[0].mxu0
    %4723 = vdwg.mxu0
    %4724 = vmatprep.subr.bf16.mxu0 %v4443
    %4725 = vmatpush1.bf16.msra.mxu0 %v4442
    %4726 = vmatprep.subr.bf16.mxu0 %v4451
    %4727 = vmatpush1.bf16.msra.mxu0 %v4450
    %4728 = vmatprep.subr.bf16.mxu0 %v4459
    %4729 = vmatpush1.bf16.msra.mxu0 %v4458
    %4730 = vmatprep.subr.bf16.mxu0 %v4467
    %4731 = vmatpush1.bf16.msra.mxu0 %v4466
    %4732 = vmatprep.subr.bf16.mxu0 %v4475
    %4733 = vmatpush1.bf16.msra.mxu0 %v4474
    %4734 = vmatprep.subr.bf16.mxu0 %v4483
    %4735 = vmatpush1.bf16.msra.mxu0 %v4482
    %4736 = vmatprep.subr.bf16.mxu0 %v4491
    %4737 = vmatpush1.bf16.msra.mxu0 %v4490
    %4738 = vmatprep.subr.bf16.mxu0 %v4499
    %4739 = vmatpush1.bf16.msra.mxu0 %v4498
    %4740 = vmatprep.subr.bf16.mxu0 %v4507
    %4741 = vmatpush1.bf16.msra.mxu0 %v4506
    %4742 = vmatprep.subr.bf16.mxu0 %v4515
    %4743 = vmatpush1.bf16.msra.mxu0 %v4514
    %4744 = vmatprep.subr.bf16.mxu0 %v4523
    %4745 = vmatpush1.bf16.msra.mxu0 %v4522
    %4746 = vmatprep.subr.bf16.mxu0 %v4531
    %4747 = vmatpush1.bf16.msra.mxu0 %v4530
    %4748 = vmatprep.subr.bf16.mxu0 %v4539
    %4749 = vmatpush1.bf16.msra.mxu0 %v4538
    %4750 = vmatprep.subr.bf16.mxu0 %v4547
    %4751 = vmatpush1.bf16.msra.mxu0 %v4546
    %4752 = vmatprep.subr.bf16.mxu0 %v4555
    %4753 = vmatpush1.bf16.msra.mxu0 %v4554
    %4754 = vmatprep.subr.bf16.mxu0 %v4563
    %4755 = vmatpush1.bf16.msra.mxu0 %v4562
    %4756 = vmatprep.mubr.bf16.mxu0 %v4437
    %4757 = vmatmul.mubr.bf16.gmra.mrb[0].mxu0 %v4436
    %v4758 = vpop.f32.mrb[0].mxu0
    %v4759 = vadd.f32 %v4629, %v4758
    %v4760 = vpop.f32.mrb[0].mxu0
    %v4761 = vadd.f32 %v4633, %v4760
    %v4762 = vpop.f32.mrb[0].mxu0
    %v4763 = vpop.f32.mrb[0].mxu0
    %4764 = vdwg.mxu0
    %4765 = vmatprep.subr.bf16.mxu0 %v4445
    %4766 = vmatpush1.bf16.msra.mxu0 %v4444
    %4767 = vmatprep.subr.bf16.mxu0 %v4453
    %4768 = vmatpush1.bf16.msra.mxu0 %v4452
    %4769 = vmatprep.subr.bf16.mxu0 %v4461
    %4770 = vmatpush1.bf16.msra.mxu0 %v4460
    %4771 = vmatprep.subr.bf16.mxu0 %v4469
    %4772 = vmatpush1.bf16.msra.mxu0 %v4468
    %4773 = vmatprep.subr.bf16.mxu0 %v4477
    %4774 = vmatpush1.bf16.msra.mxu0 %v4476
    %4775 = vmatprep.subr.bf16.mxu0 %v4485
    %4776 = vmatpush1.bf16.msra.mxu0 %v4484
    %4777 = vmatprep.subr.bf16.mxu0 %v4493
    %4778 = vmatpush1.bf16.msra.mxu0 %v4492
    %4779 = vmatprep.subr.bf16.mxu0 %v4501
    %4780 = vmatpush1.bf16.msra.mxu0 %v4500
    %4781 = vmatprep.subr.bf16.mxu0 %v4509
    %4782 = vmatpush1.bf16.msra.mxu0 %v4508
    %4783 = vmatprep.subr.bf16.mxu0 %v4517
    %4784 = vmatpush1.bf16.msra.mxu0 %v4516
    %4785 = vmatprep.subr.bf16.mxu0 %v4525
    %4786 = vmatpush1.bf16.msra.mxu0 %v4524
    %4787 = vmatprep.subr.bf16.mxu0 %v4533
    %4788 = vmatpush1.bf16.msra.mxu0 %v4532
    %4789 = vmatprep.subr.bf16.mxu0 %v4541
    %4790 = vmatpush1.bf16.msra.mxu0 %v4540
    %4791 = vmatprep.subr.bf16.mxu0 %v4549
    %4792 = vmatpush1.bf16.msra.mxu0 %v4548
    %4793 = vmatprep.subr.bf16.mxu0 %v4557
    %4794 = vmatpush1.bf16.msra.mxu0 %v4556
    %4795 = vmatprep.subr.bf16.mxu0 %v4565
    %4796 = vmatpush1.bf16.msra.mxu0 %v4564
    %4797 = vmatprep.mubr.bf16.mxu0 %v4437
    %4798 = vmatmul.mubr.bf16.gmra.mrb[0].mxu0 %v4436
    %v4799 = vpop.f32.mrb[0].mxu0
    %v4800 = vadd.f32 %v4637, %v4799
    %v4801 = vpop.f32.mrb[0].mxu0
    %v4802 = vadd.f32 %v4641, %v4801
    %v4803 = vpop.f32.mrb[0].mxu0
    %v4804 = vpop.f32.mrb[0].mxu0
    %4805 = vdwg.mxu0
    %v4806 = vpack.c.bf16 %v4401, %v4401
    %v4807 = vpack.c.bf16 %v4402, %v4402
    %s4808 = scalar_lea.vmem [#allocation2], 1024
    %v4809 = vld [vmem:[%s4808] sm:$0xff]
    %v4810 = vld [vmem:[%s4808 + $0x8] sm:$0xff]
    %v4811 = vld [vmem:[%s4808 + $0x10] sm:$0xff]
    %v4812 = vld [vmem:[%s4808 + $0x18] sm:$0xff]
    %v4813 = vld [vmem:[%s4808 + $0x20] sm:$0xff]
    %v4814 = vld [vmem:[%s4808 + $0x28] sm:$0xff]
    %v4815 = vld [vmem:[%s4808 + $0x30] sm:$0xff]
    %v4816 = vld [vmem:[%s4808 + $0x38] sm:$0xff]
    %v4817 = vld [vmem:[%s4808 + $0x40] sm:$0xff]
    %v4818 = vld [vmem:[%s4808 + $0x48] sm:$0xff]
    %v4819 = vld [vmem:[%s4808 + $0x50] sm:$0xff]
    %v4820 = vld [vmem:[%s4808 + $0x58] sm:$0xff]
    %v4821 = vld [vmem:[%s4808 + $0x60] sm:$0xff]
    %v4822 = vld [vmem:[%s4808 + $0x68] sm:$0xff]
    %v4823 = vld [vmem:[%s4808 + $0x70] sm:$0xff]
    %v4824 = vld [vmem:[%s4808 + $0x78] sm:$0xff]
    %v4825 = vld [vmem:[%s4808 + $0x80] sm:$0xff]
    %v4826 = vld [vmem:[%s4808 + $0x88] sm:$0xff]
    %v4827 = vld [vmem:[%s4808 + $0x90] sm:$0xff]
    %v4828 = vld [vmem:[%s4808 + $0x98] sm:$0xff]
    %v4829 = vld [vmem:[%s4808 + $0xa0] sm:$0xff]
    %v4830 = vld [vmem:[%s4808 + $0xa8] sm:$0xff]
    %v4831 = vld [vmem:[%s4808 + $0xb0] sm:$0xff]
    %v4832 = vld [vmem:[%s4808 + $0xb8] sm:$0xff]
    %v4833 = vld [vmem:[%s4808 + $0xc0] sm:$0xff]
    %v4834 = vld [vmem:[%s4808 + $0xc8] sm:$0xff]
    %v4835 = vld [vmem:[%s4808 + $0xd0] sm:$0xff]
    %v4836 = vld [vmem:[%s4808 + $0xd8] sm:$0xff]
    %v4837 = vld [vmem:[%s4808 + $0xe0] sm:$0xff]
    %v4838 = vld [vmem:[%s4808 + $0xe8] sm:$0xff]
    %v4839 = vld [vmem:[%s4808 + $0xf0] sm:$0xff]
    %v4840 = vld [vmem:[%s4808 + $0xf8] sm:$0xff]
    %v4841 = vld [vmem:[%s4808 + $0x100] sm:$0xff]
    %v4842 = vld [vmem:[%s4808 + $0x108] sm:$0xff]
    %v4843 = vld [vmem:[%s4808 + $0x110] sm:$0xff]
    %v4844 = vld [vmem:[%s4808 + $0x118] sm:$0xff]
    %v4845 = vld [vmem:[%s4808 + $0x120] sm:$0xff]
    %v4846 = vld [vmem:[%s4808 + $0x128] sm:$0xff]
    %v4847 = vld [vmem:[%s4808 + $0x130] sm:$0xff]
    %v4848 = vld [vmem:[%s4808 + $0x138] sm:$0xff]
    %v4849 = vld [vmem:[%s4808 + $0x140] sm:$0xff]
    %v4850 = vld [vmem:[%s4808 + $0x148] sm:$0xff]
    %v4851 = vld [vmem:[%s4808 + $0x150] sm:$0xff]
    %v4852 = vld [vmem:[%s4808 + $0x158] sm:$0xff]
    %v4853 = vld [vmem:[%s4808 + $0x160] sm:$0xff]
    %v4854 = vld [vmem:[%s4808 + $0x168] sm:$0xff]
    %v4855 = vld [vmem:[%s4808 + $0x170] sm:$0xff]
    %v4856 = vld [vmem:[%s4808 + $0x178] sm:$0xff]
    %v4857 = vld [vmem:[%s4808 + $0x180] sm:$0xff]
    %v4858 = vld [vmem:[%s4808 + $0x188] sm:$0xff]
    %v4859 = vld [vmem:[%s4808 + $0x190] sm:$0xff]
    %v4860 = vld [vmem:[%s4808 + $0x198] sm:$0xff]
    %v4861 = vld [vmem:[%s4808 + $0x1a0] sm:$0xff]
    %v4862 = vld [vmem:[%s4808 + $0x1a8] sm:$0xff]
    %v4863 = vld [vmem:[%s4808 + $0x1b0] sm:$0xff]
    %v4864 = vld [vmem:[%s4808 + $0x1b8] sm:$0xff]
    %v4865 = vld [vmem:[%s4808 + $0x1c0] sm:$0xff]
    %v4866 = vld [vmem:[%s4808 + $0x1c8] sm:$0xff]
    %v4867 = vld [vmem:[%s4808 + $0x1d0] sm:$0xff]
    %v4868 = vld [vmem:[%s4808 + $0x1d8] sm:$0xff]
    %v4869 = vld [vmem:[%s4808 + $0x1e0] sm:$0xff]
    %v4870 = vld [vmem:[%s4808 + $0x1e8] sm:$0xff]
    %v4871 = vld [vmem:[%s4808 + $0x1f0] sm:$0xff]
    %v4872 = vld [vmem:[%s4808 + $0x1f8] sm:$0xff]
    %v4873 = vld [vmem:[%s4808 + $0x200] sm:$0xff]
    %v4874 = vld [vmem:[%s4808 + $0x208] sm:$0xff]
    %v4875 = vld [vmem:[%s4808 + $0x210] sm:$0xff]
    %v4876 = vld [vmem:[%s4808 + $0x218] sm:$0xff]
    %v4877 = vld [vmem:[%s4808 + $0x220] sm:$0xff]
    %v4878 = vld [vmem:[%s4808 + $0x228] sm:$0xff]
    %v4879 = vld [vmem:[%s4808 + $0x230] sm:$0xff]
    %v4880 = vld [vmem:[%s4808 + $0x238] sm:$0xff]
    %v4881 = vld [vmem:[%s4808 + $0x240] sm:$0xff]
    %v4882 = vld [vmem:[%s4808 + $0x248] sm:$0xff]
    %v4883 = vld [vmem:[%s4808 + $0x250] sm:$0xff]
    %v4884 = vld [vmem:[%s4808 + $0x258] sm:$0xff]
    %v4885 = vld [vmem:[%s4808 + $0x260] sm:$0xff]
    %v4886 = vld [vmem:[%s4808 + $0x268] sm:$0xff]
    %v4887 = vld [vmem:[%s4808 + $0x270] sm:$0xff]
    %v4888 = vld [vmem:[%s4808 + $0x278] sm:$0xff]
    %v4889 = vld [vmem:[%s4808 + $0x280] sm:$0xff]
    %v4890 = vld [vmem:[%s4808 + $0x288] sm:$0xff]
    %v4891 = vld [vmem:[%s4808 + $0x290] sm:$0xff]
    %v4892 = vld [vmem:[%s4808 + $0x298] sm:$0xff]
    %v4893 = vld [vmem:[%s4808 + $0x2a0] sm:$0xff]
    %v4894 = vld [vmem:[%s4808 + $0x2a8] sm:$0xff]
    %v4895 = vld [vmem:[%s4808 + $0x2b0] sm:$0xff]
    %v4896 = vld [vmem:[%s4808 + $0x2b8] sm:$0xff]
    %v4897 = vld [vmem:[%s4808 + $0x2c0] sm:$0xff]
    %v4898 = vld [vmem:[%s4808 + $0x2c8] sm:$0xff]
    %v4899 = vld [vmem:[%s4808 + $0x2d0] sm:$0xff]
    %v4900 = vld [vmem:[%s4808 + $0x2d8] sm:$0xff]
    %v4901 = vld [vmem:[%s4808 + $0x2e0] sm:$0xff]
    %v4902 = vld [vmem:[%s4808 + $0x2e8] sm:$0xff]
    %v4903 = vld [vmem:[%s4808 + $0x2f0] sm:$0xff]
    %v4904 = vld [vmem:[%s4808 + $0x2f8] sm:$0xff]
    %v4905 = vld [vmem:[%s4808 + $0x300] sm:$0xff]
    %v4906 = vld [vmem:[%s4808 + $0x308] sm:$0xff]
    %v4907 = vld [vmem:[%s4808 + $0x310] sm:$0xff]
    %v4908 = vld [vmem:[%s4808 + $0x318] sm:$0xff]
    %v4909 = vld [vmem:[%s4808 + $0x320] sm:$0xff]
    %v4910 = vld [vmem:[%s4808 + $0x328] sm:$0xff]
    %v4911 = vld [vmem:[%s4808 + $0x330] sm:$0xff]
    %v4912 = vld [vmem:[%s4808 + $0x338] sm:$0xff]
    %v4913 = vld [vmem:[%s4808 + $0x340] sm:$0xff]
    %v4914 = vld [vmem:[%s4808 + $0x348] sm:$0xff]
    %v4915 = vld [vmem:[%s4808 + $0x350] sm:$0xff]
    %v4916 = vld [vmem:[%s4808 + $0x358] sm:$0xff]
    %v4917 = vld [vmem:[%s4808 + $0x360] sm:$0xff]
    %v4918 = vld [vmem:[%s4808 + $0x368] sm:$0xff]
    %v4919 = vld [vmem:[%s4808 + $0x370] sm:$0xff]
    %v4920 = vld [vmem:[%s4808 + $0x378] sm:$0xff]
    %v4921 = vld [vmem:[%s4808 + $0x380] sm:$0xff]
    %v4922 = vld [vmem:[%s4808 + $0x388] sm:$0xff]
    %v4923 = vld [vmem:[%s4808 + $0x390] sm:$0xff]
    %v4924 = vld [vmem:[%s4808 + $0x398] sm:$0xff]
    %v4925 = vld [vmem:[%s4808 + $0x3a0] sm:$0xff]
    %v4926 = vld [vmem:[%s4808 + $0x3a8] sm:$0xff]
    %v4927 = vld [vmem:[%s4808 + $0x3b0] sm:$0xff]
    %v4928 = vld [vmem:[%s4808 + $0x3b8] sm:$0xff]
    %v4929 = vld [vmem:[%s4808 + $0x3c0] sm:$0xff]
    %v4930 = vld [vmem:[%s4808 + $0x3c8] sm:$0xff]
    %v4931 = vld [vmem:[%s4808 + $0x3d0] sm:$0xff]
    %v4932 = vld [vmem:[%s4808 + $0x3d8] sm:$0xff]
    %v4933 = vld [vmem:[%s4808 + $0x3e0] sm:$0xff]
    %v4934 = vld [vmem:[%s4808 + $0x3e8] sm:$0xff]
    %v4935 = vld [vmem:[%s4808 + $0x3f0] sm:$0xff]
    %v4936 = vld [vmem:[%s4808 + $0x3f8] sm:$0xff]
    %v4937 = vlaneseq
    %v4938 = vshrl.u32 %v4937, 7
    %v4939 = vsub.s32 1, %v4938
    %v4940 = vrot.slane %v212, %v4939
    %v4941 = vlaneseq
    %v4942 = vshrl.u32 %v4941, 7
    %v4943 = vsub.s32 5, %v4942
    %v4944 = vrot.slane %v212, %v4943
    %v4945 = vlaneseq
    %v4946 = vshrl.u32 %v4945, 7
    %v4947 = vsub.s32 1, %v4946
    %v4948 = vrot.slane %v213, %v4947
    %v4949 = vlaneseq
    %v4950 = vshrl.u32 %v4949, 7
    %v4951 = vsub.s32 5, %v4950
    %v4952 = vrot.slane %v213, %v4951
    %v4953 = vlaneseq
    %v4954 = vshrl.u32 %v4953, 7
    %v4955 = vsub.s32 1, %v4954
    %v4956 = vrot.slane %v214, %v4955
    %v4957 = vlaneseq
    %v4958 = vshrl.u32 %v4957, 7
    %v4959 = vsub.s32 5, %v4958
    %v4960 = vrot.slane %v214, %v4959
    %v4961 = vlaneseq
    %v4962 = vshrl.u32 %v4961, 7
    %v4963 = vsub.s32 1, %v4962
    %v4964 = vrot.slane %v215, %v4963
    %v4965 = vlaneseq
    %v4966 = vshrl.u32 %v4965, 7
    %v4967 = vsub.s32 5, %v4966
    %v4968 = vrot.slane %v215, %v4967
    %v4977 = vlaneseq
    %v4978 = vshrl.u32 %v4977, 7
    %v4979 = vsub.s32 1, %v4978
    %v4980 = vrot.slane %v4940, %v4979
    %v4981 = vlaneseq
    %v4982 = vshrl.u32 %v4981, 7
    %v4983 = vsub.s32 1, %v4982
    %v4984 = vrot.slane %v4944, %v4983
    %v4985 = vlaneseq
    %v4986 = vshrl.u32 %v4985, 7
    %v4987 = vsub.s32 1, %v4986
    %v4988 = vrot.slane %v4948, %v4987
    %v4989 = vlaneseq
    %v4990 = vshrl.u32 %v4989, 7
    %v4991 = vsub.s32 1, %v4990
    %v4992 = vrot.slane %v4952, %v4991
    %v4993 = vlaneseq
    %v4994 = vshrl.u32 %v4993, 7
    %v4995 = vsub.s32 1, %v4994
    %v4996 = vrot.slane %v4956, %v4995
    %v4997 = vlaneseq
    %v4998 = vshrl.u32 %v4997, 7
    %v4999 = vsub.s32 1, %v4998
    %v5000 = vrot.slane %v4960, %v4999
    %v5001 = vlaneseq
    %v5002 = vshrl.u32 %v5001, 7
    %v5003 = vsub.s32 1, %v5002
    %v5004 = vrot.slane %v4964, %v5003
    %v5005 = vlaneseq
    %v5006 = vshrl.u32 %v5005, 7
    %v5007 = vsub.s32 1, %v5006
    %v5008 = vrot.slane %v4968, %v5007
    %5009 = vmatprep.subr.bf16.mxu0 %v4810
    %5010 = vmatpush1.bf16.msra.mxu0 %v4809
    %5011 = vmatprep.subr.bf16.mxu0 %v4818
    %5012 = vmatpush1.bf16.msra.mxu0 %v4817
    %5013 = vmatprep.subr.bf16.mxu0 %v4826
    %5014 = vmatpush1.bf16.msra.mxu0 %v4825
    %5015 = vmatprep.subr.bf16.mxu0 %v4834
    %5016 = vmatpush1.bf16.msra.mxu0 %v4833
    %5017 = vmatprep.subr.bf16.mxu0 %v4842
    %5018 = vmatpush1.bf16.msra.mxu0 %v4841
    %5019 = vmatprep.subr.bf16.mxu0 %v4850
    %5020 = vmatpush1.bf16.msra.mxu0 %v4849
    %5021 = vmatprep.subr.bf16.mxu0 %v4858
    %5022 = vmatpush1.bf16.msra.mxu0 %v4857
    %5023 = vmatprep.subr.bf16.mxu0 %v4866
    %5024 = vmatpush1.bf16.msra.mxu0 %v4865
    %5025 = vmatprep.subr.bf16.mxu0 %v4874
    %5026 = vmatpush1.bf16.msra.mxu0 %v4873
    %5027 = vmatprep.subr.bf16.mxu0 %v4882
    %5028 = vmatpush1.bf16.msra.mxu0 %v4881
    %5029 = vmatprep.subr.bf16.mxu0 %v4890
    %5030 = vmatpush1.bf16.msra.mxu0 %v4889
    %5031 = vmatprep.subr.bf16.mxu0 %v4898
    %5032 = vmatpush1.bf16.msra.mxu0 %v4897
    %5033 = vmatprep.subr.bf16.mxu0 %v4906
    %5034 = vmatpush1.bf16.msra.mxu0 %v4905
    %5035 = vmatprep.subr.bf16.mxu0 %v4914
    %5036 = vmatpush1.bf16.msra.mxu0 %v4913
    %5037 = vmatprep.subr.bf16.mxu0 %v4922
    %5038 = vmatpush1.bf16.msra.mxu0 %v4921
    %5039 = vmatprep.subr.bf16.mxu0 %v4930
    %5040 = vmatpush1.bf16.msra.mxu0 %v4929
    %5041 = vmatprep.mubr.bf16.mxu0 %v4807
    %5042 = vmatmul.mubr.bf16.gmra.mrb[0].mxu0 %v4806
    %v5043 = vpop.f32.mrb[0].mxu0
    %v5044 = vadd.f32 %v4980, %v5043
    %v5045 = vpop.f32.mrb[0].mxu0
    %v5046 = vadd.f32 %v4984, %v5045
    %v5047 = vpop.f32.mrb[0].mxu0
    %v5048 = vpop.f32.mrb[0].mxu0
    %5049 = vdwg.mxu0
    %5050 = vmatprep.subr.bf16.mxu0 %v4812
    %5051 = vmatpush1.bf16.msra.mxu0 %v4811
    %5052 = vmatprep.subr.bf16.mxu0 %v4820
    %5053 = vmatpush1.bf16.msra.mxu0 %v4819
    %5054 = vmatprep.subr.bf16.mxu0 %v4828
    %5055 = vmatpush1.bf16.msra.mxu0 %v4827
    %5056 = vmatprep.subr.bf16.mxu0 %v4836
    %5057 = vmatpush1.bf16.msra.mxu0 %v4835
    %5058 = vmatprep.subr.bf16.mxu0 %v4844
    %5059 = vmatpush1.bf16.msra.mxu0 %v4843
    %5060 = vmatprep.subr.bf16.mxu0 %v4852
    %5061 = vmatpush1.bf16.msra.mxu0 %v4851
    %5062 = vmatprep.subr.bf16.mxu0 %v4860
    %5063 = vmatpush1.bf16.msra.mxu0 %v4859
    %5064 = vmatprep.subr.bf16.mxu0 %v4868
    %5065 = vmatpush1.bf16.msra.mxu0 %v4867
    %5066 = vmatprep.subr.bf16.mxu0 %v4876
    %5067 = vmatpush1.bf16.msra.mxu0 %v4875
    %5068 = vmatprep.subr.bf16.mxu0 %v4884
    %5069 = vmatpush1.bf16.msra.mxu0 %v4883
    %5070 = vmatprep.subr.bf16.mxu0 %v4892
    %5071 = vmatpush1.bf16.msra.mxu0 %v4891
    %5072 = vmatprep.subr.bf16.mxu0 %v4900
    %5073 = vmatpush1.bf16.msra.mxu0 %v4899
    %5074 = vmatprep.subr.bf16.mxu0 %v4908
    %5075 = vmatpush1.bf16.msra.mxu0 %v4907
    %5076 = vmatprep.subr.bf16.mxu0 %v4916
    %5077 = vmatpush1.bf16.msra.mxu0 %v4915
    %5078 = vmatprep.subr.bf16.mxu0 %v4924
    %5079 = vmatpush1.bf16.msra.mxu0 %v4923
    %5080 = vmatprep.subr.bf16.mxu0 %v4932
    %5081 = vmatpush1.bf16.msra.mxu0 %v4931
    %5082 = vmatprep.mubr.bf16.mxu0 %v4807
    %5083 = vmatmul.mubr.bf16.gmra.mrb[0].mxu0 %v4806
    %v5084 = vpop.f32.mrb[0].mxu0
    %v5085 = vadd.f32 %v4988, %v5084
    %v5086 = vpop.f32.mrb[0].mxu0
    %v5087 = vadd.f32 %v4992, %v5086
    %v5088 = vpop.f32.mrb[0].mxu0
    %v5089 = vpop.f32.mrb[0].mxu0
    %5090 = vdwg.mxu0
    %5091 = vmatprep.subr.bf16.mxu0 %v4814
    %5092 = vmatpush1.bf16.msra.mxu0 %v4813
    %5093 = vmatprep.subr.bf16.mxu0 %v4822
    %5094 = vmatpush1.bf16.msra.mxu0 %v4821
    %5095 = vmatprep.subr.bf16.mxu0 %v4830
    %5096 = vmatpush1.bf16.msra.mxu0 %v4829
    %5097 = vmatprep.subr.bf16.mxu0 %v4838
    %5098 = vmatpush1.bf16.msra.mxu0 %v4837
    %5099 = vmatprep.subr.bf16.mxu0 %v4846
    %5100 = vmatpush1.bf16.msra.mxu0 %v4845
    %5101 = vmatprep.subr.bf16.mxu0 %v4854
    %5102 = vmatpush1.bf16.msra.mxu0 %v4853
    %5103 = vmatprep.subr.bf16.mxu0 %v4862
    %5104 = vmatpush1.bf16.msra.mxu0 %v4861
    %5105 = vmatprep.subr.bf16.mxu0 %v4870
    %5106 = vmatpush1.bf16.msra.mxu0 %v4869
    %5107 = vmatprep.subr.bf16.mxu0 %v4878
    %5108 = vmatpush1.bf16.msra.mxu0 %v4877
    %5109 = vmatprep.subr.bf16.mxu0 %v4886
    %5110 = vmatpush1.bf16.msra.mxu0 %v4885
    %5111 = vmatprep.subr.bf16.mxu0 %v4894
    %5112 = vmatpush1.bf16.msra.mxu0 %v4893
    %5113 = vmatprep.subr.bf16.mxu0 %v4902
    %5114 = vmatpush1.bf16.msra.mxu0 %v4901
    %5115 = vmatprep.subr.bf16.mxu0 %v4910
    %5116 = vmatpush1.bf16.msra.mxu0 %v4909
    %5117 = vmatprep.subr.bf16.mxu0 %v4918
    %5118 = vmatpush1.bf16.msra.mxu0 %v4917
    %5119 = vmatprep.subr.bf16.mxu0 %v4926
    %5120 = vmatpush1.bf16.msra.mxu0 %v4925
    %5121 = vmatprep.subr.bf16.mxu0 %v4934
    %5122 = vmatpush1.bf16.msra.mxu0 %v4933
    %5123 = vmatprep.mubr.bf16.mxu0 %v4807
    %5124 = vmatmul.mubr.bf16.gmra.mrb[0].mxu0 %v4806
    %v5125 = vpop.f32.mrb[0].mxu0
    %v5126 = vadd.f32 %v4996, %v5125
    %v5127 = vpop.f32.mrb[0].mxu0
    %v5128 = vadd.f32 %v5000, %v5127
    %v5129 = vpop.f32.mrb[0].mxu0
    %v5130 = vpop.f32.mrb[0].mxu0
    %5131 = vdwg.mxu0
    %5132 = vmatprep.subr.bf16.mxu0 %v4816
    %5133 = vmatpush1.bf16.msra.mxu0 %v4815
    %5134 = vmatprep.subr.bf16.mxu0 %v4824
    %5135 = vmatpush1.bf16.msra.mxu0 %v4823
    %5136 = vmatprep.subr.bf16.mxu0 %v4832
    %5137 = vmatpush1.bf16.msra.mxu0 %v4831
    %5138 = vmatprep.subr.bf16.mxu0 %v4840
    %5139 = vmatpush1.bf16.msra.mxu0 %v4839
    %5140 = vmatprep.subr.bf16.mxu0 %v4848
    %5141 = vmatpush1.bf16.msra.mxu0 %v4847
    %5142 = vmatprep.subr.bf16.mxu0 %v4856
    %5143 = vmatpush1.bf16.msra.mxu0 %v4855
    %5144 = vmatprep.subr.bf16.mxu0 %v4864
    %5145 = vmatpush1.bf16.msra.mxu0 %v4863
    %5146 = vmatprep.subr.bf16.mxu0 %v4872
    %5147 = vmatpush1.bf16.msra.mxu0 %v4871
    %5148 = vmatprep.subr.bf16.mxu0 %v4880
    %5149 = vmatpush1.bf16.msra.mxu0 %v4879
    %5150 = vmatprep.subr.bf16.mxu0 %v4888
    %5151 = vmatpush1.bf16.msra.mxu0 %v4887
    %5152 = vmatprep.subr.bf16.mxu0 %v4896
    %5153 = vmatpush1.bf16.msra.mxu0 %v4895
    %5154 = vmatprep.subr.bf16.mxu0 %v4904
    %5155 = vmatpush1.bf16.msra.mxu0 %v4903
    %5156 = vmatprep.subr.bf16.mxu0 %v4912
    %5157 = vmatpush1.bf16.msra.mxu0 %v4911
    %5158 = vmatprep.subr.bf16.mxu0 %v4920
    %5159 = vmatpush1.bf16.msra.mxu0 %v4919
    %5160 = vmatprep.subr.bf16.mxu0 %v4928
    %5161 = vmatpush1.bf16.msra.mxu0 %v4927
    %5162 = vmatprep.subr.bf16.mxu0 %v4936
    %5163 = vmatpush1.bf16.msra.mxu0 %v4935
    %5164 = vmatprep.mubr.bf16.mxu0 %v4807
    %5165 = vmatmul.mubr.bf16.gmra.mrb[0].mxu0 %v4806
    %v5166 = vpop.f32.mrb[0].mxu0
    %v5167 = vadd.f32 %v5004, %v5166
    %v5168 = vpop.f32.mrb[0].mxu0
    %v5169 = vadd.f32 %v5008, %v5168
    %v5170 = vpop.f32.mrb[0].mxu0
    %v5171 = vpop.f32.mrb[0].mxu0
    %5172 = vdwg.mxu0
    %v5173 = vpack.c.bf16 %v4425, %v4425
    %v5174 = vpack.c.bf16 %v4426, %v4426
    %s5175 = scalar_lea.vmem [#allocation2], 2048
    %v5176 = vld [vmem:[%s5175] sm:$0xff]
    %v5177 = vld [vmem:[%s5175 + $0x8] sm:$0xff]
    %v5178 = vld [vmem:[%s5175 + $0x10] sm:$0xff]
    %v5179 = vld [vmem:[%s5175 + $0x18] sm:$0xff]
    %v5180 = vld [vmem:[%s5175 + $0x20] sm:$0xff]
    %v5181 = vld [vmem:[%s5175 + $0x28] sm:$0xff]
    %v5182 = vld [vmem:[%s5175 + $0x30] sm:$0xff]
    %v5183 = vld [vmem:[%s5175 + $0x38] sm:$0xff]
    %v5184 = vld [vmem:[%s5175 + $0x40] sm:$0xff]
    %v5185 = vld [vmem:[%s5175 + $0x48] sm:$0xff]
    %v5186 = vld [vmem:[%s5175 + $0x50] sm:$0xff]
    %v5187 = vld [vmem:[%s5175 + $0x58] sm:$0xff]
    %v5188 = vld [vmem:[%s5175 + $0x60] sm:$0xff]
    %v5189 = vld [vmem:[%s5175 + $0x68] sm:$0xff]
    %v5190 = vld [vmem:[%s5175 + $0x70] sm:$0xff]
    %v5191 = vld [vmem:[%s5175 + $0x78] sm:$0xff]
    %v5192 = vld [vmem:[%s5175 + $0x80] sm:$0xff]
    %v5193 = vld [vmem:[%s5175 + $0x88] sm:$0xff]
    %v5194 = vld [vmem:[%s5175 + $0x90] sm:$0xff]
    %v5195 = vld [vmem:[%s5175 + $0x98] sm:$0xff]
    %v5196 = vld [vmem:[%s5175 + $0xa0] sm:$0xff]
    %v5197 = vld [vmem:[%s5175 + $0xa8] sm:$0xff]
    %v5198 = vld [vmem:[%s5175 + $0xb0] sm:$0xff]
    %v5199 = vld [vmem:[%s5175 + $0xb8] sm:$0xff]
    %v5200 = vld [vmem:[%s5175 + $0xc0] sm:$0xff]
    %v5201 = vld [vmem:[%s5175 + $0xc8] sm:$0xff]
    %v5202 = vld [vmem:[%s5175 + $0xd0] sm:$0xff]
    %v5203 = vld [vmem:[%s5175 + $0xd8] sm:$0xff]
    %v5204 = vld [vmem:[%s5175 + $0xe0] sm:$0xff]
    %v5205 = vld [vmem:[%s5175 + $0xe8] sm:$0xff]
    %v5206 = vld [vmem:[%s5175 + $0xf0] sm:$0xff]
    %v5207 = vld [vmem:[%s5175 + $0xf8] sm:$0xff]
    %v5208 = vld [vmem:[%s5175 + $0x100] sm:$0xff]
    %v5209 = vld [vmem:[%s5175 + $0x108] sm:$0xff]
    %v5210 = vld [vmem:[%s5175 + $0x110] sm:$0xff]
    %v5211 = vld [vmem:[%s5175 + $0x118] sm:$0xff]
    %v5212 = vld [vmem:[%s5175 + $0x120] sm:$0xff]
    %v5213 = vld [vmem:[%s5175 + $0x128] sm:$0xff]
    %v5214 = vld [vmem:[%s5175 + $0x130] sm:$0xff]
    %v5215 = vld [vmem:[%s5175 + $0x138] sm:$0xff]
    %v5216 = vld [vmem:[%s5175 + $0x140] sm:$0xff]
    %v5217 = vld [vmem:[%s5175 + $0x148] sm:$0xff]
    %v5218 = vld [vmem:[%s5175 + $0x150] sm:$0xff]
    %v5219 = vld [vmem:[%s5175 + $0x158] sm:$0xff]
    %v5220 = vld [vmem:[%s5175 + $0x160] sm:$0xff]
    %v5221 = vld [vmem:[%s5175 + $0x168] sm:$0xff]
    %v5222 = vld [vmem:[%s5175 + $0x170] sm:$0xff]
    %v5223 = vld [vmem:[%s5175 + $0x178] sm:$0xff]
    %v5224 = vld [vmem:[%s5175 + $0x180] sm:$0xff]
    %v5225 = vld [vmem:[%s5175 + $0x188] sm:$0xff]
    %v5226 = vld [vmem:[%s5175 + $0x190] sm:$0xff]
    %v5227 = vld [vmem:[%s5175 + $0x198] sm:$0xff]
    %v5228 = vld [vmem:[%s5175 + $0x1a0] sm:$0xff]
    %v5229 = vld [vmem:[%s5175 + $0x1a8] sm:$0xff]
    %v5230 = vld [vmem:[%s5175 + $0x1b0] sm:$0xff]
    %v5231 = vld [vmem:[%s5175 + $0x1b8] sm:$0xff]
    %v5232 = vld [vmem:[%s5175 + $0x1c0] sm:$0xff]
    %v5233 = vld [vmem:[%s5175 + $0x1c8] sm:$0xff]
    %v5234 = vld [vmem:[%s5175 + $0x1d0] sm:$0xff]
    %v5235 = vld [vmem:[%s5175 + $0x1d8] sm:$0xff]
    %v5236 = vld [vmem:[%s5175 + $0x1e0] sm:$0xff]
    %v5237 = vld [vmem:[%s5175 + $0x1e8] sm:$0xff]
    %v5238 = vld [vmem:[%s5175 + $0x1f0] sm:$0xff]
    %v5239 = vld [vmem:[%s5175 + $0x1f8] sm:$0xff]
    %v5240 = vld [vmem:[%s5175 + $0x200] sm:$0xff]
    %v5241 = vld [vmem:[%s5175 + $0x208] sm:$0xff]
    %v5242 = vld [vmem:[%s5175 + $0x210] sm:$0xff]
    %v5243 = vld [vmem:[%s5175 + $0x218] sm:$0xff]
    %v5244 = vld [vmem:[%s5175 + $0x220] sm:$0xff]
    %v5245 = vld [vmem:[%s5175 + $0x228] sm:$0xff]
    %v5246 = vld [vmem:[%s5175 + $0x230] sm:$0xff]
    %v5247 = vld [vmem:[%s5175 + $0x238] sm:$0xff]
    %v5248 = vld [vmem:[%s5175 + $0x240] sm:$0xff]
    %v5249 = vld [vmem:[%s5175 + $0x248] sm:$0xff]
    %v5250 = vld [vmem:[%s5175 + $0x250] sm:$0xff]
    %v5251 = vld [vmem:[%s5175 + $0x258] sm:$0xff]
    %v5252 = vld [vmem:[%s5175 + $0x260] sm:$0xff]
    %v5253 = vld [vmem:[%s5175 + $0x268] sm:$0xff]
    %v5254 = vld [vmem:[%s5175 + $0x270] sm:$0xff]
    %v5255 = vld [vmem:[%s5175 + $0x278] sm:$0xff]
    %v5256 = vld [vmem:[%s5175 + $0x280] sm:$0xff]
    %v5257 = vld [vmem:[%s5175 + $0x288] sm:$0xff]
    %v5258 = vld [vmem:[%s5175 + $0x290] sm:$0xff]
    %v5259 = vld [vmem:[%s5175 + $0x298] sm:$0xff]
    %v5260 = vld [vmem:[%s5175 + $0x2a0] sm:$0xff]
    %v5261 = vld [vmem:[%s5175 + $0x2a8] sm:$0xff]
    %v5262 = vld [vmem:[%s5175 + $0x2b0] sm:$0xff]
    %v5263 = vld [vmem:[%s5175 + $0x2b8] sm:$0xff]
    %v5264 = vld [vmem:[%s5175 + $0x2c0] sm:$0xff]
    %v5265 = vld [vmem:[%s5175 + $0x2c8] sm:$0xff]
    %v5266 = vld [vmem:[%s5175 + $0x2d0] sm:$0xff]
    %v5267 = vld [vmem:[%s5175 + $0x2d8] sm:$0xff]
    %v5268 = vld [vmem:[%s5175 + $0x2e0] sm:$0xff]
    %v5269 = vld [vmem:[%s5175 + $0x2e8] sm:$0xff]
    %v5270 = vld [vmem:[%s5175 + $0x2f0] sm:$0xff]
    %v5271 = vld [vmem:[%s5175 + $0x2f8] sm:$0xff]
    %v5272 = vld [vmem:[%s5175 + $0x300] sm:$0xff]
    %v5273 = vld [vmem:[%s5175 + $0x308] sm:$0xff]
    %v5274 = vld [vmem:[%s5175 + $0x310] sm:$0xff]
    %v5275 = vld [vmem:[%s5175 + $0x318] sm:$0xff]
    %v5276 = vld [vmem:[%s5175 + $0x320] sm:$0xff]
    %v5277 = vld [vmem:[%s5175 + $0x328] sm:$0xff]
    %v5278 = vld [vmem:[%s5175 + $0x330] sm:$0xff]
    %v5279 = vld [vmem:[%s5175 + $0x338] sm:$0xff]
    %v5280 = vld [vmem:[%s5175 + $0x340] sm:$0xff]
    %v5281 = vld [vmem:[%s5175 + $0x348] sm:$0xff]
    %v5282 = vld [vmem:[%s5175 + $0x350] sm:$0xff]
    %v5283 = vld [vmem:[%s5175 + $0x358] sm:$0xff]
    %v5284 = vld [vmem:[%s5175 + $0x360] sm:$0xff]
    %v5285 = vld [vmem:[%s5175 + $0x368] sm:$0xff]
    %v5286 = vld [vmem:[%s5175 + $0x370] sm:$0xff]
    %v5287 = vld [vmem:[%s5175 + $0x378] sm:$0xff]
    %v5288 = vld [vmem:[%s5175 + $0x380] sm:$0xff]
    %v5289 = vld [vmem:[%s5175 + $0x388] sm:$0xff]
    %v5290 = vld [vmem:[%s5175 + $0x390] sm:$0xff]
    %v5291 = vld [vmem:[%s5175 + $0x398] sm:$0xff]
    %v5292 = vld [vmem:[%s5175 + $0x3a0] sm:$0xff]
    %v5293 = vld [vmem:[%s5175 + $0x3a8] sm:$0xff]
    %v5294 = vld [vmem:[%s5175 + $0x3b0] sm:$0xff]
    %v5295 = vld [vmem:[%s5175 + $0x3b8] sm:$0xff]
    %v5296 = vld [vmem:[%s5175 + $0x3c0] sm:$0xff]
    %v5297 = vld [vmem:[%s5175 + $0x3c8] sm:$0xff]
    %v5298 = vld [vmem:[%s5175 + $0x3d0] sm:$0xff]
    %v5299 = vld [vmem:[%s5175 + $0x3d8] sm:$0xff]
    %v5300 = vld [vmem:[%s5175 + $0x3e0] sm:$0xff]
    %v5301 = vld [vmem:[%s5175 + $0x3e8] sm:$0xff]
    %v5302 = vld [vmem:[%s5175 + $0x3f0] sm:$0xff]
    %v5303 = vld [vmem:[%s5175 + $0x3f8] sm:$0xff]
    %v5304 = vlaneseq
    %v5305 = vshrl.u32 %v5304, 7
    %v5306 = vsub.s32 2, %v5305
    %v5307 = vrot.slane %v212, %v5306
    %v5308 = vlaneseq
    %v5309 = vshrl.u32 %v5308, 7
    %v5310 = vsub.s32 6, %v5309
    %v5311 = vrot.slane %v212, %v5310
    %v5312 = vlaneseq
    %v5313 = vshrl.u32 %v5312, 7
    %v5314 = vsub.s32 2, %v5313
    %v5315 = vrot.slane %v213, %v5314
    %v5316 = vlaneseq
    %v5317 = vshrl.u32 %v5316, 7
    %v5318 = vsub.s32 6, %v5317
    %v5319 = vrot.slane %v213, %v5318
    %v5320 = vlaneseq
    %v5321 = vshrl.u32 %v5320, 7
    %v5322 = vsub.s32 2, %v5321
    %v5323 = vrot.slane %v214, %v5322
    %v5324 = vlaneseq
    %v5325 = vshrl.u32 %v5324, 7
    %v5326 = vsub.s32 6, %v5325
    %v5327 = vrot.slane %v214, %v5326
    %v5328 = vlaneseq
    %v5329 = vshrl.u32 %v5328, 7
    %v5330 = vsub.s32 2, %v5329
    %v5331 = vrot.slane %v215, %v5330
    %v5332 = vlaneseq
    %v5333 = vshrl.u32 %v5332, 7
    %v5334 = vsub.s32 6, %v5333
    %v5335 = vrot.slane %v215, %v5334
    %v5344 = vlaneseq
    %v5345 = vshrl.u32 %v5344, 7
    %v5346 = vsub.s32 2, %v5345
    %v5347 = vrot.slane %v5307, %v5346
    %v5348 = vlaneseq
    %v5349 = vshrl.u32 %v5348, 7
    %v5350 = vsub.s32 2, %v5349
    %v5351 = vrot.slane %v5311, %v5350
    %v5352 = vlaneseq
    %v5353 = vshrl.u32 %v5352, 7
    %v5354 = vsub.s32 2, %v5353
    %v5355 = vrot.slane %v5315, %v5354
    %v5356 = vlaneseq
    %v5357 = vshrl.u32 %v5356, 7
    %v5358 = vsub.s32 2, %v5357
    %v5359 = vrot.slane %v5319, %v5358
    %v5360 = vlaneseq
    %v5361 = vshrl.u32 %v5360, 7
    %v5362 = vsub.s32 2, %v5361
    %v5363 = vrot.slane %v5323, %v5362
    %v5364 = vlaneseq
    %v5365 = vshrl.u32 %v5364, 7
    %v5366 = vsub.s32 2, %v5365
    %v5367 = vrot.slane %v5327, %v5366
    %v5368 = vlaneseq
    %v5369 = vshrl.u32 %v5368, 7
    %v5370 = vsub.s32 2, %v5369
    %v5371 = vrot.slane %v5331, %v5370
    %v5372 = vlaneseq
    %v5373 = vshrl.u32 %v5372, 7
    %v5374 = vsub.s32 2, %v5373
    %v5375 = vrot.slane %v5335, %v5374
    %5376 = vmatprep.subr.bf16.mxu0 %v5177
    %5377 = vmatpush1.bf16.msra.mxu0 %v5176
    %5378 = vmatprep.subr.bf16.mxu0 %v5185
    %5379 = vmatpush1.bf16.msra.mxu0 %v5184
    %5380 = vmatprep.subr.bf16.mxu0 %v5193
    %5381 = vmatpush1.bf16.msra.mxu0 %v5192
    %5382 = vmatprep.subr.bf16.mxu0 %v5201
    %5383 = vmatpush1.bf16.msra.mxu0 %v5200
    %5384 = vmatprep.subr.bf16.mxu0 %v5209
    %5385 = vmatpush1.bf16.msra.mxu0 %v5208
    %5386 = vmatprep.subr.bf16.mxu0 %v5217
    %5387 = vmatpush1.bf16.msra.mxu0 %v5216
    %5388 = vmatprep.subr.bf16.mxu0 %v5225
    %5389 = vmatpush1.bf16.msra.mxu0 %v5224
    %5390 = vmatprep.subr.bf16.mxu0 %v5233
    %5391 = vmatpush1.bf16.msra.mxu0 %v5232
    %5392 = vmatprep.subr.bf16.mxu0 %v5241
    %5393 = vmatpush1.bf16.msra.mxu0 %v5240
    %5394 = vmatprep.subr.bf16.mxu0 %v5249
    %5395 = vmatpush1.bf16.msra.mxu0 %v5248
    %5396 = vmatprep.subr.bf16.mxu0 %v5257
    %5397 = vmatpush1.bf16.msra.mxu0 %v5256
    %5398 = vmatprep.subr.bf16.mxu0 %v5265
    %5399 = vmatpush1.bf16.msra.mxu0 %v5264
    %5400 = vmatprep.subr.bf16.mxu0 %v5273
    %5401 = vmatpush1.bf16.msra.mxu0 %v5272
    %5402 = vmatprep.subr.bf16.mxu0 %v5281
    %5403 = vmatpush1.bf16.msra.mxu0 %v5280
    %5404 = vmatprep.subr.bf16.mxu0 %v5289
    %5405 = vmatpush1.bf16.msra.mxu0 %v5288
    %5406 = vmatprep.subr.bf16.mxu0 %v5297
    %5407 = vmatpush1.bf16.msra.mxu0 %v5296
    %5408 = vmatprep.mubr.bf16.mxu0 %v5174
    %5409 = vmatmul.mubr.bf16.gmra.mrb[0].mxu0 %v5173
    %v5410 = vpop.f32.mrb[0].mxu0
    %v5411 = vadd.f32 %v5347, %v5410
    %v5412 = vpop.f32.mrb[0].mxu0
    %v5413 = vadd.f32 %v5351, %v5412
    %v5414 = vpop.f32.mrb[0].mxu0
    %v5415 = vpop.f32.mrb[0].mxu0
    %5416 = vdwg.mxu0
    %5417 = vmatprep.subr.bf16.mxu0 %v5179
    %5418 = vmatpush1.bf16.msra.mxu0 %v5178
    %5419 = vmatprep.subr.bf16.mxu0 %v5187
    %5420 = vmatpush1.bf16.msra.mxu0 %v5186
    %5421 = vmatprep.subr.bf16.mxu0 %v5195
    %5422 = vmatpush1.bf16.msra.mxu0 %v5194
    %5423 = vmatprep.subr.bf16.mxu0 %v5203
    %5424 = vmatpush1.bf16.msra.mxu0 %v5202
    %5425 = vmatprep.subr.bf16.mxu0 %v5211
    %5426 = vmatpush1.bf16.msra.mxu0 %v5210
    %5427 = vmatprep.subr.bf16.mxu0 %v5219
    %5428 = vmatpush1.bf16.msra.mxu0 %v5218
    %5429 = vmatprep.subr.bf16.mxu0 %v5227
    %5430 = vmatpush1.bf16.msra.mxu0 %v5226
    %5431 = vmatprep.subr.bf16.mxu0 %v5235
    %5432 = vmatpush1.bf16.msra.mxu0 %v5234
    %5433 = vmatprep.subr.bf16.mxu0 %v5243
    %5434 = vmatpush1.bf16.msra.mxu0 %v5242
    %5435 = vmatprep.subr.bf16.mxu0 %v5251
    %5436 = vmatpush1.bf16.msra.mxu0 %v5250
    %5437 = vmatprep.subr.bf16.mxu0 %v5259
    %5438 = vmatpush1.bf16.msra.mxu0 %v5258
    %5439 = vmatprep.subr.bf16.mxu0 %v5267
    %5440 = vmatpush1.bf16.msra.mxu0 %v5266
    %5441 = vmatprep.subr.bf16.mxu0 %v5275
    %5442 = vmatpush1.bf16.msra.mxu0 %v5274
    %5443 = vmatprep.subr.bf16.mxu0 %v5283
    %5444 = vmatpush1.bf16.msra.mxu0 %v5282
    %5445 = vmatprep.subr.bf16.mxu0 %v5291
    %5446 = vmatpush1.bf16.msra.mxu0 %v5290
    %5447 = vmatprep.subr.bf16.mxu0 %v5299
    %5448 = vmatpush1.bf16.msra.mxu0 %v5298
    %5449 = vmatprep.mubr.bf16.mxu0 %v5174
    %5450 = vmatmul.mubr.bf16.gmra.mrb[0].mxu0 %v5173
    %v5451 = vpop.f32.mrb[0].mxu0
    %v5452 = vadd.f32 %v5355, %v5451
    %v5453 = vpop.f32.mrb[0].mxu0
    %v5454 = vadd.f32 %v5359, %v5453
    %v5455 = vpop.f32.mrb[0].mxu0
    %v5456 = vpop.f32.mrb[0].mxu0
    %5457 = vdwg.mxu0
    %5458 = vmatprep.subr.bf16.mxu0 %v5181
    %5459 = vmatpush1.bf16.msra.mxu0 %v5180
    %5460 = vmatprep.subr.bf16.mxu0 %v5189
    %5461 = vmatpush1.bf16.msra.mxu0 %v5188
    %5462 = vmatprep.subr.bf16.mxu0 %v5197
    %5463 = vmatpush1.bf16.msra.mxu0 %v5196
    %5464 = vmatprep.subr.bf16.mxu0 %v5205
    %5465 = vmatpush1.bf16.msra.mxu0 %v5204
    %5466 = vmatprep.subr.bf16.mxu0 %v5213
    %5467 = vmatpush1.bf16.msra.mxu0 %v5212
    %5468 = vmatprep.subr.bf16.mxu0 %v5221
    %5469 = vmatpush1.bf16.msra.mxu0 %v5220
    %5470 = vmatprep.subr.bf16.mxu0 %v5229
    %5471 = vmatpush1.bf16.msra.mxu0 %v5228
    %5472 = vmatprep.subr.bf16.mxu0 %v5237
    %5473 = vmatpush1.bf16.msra.mxu0 %v5236
    %5474 = vmatprep.subr.bf16.mxu0 %v5245
    %5475 = vmatpush1.bf16.msra.mxu0 %v5244
    %5476 = vmatprep.subr.bf16.mxu0 %v5253
    %5477 = vmatpush1.bf16.msra.mxu0 %v5252
    %5478 = vmatprep.subr.bf16.mxu0 %v5261
    %5479 = vmatpush1.bf16.msra.mxu0 %v5260
    %5480 = vmatprep.subr.bf16.mxu0 %v5269
    %5481 = vmatpush1.bf16.msra.mxu0 %v5268
    %5482 = vmatprep.subr.bf16.mxu0 %v5277
    %5483 = vmatpush1.bf16.msra.mxu0 %v5276
    %5484 = vmatprep.subr.bf16.mxu0 %v5285
    %5485 = vmatpush1.bf16.msra.mxu0 %v5284
    %5486 = vmatprep.subr.bf16.mxu0 %v5293
    %5487 = vmatpush1.bf16.msra.mxu0 %v5292
    %5488 = vmatprep.subr.bf16.mxu0 %v5301
    %5489 = vmatpush1.bf16.msra.mxu0 %v5300
    %5490 = vmatprep.mubr.bf16.mxu0 %v5174
    %5491 = vmatmul.mubr.bf16.gmra.mrb[0].mxu0 %v5173
    %v5492 = vpop.f32.mrb[0].mxu0
    %v5493 = vadd.f32 %v5363, %v5492
    %v5494 = vpop.f32.mrb[0].mxu0
    %v5495 = vadd.f32 %v5367, %v5494
    %v5496 = vpop.f32.mrb[0].mxu0
    %v5497 = vpop.f32.mrb[0].mxu0
    %5498 = vdwg.mxu0
    %5499 = vmatprep.subr.bf16.mxu0 %v5183
    %5500 = vmatpush1.bf16.msra.mxu0 %v5182
    %5501 = vmatprep.subr.bf16.mxu0 %v5191
    %5502 = vmatpush1.bf16.msra.mxu0 %v5190
    %5503 = vmatprep.subr.bf16.mxu0 %v5199
    %5504 = vmatpush1.bf16.msra.mxu0 %v5198
    %5505 = vmatprep.subr.bf16.mxu0 %v5207
    %5506 = vmatpush1.bf16.msra.mxu0 %v5206
    %5507 = vmatprep.subr.bf16.mxu0 %v5215
    %5508 = vmatpush1.bf16.msra.mxu0 %v5214
    %5509 = vmatprep.subr.bf16.mxu0 %v5223
    %5510 = vmatpush1.bf16.msra.mxu0 %v5222
    %5511 = vmatprep.subr.bf16.mxu0 %v5231
    %5512 = vmatpush1.bf16.msra.mxu0 %v5230
    %5513 = vmatprep.subr.bf16.mxu0 %v5239
    %5514 = vmatpush1.bf16.msra.mxu0 %v5238
    %5515 = vmatprep.subr.bf16.mxu0 %v5247
    %5516 = vmatpush1.bf16.msra.mxu0 %v5246
    %5517 = vmatprep.subr.bf16.mxu0 %v5255
    %5518 = vmatpush1.bf16.msra.mxu0 %v5254
    %5519 = vmatprep.subr.bf16.mxu0 %v5263
    %5520 = vmatpush1.bf16.msra.mxu0 %v5262
    %5521 = vmatprep.subr.bf16.mxu0 %v5271
    %5522 = vmatpush1.bf16.msra.mxu0 %v5270
    %5523 = vmatprep.subr.bf16.mxu0 %v5279
    %5524 = vmatpush1.bf16.msra.mxu0 %v5278
    %5525 = vmatprep.subr.bf16.mxu0 %v5287
    %5526 = vmatpush1.bf16.msra.mxu0 %v5286
    %5527 = vmatprep.subr.bf16.mxu0 %v5295
    %5528 = vmatpush1.bf16.msra.mxu0 %v5294
    %5529 = vmatprep.subr.bf16.mxu0 %v5303
    %5530 = vmatpush1.bf16.msra.mxu0 %v5302
    %5531 = vmatprep.mubr.bf16.mxu0 %v5174
    %5532 = vmatmul.mubr.bf16.gmra.mrb[0].mxu0 %v5173
    %v5533 = vpop.f32.mrb[0].mxu0
    %v5534 = vadd.f32 %v5371, %v5533
    %v5535 = vpop.f32.mrb[0].mxu0
    %v5536 = vadd.f32 %v5375, %v5535
    %v5537 = vpop.f32.mrb[0].mxu0
    %v5538 = vpop.f32.mrb[0].mxu0
    %5539 = vdwg.mxu0
    %v5540 = vld [vmem:[#allocation3] sm:$0xff]
    %v5541 = vld [vmem:[#allocation3 + $0x8] sm:$0xff]
    %v5542 = vld [vmem:[#allocation3 + $0x10] sm:$0xff]
    %v5543 = vld [vmem:[#allocation3 + $0x18] sm:$0xff]
    %v5544 = vld [vmem:[#allocation3 + $0x20] sm:$0xff]
    %v5545 = vld [vmem:[#allocation3 + $0x28] sm:$0xff]
    %v5546 = vld [vmem:[#allocation3 + $0x30] sm:$0xff]
    %v5547 = vld [vmem:[#allocation3 + $0x38] sm:$0xff]
    %v5548 = vld [vmem:[#allocation3 + $0x40] sm:$0xff]
    %v5549 = vld [vmem:[#allocation3 + $0x48] sm:$0xff]
    %v5550 = vld [vmem:[#allocation3 + $0x50] sm:$0xff]
    %v5551 = vld [vmem:[#allocation3 + $0x58] sm:$0xff]
    %v5552 = vld [vmem:[#allocation3 + $0x60] sm:$0xff]
    %v5553 = vld [vmem:[#allocation3 + $0x68] sm:$0xff]
    %v5554 = vld [vmem:[#allocation3 + $0x70] sm:$0xff]
    %v5555 = vld [vmem:[#allocation3 + $0x78] sm:$0xff]
    %v5556 = vld [vmem:[#allocation3 + $0x80] sm:$0xff]
    %v5557 = vld [vmem:[#allocation3 + $0x88] sm:$0xff]
    %v5558 = vld [vmem:[#allocation3 + $0x90] sm:$0xff]
    %v5559 = vld [vmem:[#allocation3 + $0x98] sm:$0xff]
    %v5560 = vld [vmem:[#allocation3 + $0xa0] sm:$0xff]
    %v5561 = vld [vmem:[#allocation3 + $0xa8] sm:$0xff]
    %v5562 = vld [vmem:[#allocation3 + $0xb0] sm:$0xff]
    %v5563 = vld [vmem:[#allocation3 + $0xb8] sm:$0xff]
    %v5564 = vld [vmem:[#allocation3 + $0xc0] sm:$0xff]
    %v5565 = vld [vmem:[#allocation3 + $0xc8] sm:$0xff]
    %v5566 = vld [vmem:[#allocation3 + $0xd0] sm:$0xff]
    %v5567 = vld [vmem:[#allocation3 + $0xd8] sm:$0xff]
    %v5568 = vld [vmem:[#allocation3 + $0xe0] sm:$0xff]
    %v5569 = vld [vmem:[#allocation3 + $0xe8] sm:$0xff]
    %v5570 = vld [vmem:[#allocation3 + $0xf0] sm:$0xff]
    %v5571 = vld [vmem:[#allocation3 + $0xf8] sm:$0xff]
    %v5572 = vld [vmem:[#allocation3 + $0x100] sm:$0xff]
    %v5573 = vld [vmem:[#allocation3 + $0x108] sm:$0xff]
    %v5574 = vld [vmem:[#allocation3 + $0x110] sm:$0xff]
    %v5575 = vld [vmem:[#allocation3 + $0x118] sm:$0xff]
    %v5576 = vld [vmem:[#allocation3 + $0x120] sm:$0xff]
    %v5577 = vld [vmem:[#allocation3 + $0x128] sm:$0xff]
    %v5578 = vld [vmem:[#allocation3 + $0x130] sm:$0xff]
    %v5579 = vld [vmem:[#allocation3 + $0x138] sm:$0xff]
    %v5580 = vld [vmem:[#allocation3 + $0x140] sm:$0xff]
    %v5581 = vld [vmem:[#allocation3 + $0x148] sm:$0xff]
    %v5582 = vld [vmem:[#allocation3 + $0x150] sm:$0xff]
    %v5583 = vld [vmem:[#allocation3 + $0x158] sm:$0xff]
    %v5584 = vld [vmem:[#allocation3 + $0x160] sm:$0xff]
    %v5585 = vld [vmem:[#allocation3 + $0x168] sm:$0xff]
    %v5586 = vld [vmem:[#allocation3 + $0x170] sm:$0xff]
    %v5587 = vld [vmem:[#allocation3 + $0x178] sm:$0xff]
    %v5588 = vld [vmem:[#allocation3 + $0x180] sm:$0xff]
    %v5589 = vld [vmem:[#allocation3 + $0x188] sm:$0xff]
    %v5590 = vld [vmem:[#allocation3 + $0x190] sm:$0xff]
    %v5591 = vld [vmem:[#allocation3 + $0x198] sm:$0xff]
    %v5592 = vld [vmem:[#allocation3 + $0x1a0] sm:$0xff]
    %v5593 = vld [vmem:[#allocation3 + $0x1a8] sm:$0xff]
    %v5594 = vld [vmem:[#allocation3 + $0x1b0] sm:$0xff]
    %v5595 = vld [vmem:[#allocation3 + $0x1b8] sm:$0xff]
    %v5596 = vld [vmem:[#allocation3 + $0x1c0] sm:$0xff]
    %v5597 = vld [vmem:[#allocation3 + $0x1c8] sm:$0xff]
    %v5598 = vld [vmem:[#allocation3 + $0x1d0] sm:$0xff]
    %v5599 = vld [vmem:[#allocation3 + $0x1d8] sm:$0xff]
    %v5600 = vld [vmem:[#allocation3 + $0x1e0] sm:$0xff]
    %v5601 = vld [vmem:[#allocation3 + $0x1e8] sm:$0xff]
    %v5602 = vld [vmem:[#allocation3 + $0x1f0] sm:$0xff]
    %v5603 = vld [vmem:[#allocation3 + $0x1f8] sm:$0xff]
    %v5604 = vld [vmem:[#allocation3 + $0x200] sm:$0xff]
    %v5605 = vld [vmem:[#allocation3 + $0x208] sm:$0xff]
    %v5606 = vld [vmem:[#allocation3 + $0x210] sm:$0xff]
    %v5607 = vld [vmem:[#allocation3 + $0x218] sm:$0xff]
    %v5608 = vld [vmem:[#allocation3 + $0x220] sm:$0xff]
    %v5609 = vld [vmem:[#allocation3 + $0x228] sm:$0xff]
    %v5610 = vld [vmem:[#allocation3 + $0x230] sm:$0xff]
    %v5611 = vld [vmem:[#allocation3 + $0x238] sm:$0xff]
    %v5612 = vld [vmem:[#allocation3 + $0x240] sm:$0xff]
    %v5613 = vld [vmem:[#allocation3 + $0x248] sm:$0xff]
    %v5614 = vld [vmem:[#allocation3 + $0x250] sm:$0xff]
    %v5615 = vld [vmem:[#allocation3 + $0x258] sm:$0xff]
    %v5616 = vld [vmem:[#allocation3 + $0x260] sm:$0xff]
    %v5617 = vld [vmem:[#allocation3 + $0x268] sm:$0xff]
    %v5618 = vld [vmem:[#allocation3 + $0x270] sm:$0xff]
    %v5619 = vld [vmem:[#allocation3 + $0x278] sm:$0xff]
    %v5620 = vld [vmem:[#allocation3 + $0x280] sm:$0xff]
    %v5621 = vld [vmem:[#allocation3 + $0x288] sm:$0xff]
    %v5622 = vld [vmem:[#allocation3 + $0x290] sm:$0xff]
    %v5623 = vld [vmem:[#allocation3 + $0x298] sm:$0xff]
    %v5624 = vld [vmem:[#allocation3 + $0x2a0] sm:$0xff]
    %v5625 = vld [vmem:[#allocation3 + $0x2a8] sm:$0xff]
    %v5626 = vld [vmem:[#allocation3 + $0x2b0] sm:$0xff]
    %v5627 = vld [vmem:[#allocation3 + $0x2b8] sm:$0xff]
    %v5628 = vld [vmem:[#allocation3 + $0x2c0] sm:$0xff]
    %v5629 = vld [vmem:[#allocation3 + $0x2c8] sm:$0xff]
    %v5630 = vld [vmem:[#allocation3 + $0x2d0] sm:$0xff]
    %v5631 = vld [vmem:[#allocation3 + $0x2d8] sm:$0xff]
    %v5632 = vld [vmem:[#allocation3 + $0x2e0] sm:$0xff]
    %v5633 = vld [vmem:[#allocation3 + $0x2e8] sm:$0xff]
    %v5634 = vld [vmem:[#allocation3 + $0x2f0] sm:$0xff]
    %v5635 = vld [vmem:[#allocation3 + $0x2f8] sm:$0xff]
    %v5636 = vld [vmem:[#allocation3 + $0x300] sm:$0xff]
    %v5637 = vld [vmem:[#allocation3 + $0x308] sm:$0xff]
    %v5638 = vld [vmem:[#allocation3 + $0x310] sm:$0xff]
    %v5639 = vld [vmem:[#allocation3 + $0x318] sm:$0xff]
    %v5640 = vld [vmem:[#allocation3 + $0x320] sm:$0xff]
    %v5641 = vld [vmem:[#allocation3 + $0x328] sm:$0xff]
    %v5642 = vld [vmem:[#allocation3 + $0x330] sm:$0xff]
    %v5643 = vld [vmem:[#allocation3 + $0x338] sm:$0xff]
    %v5644 = vld [vmem:[#allocation3 + $0x340] sm:$0xff]
    %v5645 = vld [vmem:[#allocation3 + $0x348] sm:$0xff]
    %v5646 = vld [vmem:[#allocation3 + $0x350] sm:$0xff]
    %v5647 = vld [vmem:[#allocation3 + $0x358] sm:$0xff]
    %v5648 = vld [vmem:[#allocation3 + $0x360] sm:$0xff]
    %v5649 = vld [vmem:[#allocation3 + $0x368] sm:$0xff]
    %v5650 = vld [vmem:[#allocation3 + $0x370] sm:$0xff]
    %v5651 = vld [vmem:[#allocation3 + $0x378] sm:$0xff]
    %v5652 = vld [vmem:[#allocation3 + $0x380] sm:$0xff]
    %v5653 = vld [vmem:[#allocation3 + $0x388] sm:$0xff]
    %v5654 = vld [vmem:[#allocation3 + $0x390] sm:$0xff]
    %v5655 = vld [vmem:[#allocation3 + $0x398] sm:$0xff]
    %v5656 = vld [vmem:[#allocation3 + $0x3a0] sm:$0xff]
    %v5657 = vld [vmem:[#allocation3 + $0x3a8] sm:$0xff]
    %v5658 = vld [vmem:[#allocation3 + $0x3b0] sm:$0xff]
    %v5659 = vld [vmem:[#allocation3 + $0x3b8] sm:$0xff]
    %v5660 = vld [vmem:[#allocation3 + $0x3c0] sm:$0xff]
    %v5661 = vld [vmem:[#allocation3 + $0x3c8] sm:$0xff]
    %v5662 = vld [vmem:[#allocation3 + $0x3d0] sm:$0xff]
    %v5663 = vld [vmem:[#allocation3 + $0x3d8] sm:$0xff]
    %v5664 = vld [vmem:[#allocation3 + $0x3e0] sm:$0xff]
    %v5665 = vld [vmem:[#allocation3 + $0x3e8] sm:$0xff]
    %v5666 = vld [vmem:[#allocation3 + $0x3f0] sm:$0xff]
    %v5667 = vld [vmem:[#allocation3 + $0x3f8] sm:$0xff]
    %v5668 = vld [vmem:[#allocation3 + $0x400] sm:$0xff]
    %v5669 = vld [vmem:[#allocation3 + $0x408] sm:$0xff]
    %v5670 = vld [vmem:[#allocation3 + $0x410] sm:$0xff]
    %v5671 = vld [vmem:[#allocation3 + $0x418] sm:$0xff]
    %v5672 = vld [vmem:[#allocation3 + $0x420] sm:$0xff]
    %v5673 = vld [vmem:[#allocation3 + $0x428] sm:$0xff]
    %v5674 = vld [vmem:[#allocation3 + $0x430] sm:$0xff]
    %v5675 = vld [vmem:[#allocation3 + $0x438] sm:$0xff]
    %v5676 = vld [vmem:[#allocation3 + $0x440] sm:$0xff]
    %v5677 = vld [vmem:[#allocation3 + $0x448] sm:$0xff]
    %v5678 = vld [vmem:[#allocation3 + $0x450] sm:$0xff]
    %v5679 = vld [vmem:[#allocation3 + $0x458] sm:$0xff]
    %v5680 = vld [vmem:[#allocation3 + $0x460] sm:$0xff]
    %v5681 = vld [vmem:[#allocation3 + $0x468] sm:$0xff]
    %v5682 = vld [vmem:[#allocation3 + $0x470] sm:$0xff]
    %v5683 = vld [vmem:[#allocation3 + $0x478] sm:$0xff]
    %v5684 = vld [vmem:[#allocation3 + $0x480] sm:$0xff]
    %v5685 = vld [vmem:[#allocation3 + $0x488] sm:$0xff]
    %v5686 = vld [vmem:[#allocation3 + $0x490] sm:$0xff]
    %v5687 = vld [vmem:[#allocation3 + $0x498] sm:$0xff]
    %v5688 = vld [vmem:[#allocation3 + $0x4a0] sm:$0xff]
    %v5689 = vld [vmem:[#allocation3 + $0x4a8] sm:$0xff]
    %v5690 = vld [vmem:[#allocation3 + $0x4b0] sm:$0xff]
    %v5691 = vld [vmem:[#allocation3 + $0x4b8] sm:$0xff]
    %v5692 = vld [vmem:[#allocation3 + $0x4c0] sm:$0xff]
    %v5693 = vld [vmem:[#allocation3 + $0x4c8] sm:$0xff]
    %v5694 = vld [vmem:[#allocation3 + $0x4d0] sm:$0xff]
    %v5695 = vld [vmem:[#allocation3 + $0x4d8] sm:$0xff]
    %v5696 = vld [vmem:[#allocation3 + $0x4e0] sm:$0xff]
    %v5697 = vld [vmem:[#allocation3 + $0x4e8] sm:$0xff]
    %v5698 = vld [vmem:[#allocation3 + $0x4f0] sm:$0xff]
    %v5699 = vld [vmem:[#allocation3 + $0x4f8] sm:$0xff]
    %v5700 = vld [vmem:[#allocation3 + $0x500] sm:$0xff]
    %v5701 = vld [vmem:[#allocation3 + $0x508] sm:$0xff]
    %v5702 = vld [vmem:[#allocation3 + $0x510] sm:$0xff]
    %v5703 = vld [vmem:[#allocation3 + $0x518] sm:$0xff]
    %v5704 = vld [vmem:[#allocation3 + $0x520] sm:$0xff]
    %v5705 = vld [vmem:[#allocation3 + $0x528] sm:$0xff]
    %v5706 = vld [vmem:[#allocation3 + $0x530] sm:$0xff]
    %v5707 = vld [vmem:[#allocation3 + $0x538] sm:$0xff]
    %v5708 = vld [vmem:[#allocation3 + $0x540] sm:$0xff]
    %v5709 = vld [vmem:[#allocation3 + $0x548] sm:$0xff]
    %v5710 = vld [vmem:[#allocation3 + $0x550] sm:$0xff]
    %v5711 = vld [vmem:[#allocation3 + $0x558] sm:$0xff]
    %v5712 = vld [vmem:[#allocation3 + $0x560] sm:$0xff]
    %v5713 = vld [vmem:[#allocation3 + $0x568] sm:$0xff]
    %v5714 = vld [vmem:[#allocation3 + $0x570] sm:$0xff]
    %v5715 = vld [vmem:[#allocation3 + $0x578] sm:$0xff]
    %v5716 = vld [vmem:[#allocation3 + $0x580] sm:$0xff]
    %v5717 = vld [vmem:[#allocation3 + $0x588] sm:$0xff]
    %v5718 = vld [vmem:[#allocation3 + $0x590] sm:$0xff]
    %v5719 = vld [vmem:[#allocation3 + $0x598] sm:$0xff]
    %v5720 = vld [vmem:[#allocation3 + $0x5a0] sm:$0xff]
    %v5721 = vld [vmem:[#allocation3 + $0x5a8] sm:$0xff]
    %v5722 = vld [vmem:[#allocation3 + $0x5b0] sm:$0xff]
    %v5723 = vld [vmem:[#allocation3 + $0x5b8] sm:$0xff]
    %v5724 = vld [vmem:[#allocation3 + $0x5c0] sm:$0xff]
    %v5725 = vld [vmem:[#allocation3 + $0x5c8] sm:$0xff]
    %v5726 = vld [vmem:[#allocation3 + $0x5d0] sm:$0xff]
    %v5727 = vld [vmem:[#allocation3 + $0x5d8] sm:$0xff]
    %v5728 = vld [vmem:[#allocation3 + $0x5e0] sm:$0xff]
    %v5729 = vld [vmem:[#allocation3 + $0x5e8] sm:$0xff]
    %v5730 = vld [vmem:[#allocation3 + $0x5f0] sm:$0xff]
    %v5731 = vld [vmem:[#allocation3 + $0x5f8] sm:$0xff]
    %v5736 = vrot.slane %v4759, 4
    %v5737 = vrot.slane %v4761, 4
    %v5738 = vrot.slane %v4800, 4
    %v5739 = vrot.slane %v4802, 4
    %v5748 = vrot.slane %v5044, 6
    %v5749 = vrot.slane %v5046, 6
    %v5750 = vrot.slane %v5085, 6
    %v5751 = vrot.slane %v5087, 6
    %v5760 = vrot.slane %v5126, 2
    %v5761 = vrot.slane %v5128, 2
    %v5762 = vrot.slane %v5167, 2
    %v5763 = vrot.slane %v5169, 2
    %v5772 = vrot.slane %v5411, 4
    %v5773 = vrot.slane %v5413, 4
    %v5774 = vrot.slane %v5452, 4
    %v5775 = vrot.slane %v5454, 4
    %v5780 = vsel %vm1333, %v4677, %v5736
    %v5781 = vsel %vm1333, %v4679, %v5737
    %v5782 = vsel %vm1333, %v4718, %v5738
    %v5783 = vsel %vm1333, %v4720, %v5739
    %v5784 = vsel %vm1338, %v5780, %v5748
    %v5785 = vsel %vm1338, %v5781, %v5749
    %v5786 = vsel %vm1338, %v5782, %v5750
    %v5787 = vsel %vm1338, %v5783, %v5751
    %v5788 = vsel %vm1343, %v5784, %v5760
    %v5789 = vsel %vm1343, %v5785, %v5761
    %v5790 = vsel %vm1343, %v5786, %v5762
    %v5791 = vsel %vm1343, %v5787, %v5763
    %v5792 = vsel %vm322, %v5788, %v5772
    %v5793 = vsel %vm322, %v5789, %v5773
    %v5794 = vsel %vm322, %v5790, %v5774
    %v5795 = vsel %vm322, %v5791, %v5775
    %v5796 = vsel %vm1352, %v5792, %v5493
    %v5797 = vsel %vm1352, %v5793, %v5495
    %v5798 = vsel %vm1352, %v5794, %v5534
    %v5799 = vsel %vm1352, %v5795, %v5536
    %5800 = vmatprep.subr.bf16.mxu0 %v5541
    %5801 = vmatpush1.bf16.msra.mxu0 %v5540
    %5802 = vmatprep.subr.bf16.mxu0 %v5545
    %5803 = vmatpush1.bf16.msra.mxu0 %v5544
    %5804 = vmatprep.subr.bf16.mxu0 %v5549
    %5805 = vmatpush1.bf16.msra.mxu0 %v5548
    %5806 = vmatprep.subr.bf16.mxu0 %v5553
    %5807 = vmatpush1.bf16.msra.mxu0 %v5552
    %5808 = vmatprep.subr.bf16.mxu0 %v5557
    %5809 = vmatpush1.bf16.msra.mxu0 %v5556
    %5810 = vmatprep.subr.bf16.mxu0 %v5561
    %5811 = vmatpush1.bf16.msra.mxu0 %v5560
    %5812 = vmatprep.subr.bf16.mxu0 %v5565
    %5813 = vmatpush1.bf16.msra.mxu0 %v5564
    %5814 = vmatprep.subr.bf16.mxu0 %v5569
    %5815 = vmatpush1.bf16.msra.mxu0 %v5568
    %5816 = vmatprep.subr.bf16.mxu0 %v5573
    %5817 = vmatpush1.bf16.msra.mxu0 %v5572
    %5818 = vmatprep.subr.bf16.mxu0 %v5577
    %5819 = vmatpush1.bf16.msra.mxu0 %v5576
    %5820 = vmatprep.subr.bf16.mxu0 %v5581
    %5821 = vmatpush1.bf16.msra.mxu0 %v5580
    %5822 = vmatprep.subr.bf16.mxu0 %v5585
    %5823 = vmatpush1.bf16.msra.mxu0 %v5584
    %5824 = vmatprep.subr.bf16.mxu0 %v5589
    %5825 = vmatpush1.bf16.msra.mxu0 %v5588
    %5826 = vmatprep.subr.bf16.mxu0 %v5593
    %5827 = vmatpush1.bf16.msra.mxu0 %v5592
    %5828 = vmatprep.subr.bf16.mxu0 %v5597
    %5829 = vmatpush1.bf16.msra.mxu0 %v5596
    %5830 = vmatprep.subr.bf16.mxu0 %v5601
    %5831 = vmatpush1.bf16.msra.mxu0 %v5600
    %5832 = vmatprep.mubr.bf16.mxu0 %v1358
    %5833 = vmatmul.mubr.bf16.gmra.mrb[0].mxu0 %v1357
    %v5834 = vpop.f32.mrb[0].mxu0
    %v5835 = vadd.f32 0.0, %v5834
    %v5836 = vpop.f32.mrb[0].mxu0
    %v5837 = vadd.f32 0.0, %v5836
    %v5838 = vpop.f32.mrb[0].mxu0
    %v5839 = vpop.f32.mrb[0].mxu0
    %5840 = vdwg.mxu0
    %5841 = vmatprep.subr.bf16.mxu0 %v5605
    %5842 = vmatpush1.bf16.msra.mxu0 %v5604
    %5843 = vmatprep.subr.bf16.mxu0 %v5609
    %5844 = vmatpush1.bf16.msra.mxu0 %v5608
    %5845 = vmatprep.subr.bf16.mxu0 %v5613
    %5846 = vmatpush1.bf16.msra.mxu0 %v5612
    %5847 = vmatprep.subr.bf16.mxu0 %v5617
    %5848 = vmatpush1.bf16.msra.mxu0 %v5616
    %5849 = vmatprep.subr.bf16.mxu0 %v5621
    %5850 = vmatpush1.bf16.msra.mxu0 %v5620
    %5851 = vmatprep.subr.bf16.mxu0 %v5625
    %5852 = vmatpush1.bf16.msra.mxu0 %v5624
    %5853 = vmatprep.subr.bf16.mxu0 %v5629
    %5854 = vmatpush1.bf16.msra.mxu0 %v5628
    %5855 = vmatprep.subr.bf16.mxu0 %v5633
    %5856 = vmatpush1.bf16.msra.mxu0 %v5632
    %5857 = vmatprep.subr.bf16.mxu0 %v5637
    %5858 = vmatpush1.bf16.msra.mxu0 %v5636
    %5859 = vmatprep.subr.bf16.mxu0 %v5641
    %5860 = vmatpush1.bf16.msra.mxu0 %v5640
    %5861 = vmatprep.subr.bf16.mxu0 %v5645
    %5862 = vmatpush1.bf16.msra.mxu0 %v5644
    %5863 = vmatprep.subr.bf16.mxu0 %v5649
    %5864 = vmatpush1.bf16.msra.mxu0 %v5648
    %5865 = vmatprep.subr.bf16.mxu0 %v5653
    %5866 = vmatpush1.bf16.msra.mxu0 %v5652
    %5867 = vmatprep.subr.bf16.mxu0 %v5657
    %5868 = vmatpush1.bf16.msra.mxu0 %v5656
    %5869 = vmatprep.subr.bf16.mxu0 %v5661
    %5870 = vmatpush1.bf16.msra.mxu0 %v5660
    %5871 = vmatprep.subr.bf16.mxu0 %v5665
    %5872 = vmatpush1.bf16.msra.mxu0 %v5664
    %5873 = vmatprep.mubr.bf16.mxu0 %v1360
    %5874 = vmatmul.mubr.bf16.gmra.mrb[0].mxu0 %v1359
    %v5875 = vpop.f32.mrb[0].mxu0
    %v5876 = vadd.f32 %v5835, %v5875
    %v5877 = vpop.f32.mrb[0].mxu0
    %v5878 = vadd.f32 %v5837, %v5877
    %v5879 = vpop.f32.mrb[0].mxu0
    %v5880 = vpop.f32.mrb[0].mxu0
    %5881 = vdwg.mxu0
    %5882 = vmatprep.subr.bf16.mxu0 %v5669
    %5883 = vmatpush1.bf16.msra.mxu0 %v5668
    %5884 = vmatprep.subr.bf16.mxu0 %v5673
    %5885 = vmatpush1.bf16.msra.mxu0 %v5672
    %5886 = vmatprep.subr.bf16.mxu0 %v5677
    %5887 = vmatpush1.bf16.msra.mxu0 %v5676
    %5888 = vmatprep.subr.bf16.mxu0 %v5681
    %5889 = vmatpush1.bf16.msra.mxu0 %v5680
    %5890 = vmatprep.subr.bf16.mxu0 %v5685
    %5891 = vmatpush1.bf16.msra.mxu0 %v5684
    %5892 = vmatprep.subr.bf16.mxu0 %v5689
    %5893 = vmatpush1.bf16.msra.mxu0 %v5688
    %5894 = vmatprep.subr.bf16.mxu0 %v5693
    %5895 = vmatpush1.bf16.msra.mxu0 %v5692
    %5896 = vmatprep.subr.bf16.mxu0 %v5697
    %5897 = vmatpush1.bf16.msra.mxu0 %v5696
    %5898 = vmatprep.subr.bf16.mxu0 %v5701
    %5899 = vmatpush1.bf16.msra.mxu0 %v5700
    %5900 = vmatprep.subr.bf16.mxu0 %v5705
    %5901 = vmatpush1.bf16.msra.mxu0 %v5704
    %5902 = vmatprep.subr.bf16.mxu0 %v5709
    %5903 = vmatpush1.bf16.msra.mxu0 %v5708
    %5904 = vmatprep.subr.bf16.mxu0 %v5713
    %5905 = vmatpush1.bf16.msra.mxu0 %v5712
    %5906 = vmatprep.subr.bf16.mxu0 %v5717
    %5907 = vmatpush1.bf16.msra.mxu0 %v5716
    %5908 = vmatprep.subr.bf16.mxu0 %v5721
    %5909 = vmatpush1.bf16.msra.mxu0 %v5720
    %5910 = vmatprep.subr.bf16.mxu0 %v5725
    %5911 = vmatpush1.bf16.msra.mxu0 %v5724
    %5912 = vmatprep.subr.bf16.mxu0 %v5729
    %5913 = vmatpush1.bf16.msra.mxu0 %v5728
    %5914 = vmatprep.mubr.bf16.mxu0 %v1362
    %5915 = vmatmul.mubr.bf16.gmra.mrb[0].mxu0 %v1361
    %v5916 = vpop.f32.mrb[0].mxu0
    %v5917 = vadd.f32 %v5876, %v5916
    %v5918 = vpop.f32.mrb[0].mxu0
    %v5919 = vadd.f32 %v5878, %v5918
    %v5920 = vpop.f32.mrb[0].mxu0
    %v5921 = vpop.f32.mrb[0].mxu0
    %5922 = vdwg.mxu0
    %5923 = vmatprep.subr.bf16.mxu0 %v5543
    %5924 = vmatpush1.bf16.msra.mxu0 %v5542
    %5925 = vmatprep.subr.bf16.mxu0 %v5547
    %5926 = vmatpush1.bf16.msra.mxu0 %v5546
    %5927 = vmatprep.subr.bf16.mxu0 %v5551
    %5928 = vmatpush1.bf16.msra.mxu0 %v5550
    %5929 = vmatprep.subr.bf16.mxu0 %v5555
    %5930 = vmatpush1.bf16.msra.mxu0 %v5554
    %5931 = vmatprep.subr.bf16.mxu0 %v5559
    %5932 = vmatpush1.bf16.msra.mxu0 %v5558
    %5933 = vmatprep.subr.bf16.mxu0 %v5563
    %5934 = vmatpush1.bf16.msra.mxu0 %v5562
    %5935 = vmatprep.subr.bf16.mxu0 %v5567
    %5936 = vmatpush1.bf16.msra.mxu0 %v5566
    %5937 = vmatprep.subr.bf16.mxu0 %v5571
    %5938 = vmatpush1.bf16.msra.mxu0 %v5570
    %5939 = vmatprep.subr.bf16.mxu0 %v5575
    %5940 = vmatpush1.bf16.msra.mxu0 %v5574
    %5941 = vmatprep.subr.bf16.mxu0 %v5579
    %5942 = vmatpush1.bf16.msra.mxu0 %v5578
    %5943 = vmatprep.subr.bf16.mxu0 %v5583
    %5944 = vmatpush1.bf16.msra.mxu0 %v5582
    %5945 = vmatprep.subr.bf16.mxu0 %v5587
    %5946 = vmatpush1.bf16.msra.mxu0 %v5586
    %5947 = vmatprep.subr.bf16.mxu0 %v5591
    %5948 = vmatpush1.bf16.msra.mxu0 %v5590
    %5949 = vmatprep.subr.bf16.mxu0 %v5595
    %5950 = vmatpush1.bf16.msra.mxu0 %v5594
    %5951 = vmatprep.subr.bf16.mxu0 %v5599
    %5952 = vmatpush1.bf16.msra.mxu0 %v5598
    %5953 = vmatprep.subr.bf16.mxu0 %v5603
    %5954 = vmatpush1.bf16.msra.mxu0 %v5602
    %5955 = vmatprep.mubr.bf16.mxu0 %v1358
    %5956 = vmatmul.mubr.bf16.gmra.mrb[0].mxu0 %v1357
    %v5957 = vpop.f32.mrb[0].mxu0
    %v5958 = vadd.f32 0.0, %v5957
    %v5959 = vpop.f32.mrb[0].mxu0
    %v5960 = vadd.f32 0.0, %v5959
    %v5961 = vpop.f32.mrb[0].mxu0
    %v5962 = vpop.f32.mrb[0].mxu0
    %5963 = vdwg.mxu0
    %5964 = vmatprep.subr.bf16.mxu0 %v5607
    %5965 = vmatpush1.bf16.msra.mxu0 %v5606
    %5966 = vmatprep.subr.bf16.mxu0 %v5611
    %5967 = vmatpush1.bf16.msra.mxu0 %v5610
    %5968 = vmatprep.subr.bf16.mxu0 %v5615
    %5969 = vmatpush1.bf16.msra.mxu0 %v5614
    %5970 = vmatprep.subr.bf16.mxu0 %v5619
    %5971 = vmatpush1.bf16.msra.mxu0 %v5618
    %5972 = vmatprep.subr.bf16.mxu0 %v5623
    %5973 = vmatpush1.bf16.msra.mxu0 %v5622
    %5974 = vmatprep.subr.bf16.mxu0 %v5627
    %5975 = vmatpush1.bf16.msra.mxu0 %v5626
    %5976 = vmatprep.subr.bf16.mxu0 %v5631
    %5977 = vmatpush1.bf16.msra.mxu0 %v5630
    %5978 = vmatprep.subr.bf16.mxu0 %v5635
    %5979 = vmatpush1.bf16.msra.mxu0 %v5634
    %5980 = vmatprep.subr.bf16.mxu0 %v5639
    %5981 = vmatpush1.bf16.msra.mxu0 %v5638
    %5982 = vmatprep.subr.bf16.mxu0 %v5643
    %5983 = vmatpush1.bf16.msra.mxu0 %v5642
    %5984 = vmatprep.subr.bf16.mxu0 %v5647
    %5985 = vmatpush1.bf16.msra.mxu0 %v5646
    %5986 = vmatprep.subr.bf16.mxu0 %v5651
    %5987 = vmatpush1.bf16.msra.mxu0 %v5650
    %5988 = vmatprep.subr.bf16.mxu0 %v5655
    %5989 = vmatpush1.bf16.msra.mxu0 %v5654
    %5990 = vmatprep.subr.bf16.mxu0 %v5659
    %5991 = vmatpush1.bf16.msra.mxu0 %v5658
    %5992 = vmatprep.subr.bf16.mxu0 %v5663
    %5993 = vmatpush1.bf16.msra.mxu0 %v5662
    %5994 = vmatprep.subr.bf16.mxu0 %v5667
    %5995 = vmatpush1.bf16.msra.mxu0 %v5666
    %5996 = vmatprep.mubr.bf16.mxu0 %v1360
    %5997 = vmatmul.mubr.bf16.gmra.mrb[0].mxu0 %v1359
    %v5998 = vpop.f32.mrb[0].mxu0
    %v5999 = vadd.f32 %v5958, %v5998
    %v6000 = vpop.f32.mrb[0].mxu0
    %v6001 = vadd.f32 %v5960, %v6000
    %v6002 = vpop.f32.mrb[0].mxu0
    %v6003 = vpop.f32.mrb[0].mxu0
    %6004 = vdwg.mxu0
    %6005 = vmatprep.subr.bf16.mxu0 %v5671
    %6006 = vmatpush1.bf16.msra.mxu0 %v5670
    %6007 = vmatprep.subr.bf16.mxu0 %v5675
    %6008 = vmatpush1.bf16.msra.mxu0 %v5674
    %6009 = vmatprep.subr.bf16.mxu0 %v5679
    %6010 = vmatpush1.bf16.msra.mxu0 %v5678
    %6011 = vmatprep.subr.bf16.mxu0 %v5683
    %6012 = vmatpush1.bf16.msra.mxu0 %v5682
    %6013 = vmatprep.subr.bf16.mxu0 %v5687
    %6014 = vmatpush1.bf16.msra.mxu0 %v5686
    %6015 = vmatprep.subr.bf16.mxu0 %v5691
    %6016 = vmatpush1.bf16.msra.mxu0 %v5690
    %6017 = vmatprep.subr.bf16.mxu0 %v5695
    %6018 = vmatpush1.bf16.msra.mxu0 %v5694
    %6019 = vmatprep.subr.bf16.mxu0 %v5699
    %6020 = vmatpush1.bf16.msra.mxu0 %v5698
    %6021 = vmatprep.subr.bf16.mxu0 %v5703
    %6022 = vmatpush1.bf16.msra.mxu0 %v5702
    %6023 = vmatprep.subr.bf16.mxu0 %v5707
    %6024 = vmatpush1.bf16.msra.mxu0 %v5706
    %6025 = vmatprep.subr.bf16.mxu0 %v5711
    %6026 = vmatpush1.bf16.msra.mxu0 %v5710
    %6027 = vmatprep.subr.bf16.mxu0 %v5715
    %6028 = vmatpush1.bf16.msra.mxu0 %v5714
    %6029 = vmatprep.subr.bf16.mxu0 %v5719
    %6030 = vmatpush1.bf16.msra.mxu0 %v5718
    %6031 = vmatprep.subr.bf16.mxu0 %v5723
    %6032 = vmatpush1.bf16.msra.mxu0 %v5722
    %6033 = vmatprep.subr.bf16.mxu0 %v5727
    %6034 = vmatpush1.bf16.msra.mxu0 %v5726
    %6035 = vmatprep.subr.bf16.mxu0 %v5731
    %6036 = vmatpush1.bf16.msra.mxu0 %v5730
    %6037 = vmatprep.mubr.bf16.mxu0 %v1362
    %6038 = vmatmul.mubr.bf16.gmra.mrb[0].mxu0 %v1361
    %v6039 = vpop.f32.mrb[0].mxu0
    %v6040 = vadd.f32 %v5999, %v6039
    %v6041 = vpop.f32.mrb[0].mxu0
    %v6042 = vadd.f32 %v6001, %v6041
    %v6043 = vpop.f32.mrb[0].mxu0
    %v6044 = vpop.f32.mrb[0].mxu0
    %6045 = vdwg.mxu0
    %v6046 = vadd.f32 %v5796, %v5917
    %v6047 = vadd.f32 %v5797, %v5919
    %v6048 = vadd.f32 %v5798, %v6040
    %v6049 = vadd.f32 %v5799, %v6042
    %v6050 = vxor.u32 %v6046, 2147483648
    %v6051 = vmul.f32 %v6050, 1.442695
    %v6052 = vpow.pop %v6051
    %v6053 = vadd.f32 %v6052, 1.0
    %v6054 = vrcp.pop %v6053
    %v6055 = vmul.f32 1.0, %v6054
    %v6056 = vxor.u32 %v6047, 2147483648
    %v6057 = vmul.f32 %v6056, 1.442695
    %v6058 = vpow.pop %v6057
    %v6059 = vadd.f32 %v6058, 1.0
    %v6060 = vrcp.pop %v6059
    %v6061 = vmul.f32 1.0, %v6060
    %v6062 = vtanh.pop %v6048
    %v6063 = vxor.u32 %v6049, 2147483648
    %v6064 = vmul.f32 %v6063, 1.442695
    %v6065 = vpow.pop %v6064
    %v6066 = vadd.f32 %v6065, 1.0
    %v6067 = vrcp.pop %v6066
    %v6068 = vmul.f32 1.0, %v6067
    %v6069 = vmul.f32 %v6061, 0.0
    %v6070 = vmul.f32 %v6055, %v6062
    %v6071 = vadd.f32 %v6069, %v6070
    %v6072 = vtanh.pop %v6071
    %v6073 = vmul.f32 %v6068, %v6072
    %v6074 = vsel %vm1343, %v6073, 0.0
    %v6075 = vsel %vm322, %v6074, %v6073
    %v6076 = vsel %vm1352, %v6075, 0.0
    %v6077 = vsel %vm1343, %v6071, 0.0
    %v6078 = vsel %vm322, %v6077, %v6071
    %v6079 = vsel %vm1352, %v6078, 0.0
    %v6084 = vrot.slane %v4677, 1
    %v6085 = vrot.slane %v4679, 1
    %v6086 = vrot.slane %v4718, 1
    %v6087 = vrot.slane %v4720, 1
    %v6092 = vrot.slane %v4759, 3
    %v6093 = vrot.slane %v4761, 3
    %v6094 = vrot.slane %v4800, 3
    %v6095 = vrot.slane %v4802, 3
    %v6100 = vrot.slane %v5044, 7
    %v6101 = vrot.slane %v5046, 7
    %v6102 = vrot.slane %v5085, 7
    %v6103 = vrot.slane %v5087, 7
    %v6108 = vrot.slane %v5126, 1
    %v6109 = vrot.slane %v5128, 1
    %v6110 = vrot.slane %v5167, 1
    %v6111 = vrot.slane %v5169, 1
    %v6116 = vrot.slane %v5411, 5
    %v6117 = vrot.slane %v5413, 5
    %v6118 = vrot.slane %v5452, 5
    %v6119 = vrot.slane %v5454, 5
    %v6128 = vrot.slane %v5493, 7
    %v6129 = vrot.slane %v5495, 7
    %v6130 = vrot.slane %v5534, 7
    %v6131 = vrot.slane %v5536, 7
    %v6136 = vsel %vm1333, %v6084, %v6092
    %v6137 = vsel %vm1333, %v6085, %v6093
    %v6138 = vsel %vm1333, %v6086, %v6094
    %v6139 = vsel %vm1333, %v6087, %v6095
    %v6140 = vsel %vm1338, %v6136, %v6100
    %v6141 = vsel %vm1338, %v6137, %v6101
    %v6142 = vsel %vm1338, %v6138, %v6102
    %v6143 = vsel %vm1338, %v6139, %v6103
    %v6144 = vsel %vm1343, %v6140, %v6108
    %v6145 = vsel %vm1343, %v6141, %v6109
    %v6146 = vsel %vm1343, %v6142, %v6110
    %v6147 = vsel %vm1343, %v6143, %v6111
    %v6148 = vsel %vm322, %v6144, %v6116
    %v6149 = vsel %vm322, %v6145, %v6117
    %v6150 = vsel %vm322, %v6146, %v6118
    %v6151 = vsel %vm322, %v6147, %v6119
    %v6152 = vsel %vm1352, %v6148, %v6128
    %v6153 = vsel %vm1352, %v6149, %v6129
    %v6154 = vsel %vm1352, %v6150, %v6130
    %v6155 = vsel %vm1352, %v6151, %v6131
    %v6156 = vpack.c.bf16 %v6076, %v6076
    %v6157 = vmul.bf16 %v6156, %v202
    %v6158 = vmul.bf16 %v6156, %v203
    %v6159 = vmul.bf16 %v6156, %v204
    %v6160 = vmul.bf16 %v6156, %v205
    %v6161 = vmul.bf16 %v6156, %v206
    %v6162 = vmul.bf16 %v6156, %v207
    %6163 = vmatprep.subr.bf16.mxu0 %v5541
    %6164 = vmatpush1.bf16.msra.mxu0 %v5540
    %6165 = vmatprep.subr.bf16.mxu0 %v5545
    %6166 = vmatpush1.bf16.msra.mxu0 %v5544
    %6167 = vmatprep.subr.bf16.mxu0 %v5549
    %6168 = vmatpush1.bf16.msra.mxu0 %v5548
    %6169 = vmatprep.subr.bf16.mxu0 %v5553
    %6170 = vmatpush1.bf16.msra.mxu0 %v5552
    %6171 = vmatprep.subr.bf16.mxu0 %v5557
    %6172 = vmatpush1.bf16.msra.mxu0 %v5556
    %6173 = vmatprep.subr.bf16.mxu0 %v5561
    %6174 = vmatpush1.bf16.msra.mxu0 %v5560
    %6175 = vmatprep.subr.bf16.mxu0 %v5565
    %6176 = vmatpush1.bf16.msra.mxu0 %v5564
    %6177 = vmatprep.subr.bf16.mxu0 %v5569
    %6178 = vmatpush1.bf16.msra.mxu0 %v5568
    %6179 = vmatprep.subr.bf16.mxu0 %v5573
    %6180 = vmatpush1.bf16.msra.mxu0 %v5572
    %6181 = vmatprep.subr.bf16.mxu0 %v5577
    %6182 = vmatpush1.bf16.msra.mxu0 %v5576
    %6183 = vmatprep.subr.bf16.mxu0 %v5581
    %6184 = vmatpush1.bf16.msra.mxu0 %v5580
    %6185 = vmatprep.subr.bf16.mxu0 %v5585
    %6186 = vmatpush1.bf16.msra.mxu0 %v5584
    %6187 = vmatprep.subr.bf16.mxu0 %v5589
    %6188 = vmatpush1.bf16.msra.mxu0 %v5588
    %6189 = vmatprep.subr.bf16.mxu0 %v5593
    %6190 = vmatpush1.bf16.msra.mxu0 %v5592
    %6191 = vmatprep.subr.bf16.mxu0 %v5597
    %6192 = vmatpush1.bf16.msra.mxu0 %v5596
    %6193 = vmatprep.subr.bf16.mxu0 %v5601
    %6194 = vmatpush1.bf16.msra.mxu0 %v5600
    %6195 = vmatprep.mubr.bf16.mxu0 %v6158
    %6196 = vmatmul.mubr.bf16.gmra.mrb[0].mxu0 %v6157
    %v6197 = vpop.f32.mrb[0].mxu0
    %v6198 = vadd.f32 0.0, %v6197
    %v6199 = vpop.f32.mrb[0].mxu0
    %v6200 = vadd.f32 0.0, %v6199
    %v6201 = vpop.f32.mrb[0].mxu0
    %v6202 = vpop.f32.mrb[0].mxu0
    %6203 = vdwg.mxu0
    %6204 = vmatprep.subr.bf16.mxu0 %v5605
    %6205 = vmatpush1.bf16.msra.mxu0 %v5604
    %6206 = vmatprep.subr.bf16.mxu0 %v5609
    %6207 = vmatpush1.bf16.msra.mxu0 %v5608
    %6208 = vmatprep.subr.bf16.mxu0 %v5613
    %6209 = vmatpush1.bf16.msra.mxu0 %v5612
    %6210 = vmatprep.subr.bf16.mxu0 %v5617
    %6211 = vmatpush1.bf16.msra.mxu0 %v5616
    %6212 = vmatprep.subr.bf16.mxu0 %v5621
    %6213 = vmatpush1.bf16.msra.mxu0 %v5620
    %6214 = vmatprep.subr.bf16.mxu0 %v5625
    %6215 = vmatpush1.bf16.msra.mxu0 %v5624
    %6216 = vmatprep.subr.bf16.mxu0 %v5629
    %6217 = vmatpush1.bf16.msra.mxu0 %v5628
    %6218 = vmatprep.subr.bf16.mxu0 %v5633
    %6219 = vmatpush1.bf16.msra.mxu0 %v5632
    %6220 = vmatprep.subr.bf16.mxu0 %v5637
    %6221 = vmatpush1.bf16.msra.mxu0 %v5636
    %6222 = vmatprep.subr.bf16.mxu0 %v5641
    %6223 = vmatpush1.bf16.msra.mxu0 %v5640
    %6224 = vmatprep.subr.bf16.mxu0 %v5645
    %6225 = vmatpush1.bf16.msra.mxu0 %v5644
    %6226 = vmatprep.subr.bf16.mxu0 %v5649
    %6227 = vmatpush1.bf16.msra.mxu0 %v5648
    %6228 = vmatprep.subr.bf16.mxu0 %v5653
    %6229 = vmatpush1.bf16.msra.mxu0 %v5652
    %6230 = vmatprep.subr.bf16.mxu0 %v5657
    %6231 = vmatpush1.bf16.msra.mxu0 %v5656
    %6232 = vmatprep.subr.bf16.mxu0 %v5661
    %6233 = vmatpush1.bf16.msra.mxu0 %v5660
    %6234 = vmatprep.subr.bf16.mxu0 %v5665
    %6235 = vmatpush1.bf16.msra.mxu0 %v5664
    %6236 = vmatprep.mubr.bf16.mxu0 %v6160
    %6237 = vmatmul.mubr.bf16.gmra.mrb[0].mxu0 %v6159
    %v6238 = vpop.f32.mrb[0].mxu0
    %v6239 = vadd.f32 %v6198, %v6238
    %v6240 = vpop.f32.mrb[0].mxu0
    %v6241 = vadd.f32 %v6200, %v6240
    %v6242 = vpop.f32.mrb[0].mxu0
    %v6243 = vpop.f32.mrb[0].mxu0
    %6244 = vdwg.mxu0
    %6245 = vmatprep.subr.bf16.mxu0 %v5669
    %6246 = vmatpush1.bf16.msra.mxu0 %v5668
    %6247 = vmatprep.subr.bf16.mxu0 %v5673
    %6248 = vmatpush1.bf16.msra.mxu0 %v5672
    %6249 = vmatprep.subr.bf16.mxu0 %v5677
    %6250 = vmatpush1.bf16.msra.mxu0 %v5676
    %6251 = vmatprep.subr.bf16.mxu0 %v5681
    %6252 = vmatpush1.bf16.msra.mxu0 %v5680
    %6253 = vmatprep.subr.bf16.mxu0 %v5685
    %6254 = vmatpush1.bf16.msra.mxu0 %v5684
    %6255 = vmatprep.subr.bf16.mxu0 %v5689
    %6256 = vmatpush1.bf16.msra.mxu0 %v5688
    %6257 = vmatprep.subr.bf16.mxu0 %v5693
    %6258 = vmatpush1.bf16.msra.mxu0 %v5692
    %6259 = vmatprep.subr.bf16.mxu0 %v5697
    %6260 = vmatpush1.bf16.msra.mxu0 %v5696
    %6261 = vmatprep.subr.bf16.mxu0 %v5701
    %6262 = vmatpush1.bf16.msra.mxu0 %v5700
    %6263 = vmatprep.subr.bf16.mxu0 %v5705
    %6264 = vmatpush1.bf16.msra.mxu0 %v5704
    %6265 = vmatprep.subr.bf16.mxu0 %v5709
    %6266 = vmatpush1.bf16.msra.mxu0 %v5708
    %6267 = vmatprep.subr.bf16.mxu0 %v5713
    %6268 = vmatpush1.bf16.msra.mxu0 %v5712
    %6269 = vmatprep.subr.bf16.mxu0 %v5717
    %6270 = vmatpush1.bf16.msra.mxu0 %v5716
    %6271 = vmatprep.subr.bf16.mxu0 %v5721
    %6272 = vmatpush1.bf16.msra.mxu0 %v5720
    %6273 = vmatprep.subr.bf16.mxu0 %v5725
    %6274 = vmatpush1.bf16.msra.mxu0 %v5724
    %6275 = vmatprep.subr.bf16.mxu0 %v5729
    %6276 = vmatpush1.bf16.msra.mxu0 %v5728
    %6277 = vmatprep.mubr.bf16.mxu0 %v6162
    %6278 = vmatmul.mubr.bf16.gmra.mrb[0].mxu0 %v6161
    %v6279 = vpop.f32.mrb[0].mxu0
    %v6280 = vadd.f32 %v6239, %v6279
    %v6281 = vpop.f32.mrb[0].mxu0
    %v6282 = vadd.f32 %v6241, %v6281
    %v6283 = vpop.f32.mrb[0].mxu0
    %v6284 = vpop.f32.mrb[0].mxu0
    %6285 = vdwg.mxu0
    %6286 = vmatprep.subr.bf16.mxu0 %v5543
    %6287 = vmatpush1.bf16.msra.mxu0 %v5542
    %6288 = vmatprep.subr.bf16.mxu0 %v5547
    %6289 = vmatpush1.bf16.msra.mxu0 %v5546
    %6290 = vmatprep.subr.bf16.mxu0 %v5551
    %6291 = vmatpush1.bf16.msra.mxu0 %v5550
    %6292 = vmatprep.subr.bf16.mxu0 %v5555
    %6293 = vmatpush1.bf16.msra.mxu0 %v5554
    %6294 = vmatprep.subr.bf16.mxu0 %v5559
    %6295 = vmatpush1.bf16.msra.mxu0 %v5558
    %6296 = vmatprep.subr.bf16.mxu0 %v5563
    %6297 = vmatpush1.bf16.msra.mxu0 %v5562
    %6298 = vmatprep.subr.bf16.mxu0 %v5567
    %6299 = vmatpush1.bf16.msra.mxu0 %v5566
    %6300 = vmatprep.subr.bf16.mxu0 %v5571
    %6301 = vmatpush1.bf16.msra.mxu0 %v5570
    %6302 = vmatprep.subr.bf16.mxu0 %v5575
    %6303 = vmatpush1.bf16.msra.mxu0 %v5574
    %6304 = vmatprep.subr.bf16.mxu0 %v5579
    %6305 = vmatpush1.bf16.msra.mxu0 %v5578
    %6306 = vmatprep.subr.bf16.mxu0 %v5583
    %6307 = vmatpush1.bf16.msra.mxu0 %v5582
    %6308 = vmatprep.subr.bf16.mxu0 %v5587
    %6309 = vmatpush1.bf16.msra.mxu0 %v5586
    %6310 = vmatprep.subr.bf16.mxu0 %v5591
    %6311 = vmatpush1.bf16.msra.mxu0 %v5590
    %6312 = vmatprep.subr.bf16.mxu0 %v5595
    %6313 = vmatpush1.bf16.msra.mxu0 %v5594
    %6314 = vmatprep.subr.bf16.mxu0 %v5599
    %6315 = vmatpush1.bf16.msra.mxu0 %v5598
    %6316 = vmatprep.subr.bf16.mxu0 %v5603
    %6317 = vmatpush1.bf16.msra.mxu0 %v5602
    %6318 = vmatprep.mubr.bf16.mxu0 %v6158
    %6319 = vmatmul.mubr.bf16.gmra.mrb[0].mxu0 %v6157
    %v6320 = vpop.f32.mrb[0].mxu0
    %v6321 = vadd.f32 0.0, %v6320
    %v6322 = vpop.f32.mrb[0].mxu0
    %v6323 = vadd.f32 0.0, %v6322
    %v6324 = vpop.f32.mrb[0].mxu0
    %v6325 = vpop.f32.mrb[0].mxu0
    %6326 = vdwg.mxu0
    %6327 = vmatprep.subr.bf16.mxu0 %v5607
    %6328 = vmatpush1.bf16.msra.mxu0 %v5606
    %6329 = vmatprep.subr.bf16.mxu0 %v5611
    %6330 = vmatpush1.bf16.msra.mxu0 %v5610
    %6331 = vmatprep.subr.bf16.mxu0 %v5615
    %6332 = vmatpush1.bf16.msra.mxu0 %v5614
    %6333 = vmatprep.subr.bf16.mxu0 %v5619
    %6334 = vmatpush1.bf16.msra.mxu0 %v5618
    %6335 = vmatprep.subr.bf16.mxu0 %v5623
    %6336 = vmatpush1.bf16.msra.mxu0 %v5622
    %6337 = vmatprep.subr.bf16.mxu0 %v5627
    %6338 = vmatpush1.bf16.msra.mxu0 %v5626
    %6339 = vmatprep.subr.bf16.mxu0 %v5631
    %6340 = vmatpush1.bf16.msra.mxu0 %v5630
    %6341 = vmatprep.subr.bf16.mxu0 %v5635
    %6342 = vmatpush1.bf16.msra.mxu0 %v5634
    %6343 = vmatprep.subr.bf16.mxu0 %v5639
    %6344 = vmatpush1.bf16.msra.mxu0 %v5638
    %6345 = vmatprep.subr.bf16.mxu0 %v5643
    %6346 = vmatpush1.bf16.msra.mxu0 %v5642
    %6347 = vmatprep.subr.bf16.mxu0 %v5647
    %6348 = vmatpush1.bf16.msra.mxu0 %v5646
    %6349 = vmatprep.subr.bf16.mxu0 %v5651
    %6350 = vmatpush1.bf16.msra.mxu0 %v5650
    %6351 = vmatprep.subr.bf16.mxu0 %v5655
    %6352 = vmatpush1.bf16.msra.mxu0 %v5654
    %6353 = vmatprep.subr.bf16.mxu0 %v5659
    %6354 = vmatpush1.bf16.msra.mxu0 %v5658
    %6355 = vmatprep.subr.bf16.mxu0 %v5663
    %6356 = vmatpush1.bf16.msra.mxu0 %v5662
    %6357 = vmatprep.subr.bf16.mxu0 %v5667
    %6358 = vmatpush1.bf16.msra.mxu0 %v5666
    %6359 = vmatprep.mubr.bf16.mxu0 %v6160
    %6360 = vmatmul.mubr.bf16.gmra.mrb[0].mxu0 %v6159
    %v6361 = vpop.f32.mrb[0].mxu0
    %v6362 = vadd.f32 %v6321, %v6361
    %v6363 = vpop.f32.mrb[0].mxu0
    %v6364 = vadd.f32 %v6323, %v6363
    %v6365 = vpop.f32.mrb[0].mxu0
    %v6366 = vpop.f32.mrb[0].mxu0
    %6367 = vdwg.mxu0
    %6368 = vmatprep.subr.bf16.mxu0 %v5671
    %6369 = vmatpush1.bf16.msra.mxu0 %v5670
    %6370 = vmatprep.subr.bf16.mxu0 %v5675
    %6371 = vmatpush1.bf16.msra.mxu0 %v5674
    %6372 = vmatprep.subr.bf16.mxu0 %v5679
    %6373 = vmatpush1.bf16.msra.mxu0 %v5678
    %6374 = vmatprep.subr.bf16.mxu0 %v5683
    %6375 = vmatpush1.bf16.msra.mxu0 %v5682
    %6376 = vmatprep.subr.bf16.mxu0 %v5687
    %6377 = vmatpush1.bf16.msra.mxu0 %v5686
    %6378 = vmatprep.subr.bf16.mxu0 %v5691
    %6379 = vmatpush1.bf16.msra.mxu0 %v5690
    %6380 = vmatprep.subr.bf16.mxu0 %v5695
    %6381 = vmatpush1.bf16.msra.mxu0 %v5694
    %6382 = vmatprep.subr.bf16.mxu0 %v5699
    %6383 = vmatpush1.bf16.msra.mxu0 %v5698
    %6384 = vmatprep.subr.bf16.mxu0 %v5703
    %6385 = vmatpush1.bf16.msra.mxu0 %v5702
    %6386 = vmatprep.subr.bf16.mxu0 %v5707
    %6387 = vmatpush1.bf16.msra.mxu0 %v5706
    %6388 = vmatprep.subr.bf16.mxu0 %v5711
    %6389 = vmatpush1.bf16.msra.mxu0 %v5710
    %6390 = vmatprep.subr.bf16.mxu0 %v5715
    %6391 = vmatpush1.bf16.msra.mxu0 %v5714
    %6392 = vmatprep.subr.bf16.mxu0 %v5719
    %6393 = vmatpush1.bf16.msra.mxu0 %v5718
    %6394 = vmatprep.subr.bf16.mxu0 %v5723
    %6395 = vmatpush1.bf16.msra.mxu0 %v5722
    %6396 = vmatprep.subr.bf16.mxu0 %v5727
    %6397 = vmatpush1.bf16.msra.mxu0 %v5726
    %6398 = vmatprep.subr.bf16.mxu0 %v5731
    %6399 = vmatpush1.bf16.msra.mxu0 %v5730
    %6400 = vmatprep.mubr.bf16.mxu0 %v6162
    %6401 = vmatmul.mubr.bf16.gmra.mrb[0].mxu0 %v6161
    %v6402 = vpop.f32.mrb[0].mxu0
    %v6403 = vadd.f32 %v6362, %v6402
    %v6404 = vpop.f32.mrb[0].mxu0
    %v6405 = vadd.f32 %v6364, %v6404
    %v6406 = vpop.f32.mrb[0].mxu0
    %v6407 = vpop.f32.mrb[0].mxu0
    %6408 = vdwg.mxu0
    %v6409 = vadd.f32 %v6152, %v6280
    %v6410 = vadd.f32 %v6153, %v6282
    %v6411 = vadd.f32 %v6154, %v6403
    %v6412 = vadd.f32 %v6155, %v6405
    %v6413 = vxor.u32 %v6409, 2147483648
    %v6414 = vmul.f32 %v6413, 1.442695
    %v6415 = vpow.pop %v6414
    %v6416 = vadd.f32 %v6415, 1.0
    %v6417 = vrcp.pop %v6416
    %v6418 = vmul.f32 1.0, %v6417
    %v6419 = vxor.u32 %v6410, 2147483648
    %v6420 = vmul.f32 %v6419, 1.442695
    %v6421 = vpow.pop %v6420
    %v6422 = vadd.f32 %v6421, 1.0
    %v6423 = vrcp.pop %v6422
    %v6424 = vmul.f32 1.0, %v6423
    %v6425 = vtanh.pop %v6411
    %v6426 = vxor.u32 %v6412, 2147483648
    %v6427 = vmul.f32 %v6426, 1.442695
    %v6428 = vpow.pop %v6427
    %v6429 = vadd.f32 %v6428, 1.0
    %v6430 = vrcp.pop %v6429
    %v6431 = vmul.f32 1.0, %v6430
    %v6432 = vmul.f32 %v6424, %v6079
    %v6433 = vmul.f32 %v6418, %v6425
    %v6434 = vadd.f32 %v6432, %v6433
    %v6435 = vtanh.pop %v6434
    %v6436 = vmul.f32 %v6431, %v6435
    %v6437 = vsel %vm1352, %v6436, %v6076
    %v6438 = vsel %vm1352, %v6434, %v6079
    %v6439 = vrot.slane %v4677, 2
    %v6440 = vrot.slane %v4679, 2
    %v6441 = vrot.slane %v4718, 2
    %v6442 = vrot.slane %v4720, 2
    %v6447 = vrot.slane %v4759, 2
    %v6448 = vrot.slane %v4761, 2
    %v6449 = vrot.slane %v4800, 2
    %v6450 = vrot.slane %v4802, 2
    %v6455 = vrot.slane %v5411, 6
    %v6456 = vrot.slane %v5413, 6
    %v6457 = vrot.slane %v5452, 6
    %v6458 = vrot.slane %v5454, 6
    %v6463 = vrot.slane %v5493, 6
    %v6464 = vrot.slane %v5495, 6
    %v6465 = vrot.slane %v5534, 6
    %v6466 = vrot.slane %v5536, 6
    %v6471 = vsel %vm1333, %v6439, %v6447
    %v6472 = vsel %vm1333, %v6440, %v6448
    %v6473 = vsel %vm1333, %v6441, %v6449
    %v6474 = vsel %vm1333, %v6442, %v6450
    %v6475 = vsel %vm1338, %v6471, %v5044
    %v6476 = vsel %vm1338, %v6472, %v5046
    %v6477 = vsel %vm1338, %v6473, %v5085
    %v6478 = vsel %vm1338, %v6474, %v5087
    %v6479 = vsel %vm1343, %v6475, %v5126
    %v6480 = vsel %vm1343, %v6476, %v5128
    %v6481 = vsel %vm1343, %v6477, %v5167
    %v6482 = vsel %vm1343, %v6478, %v5169
    %v6483 = vsel %vm322, %v6479, %v6455
    %v6484 = vsel %vm322, %v6480, %v6456
    %v6485 = vsel %vm322, %v6481, %v6457
    %v6486 = vsel %vm322, %v6482, %v6458
    %v6487 = vsel %vm1352, %v6483, %v6463
    %v6488 = vsel %vm1352, %v6484, %v6464
    %v6489 = vsel %vm1352, %v6485, %v6465
    %v6490 = vsel %vm1352, %v6486, %v6466
    %v6491 = vpack.c.bf16 %v6437, %v6437
    %v6492 = vmul.bf16 %v6491, %v202
    %v6493 = vmul.bf16 %v6491, %v203
    %v6494 = vmul.bf16 %v6491, %v204
    %v6495 = vmul.bf16 %v6491, %v205
    %v6496 = vmul.bf16 %v6491, %v206
    %v6497 = vmul.bf16 %v6491, %v207
    %6498 = vmatprep.subr.bf16.mxu0 %v5541
    %6499 = vmatpush1.bf16.msra.mxu0 %v5540
    %6500 = vmatprep.subr.bf16.mxu0 %v5545
    %6501 = vmatpush1.bf16.msra.mxu0 %v5544
    %6502 = vmatprep.subr.bf16.mxu0 %v5549
    %6503 = vmatpush1.bf16.msra.mxu0 %v5548
    %6504 = vmatprep.subr.bf16.mxu0 %v5553
    %6505 = vmatpush1.bf16.msra.mxu0 %v5552
    %6506 = vmatprep.subr.bf16.mxu0 %v5557
    %6507 = vmatpush1.bf16.msra.mxu0 %v5556
    %6508 = vmatprep.subr.bf16.mxu0 %v5561
    %6509 = vmatpush1.bf16.msra.mxu0 %v5560
    %6510 = vmatprep.subr.bf16.mxu0 %v5565
    %6511 = vmatpush1.bf16.msra.mxu0 %v5564
    %6512 = vmatprep.subr.bf16.mxu0 %v5569
    %6513 = vmatpush1.bf16.msra.mxu0 %v5568
    %6514 = vmatprep.subr.bf16.mxu0 %v5573
    %6515 = vmatpush1.bf16.msra.mxu0 %v5572
    %6516 = vmatprep.subr.bf16.mxu0 %v5577
    %6517 = vmatpush1.bf16.msra.mxu0 %v5576
    %6518 = vmatprep.subr.bf16.mxu0 %v5581
    %6519 = vmatpush1.bf16.msra.mxu0 %v5580
    %6520 = vmatprep.subr.bf16.mxu0 %v5585
    %6521 = vmatpush1.bf16.msra.mxu0 %v5584
    %6522 = vmatprep.subr.bf16.mxu0 %v5589
    %6523 = vmatpush1.bf16.msra.mxu0 %v5588
    %6524 = vmatprep.subr.bf16.mxu0 %v5593
    %6525 = vmatpush1.bf16.msra.mxu0 %v5592
    %6526 = vmatprep.subr.bf16.mxu0 %v5597
    %6527 = vmatpush1.bf16.msra.mxu0 %v5596
    %6528 = vmatprep.subr.bf16.mxu0 %v5601
    %6529 = vmatpush1.bf16.msra.mxu0 %v5600
    %6530 = vmatprep.mubr.bf16.mxu0 %v6493
    %6531 = vmatmul.mubr.bf16.gmra.mrb[0].mxu0 %v6492
    %v6532 = vpop.f32.mrb[0].mxu0
    %v6533 = vadd.f32 0.0, %v6532
    %v6534 = vpop.f32.mrb[0].mxu0
    %v6535 = vadd.f32 0.0, %v6534
    %v6536 = vpop.f32.mrb[0].mxu0
    %v6537 = vpop.f32.mrb[0].mxu0
    %6538 = vdwg.mxu0
    %6539 = vmatprep.subr.bf16.mxu0 %v5605
    %6540 = vmatpush1.bf16.msra.mxu0 %v5604
    %6541 = vmatprep.subr.bf16.mxu0 %v5609
    %6542 = vmatpush1.bf16.msra.mxu0 %v5608
    %6543 = vmatprep.subr.bf16.mxu0 %v5613
    %6544 = vmatpush1.bf16.msra.mxu0 %v5612
    %6545 = vmatprep.subr.bf16.mxu0 %v5617
    %6546 = vmatpush1.bf16.msra.mxu0 %v5616
    %6547 = vmatprep.subr.bf16.mxu0 %v5621
    %6548 = vmatpush1.bf16.msra.mxu0 %v5620
    %6549 = vmatprep.subr.bf16.mxu0 %v5625
    %6550 = vmatpush1.bf16.msra.mxu0 %v5624
    %6551 = vmatprep.subr.bf16.mxu0 %v5629
    %6552 = vmatpush1.bf16.msra.mxu0 %v5628
    %6553 = vmatprep.subr.bf16.mxu0 %v5633
    %6554 = vmatpush1.bf16.msra.mxu0 %v5632
    %6555 = vmatprep.subr.bf16.mxu0 %v5637
    %6556 = vmatpush1.bf16.msra.mxu0 %v5636
    %6557 = vmatprep.subr.bf16.mxu0 %v5641
    %6558 = vmatpush1.bf16.msra.mxu0 %v5640
    %6559 = vmatprep.subr.bf16.mxu0 %v5645
    %6560 = vmatpush1.bf16.msra.mxu0 %v5644
    %6561 = vmatprep.subr.bf16.mxu0 %v5649
    %6562 = vmatpush1.bf16.msra.mxu0 %v5648
    %6563 = vmatprep.subr.bf16.mxu0 %v5653
    %6564 = vmatpush1.bf16.msra.mxu0 %v5652
    %6565 = vmatprep.subr.bf16.mxu0 %v5657
    %6566 = vmatpush1.bf16.msra.mxu0 %v5656
    %6567 = vmatprep.subr.bf16.mxu0 %v5661
    %6568 = vmatpush1.bf16.msra.mxu0 %v5660
    %6569 = vmatprep.subr.bf16.mxu0 %v5665
    %6570 = vmatpush1.bf16.msra.mxu0 %v5664
    %6571 = vmatprep.mubr.bf16.mxu0 %v6495
    %6572 = vmatmul.mubr.bf16.gmra.mrb[0].mxu0 %v6494
    %v6573 = vpop.f32.mrb[0].mxu0
    %v6574 = vadd.f32 %v6533, %v6573
    %v6575 = vpop.f32.mrb[0].mxu0
    %v6576 = vadd.f32 %v6535, %v6575
    %v6577 = vpop.f32.mrb[0].mxu0
    %v6578 = vpop.f32.mrb[0].mxu0
    %6579 = vdwg.mxu0
    %6580 = vmatprep.subr.bf16.mxu0 %v5669
    %6581 = vmatpush1.bf16.msra.mxu0 %v5668
    %6582 = vmatprep.subr.bf16.mxu0 %v5673
    %6583 = vmatpush1.bf16.msra.mxu0 %v5672
    %6584 = vmatprep.subr.bf16.mxu0 %v5677
    %6585 = vmatpush1.bf16.msra.mxu0 %v5676
    %6586 = vmatprep.subr.bf16.mxu0 %v5681
    %6587 = vmatpush1.bf16.msra.mxu0 %v5680
    %6588 = vmatprep.subr.bf16.mxu0 %v5685
    %6589 = vmatpush1.bf16.msra.mxu0 %v5684
    %6590 = vmatprep.subr.bf16.mxu0 %v5689
    %6591 = vmatpush1.bf16.msra.mxu0 %v5688
    %6592 = vmatprep.subr.bf16.mxu0 %v5693
    %6593 = vmatpush1.bf16.msra.mxu0 %v5692
    %6594 = vmatprep.subr.bf16.mxu0 %v5697
    %6595 = vmatpush1.bf16.msra.mxu0 %v5696
    %6596 = vmatprep.subr.bf16.mxu0 %v5701
    %6597 = vmatpush1.bf16.msra.mxu0 %v5700
    %6598 = vmatprep.subr.bf16.mxu0 %v5705
    %6599 = vmatpush1.bf16.msra.mxu0 %v5704
    %6600 = vmatprep.subr.bf16.mxu0 %v5709
    %6601 = vmatpush1.bf16.msra.mxu0 %v5708
    %6602 = vmatprep.subr.bf16.mxu0 %v5713
    %6603 = vmatpush1.bf16.msra.mxu0 %v5712
    %6604 = vmatprep.subr.bf16.mxu0 %v5717
    %6605 = vmatpush1.bf16.msra.mxu0 %v5716
    %6606 = vmatprep.subr.bf16.mxu0 %v5721
    %6607 = vmatpush1.bf16.msra.mxu0 %v5720
    %6608 = vmatprep.subr.bf16.mxu0 %v5725
    %6609 = vmatpush1.bf16.msra.mxu0 %v5724
    %6610 = vmatprep.subr.bf16.mxu0 %v5729
    %6611 = vmatpush1.bf16.msra.mxu0 %v5728
    %6612 = vmatprep.mubr.bf16.mxu0 %v6497
    %6613 = vmatmul.mubr.bf16.gmra.mrb[0].mxu0 %v6496
    %v6614 = vpop.f32.mrb[0].mxu0
    %v6615 = vadd.f32 %v6574, %v6614
    %v6616 = vpop.f32.mrb[0].mxu0
    %v6617 = vadd.f32 %v6576, %v6616
    %v6618 = vpop.f32.mrb[0].mxu0
    %v6619 = vpop.f32.mrb[0].mxu0
    %6620 = vdwg.mxu0
    %6621 = vmatprep.subr.bf16.mxu0 %v5543
    %6622 = vmatpush1.bf16.msra.mxu0 %v5542
    %6623 = vmatprep.subr.bf16.mxu0 %v5547
    %6624 = vmatpush1.bf16.msra.mxu0 %v5546
    %6625 = vmatprep.subr.bf16.mxu0 %v5551
    %6626 = vmatpush1.bf16.msra.mxu0 %v5550
    %6627 = vmatprep.subr.bf16.mxu0 %v5555
    %6628 = vmatpush1.bf16.msra.mxu0 %v5554
    %6629 = vmatprep.subr.bf16.mxu0 %v5559
    %6630 = vmatpush1.bf16.msra.mxu0 %v5558
    %6631 = vmatprep.subr.bf16.mxu0 %v5563
    %6632 = vmatpush1.bf16.msra.mxu0 %v5562
    %6633 = vmatprep.subr.bf16.mxu0 %v5567
    %6634 = vmatpush1.bf16.msra.mxu0 %v5566
    %6635 = vmatprep.subr.bf16.mxu0 %v5571
    %6636 = vmatpush1.bf16.msra.mxu0 %v5570
    %6637 = vmatprep.subr.bf16.mxu0 %v5575
    %6638 = vmatpush1.bf16.msra.mxu0 %v5574
    %6639 = vmatprep.subr.bf16.mxu0 %v5579
    %6640 = vmatpush1.bf16.msra.mxu0 %v5578
    %6641 = vmatprep.subr.bf16.mxu0 %v5583
    %6642 = vmatpush1.bf16.msra.mxu0 %v5582
    %6643 = vmatprep.subr.bf16.mxu0 %v5587
    %6644 = vmatpush1.bf16.msra.mxu0 %v5586
    %6645 = vmatprep.subr.bf16.mxu0 %v5591
    %6646 = vmatpush1.bf16.msra.mxu0 %v5590
    %6647 = vmatprep.subr.bf16.mxu0 %v5595
    %6648 = vmatpush1.bf16.msra.mxu0 %v5594
    %6649 = vmatprep.subr.bf16.mxu0 %v5599
    %6650 = vmatpush1.bf16.msra.mxu0 %v5598
    %6651 = vmatprep.subr.bf16.mxu0 %v5603
    %6652 = vmatpush1.bf16.msra.mxu0 %v5602
    %6653 = vmatprep.mubr.bf16.mxu0 %v6493
    %6654 = vmatmul.mubr.bf16.gmra.mrb[0].mxu0 %v6492
    %v6655 = vpop.f32.mrb[0].mxu0
    %v6656 = vadd.f32 0.0, %v6655
    %v6657 = vpop.f32.mrb[0].mxu0
    %v6658 = vadd.f32 0.0, %v6657
    %v6659 = vpop.f32.mrb[0].mxu0
    %v6660 = vpop.f32.mrb[0].mxu0
    %6661 = vdwg.mxu0
    %6662 = vmatprep.subr.bf16.mxu0 %v5607
    %6663 = vmatpush1.bf16.msra.mxu0 %v5606
    %6664 = vmatprep.subr.bf16.mxu0 %v5611
    %6665 = vmatpush1.bf16.msra.mxu0 %v5610
    %6666 = vmatprep.subr.bf16.mxu0 %v5615
    %6667 = vmatpush1.bf16.msra.mxu0 %v5614
    %6668 = vmatprep.subr.bf16.mxu0 %v5619
    %6669 = vmatpush1.bf16.msra.mxu0 %v5618
    %6670 = vmatprep.subr.bf16.mxu0 %v5623
    %6671 = vmatpush1.bf16.msra.mxu0 %v5622
    %6672 = vmatprep.subr.bf16.mxu0 %v5627
    %6673 = vmatpush1.bf16.msra.mxu0 %v5626
    %6674 = vmatprep.subr.bf16.mxu0 %v5631
    %6675 = vmatpush1.bf16.msra.mxu0 %v5630
    %6676 = vmatprep.subr.bf16.mxu0 %v5635
    %6677 = vmatpush1.bf16.msra.mxu0 %v5634
    %6678 = vmatprep.subr.bf16.mxu0 %v5639
    %6679 = vmatpush1.bf16.msra.mxu0 %v5638
    %6680 = vmatprep.subr.bf16.mxu0 %v5643
    %6681 = vmatpush1.bf16.msra.mxu0 %v5642
    %6682 = vmatprep.subr.bf16.mxu0 %v5647
    %6683 = vmatpush1.bf16.msra.mxu0 %v5646
    %6684 = vmatprep.subr.bf16.mxu0 %v5651
    %6685 = vmatpush1.bf16.msra.mxu0 %v5650
    %6686 = vmatprep.subr.bf16.mxu0 %v5655
    %6687 = vmatpush1.bf16.msra.mxu0 %v5654
    %6688 = vmatprep.subr.bf16.mxu0 %v5659
    %6689 = vmatpush1.bf16.msra.mxu0 %v5658
    %6690 = vmatprep.subr.bf16.mxu0 %v5663
    %6691 = vmatpush1.bf16.msra.mxu0 %v5662
    %6692 = vmatprep.subr.bf16.mxu0 %v5667
    %6693 = vmatpush1.bf16.msra.mxu0 %v5666
    %6694 = vmatprep.mubr.bf16.mxu0 %v6495
    %6695 = vmatmul.mubr.bf16.gmra.mrb[0].mxu0 %v6494
    %v6696 = vpop.f32.mrb[0].mxu0
    %v6697 = vadd.f32 %v6656, %v6696
    %v6698 = vpop.f32.mrb[0].mxu0
    %v6699 = vadd.f32 %v6658, %v6698
    %v6700 = vpop.f32.mrb[0].mxu0
    %v6701 = vpop.f32.mrb[0].mxu0
    %6702 = vdwg.mxu0
    %6703 = vmatprep.subr.bf16.mxu0 %v5671
    %6704 = vmatpush1.bf16.msra.mxu0 %v5670
    %6705 = vmatprep.subr.bf16.mxu0 %v5675
    %6706 = vmatpush1.bf16.msra.mxu0 %v5674
    %6707 = vmatprep.subr.bf16.mxu0 %v5679
    %6708 = vmatpush1.bf16.msra.mxu0 %v5678
    %6709 = vmatprep.subr.bf16.mxu0 %v5683
    %6710 = vmatpush1.bf16.msra.mxu0 %v5682
    %6711 = vmatprep.subr.bf16.mxu0 %v5687
    %6712 = vmatpush1.bf16.msra.mxu0 %v5686
    %6713 = vmatprep.subr.bf16.mxu0 %v5691
    %6714 = vmatpush1.bf16.msra.mxu0 %v5690
    %6715 = vmatprep.subr.bf16.mxu0 %v5695
    %6716 = vmatpush1.bf16.msra.mxu0 %v5694
    %6717 = vmatprep.subr.bf16.mxu0 %v5699
    %6718 = vmatpush1.bf16.msra.mxu0 %v5698
    %6719 = vmatprep.subr.bf16.mxu0 %v5703
    %6720 = vmatpush1.bf16.msra.mxu0 %v5702
    %6721 = vmatprep.subr.bf16.mxu0 %v5707
    %6722 = vmatpush1.bf16.msra.mxu0 %v5706
    %6723 = vmatprep.subr.bf16.mxu0 %v5711
    %6724 = vmatpush1.bf16.msra.mxu0 %v5710
    %6725 = vmatprep.subr.bf16.mxu0 %v5715
    %6726 = vmatpush1.bf16.msra.mxu0 %v5714
    %6727 = vmatprep.subr.bf16.mxu0 %v5719
    %6728 = vmatpush1.bf16.msra.mxu0 %v5718
    %6729 = vmatprep.subr.bf16.mxu0 %v5723
    %6730 = vmatpush1.bf16.msra.mxu0 %v5722
    %6731 = vmatprep.subr.bf16.mxu0 %v5727
    %6732 = vmatpush1.bf16.msra.mxu0 %v5726
    %6733 = vmatprep.subr.bf16.mxu0 %v5731
    %6734 = vmatpush1.bf16.msra.mxu0 %v5730
    %6735 = vmatprep.mubr.bf16.mxu0 %v6497
    %6736 = vmatmul.mubr.bf16.gmra.mrb[0].mxu0 %v6496
    %v6737 = vpop.f32.mrb[0].mxu0
    %v6738 = vadd.f32 %v6697, %v6737
    %v6739 = vpop.f32.mrb[0].mxu0
    %v6740 = vadd.f32 %v6699, %v6739
    %v6741 = vpop.f32.mrb[0].mxu0
    %v6742 = vpop.f32.mrb[0].mxu0
    %6743 = vdwg.mxu0
    %v6744 = vadd.f32 %v6487, %v6615
    %v6745 = vadd.f32 %v6488, %v6617
    %v6746 = vadd.f32 %v6489, %v6738
    %v6747 = vadd.f32 %v6490, %v6740
    %v6748 = vxor.u32 %v6744, 2147483648
    %v6749 = vmul.f32 %v6748, 1.442695
    %v6750 = vpow.pop %v6749
    %v6751 = vadd.f32 %v6750, 1.0
    %v6752 = vrcp.pop %v6751
    %v6753 = vmul.f32 1.0, %v6752
    %v6754 = vxor.u32 %v6745, 2147483648
    %v6755 = vmul.f32 %v6754, 1.442695
    %v6756 = vpow.pop %v6755
    %v6757 = vadd.f32 %v6756, 1.0
    %v6758 = vrcp.pop %v6757
    %v6759 = vmul.f32 1.0, %v6758
    %v6760 = vtanh.pop %v6746
    %v6761 = vxor.u32 %v6747, 2147483648
    %v6762 = vmul.f32 %v6761, 1.442695
    %v6763 = vpow.pop %v6762
    %v6764 = vadd.f32 %v6763, 1.0
    %v6765 = vrcp.pop %v6764
    %v6766 = vmul.f32 1.0, %v6765
    %v6767 = vmul.f32 %v6759, %v6438
    %v6768 = vmul.f32 %v6753, %v6760
    %v6769 = vadd.f32 %v6767, %v6768
    %v6770 = vtanh.pop %v6769
    %v6771 = vmul.f32 %v6766, %v6770
    %v6772 = vrot.slane %v4677, 3
    %v6773 = vrot.slane %v4679, 3
    %v6774 = vrot.slane %v4718, 3
    %v6775 = vrot.slane %v4720, 3
    %v6780 = vrot.slane %v4759, 1
    %v6781 = vrot.slane %v4761, 1
    %v6782 = vrot.slane %v4800, 1
    %v6783 = vrot.slane %v4802, 1
    %v6788 = vrot.slane %v5044, 1
    %v6789 = vrot.slane %v5046, 1
    %v6790 = vrot.slane %v5085, 1
    %v6791 = vrot.slane %v5087, 1
    %v6796 = vrot.slane %v5126, 7
    %v6797 = vrot.slane %v5128, 7
    %v6798 = vrot.slane %v5167, 7
    %v6799 = vrot.slane %v5169, 7
    %v6804 = vrot.slane %v5411, 7
    %v6805 = vrot.slane %v5413, 7
    %v6806 = vrot.slane %v5452, 7
    %v6807 = vrot.slane %v5454, 7
    %v6812 = vrot.slane %v5493, 5
    %v6813 = vrot.slane %v5495, 5
    %v6814 = vrot.slane %v5534, 5
    %v6815 = vrot.slane %v5536, 5
    %v6820 = vsel %vm1333, %v6772, %v6780
    %v6821 = vsel %vm1333, %v6773, %v6781
    %v6822 = vsel %vm1333, %v6774, %v6782
    %v6823 = vsel %vm1333, %v6775, %v6783
    %v6824 = vsel %vm1338, %v6820, %v6788
    %v6825 = vsel %vm1338, %v6821, %v6789
    %v6826 = vsel %vm1338, %v6822, %v6790
    %v6827 = vsel %vm1338, %v6823, %v6791
    %v6828 = vsel %vm1343, %v6824, %v6796
    %v6829 = vsel %vm1343, %v6825, %v6797
    %v6830 = vsel %vm1343, %v6826, %v6798
    %v6831 = vsel %vm1343, %v6827, %v6799
    %v6832 = vsel %vm322, %v6828, %v6804
    %v6833 = vsel %vm322, %v6829, %v6805
    %v6834 = vsel %vm322, %v6830, %v6806
    %v6835 = vsel %vm322, %v6831, %v6807
    %v6836 = vsel %vm1352, %v6832, %v6812
    %v6837 = vsel %vm1352, %v6833, %v6813
    %v6838 = vsel %vm1352, %v6834, %v6814
    %v6839 = vsel %vm1352, %v6835, %v6815
    %v6840 = vpack.c.bf16 %v6771, %v6771
    %v6841 = vmul.bf16 %v6840, %v202
    %v6842 = vmul.bf16 %v6840, %v203
    %v6843 = vmul.bf16 %v6840, %v204
    %v6844 = vmul.bf16 %v6840, %v205
    %v6845 = vmul.bf16 %v6840, %v206
    %v6846 = vmul.bf16 %v6840, %v207
    %6847 = vmatprep.subr.bf16.mxu0 %v5541
    %6848 = vmatpush1.bf16.msra.mxu0 %v5540
    %6849 = vmatprep.subr.bf16.mxu0 %v5545
    %6850 = vmatpush1.bf16.msra.mxu0 %v5544
    %6851 = vmatprep.subr.bf16.mxu0 %v5549
    %6852 = vmatpush1.bf16.msra.mxu0 %v5548
    %6853 = vmatprep.subr.bf16.mxu0 %v5553
    %6854 = vmatpush1.bf16.msra.mxu0 %v5552
    %6855 = vmatprep.subr.bf16.mxu0 %v5557
    %6856 = vmatpush1.bf16.msra.mxu0 %v5556
    %6857 = vmatprep.subr.bf16.mxu0 %v5561
    %6858 = vmatpush1.bf16.msra.mxu0 %v5560
    %6859 = vmatprep.subr.bf16.mxu0 %v5565
    %6860 = vmatpush1.bf16.msra.mxu0 %v5564
    %6861 = vmatprep.subr.bf16.mxu0 %v5569
    %6862 = vmatpush1.bf16.msra.mxu0 %v5568
    %6863 = vmatprep.subr.bf16.mxu0 %v5573
    %6864 = vmatpush1.bf16.msra.mxu0 %v5572
    %6865 = vmatprep.subr.bf16.mxu0 %v5577
    %6866 = vmatpush1.bf16.msra.mxu0 %v5576
    %6867 = vmatprep.subr.bf16.mxu0 %v5581
    %6868 = vmatpush1.bf16.msra.mxu0 %v5580
    %6869 = vmatprep.subr.bf16.mxu0 %v5585
    %6870 = vmatpush1.bf16.msra.mxu0 %v5584
    %6871 = vmatprep.subr.bf16.mxu0 %v5589
    %6872 = vmatpush1.bf16.msra.mxu0 %v5588
    %6873 = vmatprep.subr.bf16.mxu0 %v5593
    %6874 = vmatpush1.bf16.msra.mxu0 %v5592
    %6875 = vmatprep.subr.bf16.mxu0 %v5597
    %6876 = vmatpush1.bf16.msra.mxu0 %v5596
    %6877 = vmatprep.subr.bf16.mxu0 %v5601
    %6878 = vmatpush1.bf16.msra.mxu0 %v5600
    %6879 = vmatprep.mubr.bf16.mxu0 %v6842
    %6880 = vmatmul.mubr.bf16.gmra.mrb[0].mxu0 %v6841
    %v6881 = vpop.f32.mrb[0].mxu0
    %v6882 = vadd.f32 0.0, %v6881
    %v6883 = vpop.f32.mrb[0].mxu0
    %v6884 = vadd.f32 0.0, %v6883
    %v6885 = vpop.f32.mrb[0].mxu0
    %v6886 = vpop.f32.mrb[0].mxu0
    %6887 = vdwg.mxu0
    %6888 = vmatprep.subr.bf16.mxu0 %v5605
    %6889 = vmatpush1.bf16.msra.mxu0 %v5604
    %6890 = vmatprep.subr.bf16.mxu0 %v5609
    %6891 = vmatpush1.bf16.msra.mxu0 %v5608
    %6892 = vmatprep.subr.bf16.mxu0 %v5613
    %6893 = vmatpush1.bf16.msra.mxu0 %v5612
    %6894 = vmatprep.subr.bf16.mxu0 %v5617
    %6895 = vmatpush1.bf16.msra.mxu0 %v5616
    %6896 = vmatprep.subr.bf16.mxu0 %v5621
    %6897 = vmatpush1.bf16.msra.mxu0 %v5620
    %6898 = vmatprep.subr.bf16.mxu0 %v5625
    %6899 = vmatpush1.bf16.msra.mxu0 %v5624
    %6900 = vmatprep.subr.bf16.mxu0 %v5629
    %6901 = vmatpush1.bf16.msra.mxu0 %v5628
    %6902 = vmatprep.subr.bf16.mxu0 %v5633
    %6903 = vmatpush1.bf16.msra.mxu0 %v5632
    %6904 = vmatprep.subr.bf16.mxu0 %v5637
    %6905 = vmatpush1.bf16.msra.mxu0 %v5636
    %6906 = vmatprep.subr.bf16.mxu0 %v5641
    %6907 = vmatpush1.bf16.msra.mxu0 %v5640
    %6908 = vmatprep.subr.bf16.mxu0 %v5645
    %6909 = vmatpush1.bf16.msra.mxu0 %v5644
    %6910 = vmatprep.subr.bf16.mxu0 %v5649
    %6911 = vmatpush1.bf16.msra.mxu0 %v5648
    %6912 = vmatprep.subr.bf16.mxu0 %v5653
    %6913 = vmatpush1.bf16.msra.mxu0 %v5652
    %6914 = vmatprep.subr.bf16.mxu0 %v5657
    %6915 = vmatpush1.bf16.msra.mxu0 %v5656
    %6916 = vmatprep.subr.bf16.mxu0 %v5661
    %6917 = vmatpush1.bf16.msra.mxu0 %v5660
    %6918 = vmatprep.subr.bf16.mxu0 %v5665
    %6919 = vmatpush1.bf16.msra.mxu0 %v5664
    %6920 = vmatprep.mubr.bf16.mxu0 %v6844
    %6921 = vmatmul.mubr.bf16.gmra.mrb[0].mxu0 %v6843
    %v6922 = vpop.f32.mrb[0].mxu0
    %v6923 = vadd.f32 %v6882, %v6922
    %v6924 = vpop.f32.mrb[0].mxu0
    %v6925 = vadd.f32 %v6884, %v6924
    %v6926 = vpop.f32.mrb[0].mxu0
    %v6927 = vpop.f32.mrb[0].mxu0
    %6928 = vdwg.mxu0
    %6929 = vmatprep.subr.bf16.mxu0 %v5669
    %6930 = vmatpush1.bf16.msra.mxu0 %v5668
    %6931 = vmatprep.subr.bf16.mxu0 %v5673
    %6932 = vmatpush1.bf16.msra.mxu0 %v5672
    %6933 = vmatprep.subr.bf16.mxu0 %v5677
    %6934 = vmatpush1.bf16.msra.mxu0 %v5676
    %6935 = vmatprep.subr.bf16.mxu0 %v5681
    %6936 = vmatpush1.bf16.msra.mxu0 %v5680
    %6937 = vmatprep.subr.bf16.mxu0 %v5685
    %6938 = vmatpush1.bf16.msra.mxu0 %v5684
    %6939 = vmatprep.subr.bf16.mxu0 %v5689
    %6940 = vmatpush1.bf16.msra.mxu0 %v5688
    %6941 = vmatprep.subr.bf16.mxu0 %v5693
    %6942 = vmatpush1.bf16.msra.mxu0 %v5692
    %6943 = vmatprep.subr.bf16.mxu0 %v5697
    %6944 = vmatpush1.bf16.msra.mxu0 %v5696
    %6945 = vmatprep.subr.bf16.mxu0 %v5701
    %6946 = vmatpush1.bf16.msra.mxu0 %v5700
    %6947 = vmatprep.subr.bf16.mxu0 %v5705
    %6948 = vmatpush1.bf16.msra.mxu0 %v5704
    %6949 = vmatprep.subr.bf16.mxu0 %v5709
    %6950 = vmatpush1.bf16.msra.mxu0 %v5708
    %6951 = vmatprep.subr.bf16.mxu0 %v5713
    %6952 = vmatpush1.bf16.msra.mxu0 %v5712
    %6953 = vmatprep.subr.bf16.mxu0 %v5717
    %6954 = vmatpush1.bf16.msra.mxu0 %v5716
    %6955 = vmatprep.subr.bf16.mxu0 %v5721
    %6956 = vmatpush1.bf16.msra.mxu0 %v5720
    %6957 = vmatprep.subr.bf16.mxu0 %v5725
    %6958 = vmatpush1.bf16.msra.mxu0 %v5724
    %6959 = vmatprep.subr.bf16.mxu0 %v5729
    %6960 = vmatpush1.bf16.msra.mxu0 %v5728
    %6961 = vmatprep.mubr.bf16.mxu0 %v6846
    %6962 = vmatmul.mubr.bf16.gmra.mrb[0].mxu0 %v6845
    %v6963 = vpop.f32.mrb[0].mxu0
    %v6964 = vadd.f32 %v6923, %v6963
    %v6965 = vpop.f32.mrb[0].mxu0
    %v6966 = vadd.f32 %v6925, %v6965
    %v6967 = vpop.f32.mrb[0].mxu0
    %v6968 = vpop.f32.mrb[0].mxu0
    %6969 = vdwg.mxu0
    %6970 = vmatprep.subr.bf16.mxu0 %v5543
    %6971 = vmatpush1.bf16.msra.mxu0 %v5542
    %6972 = vmatprep.subr.bf16.mxu0 %v5547
    %6973 = vmatpush1.bf16.msra.mxu0 %v5546
    %6974 = vmatprep.subr.bf16.mxu0 %v5551
    %6975 = vmatpush1.bf16.msra.mxu0 %v5550
    %6976 = vmatprep.subr.bf16.mxu0 %v5555
    %6977 = vmatpush1.bf16.msra.mxu0 %v5554
    %6978 = vmatprep.subr.bf16.mxu0 %v5559
    %6979 = vmatpush1.bf16.msra.mxu0 %v5558
    %6980 = vmatprep.subr.bf16.mxu0 %v5563
    %6981 = vmatpush1.bf16.msra.mxu0 %v5562
    %6982 = vmatprep.subr.bf16.mxu0 %v5567
    %6983 = vmatpush1.bf16.msra.mxu0 %v5566
    %6984 = vmatprep.subr.bf16.mxu0 %v5571
    %6985 = vmatpush1.bf16.msra.mxu0 %v5570
    %6986 = vmatprep.subr.bf16.mxu0 %v5575
    %6987 = vmatpush1.bf16.msra.mxu0 %v5574
    %6988 = vmatprep.subr.bf16.mxu0 %v5579
    %6989 = vmatpush1.bf16.msra.mxu0 %v5578
    %6990 = vmatprep.subr.bf16.mxu0 %v5583
    %6991 = vmatpush1.bf16.msra.mxu0 %v5582
    %6992 = vmatprep.subr.bf16.mxu0 %v5587
    %6993 = vmatpush1.bf16.msra.mxu0 %v5586
    %6994 = vmatprep.subr.bf16.mxu0 %v5591
    %6995 = vmatpush1.bf16.msra.mxu0 %v5590
    %6996 = vmatprep.subr.bf16.mxu0 %v5595
    %6997 = vmatpush1.bf16.msra.mxu0 %v5594
    %6998 = vmatprep.subr.bf16.mxu0 %v5599
    %6999 = vmatpush1.bf16.msra.mxu0 %v5598
    %7000 = vmatprep.subr.bf16.mxu0 %v5603
    %7001 = vmatpush1.bf16.msra.mxu0 %v5602
    %7002 = vmatprep.mubr.bf16.mxu0 %v6842
    %7003 = vmatmul.mubr.bf16.gmra.mrb[0].mxu0 %v6841
    %v7004 = vpop.f32.mrb[0].mxu0
    %v7005 = vadd.f32 0.0, %v7004
    %v7006 = vpop.f32.mrb[0].mxu0
    %v7007 = vadd.f32 0.0, %v7006
    %v7008 = vpop.f32.mrb[0].mxu0
    %v7009 = vpop.f32.mrb[0].mxu0
    %7010 = vdwg.mxu0
    %7011 = vmatprep.subr.bf16.mxu0 %v5607
    %7012 = vmatpush1.bf16.msra.mxu0 %v5606
    %7013 = vmatprep.subr.bf16.mxu0 %v5611
    %7014 = vmatpush1.bf16.msra.mxu0 %v5610
    %7015 = vmatprep.subr.bf16.mxu0 %v5615
    %7016 = vmatpush1.bf16.msra.mxu0 %v5614
    %7017 = vmatprep.subr.bf16.mxu0 %v5619
    %7018 = vmatpush1.bf16.msra.mxu0 %v5618
    %7019 = vmatprep.subr.bf16.mxu0 %v5623
    %7020 = vmatpush1.bf16.msra.mxu0 %v5622
    %7021 = vmatprep.subr.bf16.mxu0 %v5627
    %7022 = vmatpush1.bf16.msra.mxu0 %v5626
    %7023 = vmatprep.subr.bf16.mxu0 %v5631
    %7024 = vmatpush1.bf16.msra.mxu0 %v5630
    %7025 = vmatprep.subr.bf16.mxu0 %v5635
    %7026 = vmatpush1.bf16.msra.mxu0 %v5634
    %7027 = vmatprep.subr.bf16.mxu0 %v5639
    %7028 = vmatpush1.bf16.msra.mxu0 %v5638
    %7029 = vmatprep.subr.bf16.mxu0 %v5643
    %7030 = vmatpush1.bf16.msra.mxu0 %v5642
    %7031 = vmatprep.subr.bf16.mxu0 %v5647
    %7032 = vmatpush1.bf16.msra.mxu0 %v5646
    %7033 = vmatprep.subr.bf16.mxu0 %v5651
    %7034 = vmatpush1.bf16.msra.mxu0 %v5650
    %7035 = vmatprep.subr.bf16.mxu0 %v5655
    %7036 = vmatpush1.bf16.msra.mxu0 %v5654
    %7037 = vmatprep.subr.bf16.mxu0 %v5659
    %7038 = vmatpush1.bf16.msra.mxu0 %v5658
    %7039 = vmatprep.subr.bf16.mxu0 %v5663
    %7040 = vmatpush1.bf16.msra.mxu0 %v5662
    %7041 = vmatprep.subr.bf16.mxu0 %v5667
    %7042 = vmatpush1.bf16.msra.mxu0 %v5666
    %7043 = vmatprep.mubr.bf16.mxu0 %v6844
    %7044 = vmatmul.mubr.bf16.gmra.mrb[0].mxu0 %v6843
    %v7045 = vpop.f32.mrb[0].mxu0
    %v7046 = vadd.f32 %v7005, %v7045
    %v7047 = vpop.f32.mrb[0].mxu0
    %v7048 = vadd.f32 %v7007, %v7047
    %v7049 = vpop.f32.mrb[0].mxu0
    %v7050 = vpop.f32.mrb[0].mxu0
    %7051 = vdwg.mxu0
    %7052 = vmatprep.subr.bf16.mxu0 %v5671
    %7053 = vmatpush1.bf16.msra.mxu0 %v5670
    %7054 = vmatprep.subr.bf16.mxu0 %v5675
    %7055 = vmatpush1.bf16.msra.mxu0 %v5674
    %7056 = vmatprep.subr.bf16.mxu0 %v5679
    %7057 = vmatpush1.bf16.msra.mxu0 %v5678
    %7058 = vmatprep.subr.bf16.mxu0 %v5683
    %7059 = vmatpush1.bf16.msra.mxu0 %v5682
    %7060 = vmatprep.subr.bf16.mxu0 %v5687
    %7061 = vmatpush1.bf16.msra.mxu0 %v5686
    %7062 = vmatprep.subr.bf16.mxu0 %v5691
    %7063 = vmatpush1.bf16.msra.mxu0 %v5690
    %7064 = vmatprep.subr.bf16.mxu0 %v5695
    %7065 = vmatpush1.bf16.msra.mxu0 %v5694
    %7066 = vmatprep.subr.bf16.mxu0 %v5699
    %7067 = vmatpush1.bf16.msra.mxu0 %v5698
    %7068 = vmatprep.subr.bf16.mxu0 %v5703
    %7069 = vmatpush1.bf16.msra.mxu0 %v5702
    %7070 = vmatprep.subr.bf16.mxu0 %v5707
    %7071 = vmatpush1.bf16.msra.mxu0 %v5706
    %7072 = vmatprep.subr.bf16.mxu0 %v5711
    %7073 = vmatpush1.bf16.msra.mxu0 %v5710
    %7074 = vmatprep.subr.bf16.mxu0 %v5715
    %7075 = vmatpush1.bf16.msra.mxu0 %v5714
    %7076 = vmatprep.subr.bf16.mxu0 %v5719
    %7077 = vmatpush1.bf16.msra.mxu0 %v5718
    %7078 = vmatprep.subr.bf16.mxu0 %v5723
    %7079 = vmatpush1.bf16.msra.mxu0 %v5722
    %7080 = vmatprep.subr.bf16.mxu0 %v5727
    %7081 = vmatpush1.bf16.msra.mxu0 %v5726
    %7082 = vmatprep.subr.bf16.mxu0 %v5731
    %7083 = vmatpush1.bf16.msra.mxu0 %v5730
    %7084 = vmatprep.mubr.bf16.mxu0 %v6846
    %7085 = vmatmul.mubr.bf16.gmra.mrb[0].mxu0 %v6845
    %v7086 = vpop.f32.mrb[0].mxu0
    %v7087 = vadd.f32 %v7046, %v7086
    %v7088 = vpop.f32.mrb[0].mxu0
    %v7089 = vadd.f32 %v7048, %v7088
    %v7090 = vpop.f32.mrb[0].mxu0
    %v7091 = vpop.f32.mrb[0].mxu0
    %7092 = vdwg.mxu0
    %v7093 = vadd.f32 %v6836, %v6964
    %v7094 = vadd.f32 %v6837, %v6966
    %v7095 = vadd.f32 %v6838, %v7087
    %v7096 = vadd.f32 %v6839, %v7089
    %v7097 = vxor.u32 %v7093, 2147483648
    %v7098 = vmul.f32 %v7097, 1.442695
    %v7099 = vpow.pop %v7098
    %v7100 = vadd.f32 %v7099, 1.0
    %v7101 = vrcp.pop %v7100
    %v7102 = vmul.f32 1.0, %v7101
    %v7103 = vxor.u32 %v7094, 2147483648
    %v7104 = vmul.f32 %v7103, 1.442695
    %v7105 = vpow.pop %v7104
    %v7106 = vadd.f32 %v7105, 1.0
    %v7107 = vrcp.pop %v7106
    %v7108 = vmul.f32 1.0, %v7107
    %v7109 = vtanh.pop %v7095
    %v7110 = vxor.u32 %v7096, 2147483648
    %v7111 = vmul.f32 %v7110, 1.442695
    %v7112 = vpow.pop %v7111
    %v7113 = vadd.f32 %v7112, 1.0
    %v7114 = vrcp.pop %v7113
    %v7115 = vmul.f32 1.0, %v7114
    %v7116 = vmul.f32 %v7108, %v6769
    %v7117 = vmul.f32 %v7102, %v7109
    %v7118 = vadd.f32 %v7116, %v7117
    %v7119 = vtanh.pop %v7118
    %v7120 = vmul.f32 %v7115, %v7119
    %v7121 = vrot.slane %v4677, 4
    %v7122 = vrot.slane %v4679, 4
    %v7123 = vrot.slane %v4718, 4
    %v7124 = vrot.slane %v4720, 4
    %v7129 = vrot.slane %v5044, 2
    %v7130 = vrot.slane %v5046, 2
    %v7131 = vrot.slane %v5085, 2
    %v7132 = vrot.slane %v5087, 2
    %v7137 = vrot.slane %v5126, 6
    %v7138 = vrot.slane %v5128, 6
    %v7139 = vrot.slane %v5167, 6
    %v7140 = vrot.slane %v5169, 6
    %v7145 = vrot.slane %v5493, 4
    %v7146 = vrot.slane %v5495, 4
    %v7147 = vrot.slane %v5534, 4
    %v7148 = vrot.slane %v5536, 4
    %v7153 = vsel %vm1333, %v7121, %v4759
    %v7154 = vsel %vm1333, %v7122, %v4761
    %v7155 = vsel %vm1333, %v7123, %v4800
    %v7156 = vsel %vm1333, %v7124, %v4802
    %v7157 = vsel %vm1338, %v7153, %v7129
    %v7158 = vsel %vm1338, %v7154, %v7130
    %v7159 = vsel %vm1338, %v7155, %v7131
    %v7160 = vsel %vm1338, %v7156, %v7132
    %v7161 = vsel %vm1343, %v7157, %v7137
    %v7162 = vsel %vm1343, %v7158, %v7138
    %v7163 = vsel %vm1343, %v7159, %v7139
    %v7164 = vsel %vm1343, %v7160, %v7140
    %v7165 = vsel %vm322, %v7161, %v5411
    %v7166 = vsel %vm322, %v7162, %v5413
    %v7167 = vsel %vm322, %v7163, %v5452
    %v7168 = vsel %vm322, %v7164, %v5454
    %v7169 = vsel %vm1352, %v7165, %v7145
    %v7170 = vsel %vm1352, %v7166, %v7146
    %v7171 = vsel %vm1352, %v7167, %v7147
    %v7172 = vsel %vm1352, %v7168, %v7148
    %v7173 = vpack.c.bf16 %v7120, %v7120
    %v7174 = vmul.bf16 %v7173, %v202
    %v7175 = vmul.bf16 %v7173, %v203
    %v7176 = vmul.bf16 %v7173, %v204
    %v7177 = vmul.bf16 %v7173, %v205
    %v7178 = vmul.bf16 %v7173, %v206
    %v7179 = vmul.bf16 %v7173, %v207
    %7180 = vmatprep.subr.bf16.mxu0 %v5541
    %7181 = vmatpush1.bf16.msra.mxu0 %v5540
    %7182 = vmatprep.subr.bf16.mxu0 %v5545
    %7183 = vmatpush1.bf16.msra.mxu0 %v5544
    %7184 = vmatprep.subr.bf16.mxu0 %v5549
    %7185 = vmatpush1.bf16.msra.mxu0 %v5548
    %7186 = vmatprep.subr.bf16.mxu0 %v5553
    %7187 = vmatpush1.bf16.msra.mxu0 %v5552
    %7188 = vmatprep.subr.bf16.mxu0 %v5557
    %7189 = vmatpush1.bf16.msra.mxu0 %v5556
    %7190 = vmatprep.subr.bf16.mxu0 %v5561
    %7191 = vmatpush1.bf16.msra.mxu0 %v5560
    %7192 = vmatprep.subr.bf16.mxu0 %v5565
    %7193 = vmatpush1.bf16.msra.mxu0 %v5564
    %7194 = vmatprep.subr.bf16.mxu0 %v5569
    %7195 = vmatpush1.bf16.msra.mxu0 %v5568
    %7196 = vmatprep.subr.bf16.mxu0 %v5573
    %7197 = vmatpush1.bf16.msra.mxu0 %v5572
    %7198 = vmatprep.subr.bf16.mxu0 %v5577
    %7199 = vmatpush1.bf16.msra.mxu0 %v5576
    %7200 = vmatprep.subr.bf16.mxu0 %v5581
    %7201 = vmatpush1.bf16.msra.mxu0 %v5580
    %7202 = vmatprep.subr.bf16.mxu0 %v5585
    %7203 = vmatpush1.bf16.msra.mxu0 %v5584
    %7204 = vmatprep.subr.bf16.mxu0 %v5589
    %7205 = vmatpush1.bf16.msra.mxu0 %v5588
    %7206 = vmatprep.subr.bf16.mxu0 %v5593
    %7207 = vmatpush1.bf16.msra.mxu0 %v5592
    %7208 = vmatprep.subr.bf16.mxu0 %v5597
    %7209 = vmatpush1.bf16.msra.mxu0 %v5596
    %7210 = vmatprep.subr.bf16.mxu0 %v5601
    %7211 = vmatpush1.bf16.msra.mxu0 %v5600
    %7212 = vmatprep.mubr.bf16.mxu0 %v7175
    %7213 = vmatmul.mubr.bf16.gmra.mrb[0].mxu0 %v7174
    %v7214 = vpop.f32.mrb[0].mxu0
    %v7215 = vadd.f32 0.0, %v7214
    %v7216 = vpop.f32.mrb[0].mxu0
    %v7217 = vadd.f32 0.0, %v7216
    %v7218 = vpop.f32.mrb[0].mxu0
    %v7219 = vpop.f32.mrb[0].mxu0
    %7220 = vdwg.mxu0
    %7221 = vmatprep.subr.bf16.mxu0 %v5605
    %7222 = vmatpush1.bf16.msra.mxu0 %v5604
    %7223 = vmatprep.subr.bf16.mxu0 %v5609
    %7224 = vmatpush1.bf16.msra.mxu0 %v5608
    %7225 = vmatprep.subr.bf16.mxu0 %v5613
    %7226 = vmatpush1.bf16.msra.mxu0 %v5612
    %7227 = vmatprep.subr.bf16.mxu0 %v5617
    %7228 = vmatpush1.bf16.msra.mxu0 %v5616
    %7229 = vmatprep.subr.bf16.mxu0 %v5621
    %7230 = vmatpush1.bf16.msra.mxu0 %v5620
    %7231 = vmatprep.subr.bf16.mxu0 %v5625
    %7232 = vmatpush1.bf16.msra.mxu0 %v5624
    %7233 = vmatprep.subr.bf16.mxu0 %v5629
    %7234 = vmatpush1.bf16.msra.mxu0 %v5628
    %7235 = vmatprep.subr.bf16.mxu0 %v5633
    %7236 = vmatpush1.bf16.msra.mxu0 %v5632
    %7237 = vmatprep.subr.bf16.mxu0 %v5637
    %7238 = vmatpush1.bf16.msra.mxu0 %v5636
    %7239 = vmatprep.subr.bf16.mxu0 %v5641
    %7240 = vmatpush1.bf16.msra.mxu0 %v5640
    %7241 = vmatprep.subr.bf16.mxu0 %v5645
    %7242 = vmatpush1.bf16.msra.mxu0 %v5644
    %7243 = vmatprep.subr.bf16.mxu0 %v5649
    %7244 = vmatpush1.bf16.msra.mxu0 %v5648
    %7245 = vmatprep.subr.bf16.mxu0 %v5653
    %7246 = vmatpush1.bf16.msra.mxu0 %v5652
    %7247 = vmatprep.subr.bf16.mxu0 %v5657
    %7248 = vmatpush1.bf16.msra.mxu0 %v5656
    %7249 = vmatprep.subr.bf16.mxu0 %v5661
    %7250 = vmatpush1.bf16.msra.mxu0 %v5660
    %7251 = vmatprep.subr.bf16.mxu0 %v5665
    %7252 = vmatpush1.bf16.msra.mxu0 %v5664
    %7253 = vmatprep.mubr.bf16.mxu0 %v7177
    %7254 = vmatmul.mubr.bf16.gmra.mrb[0].mxu0 %v7176
    %v7255 = vpop.f32.mrb[0].mxu0
    %v7256 = vadd.f32 %v7215, %v7255
    %v7257 = vpop.f32.mrb[0].mxu0
    %v7258 = vadd.f32 %v7217, %v7257
    %v7259 = vpop.f32.mrb[0].mxu0
    %v7260 = vpop.f32.mrb[0].mxu0
    %7261 = vdwg.mxu0
    %7262 = vmatprep.subr.bf16.mxu0 %v5669
    %7263 = vmatpush1.bf16.msra.mxu0 %v5668
    %7264 = vmatprep.subr.bf16.mxu0 %v5673
    %7265 = vmatpush1.bf16.msra.mxu0 %v5672
    %7266 = vmatprep.subr.bf16.mxu0 %v5677
    %7267 = vmatpush1.bf16.msra.mxu0 %v5676
    %7268 = vmatprep.subr.bf16.mxu0 %v5681
    %7269 = vmatpush1.bf16.msra.mxu0 %v5680
    %7270 = vmatprep.subr.bf16.mxu0 %v5685
    %7271 = vmatpush1.bf16.msra.mxu0 %v5684
    %7272 = vmatprep.subr.bf16.mxu0 %v5689
    %7273 = vmatpush1.bf16.msra.mxu0 %v5688
    %7274 = vmatprep.subr.bf16.mxu0 %v5693
    %7275 = vmatpush1.bf16.msra.mxu0 %v5692
    %7276 = vmatprep.subr.bf16.mxu0 %v5697
    %7277 = vmatpush1.bf16.msra.mxu0 %v5696
    %7278 = vmatprep.subr.bf16.mxu0 %v5701
    %7279 = vmatpush1.bf16.msra.mxu0 %v5700
    %7280 = vmatprep.subr.bf16.mxu0 %v5705
    %7281 = vmatpush1.bf16.msra.mxu0 %v5704
    %7282 = vmatprep.subr.bf16.mxu0 %v5709
    %7283 = vmatpush1.bf16.msra.mxu0 %v5708
    %7284 = vmatprep.subr.bf16.mxu0 %v5713
    %7285 = vmatpush1.bf16.msra.mxu0 %v5712
    %7286 = vmatprep.subr.bf16.mxu0 %v5717
    %7287 = vmatpush1.bf16.msra.mxu0 %v5716
    %7288 = vmatprep.subr.bf16.mxu0 %v5721
    %7289 = vmatpush1.bf16.msra.mxu0 %v5720
    %7290 = vmatprep.subr.bf16.mxu0 %v5725
    %7291 = vmatpush1.bf16.msra.mxu0 %v5724
    %7292 = vmatprep.subr.bf16.mxu0 %v5729
    %7293 = vmatpush1.bf16.msra.mxu0 %v5728
    %7294 = vmatprep.mubr.bf16.mxu0 %v7179
    %7295 = vmatmul.mubr.bf16.gmra.mrb[0].mxu0 %v7178
    %v7296 = vpop.f32.mrb[0].mxu0
    %v7297 = vadd.f32 %v7256, %v7296
    %v7298 = vpop.f32.mrb[0].mxu0
    %v7299 = vadd.f32 %v7258, %v7298
    %v7300 = vpop.f32.mrb[0].mxu0
    %v7301 = vpop.f32.mrb[0].mxu0
    %7302 = vdwg.mxu0
    %7303 = vmatprep.subr.bf16.mxu0 %v5543
    %7304 = vmatpush1.bf16.msra.mxu0 %v5542
    %7305 = vmatprep.subr.bf16.mxu0 %v5547
    %7306 = vmatpush1.bf16.msra.mxu0 %v5546
    %7307 = vmatprep.subr.bf16.mxu0 %v5551
    %7308 = vmatpush1.bf16.msra.mxu0 %v5550
    %7309 = vmatprep.subr.bf16.mxu0 %v5555
    %7310 = vmatpush1.bf16.msra.mxu0 %v5554
    %7311 = vmatprep.subr.bf16.mxu0 %v5559
    %7312 = vmatpush1.bf16.msra.mxu0 %v5558
    %7313 = vmatprep.subr.bf16.mxu0 %v5563
    %7314 = vmatpush1.bf16.msra.mxu0 %v5562
    %7315 = vmatprep.subr.bf16.mxu0 %v5567
    %7316 = vmatpush1.bf16.msra.mxu0 %v5566
    %7317 = vmatprep.subr.bf16.mxu0 %v5571
    %7318 = vmatpush1.bf16.msra.mxu0 %v5570
    %7319 = vmatprep.subr.bf16.mxu0 %v5575
    %7320 = vmatpush1.bf16.msra.mxu0 %v5574
    %7321 = vmatprep.subr.bf16.mxu0 %v5579
    %7322 = vmatpush1.bf16.msra.mxu0 %v5578
    %7323 = vmatprep.subr.bf16.mxu0 %v5583
    %7324 = vmatpush1.bf16.msra.mxu0 %v5582
    %7325 = vmatprep.subr.bf16.mxu0 %v5587
    %7326 = vmatpush1.bf16.msra.mxu0 %v5586
    %7327 = vmatprep.subr.bf16.mxu0 %v5591
    %7328 = vmatpush1.bf16.msra.mxu0 %v5590
    %7329 = vmatprep.subr.bf16.mxu0 %v5595
    %7330 = vmatpush1.bf16.msra.mxu0 %v5594
    %7331 = vmatprep.subr.bf16.mxu0 %v5599
    %7332 = vmatpush1.bf16.msra.mxu0 %v5598
    %7333 = vmatprep.subr.bf16.mxu0 %v5603
    %7334 = vmatpush1.bf16.msra.mxu0 %v5602
    %7335 = vmatprep.mubr.bf16.mxu0 %v7175
    %7336 = vmatmul.mubr.bf16.gmra.mrb[0].mxu0 %v7174
    %v7337 = vpop.f32.mrb[0].mxu0
    %v7338 = vadd.f32 0.0, %v7337
    %v7339 = vpop.f32.mrb[0].mxu0
    %v7340 = vadd.f32 0.0, %v7339
    %v7341 = vpop.f32.mrb[0].mxu0
    %v7342 = vpop.f32.mrb[0].mxu0
    %7343 = vdwg.mxu0
    %7344 = vmatprep.subr.bf16.mxu0 %v5607
    %7345 = vmatpush1.bf16.msra.mxu0 %v5606
    %7346 = vmatprep.subr.bf16.mxu0 %v5611
    %7347 = vmatpush1.bf16.msra.mxu0 %v5610
    %7348 = vmatprep.subr.bf16.mxu0 %v5615
    %7349 = vmatpush1.bf16.msra.mxu0 %v5614
    %7350 = vmatprep.subr.bf16.mxu0 %v5619
    %7351 = vmatpush1.bf16.msra.mxu0 %v5618
    %7352 = vmatprep.subr.bf16.mxu0 %v5623
    %7353 = vmatpush1.bf16.msra.mxu0 %v5622
    %7354 = vmatprep.subr.bf16.mxu0 %v5627
    %7355 = vmatpush1.bf16.msra.mxu0 %v5626
    %7356 = vmatprep.subr.bf16.mxu0 %v5631
    %7357 = vmatpush1.bf16.msra.mxu0 %v5630
    %7358 = vmatprep.subr.bf16.mxu0 %v5635
    %7359 = vmatpush1.bf16.msra.mxu0 %v5634
    %7360 = vmatprep.subr.bf16.mxu0 %v5639
    %7361 = vmatpush1.bf16.msra.mxu0 %v5638
    %7362 = vmatprep.subr.bf16.mxu0 %v5643
    %7363 = vmatpush1.bf16.msra.mxu0 %v5642
    %7364 = vmatprep.subr.bf16.mxu0 %v5647
    %7365 = vmatpush1.bf16.msra.mxu0 %v5646
    %7366 = vmatprep.subr.bf16.mxu0 %v5651
    %7367 = vmatpush1.bf16.msra.mxu0 %v5650
    %7368 = vmatprep.subr.bf16.mxu0 %v5655
    %7369 = vmatpush1.bf16.msra.mxu0 %v5654
    %7370 = vmatprep.subr.bf16.mxu0 %v5659
    %7371 = vmatpush1.bf16.msra.mxu0 %v5658
    %7372 = vmatprep.subr.bf16.mxu0 %v5663
    %7373 = vmatpush1.bf16.msra.mxu0 %v5662
    %7374 = vmatprep.subr.bf16.mxu0 %v5667
    %7375 = vmatpush1.bf16.msra.mxu0 %v5666
    %7376 = vmatprep.mubr.bf16.mxu0 %v7177
    %7377 = vmatmul.mubr.bf16.gmra.mrb[0].mxu0 %v7176
    %v7378 = vpop.f32.mrb[0].mxu0
    %v7379 = vadd.f32 %v7338, %v7378
    %v7380 = vpop.f32.mrb[0].mxu0
    %v7381 = vadd.f32 %v7340, %v7380
    %v7382 = vpop.f32.mrb[0].mxu0
    %v7383 = vpop.f32.mrb[0].mxu0
    %7384 = vdwg.mxu0
    %7385 = vmatprep.subr.bf16.mxu0 %v5671
    %7386 = vmatpush1.bf16.msra.mxu0 %v5670
    %7387 = vmatprep.subr.bf16.mxu0 %v5675
    %7388 = vmatpush1.bf16.msra.mxu0 %v5674
    %7389 = vmatprep.subr.bf16.mxu0 %v5679
    %7390 = vmatpush1.bf16.msra.mxu0 %v5678
    %7391 = vmatprep.subr.bf16.mxu0 %v5683
    %7392 = vmatpush1.bf16.msra.mxu0 %v5682
    %7393 = vmatprep.subr.bf16.mxu0 %v5687
    %7394 = vmatpush1.bf16.msra.mxu0 %v5686
    %7395 = vmatprep.subr.bf16.mxu0 %v5691
    %7396 = vmatpush1.bf16.msra.mxu0 %v5690
    %7397 = vmatprep.subr.bf16.mxu0 %v5695
    %7398 = vmatpush1.bf16.msra.mxu0 %v5694
    %7399 = vmatprep.subr.bf16.mxu0 %v5699
    %7400 = vmatpush1.bf16.msra.mxu0 %v5698
    %7401 = vmatprep.subr.bf16.mxu0 %v5703
    %7402 = vmatpush1.bf16.msra.mxu0 %v5702
    %7403 = vmatprep.subr.bf16.mxu0 %v5707
    %7404 = vmatpush1.bf16.msra.mxu0 %v5706
    %7405 = vmatprep.subr.bf16.mxu0 %v5711
    %7406 = vmatpush1.bf16.msra.mxu0 %v5710
    %7407 = vmatprep.subr.bf16.mxu0 %v5715
    %7408 = vmatpush1.bf16.msra.mxu0 %v5714
    %7409 = vmatprep.subr.bf16.mxu0 %v5719
    %7410 = vmatpush1.bf16.msra.mxu0 %v5718
    %7411 = vmatprep.subr.bf16.mxu0 %v5723
    %7412 = vmatpush1.bf16.msra.mxu0 %v5722
    %7413 = vmatprep.subr.bf16.mxu0 %v5727
    %7414 = vmatpush1.bf16.msra.mxu0 %v5726
    %7415 = vmatprep.subr.bf16.mxu0 %v5731
    %7416 = vmatpush1.bf16.msra.mxu0 %v5730
    %7417 = vmatprep.mubr.bf16.mxu0 %v7179
    %7418 = vmatmul.mubr.bf16.gmra.mrb[0].mxu0 %v7178
    %v7419 = vpop.f32.mrb[0].mxu0
    %v7420 = vadd.f32 %v7379, %v7419
    %v7421 = vpop.f32.mrb[0].mxu0
    %v7422 = vadd.f32 %v7381, %v7421
    %v7423 = vpop.f32.mrb[0].mxu0
    %v7424 = vpop.f32.mrb[0].mxu0
    %7425 = vdwg.mxu0
    %v7426 = vadd.f32 %v7169, %v7297
    %v7427 = vadd.f32 %v7170, %v7299
    %v7428 = vadd.f32 %v7171, %v7420
    %v7429 = vadd.f32 %v7172, %v7422
    %v7430 = vxor.u32 %v7426, 2147483648
    %v7431 = vmul.f32 %v7430, 1.442695
    %v7432 = vpow.pop %v7431
    %v7433 = vadd.f32 %v7432, 1.0
    %v7434 = vrcp.pop %v7433
    %v7435 = vmul.f32 1.0, %v7434
    %v7436 = vxor.u32 %v7427, 2147483648
    %v7437 = vmul.f32 %v7436, 1.442695
    %v7438 = vpow.pop %v7437
    %v7439 = vadd.f32 %v7438, 1.0
    %v7440 = vrcp.pop %v7439
    %v7441 = vmul.f32 1.0, %v7440
    %v7442 = vtanh.pop %v7428
    %v7443 = vxor.u32 %v7429, 2147483648
    %v7444 = vmul.f32 %v7443, 1.442695
    %v7445 = vpow.pop %v7444
    %v7446 = vadd.f32 %v7445, 1.0
    %v7447 = vrcp.pop %v7446
    %v7448 = vmul.f32 1.0, %v7447
    %v7449 = vmul.f32 %v7441, %v7118
    %v7450 = vmul.f32 %v7435, %v7442
    %v7451 = vadd.f32 %v7449, %v7450
    %v7452 = vtanh.pop %v7451
    %v7453 = vmul.f32 %v7448, %v7452
    %v7454 = vsel %vm322, %v7453, %v7120
    %v7455 = vsel %vm1352, %v7454, %v7453
    %v7456 = vsel %vm322, %v7451, %v7118
    %v7457 = vsel %vm1352, %v7456, %v7451
    %v7458 = vrot.slane %v4677, 5
    %v7459 = vrot.slane %v4679, 5
    %v7460 = vrot.slane %v4718, 5
    %v7461 = vrot.slane %v4720, 5
    %v7466 = vrot.slane %v4759, 7
    %v7467 = vrot.slane %v4761, 7
    %v7468 = vrot.slane %v4800, 7
    %v7469 = vrot.slane %v4802, 7
    %v7474 = vrot.slane %v5044, 3
    %v7475 = vrot.slane %v5046, 3
    %v7476 = vrot.slane %v5085, 3
    %v7477 = vrot.slane %v5087, 3
    %v7482 = vrot.slane %v5126, 5
    %v7483 = vrot.slane %v5128, 5
    %v7484 = vrot.slane %v5167, 5
    %v7485 = vrot.slane %v5169, 5
    %v7490 = vrot.slane %v5411, 1
    %v7491 = vrot.slane %v5413, 1
    %v7492 = vrot.slane %v5452, 1
    %v7493 = vrot.slane %v5454, 1
    %v7498 = vrot.slane %v5493, 3
    %v7499 = vrot.slane %v5495, 3
    %v7500 = vrot.slane %v5534, 3
    %v7501 = vrot.slane %v5536, 3
    %v7506 = vsel %vm1333, %v7458, %v7466
    %v7507 = vsel %vm1333, %v7459, %v7467
    %v7508 = vsel %vm1333, %v7460, %v7468
    %v7509 = vsel %vm1333, %v7461, %v7469
    %v7510 = vsel %vm1338, %v7506, %v7474
    %v7511 = vsel %vm1338, %v7507, %v7475
    %v7512 = vsel %vm1338, %v7508, %v7476
    %v7513 = vsel %vm1338, %v7509, %v7477
    %v7514 = vsel %vm1343, %v7510, %v7482
    %v7515 = vsel %vm1343, %v7511, %v7483
    %v7516 = vsel %vm1343, %v7512, %v7484
    %v7517 = vsel %vm1343, %v7513, %v7485
    %v7518 = vsel %vm322, %v7514, %v7490
    %v7519 = vsel %vm322, %v7515, %v7491
    %v7520 = vsel %vm322, %v7516, %v7492
    %v7521 = vsel %vm322, %v7517, %v7493
    %v7522 = vsel %vm1352, %v7518, %v7498
    %v7523 = vsel %vm1352, %v7519, %v7499
    %v7524 = vsel %vm1352, %v7520, %v7500
    %v7525 = vsel %vm1352, %v7521, %v7501
    %v7526 = vpack.c.bf16 %v7455, %v7455
    %v7527 = vmul.bf16 %v7526, %v202
    %v7528 = vmul.bf16 %v7526, %v203
    %v7529 = vmul.bf16 %v7526, %v204
    %v7530 = vmul.bf16 %v7526, %v205
    %v7531 = vmul.bf16 %v7526, %v206
    %v7532 = vmul.bf16 %v7526, %v207
    %7533 = vmatprep.subr.bf16.mxu0 %v5541
    %7534 = vmatpush1.bf16.msra.mxu0 %v5540
    %7535 = vmatprep.subr.bf16.mxu0 %v5545
    %7536 = vmatpush1.bf16.msra.mxu0 %v5544
    %7537 = vmatprep.subr.bf16.mxu0 %v5549
    %7538 = vmatpush1.bf16.msra.mxu0 %v5548
    %7539 = vmatprep.subr.bf16.mxu0 %v5553
    %7540 = vmatpush1.bf16.msra.mxu0 %v5552
    %7541 = vmatprep.subr.bf16.mxu0 %v5557
    %7542 = vmatpush1.bf16.msra.mxu0 %v5556
    %7543 = vmatprep.subr.bf16.mxu0 %v5561
    %7544 = vmatpush1.bf16.msra.mxu0 %v5560
    %7545 = vmatprep.subr.bf16.mxu0 %v5565
    %7546 = vmatpush1.bf16.msra.mxu0 %v5564
    %7547 = vmatprep.subr.bf16.mxu0 %v5569
    %7548 = vmatpush1.bf16.msra.mxu0 %v5568
    %7549 = vmatprep.subr.bf16.mxu0 %v5573
    %7550 = vmatpush1.bf16.msra.mxu0 %v5572
    %7551 = vmatprep.subr.bf16.mxu0 %v5577
    %7552 = vmatpush1.bf16.msra.mxu0 %v5576
    %7553 = vmatprep.subr.bf16.mxu0 %v5581
    %7554 = vmatpush1.bf16.msra.mxu0 %v5580
    %7555 = vmatprep.subr.bf16.mxu0 %v5585
    %7556 = vmatpush1.bf16.msra.mxu0 %v5584
    %7557 = vmatprep.subr.bf16.mxu0 %v5589
    %7558 = vmatpush1.bf16.msra.mxu0 %v5588
    %7559 = vmatprep.subr.bf16.mxu0 %v5593
    %7560 = vmatpush1.bf16.msra.mxu0 %v5592
    %7561 = vmatprep.subr.bf16.mxu0 %v5597
    %7562 = vmatpush1.bf16.msra.mxu0 %v5596
    %7563 = vmatprep.subr.bf16.mxu0 %v5601
    %7564 = vmatpush1.bf16.msra.mxu0 %v5600
    %7565 = vmatprep.mubr.bf16.mxu0 %v7528
    %7566 = vmatmul.mubr.bf16.gmra.mrb[0].mxu0 %v7527
    %v7567 = vpop.f32.mrb[0].mxu0
    %v7568 = vadd.f32 0.0, %v7567
    %v7569 = vpop.f32.mrb[0].mxu0
    %v7570 = vadd.f32 0.0, %v7569
    %v7571 = vpop.f32.mrb[0].mxu0
    %v7572 = vpop.f32.mrb[0].mxu0
    %7573 = vdwg.mxu0
    %7574 = vmatprep.subr.bf16.mxu0 %v5605
    %7575 = vmatpush1.bf16.msra.mxu0 %v5604
    %7576 = vmatprep.subr.bf16.mxu0 %v5609
    %7577 = vmatpush1.bf16.msra.mxu0 %v5608
    %7578 = vmatprep.subr.bf16.mxu0 %v5613
    %7579 = vmatpush1.bf16.msra.mxu0 %v5612
    %7580 = vmatprep.subr.bf16.mxu0 %v5617
    %7581 = vmatpush1.bf16.msra.mxu0 %v5616
    %7582 = vmatprep.subr.bf16.mxu0 %v5621
    %7583 = vmatpush1.bf16.msra.mxu0 %v5620
    %7584 = vmatprep.subr.bf16.mxu0 %v5625
    %7585 = vmatpush1.bf16.msra.mxu0 %v5624
    %7586 = vmatprep.subr.bf16.mxu0 %v5629
    %7587 = vmatpush1.bf16.msra.mxu0 %v5628
    %7588 = vmatprep.subr.bf16.mxu0 %v5633
    %7589 = vmatpush1.bf16.msra.mxu0 %v5632
    %7590 = vmatprep.subr.bf16.mxu0 %v5637
    %7591 = vmatpush1.bf16.msra.mxu0 %v5636
    %7592 = vmatprep.subr.bf16.mxu0 %v5641
    %7593 = vmatpush1.bf16.msra.mxu0 %v5640
    %7594 = vmatprep.subr.bf16.mxu0 %v5645
    %7595 = vmatpush1.bf16.msra.mxu0 %v5644
    %7596 = vmatprep.subr.bf16.mxu0 %v5649
    %7597 = vmatpush1.bf16.msra.mxu0 %v5648
    %7598 = vmatprep.subr.bf16.mxu0 %v5653
    %7599 = vmatpush1.bf16.msra.mxu0 %v5652
    %7600 = vmatprep.subr.bf16.mxu0 %v5657
    %7601 = vmatpush1.bf16.msra.mxu0 %v5656
    %7602 = vmatprep.subr.bf16.mxu0 %v5661
    %7603 = vmatpush1.bf16.msra.mxu0 %v5660
    %7604 = vmatprep.subr.bf16.mxu0 %v5665
    %7605 = vmatpush1.bf16.msra.mxu0 %v5664
    %7606 = vmatprep.mubr.bf16.mxu0 %v7530
    %7607 = vmatmul.mubr.bf16.gmra.mrb[0].mxu0 %v7529
    %v7608 = vpop.f32.mrb[0].mxu0
    %v7609 = vadd.f32 %v7568, %v7608
    %v7610 = vpop.f32.mrb[0].mxu0
    %v7611 = vadd.f32 %v7570, %v7610
    %v7612 = vpop.f32.mrb[0].mxu0
    %v7613 = vpop.f32.mrb[0].mxu0
    %7614 = vdwg.mxu0
    %7615 = vmatprep.subr.bf16.mxu0 %v5669
    %7616 = vmatpush1.bf16.msra.mxu0 %v5668
    %7617 = vmatprep.subr.bf16.mxu0 %v5673
    %7618 = vmatpush1.bf16.msra.mxu0 %v5672
    %7619 = vmatprep.subr.bf16.mxu0 %v5677
    %7620 = vmatpush1.bf16.msra.mxu0 %v5676
    %7621 = vmatprep.subr.bf16.mxu0 %v5681
    %7622 = vmatpush1.bf16.msra.mxu0 %v5680
    %7623 = vmatprep.subr.bf16.mxu0 %v5685
    %7624 = vmatpush1.bf16.msra.mxu0 %v5684
    %7625 = vmatprep.subr.bf16.mxu0 %v5689
    %7626 = vmatpush1.bf16.msra.mxu0 %v5688
    %7627 = vmatprep.subr.bf16.mxu0 %v5693
    %7628 = vmatpush1.bf16.msra.mxu0 %v5692
    %7629 = vmatprep.subr.bf16.mxu0 %v5697
    %7630 = vmatpush1.bf16.msra.mxu0 %v5696
    %7631 = vmatprep.subr.bf16.mxu0 %v5701
    %7632 = vmatpush1.bf16.msra.mxu0 %v5700
    %7633 = vmatprep.subr.bf16.mxu0 %v5705
    %7634 = vmatpush1.bf16.msra.mxu0 %v5704
    %7635 = vmatprep.subr.bf16.mxu0 %v5709
    %7636 = vmatpush1.bf16.msra.mxu0 %v5708
    %7637 = vmatprep.subr.bf16.mxu0 %v5713
    %7638 = vmatpush1.bf16.msra.mxu0 %v5712
    %7639 = vmatprep.subr.bf16.mxu0 %v5717
    %7640 = vmatpush1.bf16.msra.mxu0 %v5716
    %7641 = vmatprep.subr.bf16.mxu0 %v5721
    %7642 = vmatpush1.bf16.msra.mxu0 %v5720
    %7643 = vmatprep.subr.bf16.mxu0 %v5725
    %7644 = vmatpush1.bf16.msra.mxu0 %v5724
    %7645 = vmatprep.subr.bf16.mxu0 %v5729
    %7646 = vmatpush1.bf16.msra.mxu0 %v5728
    %7647 = vmatprep.mubr.bf16.mxu0 %v7532
    %7648 = vmatmul.mubr.bf16.gmra.mrb[0].mxu0 %v7531
    %v7649 = vpop.f32.mrb[0].mxu0
    %v7650 = vadd.f32 %v7609, %v7649
    %v7651 = vpop.f32.mrb[0].mxu0
    %v7652 = vadd.f32 %v7611, %v7651
    %v7653 = vpop.f32.mrb[0].mxu0
    %v7654 = vpop.f32.mrb[0].mxu0
    %7655 = vdwg.mxu0
    %7656 = vmatprep.subr.bf16.mxu0 %v5543
    %7657 = vmatpush1.bf16.msra.mxu0 %v5542
    %7658 = vmatprep.subr.bf16.mxu0 %v5547
    %7659 = vmatpush1.bf16.msra.mxu0 %v5546
    %7660 = vmatprep.subr.bf16.mxu0 %v5551
    %7661 = vmatpush1.bf16.msra.mxu0 %v5550
    %7662 = vmatprep.subr.bf16.mxu0 %v5555
    %7663 = vmatpush1.bf16.msra.mxu0 %v5554
    %7664 = vmatprep.subr.bf16.mxu0 %v5559
    %7665 = vmatpush1.bf16.msra.mxu0 %v5558
    %7666 = vmatprep.subr.bf16.mxu0 %v5563
    %7667 = vmatpush1.bf16.msra.mxu0 %v5562
    %7668 = vmatprep.subr.bf16.mxu0 %v5567
    %7669 = vmatpush1.bf16.msra.mxu0 %v5566
    %7670 = vmatprep.subr.bf16.mxu0 %v5571
    %7671 = vmatpush1.bf16.msra.mxu0 %v5570
    %7672 = vmatprep.subr.bf16.mxu0 %v5575
    %7673 = vmatpush1.bf16.msra.mxu0 %v5574
    %7674 = vmatprep.subr.bf16.mxu0 %v5579
    %7675 = vmatpush1.bf16.msra.mxu0 %v5578
    %7676 = vmatprep.subr.bf16.mxu0 %v5583
    %7677 = vmatpush1.bf16.msra.mxu0 %v5582
    %7678 = vmatprep.subr.bf16.mxu0 %v5587
    %7679 = vmatpush1.bf16.msra.mxu0 %v5586
    %7680 = vmatprep.subr.bf16.mxu0 %v5591
    %7681 = vmatpush1.bf16.msra.mxu0 %v5590
    %7682 = vmatprep.subr.bf16.mxu0 %v5595
    %7683 = vmatpush1.bf16.msra.mxu0 %v5594
    %7684 = vmatprep.subr.bf16.mxu0 %v5599
    %7685 = vmatpush1.bf16.msra.mxu0 %v5598
    %7686 = vmatprep.subr.bf16.mxu0 %v5603
    %7687 = vmatpush1.bf16.msra.mxu0 %v5602
    %7688 = vmatprep.mubr.bf16.mxu0 %v7528
    %7689 = vmatmul.mubr.bf16.gmra.mrb[0].mxu0 %v7527
    %v7690 = vpop.f32.mrb[0].mxu0
    %v7691 = vadd.f32 0.0, %v7690
    %v7692 = vpop.f32.mrb[0].mxu0
    %v7693 = vadd.f32 0.0, %v7692
    %v7694 = vpop.f32.mrb[0].mxu0
    %v7695 = vpop.f32.mrb[0].mxu0
    %7696 = vdwg.mxu0
    %7697 = vmatprep.subr.bf16.mxu0 %v5607
    %7698 = vmatpush1.bf16.msra.mxu0 %v5606
    %7699 = vmatprep.subr.bf16.mxu0 %v5611
    %7700 = vmatpush1.bf16.msra.mxu0 %v5610
    %7701 = vmatprep.subr.bf16.mxu0 %v5615
    %7702 = vmatpush1.bf16.msra.mxu0 %v5614
    %7703 = vmatprep.subr.bf16.mxu0 %v5619
    %7704 = vmatpush1.bf16.msra.mxu0 %v5618
    %7705 = vmatprep.subr.bf16.mxu0 %v5623
    %7706 = vmatpush1.bf16.msra.mxu0 %v5622
    %7707 = vmatprep.subr.bf16.mxu0 %v5627
    %7708 = vmatpush1.bf16.msra.mxu0 %v5626
    %7709 = vmatprep.subr.bf16.mxu0 %v5631
    %7710 = vmatpush1.bf16.msra.mxu0 %v5630
    %7711 = vmatprep.subr.bf16.mxu0 %v5635
    %7712 = vmatpush1.bf16.msra.mxu0 %v5634
    %7713 = vmatprep.subr.bf16.mxu0 %v5639
    %7714 = vmatpush1.bf16.msra.mxu0 %v5638
    %7715 = vmatprep.subr.bf16.mxu0 %v5643
    %7716 = vmatpush1.bf16.msra.mxu0 %v5642
    %7717 = vmatprep.subr.bf16.mxu0 %v5647
    %7718 = vmatpush1.bf16.msra.mxu0 %v5646
    %7719 = vmatprep.subr.bf16.mxu0 %v5651
    %7720 = vmatpush1.bf16.msra.mxu0 %v5650
    %7721 = vmatprep.subr.bf16.mxu0 %v5655
    %7722 = vmatpush1.bf16.msra.mxu0 %v5654
    %7723 = vmatprep.subr.bf16.mxu0 %v5659
    %7724 = vmatpush1.bf16.msra.mxu0 %v5658
    %7725 = vmatprep.subr.bf16.mxu0 %v5663
    %7726 = vmatpush1.bf16.msra.mxu0 %v5662
    %7727 = vmatprep.subr.bf16.mxu0 %v5667
    %7728 = vmatpush1.bf16.msra.mxu0 %v5666
    %7729 = vmatprep.mubr.bf16.mxu0 %v7530
    %7730 = vmatmul.mubr.bf16.gmra.mrb[0].mxu0 %v7529
    %v7731 = vpop.f32.mrb[0].mxu0
    %v7732 = vadd.f32 %v7691, %v7731
    %v7733 = vpop.f32.mrb[0].mxu0
    %v7734 = vadd.f32 %v7693, %v7733
    %v7735 = vpop.f32.mrb[0].mxu0
    %v7736 = vpop.f32.mrb[0].mxu0
    %7737 = vdwg.mxu0
    %7738 = vmatprep.subr.bf16.mxu0 %v5671
    %7739 = vmatpush1.bf16.msra.mxu0 %v5670
    %7740 = vmatprep.subr.bf16.mxu0 %v5675
    %7741 = vmatpush1.bf16.msra.mxu0 %v5674
    %7742 = vmatprep.subr.bf16.mxu0 %v5679
    %7743 = vmatpush1.bf16.msra.mxu0 %v5678
    %7744 = vmatprep.subr.bf16.mxu0 %v5683
    %7745 = vmatpush1.bf16.msra.mxu0 %v5682
    %7746 = vmatprep.subr.bf16.mxu0 %v5687
    %7747 = vmatpush1.bf16.msra.mxu0 %v5686
    %7748 = vmatprep.subr.bf16.mxu0 %v5691
    %7749 = vmatpush1.bf16.msra.mxu0 %v5690
    %7750 = vmatprep.subr.bf16.mxu0 %v5695
    %7751 = vmatpush1.bf16.msra.mxu0 %v5694
    %7752 = vmatprep.subr.bf16.mxu0 %v5699
    %7753 = vmatpush1.bf16.msra.mxu0 %v5698
    %7754 = vmatprep.subr.bf16.mxu0 %v5703
    %7755 = vmatpush1.bf16.msra.mxu0 %v5702
    %7756 = vmatprep.subr.bf16.mxu0 %v5707
    %7757 = vmatpush1.bf16.msra.mxu0 %v5706
    %7758 = vmatprep.subr.bf16.mxu0 %v5711
    %7759 = vmatpush1.bf16.msra.mxu0 %v5710
    %7760 = vmatprep.subr.bf16.mxu0 %v5715
    %7761 = vmatpush1.bf16.msra.mxu0 %v5714
    %7762 = vmatprep.subr.bf16.mxu0 %v5719
    %7763 = vmatpush1.bf16.msra.mxu0 %v5718
    %7764 = vmatprep.subr.bf16.mxu0 %v5723
    %7765 = vmatpush1.bf16.msra.mxu0 %v5722
    %7766 = vmatprep.subr.bf16.mxu0 %v5727
    %7767 = vmatpush1.bf16.msra.mxu0 %v5726
    %7768 = vmatprep.subr.bf16.mxu0 %v5731
    %7769 = vmatpush1.bf16.msra.mxu0 %v5730
    %7770 = vmatprep.mubr.bf16.mxu0 %v7532
    %7771 = vmatmul.mubr.bf16.gmra.mrb[0].mxu0 %v7531
    %v7772 = vpop.f32.mrb[0].mxu0
    %v7773 = vadd.f32 %v7732, %v7772
    %v7774 = vpop.f32.mrb[0].mxu0
    %v7775 = vadd.f32 %v7734, %v7774
    %v7776 = vpop.f32.mrb[0].mxu0
    %v7777 = vpop.f32.mrb[0].mxu0
    %7778 = vdwg.mxu0
    %v7779 = vadd.f32 %v7522, %v7650
    %v7780 = vadd.f32 %v7523, %v7652
    %v7781 = vadd.f32 %v7524, %v7773
    %v7782 = vadd.f32 %v7525, %v7775
    %v7783 = vxor.u32 %v7779, 2147483648
    %v7784 = vmul.f32 %v7783, 1.442695
    %v7785 = vpow.pop %v7784
    %v7786 = vadd.f32 %v7785, 1.0
    %v7787 = vrcp.pop %v7786
    %v7788 = vmul.f32 1.0, %v7787
    %v7789 = vxor.u32 %v7780, 2147483648
    %v7790 = vmul.f32 %v7789, 1.442695
    %v7791 = vpow.pop %v7790
    %v7792 = vadd.f32 %v7791, 1.0
    %v7793 = vrcp.pop %v7792
    %v7794 = vmul.f32 1.0, %v7793
    %v7795 = vtanh.pop %v7781
    %v7796 = vxor.u32 %v7782, 2147483648
    %v7797 = vmul.f32 %v7796, 1.442695
    %v7798 = vpow.pop %v7797
    %v7799 = vadd.f32 %v7798, 1.0
    %v7800 = vrcp.pop %v7799
    %v7801 = vmul.f32 1.0, %v7800
    %v7802 = vmul.f32 %v7794, %v7457
    %v7803 = vmul.f32 %v7788, %v7795
    %v7804 = vadd.f32 %v7802, %v7803
    %v7805 = vtanh.pop %v7804
    %v7806 = vmul.f32 %v7801, %v7805
    %v7807 = vsel %vm1338, %v7806, %v7455
    %v7808 = vsel %vm1343, %v7807, %v7806
    %v7809 = vsel %vm322, %v7808, %v7455
    %v7810 = vsel %vm1352, %v7809, %v7806
    %v7812 = vrot.slane %v7810, 1
    %v7815 = vrot.slane %v7455, 1
    %v7817 = vrot.slane %v7120, 1
    %v7819 = vrot.slane %v6771, 1
    %v7821 = vrot.slane %v6437, 1
    %v7823 = vrot.slane %v6076, 1
    %v7824 = vrot.slane %v6437, 7
    %v7825 = vrot.slane %v7815, 7
    %v7828 = vrot.slane %v6771, 6
    %v7829 = vrot.slane %v7817, 6
    %v7832 = vrot.slane %v7120, 5
    %v7833 = vrot.slane %v7819, 5
    %v7836 = vrot.slane %v7455, 4
    %v7837 = vrot.slane %v7821, 4
    %v7840 = vrot.slane %v7810, 3
    %v7841 = vrot.slane %v7823, 3
    %v7844 = vsel %vm1333, %v6076, %v7824
    %v7845 = vsel %vm1333, %v7812, %v7825
    %v7846 = vsel %vm1338, %v7844, %v7828
    %v7847 = vsel %vm1338, %v7845, %v7829
    %v7848 = vsel %vm1343, %v7846, %v7832
    %v7849 = vsel %vm1343, %v7847, %v7833
    %v7850 = vsel %vm322, %v7848, %v7836
    %v7851 = vsel %vm322, %v7849, %v7837
    %v7852 = vsel %vm1352, %v7850, %v7840
    %v7853 = vsel %vm1352, %v7851, %v7841
    %v7855 = vrot.slane %v6076, 2
    %v7856 = vrot.slane %v7812, 2
    %v7859 = vrot.slane %v7815, 1
    %v7862 = vrot.slane %v7120, 7
    %v7863 = vrot.slane %v7819, 7
    %v7866 = vrot.slane %v7455, 6
    %v7867 = vrot.slane %v7821, 6
    %v7870 = vsel %vm1333, %v7855, %v7821
    %v7871 = vsel %vm1333, %v7856, %v7859
    %v7872 = vsel %vm1338, %v7870, %v6771
    %v7873 = vsel %vm1338, %v7871, %v7817
    %v7874 = vsel %vm1343, %v7872, %v7862
    %v7875 = vsel %vm1343, %v7873, %v7863
    %v7876 = vsel %vm322, %v7874, %v7866
    %v7877 = vsel %vm322, %v7875, %v7867
    %v7878 = vsel %vm1352, %v7876, 0.0
    %v7879 = vsel %vm1352, %v7877, 0.0
    %v7880 = vrot.slane %v6076, 4
    %v7881 = vrot.slane %v7812, 4
    %v7884 = vrot.slane %v6437, 3
    %v7885 = vrot.slane %v7815, 3
    %v7888 = vrot.slane %v6771, 2
    %v7889 = vrot.slane %v7817, 2
    %v7892 = vrot.slane %v7819, 1
    %v7894 = vsel %vm1333, %v7880, %v7884
    %v7895 = vsel %vm1333, %v7881, %v7885
    %v7896 = vsel %vm1338, %v7894, %v7888
    %v7897 = vsel %vm1338, %v7895, %v7889
    %v7898 = vsel %vm1343, %v7896, %v7817
    %v7899 = vsel %vm1343, %v7897, %v7892
    %v7900 = vsel %vm322, %v7898, 0.0
    %v7901 = vsel %vm322, %v7899, 0.0
    %v7902 = vsel %vm1352, %v7900, 0.0
    %v7903 = vsel %vm1352, %v7901, 0.0
    %v7906 = vrot.slane %v7878, 3
    %v7907 = vrot.slane %v7879, 3
    %v7912 = vrot.slane %v7902, 7
    %v7913 = vrot.slane %v7903, 7
    %v7916 = vsel %vm1352, %v7852, %v7906
    %v7917 = vsel %vm1352, %v7853, %v7907
    %v7918 = vsel %vm1333, %v7906, %v7912
    %v7919 = vsel %vm1333, %v7907, %v7913
    %v7920 = vld [vmem:[#allocation11] sm:$0xff]
    %v7921 = vld [vmem:[#allocation11 + $0x8] sm:$0xff]
    %v7922 = vld [vmem:[#allocation11 + $0x10] sm:$0xff]
    %v7923 = vld [vmem:[#allocation11 + $0x18] sm:$0xff]
    %v7924 = vld [vmem:[#allocation11 + $0x20] sm:$0xff]
    %v7925 = vld [vmem:[#allocation11 + $0x28] sm:$0xff]
    %v7926 = vld [vmem:[#allocation11 + $0x30] sm:$0xff]
    %v7927 = vld [vmem:[#allocation11 + $0x38] sm:$0xff]
    %v7928 = vld [vmem:[#allocation11 + $0x40] sm:$0xff]
    %v7929 = vld [vmem:[#allocation11 + $0x48] sm:$0xff]
    %v7930 = vld [vmem:[#allocation11 + $0x50] sm:$0xff]
    %v7931 = vld [vmem:[#allocation11 + $0x58] sm:$0xff]
    %v7932 = vld [vmem:[#allocation11 + $0x60] sm:$0xff]
    %v7933 = vld [vmem:[#allocation11 + $0x68] sm:$0xff]
    %v7934 = vld [vmem:[#allocation11 + $0x70] sm:$0xff]
    %v7935 = vld [vmem:[#allocation11 + $0x78] sm:$0xff]
    %v7936 = vld [vmem:[#allocation11 + $0x80] sm:$0xff]
    %v7937 = vld [vmem:[#allocation11 + $0x88] sm:$0xff]
    %v7938 = vld [vmem:[#allocation11 + $0x90] sm:$0xff]
    %v7939 = vld [vmem:[#allocation11 + $0x98] sm:$0xff]
    %v7940 = vld [vmem:[#allocation11 + $0xa0] sm:$0xff]
    %v7941 = vld [vmem:[#allocation11 + $0xa8] sm:$0xff]
    %v7942 = vld [vmem:[#allocation11 + $0xb0] sm:$0xff]
    %v7943 = vld [vmem:[#allocation11 + $0xb8] sm:$0xff]
    %v7944 = vld [vmem:[#allocation11 + $0xc0] sm:$0xff]
    %v7945 = vld [vmem:[#allocation11 + $0xc8] sm:$0xff]
    %v7946 = vld [vmem:[#allocation11 + $0xd0] sm:$0xff]
    %v7947 = vld [vmem:[#allocation11 + $0xd8] sm:$0xff]
    %v7948 = vld [vmem:[#allocation11 + $0xe0] sm:$0xff]
    %v7949 = vld [vmem:[#allocation11 + $0xe8] sm:$0xff]
    %v7950 = vld [vmem:[#allocation11 + $0xf0] sm:$0xff]
    %v7951 = vld [vmem:[#allocation11 + $0xf8] sm:$0xff]
    %7984 = vrot.lane.b32.xlu0 %v7920, 28
    %v7985 = vpop.permute.xlu0 %7984
    %7986 = vrot.lane.b32.xlu0 %v7921, 28
    %v7987 = vpop.permute.xlu0 %7986
    %7988 = vrot.lane.b32.xlu0 %v7922, 28
    %v7989 = vpop.permute.xlu0 %7988
    %7990 = vrot.lane.b32.xlu0 %v7923, 28
    %v7991 = vpop.permute.xlu0 %7990
    %7992 = vrot.lane.b32.xlu0 %v7924, 28
    %v7993 = vpop.permute.xlu0 %7992
    %7994 = vrot.lane.b32.xlu0 %v7925, 28
    %v7995 = vpop.permute.xlu0 %7994
    %7996 = vrot.lane.b32.xlu0 %v7926, 28
    %v7997 = vpop.permute.xlu0 %7996
    %7998 = vrot.lane.b32.xlu0 %v7927, 28
    %v7999 = vpop.permute.xlu0 %7998
    %8000 = vrot.lane.b32.xlu0 %v7928, 28
    %v8001 = vpop.permute.xlu0 %8000
    %8002 = vrot.lane.b32.xlu0 %v7929, 28
    %v8003 = vpop.permute.xlu0 %8002
    %8004 = vrot.lane.b32.xlu0 %v7930, 28
    %v8005 = vpop.permute.xlu0 %8004
    %8006 = vrot.lane.b32.xlu0 %v7931, 28
    %v8007 = vpop.permute.xlu0 %8006
    %8008 = vrot.lane.b32.xlu0 %v7932, 28
    %v8009 = vpop.permute.xlu0 %8008
    %8010 = vrot.lane.b32.xlu0 %v7933, 28
    %v8011 = vpop.permute.xlu0 %8010
    %8012 = vrot.lane.b32.xlu0 %v7934, 28
    %v8013 = vpop.permute.xlu0 %8012
    %8014 = vrot.lane.b32.xlu0 %v7935, 28
    %v8015 = vpop.permute.xlu0 %8014
    %8016 = vrot.lane.b32.xlu0 %v7936, 28
    %v8017 = vpop.permute.xlu0 %8016
    %8018 = vrot.lane.b32.xlu0 %v7937, 28
    %v8019 = vpop.permute.xlu0 %8018
    %8020 = vrot.lane.b32.xlu0 %v7938, 28
    %v8021 = vpop.permute.xlu0 %8020
    %8022 = vrot.lane.b32.xlu0 %v7939, 28
    %v8023 = vpop.permute.xlu0 %8022
    %8024 = vrot.lane.b32.xlu0 %v7940, 28
    %v8025 = vpop.permute.xlu0 %8024
    %8026 = vrot.lane.b32.xlu0 %v7941, 28
    %v8027 = vpop.permute.xlu0 %8026
    %8028 = vrot.lane.b32.xlu0 %v7942, 28
    %v8029 = vpop.permute.xlu0 %8028
    %8030 = vrot.lane.b32.xlu0 %v7943, 28
    %v8031 = vpop.permute.xlu0 %8030
    %8032 = vrot.lane.b32.xlu0 %v7944, 28
    %v8033 = vpop.permute.xlu0 %8032
    %8034 = vrot.lane.b32.xlu0 %v7945, 28
    %v8035 = vpop.permute.xlu0 %8034
    %8036 = vrot.lane.b32.xlu0 %v7946, 28
    %v8037 = vpop.permute.xlu0 %8036
    %8038 = vrot.lane.b32.xlu0 %v7947, 28
    %v8039 = vpop.permute.xlu0 %8038
    %8040 = vrot.lane.b32.xlu0 %v7948, 28
    %v8041 = vpop.permute.xlu0 %8040
    %8042 = vrot.lane.b32.xlu0 %v7949, 28
    %v8043 = vpop.permute.xlu0 %8042
    %8044 = vrot.lane.b32.xlu0 %v7950, 28
    %v8045 = vpop.permute.xlu0 %8044
    %8046 = vrot.lane.b32.xlu0 %v7951, 28
    %v8047 = vpop.permute.xlu0 %8046
    %8080 = vmatprep.subr.mxu0 0.0
    %8081 = vmatpush1.msra.mxu0 %v7985
    %8082 = vmatprep.subr.mxu0 0.0
    %8083 = vmatpush1.msra.mxu0 %v7987
    %8084 = vmatprep.subr.mxu0 0.0
    %8085 = vmatpush1.msra.mxu0 %v7989
    %8086 = vmatprep.subr.mxu0 0.0
    %8087 = vmatpush1.msra.mxu0 %v7991
    %8088 = vmatprep.subr.mxu0 0.0
    %8089 = vmatpush1.msra.mxu0 %v7993
    %8090 = vmatprep.subr.mxu0 0.0
    %8091 = vmatpush1.msra.mxu0 %v7995
    %8092 = vmatprep.subr.mxu0 0.0
    %8093 = vmatpush1.msra.mxu0 %v7997
    %8094 = vmatprep.subr.mxu0 0.0
    %8095 = vmatpush1.msra.mxu0 %v7999
    %8096 = vmatprep.subr.mxu0 0.0
    %8097 = vmatpush1.msra.mxu0 %v8001
    %8098 = vmatprep.subr.mxu0 0.0
    %8099 = vmatpush1.msra.mxu0 %v8003
    %8100 = vmatprep.subr.mxu0 0.0
    %8101 = vmatpush1.msra.mxu0 %v8005
    %8102 = vmatprep.subr.mxu0 0.0
    %8103 = vmatpush1.msra.mxu0 %v8007
    %8104 = vmatprep.subr.mxu0 0.0
    %8105 = vmatpush1.msra.mxu0 %v8009
    %8106 = vmatprep.subr.mxu0 0.0
    %8107 = vmatpush1.msra.mxu0 %v8011
    %8108 = vmatprep.subr.mxu0 0.0
    %8109 = vmatpush1.msra.mxu0 %v8013
    %8110 = vmatprep.subr.mxu0 0.0
    %8111 = vmatpush1.msra.mxu0 %v8015
    %8112 = vmatprep.subr.mxu0 0.0
    %8113 = vmatpush1.msra.mxu0 %v8017
    %8114 = vmatprep.subr.mxu0 0.0
    %8115 = vmatpush1.msra.mxu0 %v8019
    %8116 = vmatprep.subr.mxu0 0.0
    %8117 = vmatpush1.msra.mxu0 %v8021
    %8118 = vmatprep.subr.mxu0 0.0
    %8119 = vmatpush1.msra.mxu0 %v8023
    %8120 = vmatprep.subr.mxu0 0.0
    %8121 = vmatpush1.msra.mxu0 %v8025
    %8122 = vmatprep.subr.mxu0 0.0
    %8123 = vmatpush1.msra.mxu0 %v8027
    %8124 = vmatprep.subr.mxu0 0.0
    %8125 = vmatpush1.msra.mxu0 %v8029
    %8126 = vmatprep.subr.mxu0 0.0
    %8127 = vmatpush1.msra.mxu0 %v8031
    %8128 = vmatprep.subr.mxu0 0.0
    %8129 = vmatpush1.msra.mxu0 %v8033
    %8130 = vmatprep.subr.mxu0 0.0
    %8131 = vmatpush1.msra.mxu0 %v8035
    %8132 = vmatprep.subr.mxu0 0.0
    %8133 = vmatpush1.msra.mxu0 %v8037
    %8134 = vmatprep.subr.mxu0 0.0
    %8135 = vmatpush1.msra.mxu0 %v8039
    %8136 = vmatprep.subr.mxu0 0.0
    %8137 = vmatpush1.msra.mxu0 %v8041
    %8138 = vmatprep.subr.mxu0 0.0
    %8139 = vmatpush1.msra.mxu0 %v8043
    %8140 = vmatprep.subr.mxu0 0.0
    %8141 = vmatpush1.msra.mxu0 %v8045
    %8142 = vmatprep.subr.mxu0 0.0
    %8143 = vmatpush1.msra.mxu0 %v8047
    %8144 = vmatprep.mubr.f32.mxu0 %v7917
    %8145 = vmatmul.mubr.f32.gmra.mrb[0].mxu0 %v7916
    %v8146 = vpop.f32.mrb[0].mxu0
    %v8147 = vadd.f32 0.0, %v8146
    %v8148 = vpop.f32.mrb[0].mxu0
    %8149 = vmatprep.mubr.f32.mxu0 %v7919
    %8150 = vmatmul.mubr.f32.gmra.mrb[0].mxu0 %v7918
    %v8151 = vpop.f32.mrb[0].mxu0
    %v8152 = vadd.f32 0.0, %v8151
    %v8153 = vpop.f32.mrb[0].mxu0
    %8154 = vdwg.mxu0
    %vm8155 = vcmask 7168
    %v8156 = vsel %vm8155, %v8147, -inf
    %vm8157 = vcmask 3072
    %v8158 = vsel %vm8157, %v8152, -inf
    %v8159 = vmax.f32 %v8156, %v8158
    %v8160 = vrot.slane %v8159, 4
    %v8161 = vmax.f32 %v8159, %v8160
    %v8162 = vrot.slane %v8161, 2
    %v8163 = vmax.f32 %v8161, %v8162
    %v8164 = vrot.slane %v8163, 1
    %v8165 = vmax.f32 %v8163, %v8164
    %v8166 = vsub.f32 %v8147, %v8165
    %v8167 = vsub.f32 %v8152, %v8165
    %v8168 = vmul.f32 %v8166, 1.442695
    %v8169 = vpow.pop %v8168
    %v8170 = vmul.f32 %v8167, 1.442695
    %v8171 = vpow.pop %v8170
    %v8172 = vsel %vm8155, %v8169, 0.0
    %v8173 = vsel %vm8157, %v8171, 0.0
    %v8174 = vadd.f32 %v8172, %v8173
    %v8175 = vrot.slane %v8174, 4
    %v8176 = vadd.f32 %v8174, %v8175
    %v8177 = vrot.slane %v8176, 2
    %v8178 = vadd.f32 %v8176, %v8177
    %v8179 = vrot.slane %v8178, 1
    %v8180 = vadd.f32 %v8178, %v8179
    %v8181 = vrcp.pop %v8180
    %v8182 = vmul.f32 %v8169, %v8181
    %v8183 = vmul.f32 %v8171, %v8181
    %8184 = vst.msk [vmem:[%s9] sm:$0xff] %vm8155, %v8182
    %8185 = vst.msk [vmem:[%s9 + $0x8] sm:$0xf] %vm8157, %v8183
    %8187 = vset.pattern.permute.xlu0 0
    %8188 = vperm.xlu0 %8187, %v8182
    %v8189 = vpop.permute.xlu0 %8188
    %8192 = vset.pattern.permute.xlu0 0
    %8193 = vperm.xlu0 %8192, %v8183
    %v8194 = vpop.permute.xlu0 %8193
    %v8196 = vmul.f32 %v7916, %v8189
    %v8197 = vmul.f32 %v7917, %v8189
    %v8198 = vmul.f32 %v7918, %v8194
    %v8199 = vmul.f32 %v7919, %v8194
    %v8200 = vsel %vm322, %v8198, 0.0
    %v8201 = vadd.f32 %v8196, %v8200
    %v8202 = vrot.slane %v8201, 4
    %v8203 = vadd.f32 %v8201, %v8202
    %v8204 = vrot.slane %v8203, 2
    %v8205 = vadd.f32 %v8203, %v8204
    %v8206 = vrot.slane %v8205, 1
    %v8207 = vadd.f32 %v8205, %v8206
    %v8208 = vsel %vm322, %v8199, 0.0
    %v8209 = vadd.f32 %v8197, %v8208
    %v8210 = vrot.slane %v8209, 4
    %v8211 = vadd.f32 %v8209, %v8210
    %v8212 = vrot.slane %v8211, 2
    %v8213 = vadd.f32 %v8211, %v8212
    %v8214 = vrot.slane %v8213, 1
    %v8215 = vadd.f32 %v8213, %v8214
    %v8216 = vld [vmem:[#allocation11] sm:$0xff]
    %v8217 = vld [vmem:[#allocation11 + $0x8] sm:$0xff]
    %v8218 = vld [vmem:[#allocation11 + $0x10] sm:$0xff]
    %v8219 = vld [vmem:[#allocation11 + $0x18] sm:$0xff]
    %v8220 = vld [vmem:[#allocation11 + $0x20] sm:$0xff]
    %v8221 = vld [vmem:[#allocation11 + $0x28] sm:$0xff]
    %v8222 = vld [vmem:[#allocation11 + $0x30] sm:$0xff]
    %v8223 = vld [vmem:[#allocation11 + $0x38] sm:$0xff]
    %v8224 = vld [vmem:[#allocation11 + $0x40] sm:$0xff]
    %v8225 = vld [vmem:[#allocation11 + $0x48] sm:$0xff]
    %v8226 = vld [vmem:[#allocation11 + $0x50] sm:$0xff]
    %v8227 = vld [vmem:[#allocation11 + $0x58] sm:$0xff]
    %v8228 = vld [vmem:[#allocation11 + $0x60] sm:$0xff]
    %v8229 = vld [vmem:[#allocation11 + $0x68] sm:$0xff]
    %v8230 = vld [vmem:[#allocation11 + $0x70] sm:$0xff]
    %v8231 = vld [vmem:[#allocation11 + $0x78] sm:$0xff]
    %v8232 = vld [vmem:[#allocation11 + $0x80] sm:$0xff]
    %v8233 = vld [vmem:[#allocation11 + $0x88] sm:$0xff]
    %v8234 = vld [vmem:[#allocation11 + $0x90] sm:$0xff]
    %v8235 = vld [vmem:[#allocation11 + $0x98] sm:$0xff]
    %v8236 = vld [vmem:[#allocation11 + $0xa0] sm:$0xff]
    %v8237 = vld [vmem:[#allocation11 + $0xa8] sm:$0xff]
    %v8238 = vld [vmem:[#allocation11 + $0xb0] sm:$0xff]
    %v8239 = vld [vmem:[#allocation11 + $0xb8] sm:$0xff]
    %v8240 = vld [vmem:[#allocation11 + $0xc0] sm:$0xff]
    %v8241 = vld [vmem:[#allocation11 + $0xc8] sm:$0xff]
    %v8242 = vld [vmem:[#allocation11 + $0xd0] sm:$0xff]
    %v8243 = vld [vmem:[#allocation11 + $0xd8] sm:$0xff]
    %v8244 = vld [vmem:[#allocation11 + $0xe0] sm:$0xff]
    %v8245 = vld [vmem:[#allocation11 + $0xe8] sm:$0xff]
    %v8246 = vld [vmem:[#allocation11 + $0xf0] sm:$0xff]
    %v8247 = vld [vmem:[#allocation11 + $0xf8] sm:$0xff]
    %v8248 = vld [vmem:[#allocation13 + $0x68] sm:$0x1]
    %v8249 = vld [vmem:[#allocation13] sm:$0xff]
    %v8250 = vld [vmem:[#allocation13 + $0x8] sm:$0xff]
    %v8251 = vld [vmem:[#allocation13 + $0x10] sm:$0xff]
    %v8252 = vld [vmem:[#allocation13 + $0x18] sm:$0xff]
    %v8253 = vld [vmem:[#allocation13 + $0x20] sm:$0xff]
    %v8254 = vld [vmem:[#allocation13 + $0x28] sm:$0xff]
    %v8255 = vld [vmem:[#allocation13 + $0x30] sm:$0xff]
    %v8256 = vld [vmem:[#allocation13 + $0x38] sm:$0xff]
    %v8257 = vld [vmem:[#allocation13 + $0x40] sm:$0xff]
    %v8258 = vld [vmem:[#allocation13 + $0x48] sm:$0xff]
    %v8259 = vld [vmem:[#allocation13 + $0x50] sm:$0xff]
    %v8260 = vld [vmem:[#allocation13 + $0x58] sm:$0xff]
    %v8261 = vld [vmem:[#allocation13 + $0x60] sm:$0xf]
    %v8262 = vld [vmem:[#allocation13 + $0x69] sm:$0x1]
    %v8263 = vld [vmem:[#allocation13 + $0x30] sm:$0x3]
    %v8264 = vld [vmem:[#allocation13 + $0x6a] sm:$0x1]
    %8265 = vmatprep.subr.mxu0 0.0
    %8266 = vmatpush1.msra.mxu0 %v8216
    %8267 = vmatprep.subr.mxu0 0.0
    %8268 = vmatpush1.msra.mxu0 %v8217
    %8269 = vmatprep.subr.mxu0 0.0
    %8270 = vmatpush1.msra.mxu0 %v8218
    %8271 = vmatprep.subr.mxu0 0.0
    %8272 = vmatpush1.msra.mxu0 %v8219
    %8273 = vmatprep.subr.mxu0 0.0
    %8274 = vmatpush1.msra.mxu0 %v8220
    %8275 = vmatprep.subr.mxu0 0.0
    %8276 = vmatpush1.msra.mxu0 %v8221
    %8277 = vmatprep.subr.mxu0 0.0
    %8278 = vmatpush1.msra.mxu0 %v8222
    %8279 = vmatprep.subr.mxu0 0.0
    %8280 = vmatpush1.msra.mxu0 %v8223
    %8281 = vmatprep.subr.mxu0 0.0
    %8282 = vmatpush1.msra.mxu0 %v8224
    %8283 = vmatprep.subr.mxu0 0.0
    %8284 = vmatpush1.msra.mxu0 %v8225
    %8285 = vmatprep.subr.mxu0 0.0
    %8286 = vmatpush1.msra.mxu0 %v8226
    %8287 = vmatprep.subr.mxu0 0.0
    %8288 = vmatpush1.msra.mxu0 %v8227
    %8289 = vmatprep.subr.mxu0 0.0
    %8290 = vmatpush1.msra.mxu0 %v8228
    %8291 = vmatprep.subr.mxu0 0.0
    %8292 = vmatpush1.msra.mxu0 %v8229
    %8293 = vmatprep.subr.mxu0 0.0
    %8294 = vmatpush1.msra.mxu0 %v8230
    %8295 = vmatprep.subr.mxu0 0.0
    %8296 = vmatpush1.msra.mxu0 %v8231
    %8297 = vmatprep.subr.mxu0 0.0
    %8298 = vmatpush1.msra.mxu0 %v8232
    %8299 = vmatprep.subr.mxu0 0.0
    %8300 = vmatpush1.msra.mxu0 %v8233
    %8301 = vmatprep.subr.mxu0 0.0
    %8302 = vmatpush1.msra.mxu0 %v8234
    %8303 = vmatprep.subr.mxu0 0.0
    %8304 = vmatpush1.msra.mxu0 %v8235
    %8305 = vmatprep.subr.mxu0 0.0
    %8306 = vmatpush1.msra.mxu0 %v8236
    %8307 = vmatprep.subr.mxu0 0.0
    %8308 = vmatpush1.msra.mxu0 %v8237
    %8309 = vmatprep.subr.mxu0 0.0
    %8310 = vmatpush1.msra.mxu0 %v8238
    %8311 = vmatprep.subr.mxu0 0.0
    %8312 = vmatpush1.msra.mxu0 %v8239
    %8313 = vmatprep.subr.mxu0 0.0
    %8314 = vmatpush1.msra.mxu0 %v8240
    %8315 = vmatprep.subr.mxu0 0.0
    %8316 = vmatpush1.msra.mxu0 %v8241
    %8317 = vmatprep.subr.mxu0 0.0
    %8318 = vmatpush1.msra.mxu0 %v8242
    %8319 = vmatprep.subr.mxu0 0.0
    %8320 = vmatpush1.msra.mxu0 %v8243
    %8321 = vmatprep.subr.mxu0 0.0
    %8322 = vmatpush1.msra.mxu0 %v8244
    %8323 = vmatprep.subr.mxu0 0.0
    %8324 = vmatpush1.msra.mxu0 %v8245
    %8325 = vmatprep.subr.mxu0 0.0
    %8326 = vmatpush1.msra.mxu0 %v8246
    %8327 = vmatprep.subr.mxu0 0.0
    %8328 = vmatpush1.msra.mxu0 %v8247
    %8329 = vmatprep.mubr.f32.mxu0 %v8215
    %8330 = vmatmul.mubr.f32.gmra.mrb[0].mxu0 %v8207
    %v8331 = vpop.f32.mrb[0].mxu0
    %v8332 = vadd.f32 %v8248, %v8331
    %v8333 = vpop.f32.mrb[0].mxu0
    %8334 = vdwg.mxu0
    %v8335 = vmax.f32 %v8332, 0.0
    %vm8336 = vcmask 818176
    %v8338 = vsel %vm8336, %v8335, 0
    %v8341 = vsel %vm322, %v8261, 0
    %8343 = vmatprep.subr.mxu0 0.0
    %8344 = vmatpush1.msra.mxu0 %v8249
    %8345 = vmatprep.subr.mxu0 0.0
    %8346 = vmatpush1.msra.mxu0 %v8250
    %8347 = vmatprep.subr.mxu0 0.0
    %8348 = vmatpush1.msra.mxu0 %v8251
    %8349 = vmatprep.subr.mxu0 0.0
    %8350 = vmatpush1.msra.mxu0 %v8252
    %8351 = vmatprep.subr.mxu0 0.0
    %8352 = vmatpush1.msra.mxu0 %v8253
    %8353 = vmatprep.subr.mxu0 0.0
    %8354 = vmatpush1.msra.mxu0 %v8254
    %8355 = vmatprep.subr.mxu0 0.0
    %8356 = vmatpush1.msra.mxu0 %v8255
    %8357 = vmatprep.subr.mxu0 0.0
    %8358 = vmatpush1.msra.mxu0 %v8256
    %8359 = vmatprep.subr.mxu0 0.0
    %8360 = vmatpush1.msra.mxu0 %v8257
    %8361 = vmatprep.subr.mxu0 0.0
    %8362 = vmatpush1.msra.mxu0 %v8258
    %8363 = vmatprep.subr.mxu0 0.0
    %8364 = vmatpush1.msra.mxu0 %v8259
    %8365 = vmatprep.subr.mxu0 0.0
    %8366 = vmatpush1.msra.mxu0 %v8260
    %8367 = vmatprep.subr.mxu0 0.0
    %8368 = vmatpush1.msra.mxu0 %v8341
    %8369 = vmatprep.subr.mxu0 0.0
    %8370 = vmatpush1.msra.mxu0 0.0
    %8371 = vmatprep.subr.mxu0 0.0
    %8372 = vmatpush1.msra.mxu0 0.0
    %8373 = vmatprep.subr.mxu0 0.0
    %8374 = vmatpush1.msra.mxu0 0.0
    %8375 = vmatprep.subr.mxu0 0.0
    %8376 = vmatpush1.msra.mxu0 0.0
    %8377 = vmatprep.subr.mxu0 0.0
    %8378 = vmatpush1.msra.mxu0 0.0
    %8379 = vmatprep.subr.mxu0 0.0
    %8380 = vmatpush1.msra.mxu0 0.0
    %8381 = vmatprep.subr.mxu0 0.0
    %8382 = vmatpush1.msra.mxu0 0.0
    %8383 = vmatprep.subr.mxu0 0.0
    %8384 = vmatpush1.msra.mxu0 0.0
    %8385 = vmatprep.subr.mxu0 0.0
    %8386 = vmatpush1.msra.mxu0 0.0
    %8387 = vmatprep.subr.mxu0 0.0
    %8388 = vmatpush1.msra.mxu0 0.0
    %8389 = vmatprep.subr.mxu0 0.0
    %8390 = vmatpush1.msra.mxu0 0.0
    %8391 = vmatprep.subr.mxu0 0.0
    %8392 = vmatpush1.msra.mxu0 0.0
    %8393 = vmatprep.subr.mxu0 0.0
    %8394 = vmatpush1.msra.mxu0 0.0
    %8395 = vmatprep.subr.mxu0 0.0
    %8396 = vmatpush1.msra.mxu0 0.0
    %8397 = vmatprep.subr.mxu0 0.0
    %8398 = vmatpush1.msra.mxu0 0.0
    %8399 = vmatprep.subr.mxu0 0.0
    %8400 = vmatpush1.msra.mxu0 0.0
    %8401 = vmatprep.subr.mxu0 0.0
    %8402 = vmatpush1.msra.mxu0 0.0
    %8403 = vmatprep.subr.mxu0 0.0
    %8404 = vmatpush1.msra.mxu0 0.0
    %8405 = vmatprep.subr.mxu0 0.0
    %8406 = vmatpush1.msra.mxu0 0.0
    %8407 = vmatprep.mubr.f32.mxu0 0.0
    %8408 = vmatmul.mubr.f32.gmra.mrb[0].mxu0 %v8338
    %v8409 = vpop.f32.mrb[0].mxu0
    %v8410 = vadd.f32 %v8262, %v8409
    %v8411 = vpop.f32.mrb[0].mxu0
    %8412 = vdwg.mxu0
    %8420 = vrot.lane.b32.xlu0 %v8249, 78
    %v8421 = vpop.permute.xlu0 %8420
    %8422 = vrot.lane.b32.xlu0 %v8250, 78
    %v8423 = vpop.permute.xlu0 %8422
    %8424 = vrot.lane.b32.xlu0 %v8251, 78
    %v8425 = vpop.permute.xlu0 %8424
    %8426 = vrot.lane.b32.xlu0 %v8252, 78
    %v8427 = vpop.permute.xlu0 %8426
    %8428 = vrot.lane.b32.xlu0 %v8253, 78
    %v8429 = vpop.permute.xlu0 %8428
    %8430 = vrot.lane.b32.xlu0 %v8254, 78
    %v8431 = vpop.permute.xlu0 %8430
    %8432 = vrot.lane.b32.xlu0 %v8263, 78
    %v8433 = vpop.permute.xlu0 %8432
    %vm8440 = vcmask 408576
    %v8442 = vsel %vm8440, %v8410, 0
    %v8444 = vsel %vm1338, %v8433, 0
    %8446 = vmatprep.subr.mxu0 0.0
    %8447 = vmatpush1.msra.mxu0 %v8421
    %8448 = vmatprep.subr.mxu0 0.0
    %8449 = vmatpush1.msra.mxu0 %v8423
    %8450 = vmatprep.subr.mxu0 0.0
    %8451 = vmatpush1.msra.mxu0 %v8425
    %8452 = vmatprep.subr.mxu0 0.0
    %8453 = vmatpush1.msra.mxu0 %v8427
    %8454 = vmatprep.subr.mxu0 0.0
    %8455 = vmatpush1.msra.mxu0 %v8429
    %8456 = vmatprep.subr.mxu0 0.0
    %8457 = vmatpush1.msra.mxu0 %v8431
    %8458 = vmatprep.subr.mxu0 0.0
    %8459 = vmatpush1.msra.mxu0 %v8444
    %8460 = vmatprep.subr.mxu0 0.0
    %8461 = vmatpush1.msra.mxu0 0.0
    %8462 = vmatprep.subr.mxu0 0.0
    %8463 = vmatpush1.msra.mxu0 0.0
    %8464 = vmatprep.subr.mxu0 0.0
    %8465 = vmatpush1.msra.mxu0 0.0
    %8466 = vmatprep.subr.mxu0 0.0
    %8467 = vmatpush1.msra.mxu0 0.0
    %8468 = vmatprep.subr.mxu0 0.0
    %8469 = vmatpush1.msra.mxu0 0.0
    %8470 = vmatprep.subr.mxu0 0.0
    %8471 = vmatpush1.msra.mxu0 0.0
    %8472 = vmatprep.subr.mxu0 0.0
    %8473 = vmatpush1.msra.mxu0 0.0
    %8474 = vmatprep.subr.mxu0 0.0
    %8475 = vmatpush1.msra.mxu0 0.0
    %8476 = vmatprep.subr.mxu0 0.0
    %8477 = vmatpush1.msra.mxu0 0.0
    %8478 = vmatprep.subr.mxu0 0.0
    %8479 = vmatpush1.msra.mxu0 0.0
    %8480 = vmatprep.subr.mxu0 0.0
    %8481 = vmatpush1.msra.mxu0 0.0
    %8482 = vmatprep.subr.mxu0 0.0
    %8483 = vmatpush1.msra.mxu0 0.0
    %8484 = vmatprep.subr.mxu0 0.0
    %8485 = vmatpush1.msra.mxu0 0.0
    %8486 = vmatprep.subr.mxu0 0.0
    %8487 = vmatpush1.msra.mxu0 0.0
    %8488 = vmatprep.subr.mxu0 0.0
    %8489 = vmatpush1.msra.mxu0 0.0
    %8490 = vmatprep.subr.mxu0 0.0
    %8491 = vmatpush1.msra.mxu0 0.0
    %8492 = vmatprep.subr.mxu0 0.0
    %8493 = vmatpush1.msra.mxu0 0.0
    %8494 = vmatprep.subr.mxu0 0.0
    %8495 = vmatpush1.msra.mxu0 0.0
    %8496 = vmatprep.subr.mxu0 0.0
    %8497 = vmatpush1.msra.mxu0 0.0
    %8498 = vmatprep.subr.mxu0 0.0
    %8499 = vmatpush1.msra.mxu0 0.0
    %8500 = vmatprep.subr.mxu0 0.0
    %8501 = vmatpush1.msra.mxu0 0.0
    %8502 = vmatprep.subr.mxu0 0.0
    %8503 = vmatpush1.msra.mxu0 0.0
    %8504 = vmatprep.subr.mxu0 0.0
    %8505 = vmatpush1.msra.mxu0 0.0
    %8506 = vmatprep.subr.mxu0 0.0
    %8507 = vmatpush1.msra.mxu0 0.0
    %8508 = vmatprep.subr.mxu0 0.0
    %8509 = vmatpush1.msra.mxu0 0.0
    %8510 = vmatprep.mubr.f32.mxu0 0.0
    %8511 = vmatmul.mubr.f32.gmra.mrb[0].mxu0 %v8442
    %v8512 = vpop.f32.mrb[0].mxu0
    %v8513 = vadd.f32 %v8264, %v8512
    %v8514 = vpop.f32.mrb[0].mxu0
    %8515 = vdwg.mxu0
    %vm8516 = vcmask 24576
    %8517 = vst.msk [vmem:[#allocation14] sm:$0x1] %vm8516, %v8513
    // Predicated region
    $region46: #{tpu_custom_call.1} parent=1 // pred_check
      _
    $region47: #{tpu_custom_call.1} parent=1 // pred_check_branch
      %8519 = sbr.rel (0) target = $region49
    $region48: #{tpu_custom_call.1} parent=1 // pred_region
      %s8521 = ssub.s32 16, 16
      %8522 = vsyncadd [#allocation7], %s8521
      %s8524 = sshll.u32 [#allocation14], 4
      %s8525 = int_to_ptr.vmem [resolvable:$true] %s8524
      %8527 = dma.vmem_to_hbm [thread:$0]  %s8525, 16, %s8, [#allocation7]
    $region49: #{tpu_custom_call.1} parent=1 // pred_fallthru
      _
    // Predicated region
    $region50: #{tpu_custom_call.1} parent=1 // pred_check
      _
    $region51: #{tpu_custom_call.1} parent=1 // pred_check_branch
      %8529 = sbr.rel (0) target = $region53
    $region52: #{tpu_custom_call.1} parent=1 // pred_region
      _
    $region53: #{tpu_custom_call.1} parent=1 // pred_fallthru
      _
    // Predicated region
    $region54: #{tpu_custom_call.1} parent=1 // pred_check
      _
    $region55: #{tpu_custom_call.1} parent=1 // pred_check_branch
      %8531 = sbr.rel (0) target = $region57
    $region56: #{tpu_custom_call.1} parent=1 // pred_region
      %8532 = dma.done [#allocation7], 16
    $region57: #{tpu_custom_call.1} parent=1 // pred_fallthru
      _
    // Predicated region
    $region58: #{tpu_custom_call.1} parent=1 // pred_check
      _
    $region59: #{tpu_custom_call.1} parent=1 // pred_check_branch
      %8534 = sbr.rel (0) target = $region61
    $region60: #{tpu_custom_call.1} parent=1 // pred_region
      _
    $region61: #{tpu_custom_call.1} parent=1 // pred_fallthru
      _
    %8535 = vsyncpa [#allocation6], 1
    %8536 = vsyncpa [#allocation9], 1
    %8537 = vsyncpa [#allocation12], 1
    %8538 = vsyncpa [#allocation7], 1
  %8539 = vsyncmov [#allocation4]
  %s8540 = vpop.sfrf %8539
  %p8541 = scmp.eq.s32.totalorder %s8540, 0
  %p8542 = pneg %p8541
  %8544 = shalt.err (%p8542)
  %s8545 = scalar_lea.sflag [#allocation4], 1
  %8546 = vsyncmov %s8545
  %s8547 = vpop.sfrf %8546
  %p8548 = scmp.eq.s32.totalorder %s8547, 0
  %p8549 = pneg %p8548
  %8551 = shalt.err (%p8549)

</llo_original>
